<compile_context>
chip_gen: v6e
topology: v6e:2x2x1
jax: 0.10.0
libtpu: 0.0.40
codegen_flags: <defaults>
</compile_context>

<pallas_src>
import functools

import jax
import jax.numpy as jnp
import numpy as np
from jax.experimental import pallas as pl
from jax.experimental.pallas import tpu as pltpu

_EPS = 1e-5      # PyTorch BatchNorm2d default
_LEAKY = 0.2
_VMEM = pl.BlockSpec(memory_space=pltpu.MemorySpace.VMEM)


# ------------------------------ configuration ------------------------------ #

def _conv_out(sz, k, s, p):
    return (sz + 2 * p - k) // s + 1


def make_configs(in_ch, ndf, n_layers, H, W):
    """Static per-layer shape/config table mirroring the PyTorch Discriminator."""
    cfgs = []
    h, w = H, W
    cin, cout = in_ch, ndf
    ho, wo = _conv_out(h, 4, 2, 1), _conv_out(w, 4, 2, 1)
    cfgs.append(dict(k=4, s=2, p=1, cin=cin, cout=cout, ho=ho, wo=wo, bn=False, act=True))
    h, w = ho, wo
    for _ in range(1, n_layers):
        cin, cout = cout, cout * 2
        ho, wo = _conv_out(h, 4, 2, 1), _conv_out(w, 4, 2, 1)
        cfgs.append(dict(k=4, s=2, p=1, cin=cin, cout=cout, ho=ho, wo=wo, bn=True, act=True))
        h, w = ho, wo
    ho, wo = _conv_out(h, 3, 1, 1), _conv_out(w, 3, 1, 1)
    cfgs.append(dict(k=3, s=1, p=1, cin=cout, cout=1, ho=ho, wo=wo, bn=False, act=False))
    return cfgs


# ------------------------------ fused kernel ------------------------------- #

def _make_kernel(cfgs, N):
    """Build the fused forward kernel for a static list of layer configs."""
    n_layers = len(cfgs)
    assert cfgs[-1]['cout'] == 1, "final PatchGAN conv must have a single output channel"

    def kernel(*refs):
        it = iter(refs)
        x_ref = next(it)                      # pre-padded NHWC input, f32, VMEM
        layer_refs = []
        for cfg in cfgs:
            w_ref = next(it)
            if cfg['bn']:
                layer_refs.append((w_ref, next(it), next(it)))   # w, gamma, beta
            else:
                layer_refs.append((w_ref, next(it)))             # w, bias
        o_ref = next(it)                      # (N*Ho*Wo, 1) f32 output
        scratches = list(it)                  # zero-padded activation scratches, f32

        cur = x_ref
        for li, cfg in enumerate(cfgs):
            k, s = cfg['k'], cfg['s']
            ho, wo, cin, cout = cfg['ho'], cfg['wo'], cfg['cin'], cfg['cout']
            M = N * ho * wo

            def tap(dy, dx, src=cur, ho=ho, wo=wo, s=s, M=M, cin=cin):
                # Shifted strided window of the padded activation:
                # rows dy + s*[0,ho), cols dx + s*[0,wo)  ->  (N, ho, wo, cin) -> (M, cin)
                ih = pl.ds(dy, ho) if s == 1 else pl.ds(dy, ho, s)
                iw = pl.ds(dx, wo) if s == 1 else pl.ds(dx, wo, s)
                return src[:, ih, iw, :].reshape(M, cin)

            if li == n_layers - 1:
                # Final 3x3 conv, Cout=1: VPU multiply-accumulate + one lane reduction
                # (a single-column MXU matmul would use <1% of the array).
                w_ref, b_ref = layer_refs[li]
                acc = jnp.zeros((M, cin), jnp.float32)
                for dy in range(k):
                    for dx in range(k):
                        acc = acc + tap(dy, dx) * w_ref[dy * k + dx]     # (M,cin)*(1,cin)
                o_ref[...] = jnp.sum(acc, axis=-1, keepdims=True) + b_ref[...]
            else:
                # Conv as k*k accumulating MXU matmuls, bf16 operands / f32 accumulation.
                w_ref = layer_refs[li][0]
                acc = jnp.zeros((M, cout), jnp.float32)
                for dy in range(k):
                    for dx in range(k):
                        acc = acc + jnp.dot(tap(dy, dx).astype(jnp.bfloat16),
                                            w_ref[dy * k + dx],
                                            preferred_element_type=jnp.float32)
                if cfg['bn']:
                    # Training-mode BatchNorm (biased variance) via one-pass stats,
                    # folded into a single scale/shift. Conv bias omitted: it is
                    # exactly cancelled by the mean subtraction.
                    _, g_ref, beta_ref = layer_refs[li]
                    mean = jnp.mean(acc, axis=0, keepdims=True)
                    var = jnp.mean(acc * acc, axis=0, keepdims=True) - mean * mean
                    scale = g_ref[...] * jax.lax.rsqrt(var + _EPS)
                    y = acc * scale + (beta_ref[...] - mean * scale)
                else:
                    y = acc + layer_refs[li][1][...]
                y = jnp.where(y >= 0, y, _LEAKY * y)                     # LeakyReLU(0.2)

                # Write into the interior of the next layer's zero-padded VMEM scratch;
                # the activation never leaves the chip.
                nxt = scratches[li]
                pn = cfgs[li + 1]['p']
                nxt[...] = jnp.zeros_like(nxt)
                nxt[:, pn:pn + ho, pn:pn + wo, :] = y.reshape(N, ho, wo, cout)
                cur = nxt

    return kernel


# -------------------------------- wrapper ---------------------------------- #

def discriminator_forward(x_nchw, params, cfgs):
    """NCHW input -> NCHW output; the entire network runs in one fused Pallas kernel."""
    N = x_nchw.shape[0]
    p0 = cfgs[0]['p']
    x = jnp.transpose(x_nchw, (0, 2, 3, 1)).astype(jnp.float32)          # NHWC
    xp = jnp.pad(x, ((0, 0), (p0, p0), (p0, p0), (0, 0)))                # pad layer-0 input once

    flat_inputs = [xp]
    for cfg, lp in zip(cfgs, params):
        flat_inputs.append(lp['w'])
        if cfg['bn']:
            flat_inputs.extend([lp['gamma'], lp['beta']])
        else:
            flat_inputs.append(lp['b'])

    # One zero-padded VMEM scratch per intermediate activation (stays on-chip).
    scratch = []
    for li in range(len(cfgs) - 1):
        cfg, pn = cfgs[li], cfgs[li + 1]['p']
        scratch.append(pltpu.VMEM(
            (N, cfg['ho'] + 2 * pn, cfg['wo'] + 2 * pn, cfg['cout']), jnp.float32))

    last = cfgs[-1]
    out = pl.pallas_call(
        _make_kernel(cfgs, N),
        out_shape=jax.ShapeDtypeStruct((N * last['ho'] * last['wo'], 1), jnp.float32),
        in_specs=[_VMEM] * len(flat_inputs),
        out_specs=_VMEM,
        scratch_shapes=scratch,
    )(*flat_inputs)

    out = out.reshape(N, last['ho'], last['wo'], 1)
    return jnp.transpose(out, (0, 3, 1, 2))                              # back to NCHW


# ----------------------------- parameter setup ------------------------------ #

def init_params(key, cfgs):
    """PyTorch-default Conv2d/BN init; weights pre-arranged ONCE into kernel layouts."""
    params = []
    keys = jax.random.split(key, len(cfgs))
    n_last = len(cfgs) - 1
    for li, (cfg, kk) in enumerate(zip(cfgs, keys)):
        k, cin, cout = cfg['k'], cfg['cin'], cfg['cout']
        kw, kb = jax.random.split(kk)
        bound = (cin * k * k) ** -0.5
        w_pt = jax.random.uniform(kw, (cout, cin, k, k), jnp.float32, -bound, bound)
        b_pt = jax.random.uniform(kb, (cout,), jnp.float32, -bound, bound)
        if li == n_last:
            # (1, Cin, k, k) -> (k*k, 1, Cin), f32 (VPU path for the 1-channel head)
            p = dict(w=jnp.transpose(w_pt, (2, 3, 0, 1)).reshape(k * k, 1, cin),
                     b=b_pt.reshape(1, 1))
        elif cfg['bn']:
            # Conv bias before BatchNorm is mathematically cancelled -> not materialized.
            p = dict(w=jnp.transpose(w_pt, (2, 3, 1, 0)).reshape(k * k, cin, cout)
                     .astype(jnp.bfloat16),
                     gamma=jnp.ones((1, cout), jnp.float32),
                     beta=jnp.zeros((1, cout), jnp.float32))
        else:
            p = dict(w=jnp.transpose(w_pt, (2, 3, 1, 0)).reshape(k * k, cin, cout)
                     .astype(jnp.bfloat16),
                     b=b_pt.reshape(1, cout))
        params.append(p)
    return params


# ------------------------- pure-JAX reference (check) ----------------------- #

def reference_forward(x_nchw, params, cfgs):
    x = jnp.transpose(x_nchw, (0, 2, 3, 1)).astype(jnp.float32)
    n_last = len(cfgs) - 1
    for li, (cfg, p) in enumerate(zip(cfgs, params)):
        k, cin, cout = cfg['k'], cfg['cin'], cfg['cout']
        if li == n_last:
            w = jnp.transpose(p['w'].astype(jnp.float32).reshape(k, k, 1, cin), (0, 1, 3, 2))
        else:
            w = p['w'].astype(jnp.float32).reshape(k, k, cin, cout)       # HWIO
        y = jax.lax.conv_general_dilated(
            x, w, (cfg['s'], cfg['s']), [(cfg['p'], cfg['p'])] * 2,
            dimension_numbers=('NHWC', 'HWIO', 'NHWC'))
        if cfg['bn']:
            mean = jnp.mean(y, axis=(0, 1, 2), keepdims=True)
            var = jnp.mean((y - mean) ** 2, axis=(0, 1, 2), keepdims=True)
            y = (y - mean) * jax.lax.rsqrt(var + _EPS) * p['gamma'].reshape(1, 1, 1, -1) \
                + p['beta'].reshape(1, 1, 1, -1)
        else:
            y = y + p['b'].reshape(1, 1, 1, -1)
        if cfg['act']:
            y = jnp.where(y >= 0, y, _LEAKY * y)
        x = y
    return jnp.transpose(x, (0, 3, 1, 2))


# ----------------------------------- main ----------------------------------- #

if __name__ == "__main__":
    key = jax.random.PRNGKey(0)
    kx, kp = jax.random.split(key)

    batch, in_ch, spatial, ndf, n_layers = 2, 4, 16, 8, 3
    x = jax.random.normal(kx, (batch, in_ch, spatial, spatial), jnp.float32)

    cfgs = make_configs(in_ch, ndf, n_layers, spatial, spatial)
    params = init_params(kp, cfgs)

    fwd = jax.jit(functools.partial(discriminator_forward, cfgs=cfgs))
    out = jax.block_until_ready(fwd(x, params))

    # PatchGAN head: (N, 1, H/8, W/8) for n_layers=3 stride-2 convs.
    assert out.shape == (batch, 1, spatial // 8, spatial // 8), out.shape
    assert bool(jnp.all(jnp.isfinite(out)))

    # Numerics vs. a pure-JAX reference (bf16 matmul operands -> loose tolerance).
    ref = reference_forward(x, params, cfgs)
    np.testing.assert_allclose(np.asarray(out), np.asarray(ref), atol=5e-2, rtol=5e-2)

    print("KERNEL_OK")
</pallas_src>

<mosaic_0001>
module attributes {stable_mosaic.version = 11 : i64} {
  func.func @kernel(%arg0: memref<2x18x18x4xf32, #tpu.memory_space<vmem>>, %arg1: memref<16x4x8xbf16, #tpu.memory_space<vmem>>, %arg2: memref<1x8xf32, #tpu.memory_space<vmem>>, %arg3: memref<16x8x16xbf16, #tpu.memory_space<vmem>>, %arg4: memref<1x16xf32, #tpu.memory_space<vmem>>, %arg5: memref<1x16xf32, #tpu.memory_space<vmem>>, %arg6: memref<16x16x32xbf16, #tpu.memory_space<vmem>>, %arg7: memref<1x32xf32, #tpu.memory_space<vmem>>, %arg8: memref<1x32xf32, #tpu.memory_space<vmem>>, %arg9: memref<9x1x32xf32, #tpu.memory_space<vmem>>, %arg10: memref<1x1xf32, #tpu.memory_space<vmem>>, %arg11: memref<8x1xf32, #tpu.memory_space<vmem>>, %arg12: memref<2x10x10x8xf32, #tpu.memory_space<vmem>>, %arg13: memref<2x6x6x16xf32, #tpu.memory_space<vmem>>, %arg14: memref<2x4x4x32xf32, #tpu.memory_space<vmem>>) attributes {dimension_semantics = [], scalar_prefetch = 0 : i64, scratch_operands = 3 : i64, tpu.core_type = #tpu.core_type<tc>} {
    %cst = arith.constant 0.000000e+00 : f32
    %0 = vector.broadcast %cst : f32 to vector<128x8xf32>
    %c0 = arith.constant 0 : index
    %c0_0 = arith.constant 0 : index
    %c0_1 = arith.constant 0 : index
    %c0_2 = arith.constant 0 : index
    %1 = tpu.strided_load %arg0[%c0, %c0_0, %c0_1, %c0_2] {strides = array<i32: 1, 2, 2, 1>} : memref<2x18x18x4xf32, #tpu.memory_space<vmem>>, vector<2x8x8x4xf32>
    %2 = vector.shape_cast %1 : vector<2x8x8x4xf32> to vector<128x4xf32>
    %3 = arith.truncf %2 : vector<128x4xf32> to vector<128x4xbf16>
    %c0_3 = arith.constant 0 : index
    %c0_4 = arith.constant 0 : index
    %c0_5 = arith.constant 0 : index
    %4 = vector.load %arg1[%c0_3, %c0_4, %c0_5] : memref<16x4x8xbf16, #tpu.memory_space<vmem>>, vector<1x4x8xbf16>
    %5 = vector.shape_cast %4 : vector<1x4x8xbf16> to vector<4x8xbf16>
    %cst_6 = arith.constant dense<0.000000e+00> : vector<128x8xf32>
    %6 = tpu.matmul %3, %5, %cst_6 {dimension_numbers = #tpu.dot_dimension_numbers<[1], [0], [0], [1], [0, 0, 1, 1], [], []>} : vector<128x4xbf16>, vector<4x8xbf16>, vector<128x8xf32> -> vector<128x8xf32>
    %7 = arith.addf %0, %6 : vector<128x8xf32>
    %c0_7 = arith.constant 0 : index
    %c0_8 = arith.constant 0 : index
    %c1 = arith.constant 1 : index
    %c0_9 = arith.constant 0 : index
    %8 = tpu.strided_load %arg0[%c0_7, %c0_8, %c1, %c0_9] {strides = array<i32: 1, 2, 2, 1>} : memref<2x18x18x4xf32, #tpu.memory_space<vmem>>, vector<2x8x8x4xf32>
    %9 = vector.shape_cast %8 : vector<2x8x8x4xf32> to vector<128x4xf32>
    %10 = arith.truncf %9 : vector<128x4xf32> to vector<128x4xbf16>
    %c1_10 = arith.constant 1 : index
    %c0_11 = arith.constant 0 : index
    %c0_12 = arith.constant 0 : index
    %11 = vector.load %arg1[%c1_10, %c0_11, %c0_12] : memref<16x4x8xbf16, #tpu.memory_space<vmem>>, vector<1x4x8xbf16>
    %12 = vector.shape_cast %11 : vector<1x4x8xbf16> to vector<4x8xbf16>
    %cst_13 = arith.constant dense<0.000000e+00> : vector<128x8xf32>
    %13 = tpu.matmul %10, %12, %cst_13 {dimension_numbers = #tpu.dot_dimension_numbers<[1], [0], [0], [1], [0, 0, 1, 1], [], []>} : vector<128x4xbf16>, vector<4x8xbf16>, vector<128x8xf32> -> vector<128x8xf32>
    %14 = arith.addf %7, %13 : vector<128x8xf32>
    %c0_14 = arith.constant 0 : index
    %c0_15 = arith.constant 0 : index
    %c2 = arith.constant 2 : index
    %c0_16 = arith.constant 0 : index
    %15 = tpu.strided_load %arg0[%c0_14, %c0_15, %c2, %c0_16] {strides = array<i32: 1, 2, 2, 1>} : memref<2x18x18x4xf32, #tpu.memory_space<vmem>>, vector<2x8x8x4xf32>
    %16 = vector.shape_cast %15 : vector<2x8x8x4xf32> to vector<128x4xf32>
    %17 = arith.truncf %16 : vector<128x4xf32> to vector<128x4xbf16>
    %c2_17 = arith.constant 2 : index
    %c0_18 = arith.constant 0 : index
    %c0_19 = arith.constant 0 : index
    %18 = vector.load %arg1[%c2_17, %c0_18, %c0_19] : memref<16x4x8xbf16, #tpu.memory_space<vmem>>, vector<1x4x8xbf16>
    %19 = vector.shape_cast %18 : vector<1x4x8xbf16> to vector<4x8xbf16>
    %cst_20 = arith.constant dense<0.000000e+00> : vector<128x8xf32>
    %20 = tpu.matmul %17, %19, %cst_20 {dimension_numbers = #tpu.dot_dimension_numbers<[1], [0], [0], [1], [0, 0, 1, 1], [], []>} : vector<128x4xbf16>, vector<4x8xbf16>, vector<128x8xf32> -> vector<128x8xf32>
    %21 = arith.addf %14, %20 : vector<128x8xf32>
    %c0_21 = arith.constant 0 : index
    %c0_22 = arith.constant 0 : index
    %c3 = arith.constant 3 : index
    %c0_23 = arith.constant 0 : index
    %22 = tpu.strided_load %arg0[%c0_21, %c0_22, %c3, %c0_23] {strides = array<i32: 1, 2, 2, 1>} : memref<2x18x18x4xf32, #tpu.memory_space<vmem>>, vector<2x8x8x4xf32>
    %23 = vector.shape_cast %22 : vector<2x8x8x4xf32> to vector<128x4xf32>
    %24 = arith.truncf %23 : vector<128x4xf32> to vector<128x4xbf16>
    %c3_24 = arith.constant 3 : index
    %c0_25 = arith.constant 0 : index
    %c0_26 = arith.constant 0 : index
    %25 = vector.load %arg1[%c3_24, %c0_25, %c0_26] : memref<16x4x8xbf16, #tpu.memory_space<vmem>>, vector<1x4x8xbf16>
    %26 = vector.shape_cast %25 : vector<1x4x8xbf16> to vector<4x8xbf16>
    %cst_27 = arith.constant dense<0.000000e+00> : vector<128x8xf32>
    %27 = tpu.matmul %24, %26, %cst_27 {dimension_numbers = #tpu.dot_dimension_numbers<[1], [0], [0], [1], [0, 0, 1, 1], [], []>} : vector<128x4xbf16>, vector<4x8xbf16>, vector<128x8xf32> -> vector<128x8xf32>
    %28 = arith.addf %21, %27 : vector<128x8xf32>
    %c0_28 = arith.constant 0 : index
    %c1_29 = arith.constant 1 : index
    %c0_30 = arith.constant 0 : index
    %c0_31 = arith.constant 0 : index
    %29 = tpu.strided_load %arg0[%c0_28, %c1_29, %c0_30, %c0_31] {strides = array<i32: 1, 2, 2, 1>} : memref<2x18x18x4xf32, #tpu.memory_space<vmem>>, vector<2x8x8x4xf32>
    %30 = vector.shape_cast %29 : vector<2x8x8x4xf32> to vector<128x4xf32>
    %31 = arith.truncf %30 : vector<128x4xf32> to vector<128x4xbf16>
    %c4 = arith.constant 4 : index
    %c0_32 = arith.constant 0 : index
    %c0_33 = arith.constant 0 : index
    %32 = vector.load %arg1[%c4, %c0_32, %c0_33] : memref<16x4x8xbf16, #tpu.memory_space<vmem>>, vector<1x4x8xbf16>
    %33 = vector.shape_cast %32 : vector<1x4x8xbf16> to vector<4x8xbf16>
    %cst_34 = arith.constant dense<0.000000e+00> : vector<128x8xf32>
    %34 = tpu.matmul %31, %33, %cst_34 {dimension_numbers = #tpu.dot_dimension_numbers<[1], [0], [0], [1], [0, 0, 1, 1], [], []>} : vector<128x4xbf16>, vector<4x8xbf16>, vector<128x8xf32> -> vector<128x8xf32>
    %35 = arith.addf %28, %34 : vector<128x8xf32>
    %c0_35 = arith.constant 0 : index
    %c1_36 = arith.constant 1 : index
    %c1_37 = arith.constant 1 : index
    %c0_38 = arith.constant 0 : index
    %36 = tpu.strided_load %arg0[%c0_35, %c1_36, %c1_37, %c0_38] {strides = array<i32: 1, 2, 2, 1>} : memref<2x18x18x4xf32, #tpu.memory_space<vmem>>, vector<2x8x8x4xf32>
    %37 = vector.shape_cast %36 : vector<2x8x8x4xf32> to vector<128x4xf32>
    %38 = arith.truncf %37 : vector<128x4xf32> to vector<128x4xbf16>
    %c5 = arith.constant 5 : index
    %c0_39 = arith.constant 0 : index
    %c0_40 = arith.constant 0 : index
    %39 = vector.load %arg1[%c5, %c0_39, %c0_40] : memref<16x4x8xbf16, #tpu.memory_space<vmem>>, vector<1x4x8xbf16>
    %40 = vector.shape_cast %39 : vector<1x4x8xbf16> to vector<4x8xbf16>
    %cst_41 = arith.constant dense<0.000000e+00> : vector<128x8xf32>
    %41 = tpu.matmul %38, %40, %cst_41 {dimension_numbers = #tpu.dot_dimension_numbers<[1], [0], [0], [1], [0, 0, 1, 1], [], []>} : vector<128x4xbf16>, vector<4x8xbf16>, vector<128x8xf32> -> vector<128x8xf32>
    %42 = arith.addf %35, %41 : vector<128x8xf32>
    %c0_42 = arith.constant 0 : index
    %c1_43 = arith.constant 1 : index
    %c2_44 = arith.constant 2 : index
    %c0_45 = arith.constant 0 : index
    %43 = tpu.strided_load %arg0[%c0_42, %c1_43, %c2_44, %c0_45] {strides = array<i32: 1, 2, 2, 1>} : memref<2x18x18x4xf32, #tpu.memory_space<vmem>>, vector<2x8x8x4xf32>
    %44 = vector.shape_cast %43 : vector<2x8x8x4xf32> to vector<128x4xf32>
    %45 = arith.truncf %44 : vector<128x4xf32> to vector<128x4xbf16>
    %c6 = arith.constant 6 : index
    %c0_46 = arith.constant 0 : index
    %c0_47 = arith.constant 0 : index
    %46 = vector.load %arg1[%c6, %c0_46, %c0_47] : memref<16x4x8xbf16, #tpu.memory_space<vmem>>, vector<1x4x8xbf16>
    %47 = vector.shape_cast %46 : vector<1x4x8xbf16> to vector<4x8xbf16>
    %cst_48 = arith.constant dense<0.000000e+00> : vector<128x8xf32>
    %48 = tpu.matmul %45, %47, %cst_48 {dimension_numbers = #tpu.dot_dimension_numbers<[1], [0], [0], [1], [0, 0, 1, 1], [], []>} : vector<128x4xbf16>, vector<4x8xbf16>, vector<128x8xf32> -> vector<128x8xf32>
    %49 = arith.addf %42, %48 : vector<128x8xf32>
    %c0_49 = arith.constant 0 : index
    %c1_50 = arith.constant 1 : index
    %c3_51 = arith.constant 3 : index
    %c0_52 = arith.constant 0 : index
    %50 = tpu.strided_load %arg0[%c0_49, %c1_50, %c3_51, %c0_52] {strides = array<i32: 1, 2, 2, 1>} : memref<2x18x18x4xf32, #tpu.memory_space<vmem>>, vector<2x8x8x4xf32>
    %51 = vector.shape_cast %50 : vector<2x8x8x4xf32> to vector<128x4xf32>
    %52 = arith.truncf %51 : vector<128x4xf32> to vector<128x4xbf16>
    %c7 = arith.constant 7 : index
    %c0_53 = arith.constant 0 : index
    %c0_54 = arith.constant 0 : index
    %53 = vector.load %arg1[%c7, %c0_53, %c0_54] : memref<16x4x8xbf16, #tpu.memory_space<vmem>>, vector<1x4x8xbf16>
    %54 = vector.shape_cast %53 : vector<1x4x8xbf16> to vector<4x8xbf16>
    %cst_55 = arith.constant dense<0.000000e+00> : vector<128x8xf32>
    %55 = tpu.matmul %52, %54, %cst_55 {dimension_numbers = #tpu.dot_dimension_numbers<[1], [0], [0], [1], [0, 0, 1, 1], [], []>} : vector<128x4xbf16>, vector<4x8xbf16>, vector<128x8xf32> -> vector<128x8xf32>
    %56 = arith.addf %49, %55 : vector<128x8xf32>
    %c0_56 = arith.constant 0 : index
    %c2_57 = arith.constant 2 : index
    %c0_58 = arith.constant 0 : index
    %c0_59 = arith.constant 0 : index
    %57 = tpu.strided_load %arg0[%c0_56, %c2_57, %c0_58, %c0_59] {strides = array<i32: 1, 2, 2, 1>} : memref<2x18x18x4xf32, #tpu.memory_space<vmem>>, vector<2x8x8x4xf32>
    %58 = vector.shape_cast %57 : vector<2x8x8x4xf32> to vector<128x4xf32>
    %59 = arith.truncf %58 : vector<128x4xf32> to vector<128x4xbf16>
    %c8 = arith.constant 8 : index
    %c0_60 = arith.constant 0 : index
    %c0_61 = arith.constant 0 : index
    %60 = vector.load %arg1[%c8, %c0_60, %c0_61] : memref<16x4x8xbf16, #tpu.memory_space<vmem>>, vector<1x4x8xbf16>
    %61 = vector.shape_cast %60 : vector<1x4x8xbf16> to vector<4x8xbf16>
    %cst_62 = arith.constant dense<0.000000e+00> : vector<128x8xf32>
    %62 = tpu.matmul %59, %61, %cst_62 {dimension_numbers = #tpu.dot_dimension_numbers<[1], [0], [0], [1], [0, 0, 1, 1], [], []>} : vector<128x4xbf16>, vector<4x8xbf16>, vector<128x8xf32> -> vector<128x8xf32>
    %63 = arith.addf %56, %62 : vector<128x8xf32>
    %c0_63 = arith.constant 0 : index
    %c2_64 = arith.constant 2 : index
    %c1_65 = arith.constant 1 : index
    %c0_66 = arith.constant 0 : index
    %64 = tpu.strided_load %arg0[%c0_63, %c2_64, %c1_65, %c0_66] {strides = array<i32: 1, 2, 2, 1>} : memref<2x18x18x4xf32, #tpu.memory_space<vmem>>, vector<2x8x8x4xf32>
    %65 = vector.shape_cast %64 : vector<2x8x8x4xf32> to vector<128x4xf32>
    %66 = arith.truncf %65 : vector<128x4xf32> to vector<128x4xbf16>
    %c9 = arith.constant 9 : index
    %c0_67 = arith.constant 0 : index
    %c0_68 = arith.constant 0 : index
    %67 = vector.load %arg1[%c9, %c0_67, %c0_68] : memref<16x4x8xbf16, #tpu.memory_space<vmem>>, vector<1x4x8xbf16>
    %68 = vector.shape_cast %67 : vector<1x4x8xbf16> to vector<4x8xbf16>
    %cst_69 = arith.constant dense<0.000000e+00> : vector<128x8xf32>
    %69 = tpu.matmul %66, %68, %cst_69 {dimension_numbers = #tpu.dot_dimension_numbers<[1], [0], [0], [1], [0, 0, 1, 1], [], []>} : vector<128x4xbf16>, vector<4x8xbf16>, vector<128x8xf32> -> vector<128x8xf32>
    %70 = arith.addf %63, %69 : vector<128x8xf32>
    %c0_70 = arith.constant 0 : index
    %c2_71 = arith.constant 2 : index
    %c2_72 = arith.constant 2 : index
    %c0_73 = arith.constant 0 : index
    %71 = tpu.strided_load %arg0[%c0_70, %c2_71, %c2_72, %c0_73] {strides = array<i32: 1, 2, 2, 1>} : memref<2x18x18x4xf32, #tpu.memory_space<vmem>>, vector<2x8x8x4xf32>
    %72 = vector.shape_cast %71 : vector<2x8x8x4xf32> to vector<128x4xf32>
    %73 = arith.truncf %72 : vector<128x4xf32> to vector<128x4xbf16>
    %c10 = arith.constant 10 : index
    %c0_74 = arith.constant 0 : index
    %c0_75 = arith.constant 0 : index
    %74 = vector.load %arg1[%c10, %c0_74, %c0_75] : memref<16x4x8xbf16, #tpu.memory_space<vmem>>, vector<1x4x8xbf16>
    %75 = vector.shape_cast %74 : vector<1x4x8xbf16> to vector<4x8xbf16>
    %cst_76 = arith.constant dense<0.000000e+00> : vector<128x8xf32>
    %76 = tpu.matmul %73, %75, %cst_76 {dimension_numbers = #tpu.dot_dimension_numbers<[1], [0], [0], [1], [0, 0, 1, 1], [], []>} : vector<128x4xbf16>, vector<4x8xbf16>, vector<128x8xf32> -> vector<128x8xf32>
    %77 = arith.addf %70, %76 : vector<128x8xf32>
    %c0_77 = arith.constant 0 : index
    %c2_78 = arith.constant 2 : index
    %c3_79 = arith.constant 3 : index
    %c0_80 = arith.constant 0 : index
    %78 = tpu.strided_load %arg0[%c0_77, %c2_78, %c3_79, %c0_80] {strides = array<i32: 1, 2, 2, 1>} : memref<2x18x18x4xf32, #tpu.memory_space<vmem>>, vector<2x8x8x4xf32>
    %79 = vector.shape_cast %78 : vector<2x8x8x4xf32> to vector<128x4xf32>
    %80 = arith.truncf %79 : vector<128x4xf32> to vector<128x4xbf16>
    %c11 = arith.constant 11 : index
    %c0_81 = arith.constant 0 : index
    %c0_82 = arith.constant 0 : index
    %81 = vector.load %arg1[%c11, %c0_81, %c0_82] : memref<16x4x8xbf16, #tpu.memory_space<vmem>>, vector<1x4x8xbf16>
    %82 = vector.shape_cast %81 : vector<1x4x8xbf16> to vector<4x8xbf16>
    %cst_83 = arith.constant dense<0.000000e+00> : vector<128x8xf32>
    %83 = tpu.matmul %80, %82, %cst_83 {dimension_numbers = #tpu.dot_dimension_numbers<[1], [0], [0], [1], [0, 0, 1, 1], [], []>} : vector<128x4xbf16>, vector<4x8xbf16>, vector<128x8xf32> -> vector<128x8xf32>
    %84 = arith.addf %77, %83 : vector<128x8xf32>
    %c0_84 = arith.constant 0 : index
    %c3_85 = arith.constant 3 : index
    %c0_86 = arith.constant 0 : index
    %c0_87 = arith.constant 0 : index
    %85 = tpu.strided_load %arg0[%c0_84, %c3_85, %c0_86, %c0_87] {strides = array<i32: 1, 2, 2, 1>} : memref<2x18x18x4xf32, #tpu.memory_space<vmem>>, vector<2x8x8x4xf32>
    %86 = vector.shape_cast %85 : vector<2x8x8x4xf32> to vector<128x4xf32>
    %87 = arith.truncf %86 : vector<128x4xf32> to vector<128x4xbf16>
    %c12 = arith.constant 12 : index
    %c0_88 = arith.constant 0 : index
    %c0_89 = arith.constant 0 : index
    %88 = vector.load %arg1[%c12, %c0_88, %c0_89] : memref<16x4x8xbf16, #tpu.memory_space<vmem>>, vector<1x4x8xbf16>
    %89 = vector.shape_cast %88 : vector<1x4x8xbf16> to vector<4x8xbf16>
    %cst_90 = arith.constant dense<0.000000e+00> : vector<128x8xf32>
    %90 = tpu.matmul %87, %89, %cst_90 {dimension_numbers = #tpu.dot_dimension_numbers<[1], [0], [0], [1], [0, 0, 1, 1], [], []>} : vector<128x4xbf16>, vector<4x8xbf16>, vector<128x8xf32> -> vector<128x8xf32>
    %91 = arith.addf %84, %90 : vector<128x8xf32>
    %c0_91 = arith.constant 0 : index
    %c3_92 = arith.constant 3 : index
    %c1_93 = arith.constant 1 : index
    %c0_94 = arith.constant 0 : index
    %92 = tpu.strided_load %arg0[%c0_91, %c3_92, %c1_93, %c0_94] {strides = array<i32: 1, 2, 2, 1>} : memref<2x18x18x4xf32, #tpu.memory_space<vmem>>, vector<2x8x8x4xf32>
    %93 = vector.shape_cast %92 : vector<2x8x8x4xf32> to vector<128x4xf32>
    %94 = arith.truncf %93 : vector<128x4xf32> to vector<128x4xbf16>
    %c13 = arith.constant 13 : index
    %c0_95 = arith.constant 0 : index
    %c0_96 = arith.constant 0 : index
    %95 = vector.load %arg1[%c13, %c0_95, %c0_96] : memref<16x4x8xbf16, #tpu.memory_space<vmem>>, vector<1x4x8xbf16>
    %96 = vector.shape_cast %95 : vector<1x4x8xbf16> to vector<4x8xbf16>
    %cst_97 = arith.constant dense<0.000000e+00> : vector<128x8xf32>
    %97 = tpu.matmul %94, %96, %cst_97 {dimension_numbers = #tpu.dot_dimension_numbers<[1], [0], [0], [1], [0, 0, 1, 1], [], []>} : vector<128x4xbf16>, vector<4x8xbf16>, vector<128x8xf32> -> vector<128x8xf32>
    %98 = arith.addf %91, %97 : vector<128x8xf32>
    %c0_98 = arith.constant 0 : index
    %c3_99 = arith.constant 3 : index
    %c2_100 = arith.constant 2 : index
    %c0_101 = arith.constant 0 : index
    %99 = tpu.strided_load %arg0[%c0_98, %c3_99, %c2_100, %c0_101] {strides = array<i32: 1, 2, 2, 1>} : memref<2x18x18x4xf32, #tpu.memory_space<vmem>>, vector<2x8x8x4xf32>
    %100 = vector.shape_cast %99 : vector<2x8x8x4xf32> to vector<128x4xf32>
    %101 = arith.truncf %100 : vector<128x4xf32> to vector<128x4xbf16>
    %c14 = arith.constant 14 : index
    %c0_102 = arith.constant 0 : index
    %c0_103 = arith.constant 0 : index
    %102 = vector.load %arg1[%c14, %c0_102, %c0_103] : memref<16x4x8xbf16, #tpu.memory_space<vmem>>, vector<1x4x8xbf16>
    %103 = vector.shape_cast %102 : vector<1x4x8xbf16> to vector<4x8xbf16>
    %cst_104 = arith.constant dense<0.000000e+00> : vector<128x8xf32>
    %104 = tpu.matmul %101, %103, %cst_104 {dimension_numbers = #tpu.dot_dimension_numbers<[1], [0], [0], [1], [0, 0, 1, 1], [], []>} : vector<128x4xbf16>, vector<4x8xbf16>, vector<128x8xf32> -> vector<128x8xf32>
    %105 = arith.addf %98, %104 : vector<128x8xf32>
    %c0_105 = arith.constant 0 : index
    %c3_106 = arith.constant 3 : index
    %c3_107 = arith.constant 3 : index
    %c0_108 = arith.constant 0 : index
    %106 = tpu.strided_load %arg0[%c0_105, %c3_106, %c3_107, %c0_108] {strides = array<i32: 1, 2, 2, 1>} : memref<2x18x18x4xf32, #tpu.memory_space<vmem>>, vector<2x8x8x4xf32>
    %107 = vector.shape_cast %106 : vector<2x8x8x4xf32> to vector<128x4xf32>
    %108 = arith.truncf %107 : vector<128x4xf32> to vector<128x4xbf16>
    %c15 = arith.constant 15 : index
    %c0_109 = arith.constant 0 : index
    %c0_110 = arith.constant 0 : index
    %109 = vector.load %arg1[%c15, %c0_109, %c0_110] : memref<16x4x8xbf16, #tpu.memory_space<vmem>>, vector<1x4x8xbf16>
    %110 = vector.shape_cast %109 : vector<1x4x8xbf16> to vector<4x8xbf16>
    %cst_111 = arith.constant dense<0.000000e+00> : vector<128x8xf32>
    %111 = tpu.matmul %108, %110, %cst_111 {dimension_numbers = #tpu.dot_dimension_numbers<[1], [0], [0], [1], [0, 0, 1, 1], [], []>} : vector<128x4xbf16>, vector<4x8xbf16>, vector<128x8xf32> -> vector<128x8xf32>
    %112 = arith.addf %105, %111 : vector<128x8xf32>
    %c0_112 = arith.constant 0 : index
    %c0_113 = arith.constant 0 : index
    %113 = vector.load %arg2[%c0_112, %c0_113] : memref<1x8xf32, #tpu.memory_space<vmem>>, vector<1x8xf32>
    %114 = vector.broadcast %113 : vector<1x8xf32> to vector<128x8xf32>
    %115 = arith.addf %112, %114 : vector<128x8xf32>
    %cst_114 = arith.constant 0.000000e+00 : f32
    %116 = vector.broadcast %cst_114 : f32 to vector<128x8xf32>
    %117 = arith.cmpf oge, %115, %116 : vector<128x8xf32>
    %cst_115 = arith.constant 2.000000e-01 : f32
    %118 = vector.broadcast %cst_115 : f32 to vector<128x8xf32>
    %119 = arith.mulf %118, %115 : vector<128x8xf32>
    %120 = arith.select %117, %115, %119 : vector<128x8xi1>, vector<128x8xf32>
    %cst_116 = arith.constant 0.000000e+00 : f32
    %121 = vector.broadcast %cst_116 : f32 to vector<2x10x10x8xf32>
    %c0_117 = arith.constant 0 : index
    %c0_118 = arith.constant 0 : index
    %c0_119 = arith.constant 0 : index
    %c0_120 = arith.constant 0 : index
    %122 = vector.load %arg12[%c0_117, %c0_118, %c0_119, %c0_120] : memref<2x10x10x8xf32, #tpu.memory_space<vmem>>, vector<2x10x10x8xf32>
    tpu.vector_store %arg12[%c0_117, %c0_118, %c0_119, %c0_120], %121 {strides = array<i32>} : memref<2x10x10x8xf32, #tpu.memory_space<vmem>>, vector<2x10x10x8xf32>,
    %123 = vector.shape_cast %120 : vector<128x8xf32> to vector<2x8x8x8xf32>
    %c0_121 = arith.constant 0 : index
    %c1_122 = arith.constant 1 : index
    %c1_123 = arith.constant 1 : index
    %c0_124 = arith.constant 0 : index
    %124 = vector.load %arg12[%c0_121, %c1_122, %c1_123, %c0_124] : memref<2x10x10x8xf32, #tpu.memory_space<vmem>>, vector<2x8x8x8xf32>
    tpu.vector_store %arg12[%c0_121, %c1_122, %c1_123, %c0_124], %123 {strides = array<i32>} : memref<2x10x10x8xf32, #tpu.memory_space<vmem>>, vector<2x8x8x8xf32>,
    %cst_125 = arith.constant 0.000000e+00 : f32
    %125 = vector.broadcast %cst_125 : f32 to vector<32x16xf32>
    %c0_126 = arith.constant 0 : index
    %c0_127 = arith.constant 0 : index
    %c0_128 = arith.constant 0 : index
    %c0_129 = arith.constant 0 : index
    %126 = tpu.strided_load %arg12[%c0_126, %c0_127, %c0_128, %c0_129] {strides = array<i32: 1, 2, 2, 1>} : memref<2x10x10x8xf32, #tpu.memory_space<vmem>>, vector<2x4x4x8xf32>
    %127 = vector.shape_cast %126 : vector<2x4x4x8xf32> to vector<32x8xf32>
    %128 = arith.truncf %127 : vector<32x8xf32> to vector<32x8xbf16>
    %c0_130 = arith.constant 0 : index
    %c0_131 = arith.constant 0 : index
    %c0_132 = arith.constant 0 : index
    %129 = vector.load %arg3[%c0_130, %c0_131, %c0_132] : memref<16x8x16xbf16, #tpu.memory_space<vmem>>, vector<1x8x16xbf16>
    %130 = vector.shape_cast %129 : vector<1x8x16xbf16> to vector<8x16xbf16>
    %cst_133 = arith.constant dense<0.000000e+00> : vector<32x16xf32>
    %131 = tpu.matmul %128, %130, %cst_133 {dimension_numbers = #tpu.dot_dimension_numbers<[1], [0], [0], [1], [0, 0, 1, 1], [], []>} : vector<32x8xbf16>, vector<8x16xbf16>, vector<32x16xf32> -> vector<32x16xf32>
    %132 = arith.addf %125, %131 : vector<32x16xf32>
    %c0_134 = arith.constant 0 : index
    %c0_135 = arith.constant 0 : index
    %c1_136 = arith.constant 1 : index
    %c0_137 = arith.constant 0 : index
    %133 = tpu.strided_load %arg12[%c0_134, %c0_135, %c1_136, %c0_137] {strides = array<i32: 1, 2, 2, 1>} : memref<2x10x10x8xf32, #tpu.memory_space<vmem>>, vector<2x4x4x8xf32>
    %134 = vector.shape_cast %133 : vector<2x4x4x8xf32> to vector<32x8xf32>
    %135 = arith.truncf %134 : vector<32x8xf32> to vector<32x8xbf16>
    %c1_138 = arith.constant 1 : index
    %c0_139 = arith.constant 0 : index
    %c0_140 = arith.constant 0 : index
    %136 = vector.load %arg3[%c1_138, %c0_139, %c0_140] : memref<16x8x16xbf16, #tpu.memory_space<vmem>>, vector<1x8x16xbf16>
    %137 = vector.shape_cast %136 : vector<1x8x16xbf16> to vector<8x16xbf16>
    %cst_141 = arith.constant dense<0.000000e+00> : vector<32x16xf32>
    %138 = tpu.matmul %135, %137, %cst_141 {dimension_numbers = #tpu.dot_dimension_numbers<[1], [0], [0], [1], [0, 0, 1, 1], [], []>} : vector<32x8xbf16>, vector<8x16xbf16>, vector<32x16xf32> -> vector<32x16xf32>
    %139 = arith.addf %132, %138 : vector<32x16xf32>
    %c0_142 = arith.constant 0 : index
    %c0_143 = arith.constant 0 : index
    %c2_144 = arith.constant 2 : index
    %c0_145 = arith.constant 0 : index
    %140 = tpu.strided_load %arg12[%c0_142, %c0_143, %c2_144, %c0_145] {strides = array<i32: 1, 2, 2, 1>} : memref<2x10x10x8xf32, #tpu.memory_space<vmem>>, vector<2x4x4x8xf32>
    %141 = vector.shape_cast %140 : vector<2x4x4x8xf32> to vector<32x8xf32>
    %142 = arith.truncf %141 : vector<32x8xf32> to vector<32x8xbf16>
    %c2_146 = arith.constant 2 : index
    %c0_147 = arith.constant 0 : index
    %c0_148 = arith.constant 0 : index
    %143 = vector.load %arg3[%c2_146, %c0_147, %c0_148] : memref<16x8x16xbf16, #tpu.memory_space<vmem>>, vector<1x8x16xbf16>
    %144 = vector.shape_cast %143 : vector<1x8x16xbf16> to vector<8x16xbf16>
    %cst_149 = arith.constant dense<0.000000e+00> : vector<32x16xf32>
    %145 = tpu.matmul %142, %144, %cst_149 {dimension_numbers = #tpu.dot_dimension_numbers<[1], [0], [0], [1], [0, 0, 1, 1], [], []>} : vector<32x8xbf16>, vector<8x16xbf16>, vector<32x16xf32> -> vector<32x16xf32>
    %146 = arith.addf %139, %145 : vector<32x16xf32>
    %c0_150 = arith.constant 0 : index
    %c0_151 = arith.constant 0 : index
    %c3_152 = arith.constant 3 : index
    %c0_153 = arith.constant 0 : index
    %147 = tpu.strided_load %arg12[%c0_150, %c0_151, %c3_152, %c0_153] {strides = array<i32: 1, 2, 2, 1>} : memref<2x10x10x8xf32, #tpu.memory_space<vmem>>, vector<2x4x4x8xf32>
    %148 = vector.shape_cast %147 : vector<2x4x4x8xf32> to vector<32x8xf32>
    %149 = arith.truncf %148 : vector<32x8xf32> to vector<32x8xbf16>
    %c3_154 = arith.constant 3 : index
    %c0_155 = arith.constant 0 : index
    %c0_156 = arith.constant 0 : index
    %150 = vector.load %arg3[%c3_154, %c0_155, %c0_156] : memref<16x8x16xbf16, #tpu.memory_space<vmem>>, vector<1x8x16xbf16>
    %151 = vector.shape_cast %150 : vector<1x8x16xbf16> to vector<8x16xbf16>
    %cst_157 = arith.constant dense<0.000000e+00> : vector<32x16xf32>
    %152 = tpu.matmul %149, %151, %cst_157 {dimension_numbers = #tpu.dot_dimension_numbers<[1], [0], [0], [1], [0, 0, 1, 1], [], []>} : vector<32x8xbf16>, vector<8x16xbf16>, vector<32x16xf32> -> vector<32x16xf32>
    %153 = arith.addf %146, %152 : vector<32x16xf32>
    %c0_158 = arith.constant 0 : index
    %c1_159 = arith.constant 1 : index
    %c0_160 = arith.constant 0 : index
    %c0_161 = arith.constant 0 : index
    %154 = tpu.strided_load %arg12[%c0_158, %c1_159, %c0_160, %c0_161] {strides = array<i32: 1, 2, 2, 1>} : memref<2x10x10x8xf32, #tpu.memory_space<vmem>>, vector<2x4x4x8xf32>
    %155 = vector.shape_cast %154 : vector<2x4x4x8xf32> to vector<32x8xf32>
    %156 = arith.truncf %155 : vector<32x8xf32> to vector<32x8xbf16>
    %c4_162 = arith.constant 4 : index
    %c0_163 = arith.constant 0 : index
    %c0_164 = arith.constant 0 : index
    %157 = vector.load %arg3[%c4_162, %c0_163, %c0_164] : memref<16x8x16xbf16, #tpu.memory_space<vmem>>, vector<1x8x16xbf16>
    %158 = vector.shape_cast %157 : vector<1x8x16xbf16> to vector<8x16xbf16>
    %cst_165 = arith.constant dense<0.000000e+00> : vector<32x16xf32>
    %159 = tpu.matmul %156, %158, %cst_165 {dimension_numbers = #tpu.dot_dimension_numbers<[1], [0], [0], [1], [0, 0, 1, 1], [], []>} : vector<32x8xbf16>, vector<8x16xbf16>, vector<32x16xf32> -> vector<32x16xf32>
    %160 = arith.addf %153, %159 : vector<32x16xf32>
    %c0_166 = arith.constant 0 : index
    %c1_167 = arith.constant 1 : index
    %c1_168 = arith.constant 1 : index
    %c0_169 = arith.constant 0 : index
    %161 = tpu.strided_load %arg12[%c0_166, %c1_167, %c1_168, %c0_169] {strides = array<i32: 1, 2, 2, 1>} : memref<2x10x10x8xf32, #tpu.memory_space<vmem>>, vector<2x4x4x8xf32>
    %162 = vector.shape_cast %161 : vector<2x4x4x8xf32> to vector<32x8xf32>
    %163 = arith.truncf %162 : vector<32x8xf32> to vector<32x8xbf16>
    %c5_170 = arith.constant 5 : index
    %c0_171 = arith.constant 0 : index
    %c0_172 = arith.constant 0 : index
    %164 = vector.load %arg3[%c5_170, %c0_171, %c0_172] : memref<16x8x16xbf16, #tpu.memory_space<vmem>>, vector<1x8x16xbf16>
    %165 = vector.shape_cast %164 : vector<1x8x16xbf16> to vector<8x16xbf16>
    %cst_173 = arith.constant dense<0.000000e+00> : vector<32x16xf32>
    %166 = tpu.matmul %163, %165, %cst_173 {dimension_numbers = #tpu.dot_dimension_numbers<[1], [0], [0], [1], [0, 0, 1, 1], [], []>} : vector<32x8xbf16>, vector<8x16xbf16>, vector<32x16xf32> -> vector<32x16xf32>
    %167 = arith.addf %160, %166 : vector<32x16xf32>
    %c0_174 = arith.constant 0 : index
    %c1_175 = arith.constant 1 : index
    %c2_176 = arith.constant 2 : index
    %c0_177 = arith.constant 0 : index
    %168 = tpu.strided_load %arg12[%c0_174, %c1_175, %c2_176, %c0_177] {strides = array<i32: 1, 2, 2, 1>} : memref<2x10x10x8xf32, #tpu.memory_space<vmem>>, vector<2x4x4x8xf32>
    %169 = vector.shape_cast %168 : vector<2x4x4x8xf32> to vector<32x8xf32>
    %170 = arith.truncf %169 : vector<32x8xf32> to vector<32x8xbf16>
    %c6_178 = arith.constant 6 : index
    %c0_179 = arith.constant 0 : index
    %c0_180 = arith.constant 0 : index
    %171 = vector.load %arg3[%c6_178, %c0_179, %c0_180] : memref<16x8x16xbf16, #tpu.memory_space<vmem>>, vector<1x8x16xbf16>
    %172 = vector.shape_cast %171 : vector<1x8x16xbf16> to vector<8x16xbf16>
    %cst_181 = arith.constant dense<0.000000e+00> : vector<32x16xf32>
    %173 = tpu.matmul %170, %172, %cst_181 {dimension_numbers = #tpu.dot_dimension_numbers<[1], [0], [0], [1], [0, 0, 1, 1], [], []>} : vector<32x8xbf16>, vector<8x16xbf16>, vector<32x16xf32> -> vector<32x16xf32>
    %174 = arith.addf %167, %173 : vector<32x16xf32>
    %c0_182 = arith.constant 0 : index
    %c1_183 = arith.constant 1 : index
    %c3_184 = arith.constant 3 : index
    %c0_185 = arith.constant 0 : index
    %175 = tpu.strided_load %arg12[%c0_182, %c1_183, %c3_184, %c0_185] {strides = array<i32: 1, 2, 2, 1>} : memref<2x10x10x8xf32, #tpu.memory_space<vmem>>, vector<2x4x4x8xf32>
    %176 = vector.shape_cast %175 : vector<2x4x4x8xf32> to vector<32x8xf32>
    %177 = arith.truncf %176 : vector<32x8xf32> to vector<32x8xbf16>
    %c7_186 = arith.constant 7 : index
    %c0_187 = arith.constant 0 : index
    %c0_188 = arith.constant 0 : index
    %178 = vector.load %arg3[%c7_186, %c0_187, %c0_188] : memref<16x8x16xbf16, #tpu.memory_space<vmem>>, vector<1x8x16xbf16>
    %179 = vector.shape_cast %178 : vector<1x8x16xbf16> to vector<8x16xbf16>
    %cst_189 = arith.constant dense<0.000000e+00> : vector<32x16xf32>
    %180 = tpu.matmul %177, %179, %cst_189 {dimension_numbers = #tpu.dot_dimension_numbers<[1], [0], [0], [1], [0, 0, 1, 1], [], []>} : vector<32x8xbf16>, vector<8x16xbf16>, vector<32x16xf32> -> vector<32x16xf32>
    %181 = arith.addf %174, %180 : vector<32x16xf32>
    %c0_190 = arith.constant 0 : index
    %c2_191 = arith.constant 2 : index
    %c0_192 = arith.constant 0 : index
    %c0_193 = arith.constant 0 : index
    %182 = tpu.strided_load %arg12[%c0_190, %c2_191, %c0_192, %c0_193] {strides = array<i32: 1, 2, 2, 1>} : memref<2x10x10x8xf32, #tpu.memory_space<vmem>>, vector<2x4x4x8xf32>
    %183 = vector.shape_cast %182 : vector<2x4x4x8xf32> to vector<32x8xf32>
    %184 = arith.truncf %183 : vector<32x8xf32> to vector<32x8xbf16>
    %c8_194 = arith.constant 8 : index
    %c0_195 = arith.constant 0 : index
    %c0_196 = arith.constant 0 : index
    %185 = vector.load %arg3[%c8_194, %c0_195, %c0_196] : memref<16x8x16xbf16, #tpu.memory_space<vmem>>, vector<1x8x16xbf16>
    %186 = vector.shape_cast %185 : vector<1x8x16xbf16> to vector<8x16xbf16>
    %cst_197 = arith.constant dense<0.000000e+00> : vector<32x16xf32>
    %187 = tpu.matmul %184, %186, %cst_197 {dimension_numbers = #tpu.dot_dimension_numbers<[1], [0], [0], [1], [0, 0, 1, 1], [], []>} : vector<32x8xbf16>, vector<8x16xbf16>, vector<32x16xf32> -> vector<32x16xf32>
    %188 = arith.addf %181, %187 : vector<32x16xf32>
    %c0_198 = arith.constant 0 : index
    %c2_199 = arith.constant 2 : index
    %c1_200 = arith.constant 1 : index
    %c0_201 = arith.constant 0 : index
    %189 = tpu.strided_load %arg12[%c0_198, %c2_199, %c1_200, %c0_201] {strides = array<i32: 1, 2, 2, 1>} : memref<2x10x10x8xf32, #tpu.memory_space<vmem>>, vector<2x4x4x8xf32>
    %190 = vector.shape_cast %189 : vector<2x4x4x8xf32> to vector<32x8xf32>
    %191 = arith.truncf %190 : vector<32x8xf32> to vector<32x8xbf16>
    %c9_202 = arith.constant 9 : index
    %c0_203 = arith.constant 0 : index
    %c0_204 = arith.constant 0 : index
    %192 = vector.load %arg3[%c9_202, %c0_203, %c0_204] : memref<16x8x16xbf16, #tpu.memory_space<vmem>>, vector<1x8x16xbf16>
    %193 = vector.shape_cast %192 : vector<1x8x16xbf16> to vector<8x16xbf16>
    %cst_205 = arith.constant dense<0.000000e+00> : vector<32x16xf32>
    %194 = tpu.matmul %191, %193, %cst_205 {dimension_numbers = #tpu.dot_dimension_numbers<[1], [0], [0], [1], [0, 0, 1, 1], [], []>} : vector<32x8xbf16>, vector<8x16xbf16>, vector<32x16xf32> -> vector<32x16xf32>
    %195 = arith.addf %188, %194 : vector<32x16xf32>
    %c0_206 = arith.constant 0 : index
    %c2_207 = arith.constant 2 : index
    %c2_208 = arith.constant 2 : index
    %c0_209 = arith.constant 0 : index
    %196 = tpu.strided_load %arg12[%c0_206, %c2_207, %c2_208, %c0_209] {strides = array<i32: 1, 2, 2, 1>} : memref<2x10x10x8xf32, #tpu.memory_space<vmem>>, vector<2x4x4x8xf32>
    %197 = vector.shape_cast %196 : vector<2x4x4x8xf32> to vector<32x8xf32>
    %198 = arith.truncf %197 : vector<32x8xf32> to vector<32x8xbf16>
    %c10_210 = arith.constant 10 : index
    %c0_211 = arith.constant 0 : index
    %c0_212 = arith.constant 0 : index
    %199 = vector.load %arg3[%c10_210, %c0_211, %c0_212] : memref<16x8x16xbf16, #tpu.memory_space<vmem>>, vector<1x8x16xbf16>
    %200 = vector.shape_cast %199 : vector<1x8x16xbf16> to vector<8x16xbf16>
    %cst_213 = arith.constant dense<0.000000e+00> : vector<32x16xf32>
    %201 = tpu.matmul %198, %200, %cst_213 {dimension_numbers = #tpu.dot_dimension_numbers<[1], [0], [0], [1], [0, 0, 1, 1], [], []>} : vector<32x8xbf16>, vector<8x16xbf16>, vector<32x16xf32> -> vector<32x16xf32>
    %202 = arith.addf %195, %201 : vector<32x16xf32>
    %c0_214 = arith.constant 0 : index
    %c2_215 = arith.constant 2 : index
    %c3_216 = arith.constant 3 : index
    %c0_217 = arith.constant 0 : index
    %203 = tpu.strided_load %arg12[%c0_214, %c2_215, %c3_216, %c0_217] {strides = array<i32: 1, 2, 2, 1>} : memref<2x10x10x8xf32, #tpu.memory_space<vmem>>, vector<2x4x4x8xf32>
    %204 = vector.shape_cast %203 : vector<2x4x4x8xf32> to vector<32x8xf32>
    %205 = arith.truncf %204 : vector<32x8xf32> to vector<32x8xbf16>
    %c11_218 = arith.constant 11 : index
    %c0_219 = arith.constant 0 : index
    %c0_220 = arith.constant 0 : index
    %206 = vector.load %arg3[%c11_218, %c0_219, %c0_220] : memref<16x8x16xbf16, #tpu.memory_space<vmem>>, vector<1x8x16xbf16>
    %207 = vector.shape_cast %206 : vector<1x8x16xbf16> to vector<8x16xbf16>
    %cst_221 = arith.constant dense<0.000000e+00> : vector<32x16xf32>
    %208 = tpu.matmul %205, %207, %cst_221 {dimension_numbers = #tpu.dot_dimension_numbers<[1], [0], [0], [1], [0, 0, 1, 1], [], []>} : vector<32x8xbf16>, vector<8x16xbf16>, vector<32x16xf32> -> vector<32x16xf32>
    %209 = arith.addf %202, %208 : vector<32x16xf32>
    %c0_222 = arith.constant 0 : index
    %c3_223 = arith.constant 3 : index
    %c0_224 = arith.constant 0 : index
    %c0_225 = arith.constant 0 : index
    %210 = tpu.strided_load %arg12[%c0_222, %c3_223, %c0_224, %c0_225] {strides = array<i32: 1, 2, 2, 1>} : memref<2x10x10x8xf32, #tpu.memory_space<vmem>>, vector<2x4x4x8xf32>
    %211 = vector.shape_cast %210 : vector<2x4x4x8xf32> to vector<32x8xf32>
    %212 = arith.truncf %211 : vector<32x8xf32> to vector<32x8xbf16>
    %c12_226 = arith.constant 12 : index
    %c0_227 = arith.constant 0 : index
    %c0_228 = arith.constant 0 : index
    %213 = vector.load %arg3[%c12_226, %c0_227, %c0_228] : memref<16x8x16xbf16, #tpu.memory_space<vmem>>, vector<1x8x16xbf16>
    %214 = vector.shape_cast %213 : vector<1x8x16xbf16> to vector<8x16xbf16>
    %cst_229 = arith.constant dense<0.000000e+00> : vector<32x16xf32>
    %215 = tpu.matmul %212, %214, %cst_229 {dimension_numbers = #tpu.dot_dimension_numbers<[1], [0], [0], [1], [0, 0, 1, 1], [], []>} : vector<32x8xbf16>, vector<8x16xbf16>, vector<32x16xf32> -> vector<32x16xf32>
    %216 = arith.addf %209, %215 : vector<32x16xf32>
    %c0_230 = arith.constant 0 : index
    %c3_231 = arith.constant 3 : index
    %c1_232 = arith.constant 1 : index
    %c0_233 = arith.constant 0 : index
    %217 = tpu.strided_load %arg12[%c0_230, %c3_231, %c1_232, %c0_233] {strides = array<i32: 1, 2, 2, 1>} : memref<2x10x10x8xf32, #tpu.memory_space<vmem>>, vector<2x4x4x8xf32>
    %218 = vector.shape_cast %217 : vector<2x4x4x8xf32> to vector<32x8xf32>
    %219 = arith.truncf %218 : vector<32x8xf32> to vector<32x8xbf16>
    %c13_234 = arith.constant 13 : index
    %c0_235 = arith.constant 0 : index
    %c0_236 = arith.constant 0 : index
    %220 = vector.load %arg3[%c13_234, %c0_235, %c0_236] : memref<16x8x16xbf16, #tpu.memory_space<vmem>>, vector<1x8x16xbf16>
    %221 = vector.shape_cast %220 : vector<1x8x16xbf16> to vector<8x16xbf16>
    %cst_237 = arith.constant dense<0.000000e+00> : vector<32x16xf32>
    %222 = tpu.matmul %219, %221, %cst_237 {dimension_numbers = #tpu.dot_dimension_numbers<[1], [0], [0], [1], [0, 0, 1, 1], [], []>} : vector<32x8xbf16>, vector<8x16xbf16>, vector<32x16xf32> -> vector<32x16xf32>
    %223 = arith.addf %216, %222 : vector<32x16xf32>
    %c0_238 = arith.constant 0 : index
    %c3_239 = arith.constant 3 : index
    %c2_240 = arith.constant 2 : index
    %c0_241 = arith.constant 0 : index
    %224 = tpu.strided_load %arg12[%c0_238, %c3_239, %c2_240, %c0_241] {strides = array<i32: 1, 2, 2, 1>} : memref<2x10x10x8xf32, #tpu.memory_space<vmem>>, vector<2x4x4x8xf32>
    %225 = vector.shape_cast %224 : vector<2x4x4x8xf32> to vector<32x8xf32>
    %226 = arith.truncf %225 : vector<32x8xf32> to vector<32x8xbf16>
    %c14_242 = arith.constant 14 : index
    %c0_243 = arith.constant 0 : index
    %c0_244 = arith.constant 0 : index
    %227 = vector.load %arg3[%c14_242, %c0_243, %c0_244] : memref<16x8x16xbf16, #tpu.memory_space<vmem>>, vector<1x8x16xbf16>
    %228 = vector.shape_cast %227 : vector<1x8x16xbf16> to vector<8x16xbf16>
    %cst_245 = arith.constant dense<0.000000e+00> : vector<32x16xf32>
    %229 = tpu.matmul %226, %228, %cst_245 {dimension_numbers = #tpu.dot_dimension_numbers<[1], [0], [0], [1], [0, 0, 1, 1], [], []>} : vector<32x8xbf16>, vector<8x16xbf16>, vector<32x16xf32> -> vector<32x16xf32>
    %230 = arith.addf %223, %229 : vector<32x16xf32>
    %c0_246 = arith.constant 0 : index
    %c3_247 = arith.constant 3 : index
    %c3_248 = arith.constant 3 : index
    %c0_249 = arith.constant 0 : index
    %231 = tpu.strided_load %arg12[%c0_246, %c3_247, %c3_248, %c0_249] {strides = array<i32: 1, 2, 2, 1>} : memref<2x10x10x8xf32, #tpu.memory_space<vmem>>, vector<2x4x4x8xf32>
    %232 = vector.shape_cast %231 : vector<2x4x4x8xf32> to vector<32x8xf32>
    %233 = arith.truncf %232 : vector<32x8xf32> to vector<32x8xbf16>
    %c15_250 = arith.constant 15 : index
    %c0_251 = arith.constant 0 : index
    %c0_252 = arith.constant 0 : index
    %234 = vector.load %arg3[%c15_250, %c0_251, %c0_252] : memref<16x8x16xbf16, #tpu.memory_space<vmem>>, vector<1x8x16xbf16>
    %235 = vector.shape_cast %234 : vector<1x8x16xbf16> to vector<8x16xbf16>
    %cst_253 = arith.constant dense<0.000000e+00> : vector<32x16xf32>
    %236 = tpu.matmul %233, %235, %cst_253 {dimension_numbers = #tpu.dot_dimension_numbers<[1], [0], [0], [1], [0, 0, 1, 1], [], []>} : vector<32x8xbf16>, vector<8x16xbf16>, vector<32x16xf32> -> vector<32x16xf32>
    %237 = arith.addf %230, %236 : vector<32x16xf32>
    %cst_254 = arith.constant dense<0.000000e+00> : vector<16xf32>
    %238 = vector.multi_reduction <add>, %237, %cst_254 [0] : vector<32x16xf32> to vector<16xf32>
    %239 = vector.shape_cast %238 : vector<16xf32> to vector<1x16xf32>
    %cst_255 = arith.constant 3.200000e+01 : f32
    %240 = vector.broadcast %cst_255 : f32 to vector<1x16xf32>
    %241 = arith.divf %239, %240 : vector<1x16xf32>
    %242 = arith.mulf %237, %237 : vector<32x16xf32>
    %cst_256 = arith.constant dense<0.000000e+00> : vector<16xf32>
    %243 = vector.multi_reduction <add>, %242, %cst_256 [0] : vector<32x16xf32> to vector<16xf32>
    %244 = vector.shape_cast %243 : vector<16xf32> to vector<1x16xf32>
    %cst_257 = arith.constant 3.200000e+01 : f32
    %245 = vector.broadcast %cst_257 : f32 to vector<1x16xf32>
    %246 = arith.divf %244, %245 : vector<1x16xf32>
    %247 = arith.mulf %241, %241 : vector<1x16xf32>
    %248 = arith.subf %246, %247 : vector<1x16xf32>
    %c0_258 = arith.constant 0 : index
    %c0_259 = arith.constant 0 : index
    %249 = vector.load %arg4[%c0_258, %c0_259] : memref<1x16xf32, #tpu.memory_space<vmem>>, vector<1x16xf32>
    %cst_260 = arith.constant 9.99999974E-6 : f32
    %250 = vector.broadcast %cst_260 : f32 to vector<1x16xf32>
    %251 = arith.addf %248, %250 : vector<1x16xf32>
    %252 = math.rsqrt %251 : vector<1x16xf32>
    %253 = arith.mulf %249, %252 : vector<1x16xf32>
    %254 = vector.broadcast %253 : vector<1x16xf32> to vector<32x16xf32>
    %255 = arith.mulf %237, %254 : vector<32x16xf32>
    %c0_261 = arith.constant 0 : index
    %c0_262 = arith.constant 0 : index
    %256 = vector.load %arg5[%c0_261, %c0_262] : memref<1x16xf32, #tpu.memory_space<vmem>>, vector<1x16xf32>
    %257 = arith.mulf %241, %253 : vector<1x16xf32>
    %258 = arith.subf %256, %257 : vector<1x16xf32>
    %259 = vector.broadcast %258 : vector<1x16xf32> to vector<32x16xf32>
    %260 = arith.addf %255, %259 : vector<32x16xf32>
    %cst_263 = arith.constant 0.000000e+00 : f32
    %261 = vector.broadcast %cst_263 : f32 to vector<32x16xf32>
    %262 = arith.cmpf oge, %260, %261 : vector<32x16xf32>
    %cst_264 = arith.constant 2.000000e-01 : f32
    %263 = vector.broadcast %cst_264 : f32 to vector<32x16xf32>
    %264 = arith.mulf %263, %260 : vector<32x16xf32>
    %265 = arith.select %262, %260, %264 : vector<32x16xi1>, vector<32x16xf32>
    %cst_265 = arith.constant 0.000000e+00 : f32
    %266 = vector.broadcast %cst_265 : f32 to vector<2x6x6x16xf32>
    %c0_266 = arith.constant 0 : index
    %c0_267 = arith.constant 0 : index
    %c0_268 = arith.constant 0 : index
    %c0_269 = arith.constant 0 : index
    %267 = vector.load %arg13[%c0_266, %c0_267, %c0_268, %c0_269] : memref<2x6x6x16xf32, #tpu.memory_space<vmem>>, vector<2x6x6x16xf32>
    tpu.vector_store %arg13[%c0_266, %c0_267, %c0_268, %c0_269], %266 {strides = array<i32>} : memref<2x6x6x16xf32, #tpu.memory_space<vmem>>, vector<2x6x6x16xf32>,
    %268 = vector.shape_cast %265 : vector<32x16xf32> to vector<2x4x4x16xf32>
    %c0_270 = arith.constant 0 : index
    %c1_271 = arith.constant 1 : index
    %c1_272 = arith.constant 1 : index
    %c0_273 = arith.constant 0 : index
    %269 = vector.load %arg13[%c0_270, %c1_271, %c1_272, %c0_273] : memref<2x6x6x16xf32, #tpu.memory_space<vmem>>, vector<2x4x4x16xf32>
    tpu.vector_store %arg13[%c0_270, %c1_271, %c1_272, %c0_273], %268 {strides = array<i32>} : memref<2x6x6x16xf32, #tpu.memory_space<vmem>>, vector<2x4x4x16xf32>,
    %cst_274 = arith.constant 0.000000e+00 : f32
    %270 = vector.broadcast %cst_274 : f32 to vector<8x32xf32>
    %c0_275 = arith.constant 0 : index
    %c0_276 = arith.constant 0 : index
    %c0_277 = arith.constant 0 : index
    %c0_278 = arith.constant 0 : index
    %271 = tpu.strided_load %arg13[%c0_275, %c0_276, %c0_277, %c0_278] {strides = array<i32: 1, 2, 2, 1>} : memref<2x6x6x16xf32, #tpu.memory_space<vmem>>, vector<2x2x2x16xf32>
    %272 = vector.shape_cast %271 : vector<2x2x2x16xf32> to vector<8x16xf32>
    %273 = arith.truncf %272 : vector<8x16xf32> to vector<8x16xbf16>
    %c0_279 = arith.constant 0 : index
    %c0_280 = arith.constant 0 : index
    %c0_281 = arith.constant 0 : index
    %274 = vector.load %arg6[%c0_279, %c0_280, %c0_281] : memref<16x16x32xbf16, #tpu.memory_space<vmem>>, vector<1x16x32xbf16>
    %275 = vector.shape_cast %274 : vector<1x16x32xbf16> to vector<16x32xbf16>
    %cst_282 = arith.constant dense<0.000000e+00> : vector<8x32xf32>
    %276 = tpu.matmul %273, %275, %cst_282 {dimension_numbers = #tpu.dot_dimension_numbers<[1], [0], [0], [1], [0, 0, 1, 1], [], []>} : vector<8x16xbf16>, vector<16x32xbf16>, vector<8x32xf32> -> vector<8x32xf32>
    %277 = arith.addf %270, %276 : vector<8x32xf32>
    %c0_283 = arith.constant 0 : index
    %c0_284 = arith.constant 0 : index
    %c1_285 = arith.constant 1 : index
    %c0_286 = arith.constant 0 : index
    %278 = tpu.strided_load %arg13[%c0_283, %c0_284, %c1_285, %c0_286] {strides = array<i32: 1, 2, 2, 1>} : memref<2x6x6x16xf32, #tpu.memory_space<vmem>>, vector<2x2x2x16xf32>
    %279 = vector.shape_cast %278 : vector<2x2x2x16xf32> to vector<8x16xf32>
    %280 = arith.truncf %279 : vector<8x16xf32> to vector<8x16xbf16>
    %c1_287 = arith.constant 1 : index
    %c0_288 = arith.constant 0 : index
    %c0_289 = arith.constant 0 : index
    %281 = vector.load %arg6[%c1_287, %c0_288, %c0_289] : memref<16x16x32xbf16, #tpu.memory_space<vmem>>, vector<1x16x32xbf16>
    %282 = vector.shape_cast %281 : vector<1x16x32xbf16> to vector<16x32xbf16>
    %cst_290 = arith.constant dense<0.000000e+00> : vector<8x32xf32>
    %283 = tpu.matmul %280, %282, %cst_290 {dimension_numbers = #tpu.dot_dimension_numbers<[1], [0], [0], [1], [0, 0, 1, 1], [], []>} : vector<8x16xbf16>, vector<16x32xbf16>, vector<8x32xf32> -> vector<8x32xf32>
    %284 = arith.addf %277, %283 : vector<8x32xf32>
    %c0_291 = arith.constant 0 : index
    %c0_292 = arith.constant 0 : index
    %c2_293 = arith.constant 2 : index
    %c0_294 = arith.constant 0 : index
    %285 = tpu.strided_load %arg13[%c0_291, %c0_292, %c2_293, %c0_294] {strides = array<i32: 1, 2, 2, 1>} : memref<2x6x6x16xf32, #tpu.memory_space<vmem>>, vector<2x2x2x16xf32>
    %286 = vector.shape_cast %285 : vector<2x2x2x16xf32> to vector<8x16xf32>
    %287 = arith.truncf %286 : vector<8x16xf32> to vector<8x16xbf16>
    %c2_295 = arith.constant 2 : index
    %c0_296 = arith.constant 0 : index
    %c0_297 = arith.constant 0 : index
    %288 = vector.load %arg6[%c2_295, %c0_296, %c0_297] : memref<16x16x32xbf16, #tpu.memory_space<vmem>>, vector<1x16x32xbf16>
    %289 = vector.shape_cast %288 : vector<1x16x32xbf16> to vector<16x32xbf16>
    %cst_298 = arith.constant dense<0.000000e+00> : vector<8x32xf32>
    %290 = tpu.matmul %287, %289, %cst_298 {dimension_numbers = #tpu.dot_dimension_numbers<[1], [0], [0], [1], [0, 0, 1, 1], [], []>} : vector<8x16xbf16>, vector<16x32xbf16>, vector<8x32xf32> -> vector<8x32xf32>
    %291 = arith.addf %284, %290 : vector<8x32xf32>
    %c0_299 = arith.constant 0 : index
    %c0_300 = arith.constant 0 : index
    %c3_301 = arith.constant 3 : index
    %c0_302 = arith.constant 0 : index
    %292 = tpu.strided_load %arg13[%c0_299, %c0_300, %c3_301, %c0_302] {strides = array<i32: 1, 2, 2, 1>} : memref<2x6x6x16xf32, #tpu.memory_space<vmem>>, vector<2x2x2x16xf32>
    %293 = vector.shape_cast %292 : vector<2x2x2x16xf32> to vector<8x16xf32>
    %294 = arith.truncf %293 : vector<8x16xf32> to vector<8x16xbf16>
    %c3_303 = arith.constant 3 : index
    %c0_304 = arith.constant 0 : index
    %c0_305 = arith.constant 0 : index
    %295 = vector.load %arg6[%c3_303, %c0_304, %c0_305] : memref<16x16x32xbf16, #tpu.memory_space<vmem>>, vector<1x16x32xbf16>
    %296 = vector.shape_cast %295 : vector<1x16x32xbf16> to vector<16x32xbf16>
    %cst_306 = arith.constant dense<0.000000e+00> : vector<8x32xf32>
    %297 = tpu.matmul %294, %296, %cst_306 {dimension_numbers = #tpu.dot_dimension_numbers<[1], [0], [0], [1], [0, 0, 1, 1], [], []>} : vector<8x16xbf16>, vector<16x32xbf16>, vector<8x32xf32> -> vector<8x32xf32>
    %298 = arith.addf %291, %297 : vector<8x32xf32>
    %c0_307 = arith.constant 0 : index
    %c1_308 = arith.constant 1 : index
    %c0_309 = arith.constant 0 : index
    %c0_310 = arith.constant 0 : index
    %299 = tpu.strided_load %arg13[%c0_307, %c1_308, %c0_309, %c0_310] {strides = array<i32: 1, 2, 2, 1>} : memref<2x6x6x16xf32, #tpu.memory_space<vmem>>, vector<2x2x2x16xf32>
    %300 = vector.shape_cast %299 : vector<2x2x2x16xf32> to vector<8x16xf32>
    %301 = arith.truncf %300 : vector<8x16xf32> to vector<8x16xbf16>
    %c4_311 = arith.constant 4 : index
    %c0_312 = arith.constant 0 : index
    %c0_313 = arith.constant 0 : index
    %302 = vector.load %arg6[%c4_311, %c0_312, %c0_313] : memref<16x16x32xbf16, #tpu.memory_space<vmem>>, vector<1x16x32xbf16>
    %303 = vector.shape_cast %302 : vector<1x16x32xbf16> to vector<16x32xbf16>
    %cst_314 = arith.constant dense<0.000000e+00> : vector<8x32xf32>
    %304 = tpu.matmul %301, %303, %cst_314 {dimension_numbers = #tpu.dot_dimension_numbers<[1], [0], [0], [1], [0, 0, 1, 1], [], []>} : vector<8x16xbf16>, vector<16x32xbf16>, vector<8x32xf32> -> vector<8x32xf32>
    %305 = arith.addf %298, %304 : vector<8x32xf32>
    %c0_315 = arith.constant 0 : index
    %c1_316 = arith.constant 1 : index
    %c1_317 = arith.constant 1 : index
    %c0_318 = arith.constant 0 : index
    %306 = tpu.strided_load %arg13[%c0_315, %c1_316, %c1_317, %c0_318] {strides = array<i32: 1, 2, 2, 1>} : memref<2x6x6x16xf32, #tpu.memory_space<vmem>>, vector<2x2x2x16xf32>
    %307 = vector.shape_cast %306 : vector<2x2x2x16xf32> to vector<8x16xf32>
    %308 = arith.truncf %307 : vector<8x16xf32> to vector<8x16xbf16>
    %c5_319 = arith.constant 5 : index
    %c0_320 = arith.constant 0 : index
    %c0_321 = arith.constant 0 : index
    %309 = vector.load %arg6[%c5_319, %c0_320, %c0_321] : memref<16x16x32xbf16, #tpu.memory_space<vmem>>, vector<1x16x32xbf16>
    %310 = vector.shape_cast %309 : vector<1x16x32xbf16> to vector<16x32xbf16>
    %cst_322 = arith.constant dense<0.000000e+00> : vector<8x32xf32>
    %311 = tpu.matmul %308, %310, %cst_322 {dimension_numbers = #tpu.dot_dimension_numbers<[1], [0], [0], [1], [0, 0, 1, 1], [], []>} : vector<8x16xbf16>, vector<16x32xbf16>, vector<8x32xf32> -> vector<8x32xf32>
    %312 = arith.addf %305, %311 : vector<8x32xf32>
    %c0_323 = arith.constant 0 : index
    %c1_324 = arith.constant 1 : index
    %c2_325 = arith.constant 2 : index
    %c0_326 = arith.constant 0 : index
    %313 = tpu.strided_load %arg13[%c0_323, %c1_324, %c2_325, %c0_326] {strides = array<i32: 1, 2, 2, 1>} : memref<2x6x6x16xf32, #tpu.memory_space<vmem>>, vector<2x2x2x16xf32>
    %314 = vector.shape_cast %313 : vector<2x2x2x16xf32> to vector<8x16xf32>
    %315 = arith.truncf %314 : vector<8x16xf32> to vector<8x16xbf16>
    %c6_327 = arith.constant 6 : index
    %c0_328 = arith.constant 0 : index
    %c0_329 = arith.constant 0 : index
    %316 = vector.load %arg6[%c6_327, %c0_328, %c0_329] : memref<16x16x32xbf16, #tpu.memory_space<vmem>>, vector<1x16x32xbf16>
    %317 = vector.shape_cast %316 : vector<1x16x32xbf16> to vector<16x32xbf16>
    %cst_330 = arith.constant dense<0.000000e+00> : vector<8x32xf32>
    %318 = tpu.matmul %315, %317, %cst_330 {dimension_numbers = #tpu.dot_dimension_numbers<[1], [0], [0], [1], [0, 0, 1, 1], [], []>} : vector<8x16xbf16>, vector<16x32xbf16>, vector<8x32xf32> -> vector<8x32xf32>
    %319 = arith.addf %312, %318 : vector<8x32xf32>
    %c0_331 = arith.constant 0 : index
    %c1_332 = arith.constant 1 : index
    %c3_333 = arith.constant 3 : index
    %c0_334 = arith.constant 0 : index
    %320 = tpu.strided_load %arg13[%c0_331, %c1_332, %c3_333, %c0_334] {strides = array<i32: 1, 2, 2, 1>} : memref<2x6x6x16xf32, #tpu.memory_space<vmem>>, vector<2x2x2x16xf32>
    %321 = vector.shape_cast %320 : vector<2x2x2x16xf32> to vector<8x16xf32>
    %322 = arith.truncf %321 : vector<8x16xf32> to vector<8x16xbf16>
    %c7_335 = arith.constant 7 : index
    %c0_336 = arith.constant 0 : index
    %c0_337 = arith.constant 0 : index
    %323 = vector.load %arg6[%c7_335, %c0_336, %c0_337] : memref<16x16x32xbf16, #tpu.memory_space<vmem>>, vector<1x16x32xbf16>
    %324 = vector.shape_cast %323 : vector<1x16x32xbf16> to vector<16x32xbf16>
    %cst_338 = arith.constant dense<0.000000e+00> : vector<8x32xf32>
    %325 = tpu.matmul %322, %324, %cst_338 {dimension_numbers = #tpu.dot_dimension_numbers<[1], [0], [0], [1], [0, 0, 1, 1], [], []>} : vector<8x16xbf16>, vector<16x32xbf16>, vector<8x32xf32> -> vector<8x32xf32>
    %326 = arith.addf %319, %325 : vector<8x32xf32>
    %c0_339 = arith.constant 0 : index
    %c2_340 = arith.constant 2 : index
    %c0_341 = arith.constant 0 : index
    %c0_342 = arith.constant 0 : index
    %327 = tpu.strided_load %arg13[%c0_339, %c2_340, %c0_341, %c0_342] {strides = array<i32: 1, 2, 2, 1>} : memref<2x6x6x16xf32, #tpu.memory_space<vmem>>, vector<2x2x2x16xf32>
    %328 = vector.shape_cast %327 : vector<2x2x2x16xf32> to vector<8x16xf32>
    %329 = arith.truncf %328 : vector<8x16xf32> to vector<8x16xbf16>
    %c8_343 = arith.constant 8 : index
    %c0_344 = arith.constant 0 : index
    %c0_345 = arith.constant 0 : index
    %330 = vector.load %arg6[%c8_343, %c0_344, %c0_345] : memref<16x16x32xbf16, #tpu.memory_space<vmem>>, vector<1x16x32xbf16>
    %331 = vector.shape_cast %330 : vector<1x16x32xbf16> to vector<16x32xbf16>
    %cst_346 = arith.constant dense<0.000000e+00> : vector<8x32xf32>
    %332 = tpu.matmul %329, %331, %cst_346 {dimension_numbers = #tpu.dot_dimension_numbers<[1], [0], [0], [1], [0, 0, 1, 1], [], []>} : vector<8x16xbf16>, vector<16x32xbf16>, vector<8x32xf32> -> vector<8x32xf32>
    %333 = arith.addf %326, %332 : vector<8x32xf32>
    %c0_347 = arith.constant 0 : index
    %c2_348 = arith.constant 2 : index
    %c1_349 = arith.constant 1 : index
    %c0_350 = arith.constant 0 : index
    %334 = tpu.strided_load %arg13[%c0_347, %c2_348, %c1_349, %c0_350] {strides = array<i32: 1, 2, 2, 1>} : memref<2x6x6x16xf32, #tpu.memory_space<vmem>>, vector<2x2x2x16xf32>
    %335 = vector.shape_cast %334 : vector<2x2x2x16xf32> to vector<8x16xf32>
    %336 = arith.truncf %335 : vector<8x16xf32> to vector<8x16xbf16>
    %c9_351 = arith.constant 9 : index
    %c0_352 = arith.constant 0 : index
    %c0_353 = arith.constant 0 : index
    %337 = vector.load %arg6[%c9_351, %c0_352, %c0_353] : memref<16x16x32xbf16, #tpu.memory_space<vmem>>, vector<1x16x32xbf16>
    %338 = vector.shape_cast %337 : vector<1x16x32xbf16> to vector<16x32xbf16>
    %cst_354 = arith.constant dense<0.000000e+00> : vector<8x32xf32>
    %339 = tpu.matmul %336, %338, %cst_354 {dimension_numbers = #tpu.dot_dimension_numbers<[1], [0], [0], [1], [0, 0, 1, 1], [], []>} : vector<8x16xbf16>, vector<16x32xbf16>, vector<8x32xf32> -> vector<8x32xf32>
    %340 = arith.addf %333, %339 : vector<8x32xf32>
    %c0_355 = arith.constant 0 : index
    %c2_356 = arith.constant 2 : index
    %c2_357 = arith.constant 2 : index
    %c0_358 = arith.constant 0 : index
    %341 = tpu.strided_load %arg13[%c0_355, %c2_356, %c2_357, %c0_358] {strides = array<i32: 1, 2, 2, 1>} : memref<2x6x6x16xf32, #tpu.memory_space<vmem>>, vector<2x2x2x16xf32>
    %342 = vector.shape_cast %341 : vector<2x2x2x16xf32> to vector<8x16xf32>
    %343 = arith.truncf %342 : vector<8x16xf32> to vector<8x16xbf16>
    %c10_359 = arith.constant 10 : index
    %c0_360 = arith.constant 0 : index
    %c0_361 = arith.constant 0 : index
    %344 = vector.load %arg6[%c10_359, %c0_360, %c0_361] : memref<16x16x32xbf16, #tpu.memory_space<vmem>>, vector<1x16x32xbf16>
    %345 = vector.shape_cast %344 : vector<1x16x32xbf16> to vector<16x32xbf16>
    %cst_362 = arith.constant dense<0.000000e+00> : vector<8x32xf32>
    %346 = tpu.matmul %343, %345, %cst_362 {dimension_numbers = #tpu.dot_dimension_numbers<[1], [0], [0], [1], [0, 0, 1, 1], [], []>} : vector<8x16xbf16>, vector<16x32xbf16>, vector<8x32xf32> -> vector<8x32xf32>
    %347 = arith.addf %340, %346 : vector<8x32xf32>
    %c0_363 = arith.constant 0 : index
    %c2_364 = arith.constant 2 : index
    %c3_365 = arith.constant 3 : index
    %c0_366 = arith.constant 0 : index
    %348 = tpu.strided_load %arg13[%c0_363, %c2_364, %c3_365, %c0_366] {strides = array<i32: 1, 2, 2, 1>} : memref<2x6x6x16xf32, #tpu.memory_space<vmem>>, vector<2x2x2x16xf32>
    %349 = vector.shape_cast %348 : vector<2x2x2x16xf32> to vector<8x16xf32>
    %350 = arith.truncf %349 : vector<8x16xf32> to vector<8x16xbf16>
    %c11_367 = arith.constant 11 : index
    %c0_368 = arith.constant 0 : index
    %c0_369 = arith.constant 0 : index
    %351 = vector.load %arg6[%c11_367, %c0_368, %c0_369] : memref<16x16x32xbf16, #tpu.memory_space<vmem>>, vector<1x16x32xbf16>
    %352 = vector.shape_cast %351 : vector<1x16x32xbf16> to vector<16x32xbf16>
    %cst_370 = arith.constant dense<0.000000e+00> : vector<8x32xf32>
    %353 = tpu.matmul %350, %352, %cst_370 {dimension_numbers = #tpu.dot_dimension_numbers<[1], [0], [0], [1], [0, 0, 1, 1], [], []>} : vector<8x16xbf16>, vector<16x32xbf16>, vector<8x32xf32> -> vector<8x32xf32>
    %354 = arith.addf %347, %353 : vector<8x32xf32>
    %c0_371 = arith.constant 0 : index
    %c3_372 = arith.constant 3 : index
    %c0_373 = arith.constant 0 : index
    %c0_374 = arith.constant 0 : index
    %355 = tpu.strided_load %arg13[%c0_371, %c3_372, %c0_373, %c0_374] {strides = array<i32: 1, 2, 2, 1>} : memref<2x6x6x16xf32, #tpu.memory_space<vmem>>, vector<2x2x2x16xf32>
    %356 = vector.shape_cast %355 : vector<2x2x2x16xf32> to vector<8x16xf32>
    %357 = arith.truncf %356 : vector<8x16xf32> to vector<8x16xbf16>
    %c12_375 = arith.constant 12 : index
    %c0_376 = arith.constant 0 : index
    %c0_377 = arith.constant 0 : index
    %358 = vector.load %arg6[%c12_375, %c0_376, %c0_377] : memref<16x16x32xbf16, #tpu.memory_space<vmem>>, vector<1x16x32xbf16>
    %359 = vector.shape_cast %358 : vector<1x16x32xbf16> to vector<16x32xbf16>
    %cst_378 = arith.constant dense<0.000000e+00> : vector<8x32xf32>
    %360 = tpu.matmul %357, %359, %cst_378 {dimension_numbers = #tpu.dot_dimension_numbers<[1], [0], [0], [1], [0, 0, 1, 1], [], []>} : vector<8x16xbf16>, vector<16x32xbf16>, vector<8x32xf32> -> vector<8x32xf32>
    %361 = arith.addf %354, %360 : vector<8x32xf32>
    %c0_379 = arith.constant 0 : index
    %c3_380 = arith.constant 3 : index
    %c1_381 = arith.constant 1 : index
    %c0_382 = arith.constant 0 : index
    %362 = tpu.strided_load %arg13[%c0_379, %c3_380, %c1_381, %c0_382] {strides = array<i32: 1, 2, 2, 1>} : memref<2x6x6x16xf32, #tpu.memory_space<vmem>>, vector<2x2x2x16xf32>
    %363 = vector.shape_cast %362 : vector<2x2x2x16xf32> to vector<8x16xf32>
    %364 = arith.truncf %363 : vector<8x16xf32> to vector<8x16xbf16>
    %c13_383 = arith.constant 13 : index
    %c0_384 = arith.constant 0 : index
    %c0_385 = arith.constant 0 : index
    %365 = vector.load %arg6[%c13_383, %c0_384, %c0_385] : memref<16x16x32xbf16, #tpu.memory_space<vmem>>, vector<1x16x32xbf16>
    %366 = vector.shape_cast %365 : vector<1x16x32xbf16> to vector<16x32xbf16>
    %cst_386 = arith.constant dense<0.000000e+00> : vector<8x32xf32>
    %367 = tpu.matmul %364, %366, %cst_386 {dimension_numbers = #tpu.dot_dimension_numbers<[1], [0], [0], [1], [0, 0, 1, 1], [], []>} : vector<8x16xbf16>, vector<16x32xbf16>, vector<8x32xf32> -> vector<8x32xf32>
    %368 = arith.addf %361, %367 : vector<8x32xf32>
    %c0_387 = arith.constant 0 : index
    %c3_388 = arith.constant 3 : index
    %c2_389 = arith.constant 2 : index
    %c0_390 = arith.constant 0 : index
    %369 = tpu.strided_load %arg13[%c0_387, %c3_388, %c2_389, %c0_390] {strides = array<i32: 1, 2, 2, 1>} : memref<2x6x6x16xf32, #tpu.memory_space<vmem>>, vector<2x2x2x16xf32>
    %370 = vector.shape_cast %369 : vector<2x2x2x16xf32> to vector<8x16xf32>
    %371 = arith.truncf %370 : vector<8x16xf32> to vector<8x16xbf16>
    %c14_391 = arith.constant 14 : index
    %c0_392 = arith.constant 0 : index
    %c0_393 = arith.constant 0 : index
    %372 = vector.load %arg6[%c14_391, %c0_392, %c0_393] : memref<16x16x32xbf16, #tpu.memory_space<vmem>>, vector<1x16x32xbf16>
    %373 = vector.shape_cast %372 : vector<1x16x32xbf16> to vector<16x32xbf16>
    %cst_394 = arith.constant dense<0.000000e+00> : vector<8x32xf32>
    %374 = tpu.matmul %371, %373, %cst_394 {dimension_numbers = #tpu.dot_dimension_numbers<[1], [0], [0], [1], [0, 0, 1, 1], [], []>} : vector<8x16xbf16>, vector<16x32xbf16>, vector<8x32xf32> -> vector<8x32xf32>
    %375 = arith.addf %368, %374 : vector<8x32xf32>
    %c0_395 = arith.constant 0 : index
    %c3_396 = arith.constant 3 : index
    %c3_397 = arith.constant 3 : index
    %c0_398 = arith.constant 0 : index
    %376 = tpu.strided_load %arg13[%c0_395, %c3_396, %c3_397, %c0_398] {strides = array<i32: 1, 2, 2, 1>} : memref<2x6x6x16xf32, #tpu.memory_space<vmem>>, vector<2x2x2x16xf32>
    %377 = vector.shape_cast %376 : vector<2x2x2x16xf32> to vector<8x16xf32>
    %378 = arith.truncf %377 : vector<8x16xf32> to vector<8x16xbf16>
    %c15_399 = arith.constant 15 : index
    %c0_400 = arith.constant 0 : index
    %c0_401 = arith.constant 0 : index
    %379 = vector.load %arg6[%c15_399, %c0_400, %c0_401] : memref<16x16x32xbf16, #tpu.memory_space<vmem>>, vector<1x16x32xbf16>
    %380 = vector.shape_cast %379 : vector<1x16x32xbf16> to vector<16x32xbf16>
    %cst_402 = arith.constant dense<0.000000e+00> : vector<8x32xf32>
    %381 = tpu.matmul %378, %380, %cst_402 {dimension_numbers = #tpu.dot_dimension_numbers<[1], [0], [0], [1], [0, 0, 1, 1], [], []>} : vector<8x16xbf16>, vector<16x32xbf16>, vector<8x32xf32> -> vector<8x32xf32>
    %382 = arith.addf %375, %381 : vector<8x32xf32>
    %cst_403 = arith.constant dense<0.000000e+00> : vector<32xf32>
    %383 = vector.multi_reduction <add>, %382, %cst_403 [0] : vector<8x32xf32> to vector<32xf32>
    %384 = vector.shape_cast %383 : vector<32xf32> to vector<1x32xf32>
    %cst_404 = arith.constant 8.000000e+00 : f32
    %385 = vector.broadcast %cst_404 : f32 to vector<1x32xf32>
    %386 = arith.divf %384, %385 : vector<1x32xf32>
    %387 = arith.mulf %382, %382 : vector<8x32xf32>
    %cst_405 = arith.constant dense<0.000000e+00> : vector<32xf32>
    %388 = vector.multi_reduction <add>, %387, %cst_405 [0] : vector<8x32xf32> to vector<32xf32>
    %389 = vector.shape_cast %388 : vector<32xf32> to vector<1x32xf32>
    %cst_406 = arith.constant 8.000000e+00 : f32
    %390 = vector.broadcast %cst_406 : f32 to vector<1x32xf32>
    %391 = arith.divf %389, %390 : vector<1x32xf32>
    %392 = arith.mulf %386, %386 : vector<1x32xf32>
    %393 = arith.subf %391, %392 : vector<1x32xf32>
    %c0_407 = arith.constant 0 : index
    %c0_408 = arith.constant 0 : index
    %394 = vector.load %arg7[%c0_407, %c0_408] : memref<1x32xf32, #tpu.memory_space<vmem>>, vector<1x32xf32>
    %cst_409 = arith.constant 9.99999974E-6 : f32
    %395 = vector.broadcast %cst_409 : f32 to vector<1x32xf32>
    %396 = arith.addf %393, %395 : vector<1x32xf32>
    %397 = math.rsqrt %396 : vector<1x32xf32>
    %398 = arith.mulf %394, %397 : vector<1x32xf32>
    %399 = vector.broadcast %398 : vector<1x32xf32> to vector<8x32xf32>
    %400 = arith.mulf %382, %399 : vector<8x32xf32>
    %c0_410 = arith.constant 0 : index
    %c0_411 = arith.constant 0 : index
    %401 = vector.load %arg8[%c0_410, %c0_411] : memref<1x32xf32, #tpu.memory_space<vmem>>, vector<1x32xf32>
    %402 = arith.mulf %386, %398 : vector<1x32xf32>
    %403 = arith.subf %401, %402 : vector<1x32xf32>
    %404 = vector.broadcast %403 : vector<1x32xf32> to vector<8x32xf32>
    %405 = arith.addf %400, %404 : vector<8x32xf32>
    %cst_412 = arith.constant 0.000000e+00 : f32
    %406 = vector.broadcast %cst_412 : f32 to vector<8x32xf32>
    %407 = arith.cmpf oge, %405, %406 : vector<8x32xf32>
    %cst_413 = arith.constant 2.000000e-01 : f32
    %408 = vector.broadcast %cst_413 : f32 to vector<8x32xf32>
    %409 = arith.mulf %408, %405 : vector<8x32xf32>
    %410 = arith.select %407, %405, %409 : vector<8x32xi1>, vector<8x32xf32>
    %cst_414 = arith.constant 0.000000e+00 : f32
    %411 = vector.broadcast %cst_414 : f32 to vector<2x4x4x32xf32>
    %c0_415 = arith.constant 0 : index
    %c0_416 = arith.constant 0 : index
    %c0_417 = arith.constant 0 : index
    %c0_418 = arith.constant 0 : index
    %412 = vector.load %arg14[%c0_415, %c0_416, %c0_417, %c0_418] : memref<2x4x4x32xf32, #tpu.memory_space<vmem>>, vector<2x4x4x32xf32>
    tpu.vector_store %arg14[%c0_415, %c0_416, %c0_417, %c0_418], %411 {strides = array<i32>} : memref<2x4x4x32xf32, #tpu.memory_space<vmem>>, vector<2x4x4x32xf32>,
    %413 = vector.shape_cast %410 : vector<8x32xf32> to vector<2x2x2x32xf32>
    %c0_419 = arith.constant 0 : index
    %c1_420 = arith.constant 1 : index
    %c1_421 = arith.constant 1 : index
    %c0_422 = arith.constant 0 : index
    %414 = vector.load %arg14[%c0_419, %c1_420, %c1_421, %c0_422] : memref<2x4x4x32xf32, #tpu.memory_space<vmem>>, vector<2x2x2x32xf32>
    tpu.vector_store %arg14[%c0_419, %c1_420, %c1_421, %c0_422], %413 {strides = array<i32>} : memref<2x4x4x32xf32, #tpu.memory_space<vmem>>, vector<2x2x2x32xf32>,
    %cst_423 = arith.constant 0.000000e+00 : f32
    %415 = vector.broadcast %cst_423 : f32 to vector<8x32xf32>
    %c0_424 = arith.constant 0 : index
    %c0_425 = arith.constant 0 : index
    %c0_426 = arith.constant 0 : index
    %c0_427 = arith.constant 0 : index
    %416 = vector.load %arg14[%c0_424, %c0_425, %c0_426, %c0_427] : memref<2x4x4x32xf32, #tpu.memory_space<vmem>>, vector<2x2x2x32xf32>
    %417 = vector.shape_cast %416 : vector<2x2x2x32xf32> to vector<8x32xf32>
    %c0_428 = arith.constant 0 : index
    %c0_429 = arith.constant 0 : index
    %c0_430 = arith.constant 0 : index
    %418 = vector.load %arg9[%c0_428, %c0_429, %c0_430] : memref<9x1x32xf32, #tpu.memory_space<vmem>>, vector<1x1x32xf32>
    %419 = vector.shape_cast %418 : vector<1x1x32xf32> to vector<1x32xf32>
    %420 = vector.broadcast %419 : vector<1x32xf32> to vector<8x32xf32>
    %421 = arith.mulf %417, %420 : vector<8x32xf32>
    %422 = arith.addf %415, %421 : vector<8x32xf32>
    %c0_431 = arith.constant 0 : index
    %c0_432 = arith.constant 0 : index
    %c1_433 = arith.constant 1 : index
    %c0_434 = arith.constant 0 : index
    %423 = vector.load %arg14[%c0_431, %c0_432, %c1_433, %c0_434] : memref<2x4x4x32xf32, #tpu.memory_space<vmem>>, vector<2x2x2x32xf32>
    %424 = vector.shape_cast %423 : vector<2x2x2x32xf32> to vector<8x32xf32>
    %c1_435 = arith.constant 1 : index
    %c0_436 = arith.constant 0 : index
    %c0_437 = arith.constant 0 : index
    %425 = vector.load %arg9[%c1_435, %c0_436, %c0_437] : memref<9x1x32xf32, #tpu.memory_space<vmem>>, vector<1x1x32xf32>
    %426 = vector.shape_cast %425 : vector<1x1x32xf32> to vector<1x32xf32>
    %427 = vector.broadcast %426 : vector<1x32xf32> to vector<8x32xf32>
    %428 = arith.mulf %424, %427 : vector<8x32xf32>
    %429 = arith.addf %422, %428 : vector<8x32xf32>
    %c0_438 = arith.constant 0 : index
    %c0_439 = arith.constant 0 : index
    %c2_440 = arith.constant 2 : index
    %c0_441 = arith.constant 0 : index
    %430 = vector.load %arg14[%c0_438, %c0_439, %c2_440, %c0_441] : memref<2x4x4x32xf32, #tpu.memory_space<vmem>>, vector<2x2x2x32xf32>
    %431 = vector.shape_cast %430 : vector<2x2x2x32xf32> to vector<8x32xf32>
    %c2_442 = arith.constant 2 : index
    %c0_443 = arith.constant 0 : index
    %c0_444 = arith.constant 0 : index
    %432 = vector.load %arg9[%c2_442, %c0_443, %c0_444] : memref<9x1x32xf32, #tpu.memory_space<vmem>>, vector<1x1x32xf32>
    %433 = vector.shape_cast %432 : vector<1x1x32xf32> to vector<1x32xf32>
    %434 = vector.broadcast %433 : vector<1x32xf32> to vector<8x32xf32>
    %435 = arith.mulf %431, %434 : vector<8x32xf32>
    %436 = arith.addf %429, %435 : vector<8x32xf32>
    %c0_445 = arith.constant 0 : index
    %c1_446 = arith.constant 1 : index
    %c0_447 = arith.constant 0 : index
    %c0_448 = arith.constant 0 : index
    %437 = vector.load %arg14[%c0_445, %c1_446, %c0_447, %c0_448] : memref<2x4x4x32xf32, #tpu.memory_space<vmem>>, vector<2x2x2x32xf32>
    %438 = vector.shape_cast %437 : vector<2x2x2x32xf32> to vector<8x32xf32>
    %c3_449 = arith.constant 3 : index
    %c0_450 = arith.constant 0 : index
    %c0_451 = arith.constant 0 : index
    %439 = vector.load %arg9[%c3_449, %c0_450, %c0_451] : memref<9x1x32xf32, #tpu.memory_space<vmem>>, vector<1x1x32xf32>
    %440 = vector.shape_cast %439 : vector<1x1x32xf32> to vector<1x32xf32>
    %441 = vector.broadcast %440 : vector<1x32xf32> to vector<8x32xf32>
    %442 = arith.mulf %438, %441 : vector<8x32xf32>
    %443 = arith.addf %436, %442 : vector<8x32xf32>
    %c0_452 = arith.constant 0 : index
    %c1_453 = arith.constant 1 : index
    %c1_454 = arith.constant 1 : index
    %c0_455 = arith.constant 0 : index
    %444 = vector.load %arg14[%c0_452, %c1_453, %c1_454, %c0_455] : memref<2x4x4x32xf32, #tpu.memory_space<vmem>>, vector<2x2x2x32xf32>
    %445 = vector.shape_cast %444 : vector<2x2x2x32xf32> to vector<8x32xf32>
    %c4_456 = arith.constant 4 : index
    %c0_457 = arith.constant 0 : index
    %c0_458 = arith.constant 0 : index
    %446 = vector.load %arg9[%c4_456, %c0_457, %c0_458] : memref<9x1x32xf32, #tpu.memory_space<vmem>>, vector<1x1x32xf32>
    %447 = vector.shape_cast %446 : vector<1x1x32xf32> to vector<1x32xf32>
    %448 = vector.broadcast %447 : vector<1x32xf32> to vector<8x32xf32>
    %449 = arith.mulf %445, %448 : vector<8x32xf32>
    %450 = arith.addf %443, %449 : vector<8x32xf32>
    %c0_459 = arith.constant 0 : index
    %c1_460 = arith.constant 1 : index
    %c2_461 = arith.constant 2 : index
    %c0_462 = arith.constant 0 : index
    %451 = vector.load %arg14[%c0_459, %c1_460, %c2_461, %c0_462] : memref<2x4x4x32xf32, #tpu.memory_space<vmem>>, vector<2x2x2x32xf32>
    %452 = vector.shape_cast %451 : vector<2x2x2x32xf32> to vector<8x32xf32>
    %c5_463 = arith.constant 5 : index
    %c0_464 = arith.constant 0 : index
    %c0_465 = arith.constant 0 : index
    %453 = vector.load %arg9[%c5_463, %c0_464, %c0_465] : memref<9x1x32xf32, #tpu.memory_space<vmem>>, vector<1x1x32xf32>
    %454 = vector.shape_cast %453 : vector<1x1x32xf32> to vector<1x32xf32>
    %455 = vector.broadcast %454 : vector<1x32xf32> to vector<8x32xf32>
    %456 = arith.mulf %452, %455 : vector<8x32xf32>
    %457 = arith.addf %450, %456 : vector<8x32xf32>
    %c0_466 = arith.constant 0 : index
    %c2_467 = arith.constant 2 : index
    %c0_468 = arith.constant 0 : index
    %c0_469 = arith.constant 0 : index
    %458 = vector.load %arg14[%c0_466, %c2_467, %c0_468, %c0_469] : memref<2x4x4x32xf32, #tpu.memory_space<vmem>>, vector<2x2x2x32xf32>
    %459 = vector.shape_cast %458 : vector<2x2x2x32xf32> to vector<8x32xf32>
    %c6_470 = arith.constant 6 : index
    %c0_471 = arith.constant 0 : index
    %c0_472 = arith.constant 0 : index
    %460 = vector.load %arg9[%c6_470, %c0_471, %c0_472] : memref<9x1x32xf32, #tpu.memory_space<vmem>>, vector<1x1x32xf32>
    %461 = vector.shape_cast %460 : vector<1x1x32xf32> to vector<1x32xf32>
    %462 = vector.broadcast %461 : vector<1x32xf32> to vector<8x32xf32>
    %463 = arith.mulf %459, %462 : vector<8x32xf32>
    %464 = arith.addf %457, %463 : vector<8x32xf32>
    %c0_473 = arith.constant 0 : index
    %c2_474 = arith.constant 2 : index
    %c1_475 = arith.constant 1 : index
    %c0_476 = arith.constant 0 : index
    %465 = vector.load %arg14[%c0_473, %c2_474, %c1_475, %c0_476] : memref<2x4x4x32xf32, #tpu.memory_space<vmem>>, vector<2x2x2x32xf32>
    %466 = vector.shape_cast %465 : vector<2x2x2x32xf32> to vector<8x32xf32>
    %c7_477 = arith.constant 7 : index
    %c0_478 = arith.constant 0 : index
    %c0_479 = arith.constant 0 : index
    %467 = vector.load %arg9[%c7_477, %c0_478, %c0_479] : memref<9x1x32xf32, #tpu.memory_space<vmem>>, vector<1x1x32xf32>
    %468 = vector.shape_cast %467 : vector<1x1x32xf32> to vector<1x32xf32>
    %469 = vector.broadcast %468 : vector<1x32xf32> to vector<8x32xf32>
    %470 = arith.mulf %466, %469 : vector<8x32xf32>
    %471 = arith.addf %464, %470 : vector<8x32xf32>
    %c0_480 = arith.constant 0 : index
    %c2_481 = arith.constant 2 : index
    %c2_482 = arith.constant 2 : index
    %c0_483 = arith.constant 0 : index
    %472 = vector.load %arg14[%c0_480, %c2_481, %c2_482, %c0_483] : memref<2x4x4x32xf32, #tpu.memory_space<vmem>>, vector<2x2x2x32xf32>
    %473 = vector.shape_cast %472 : vector<2x2x2x32xf32> to vector<8x32xf32>
    %c8_484 = arith.constant 8 : index
    %c0_485 = arith.constant 0 : index
    %c0_486 = arith.constant 0 : index
    %474 = vector.load %arg9[%c8_484, %c0_485, %c0_486] : memref<9x1x32xf32, #tpu.memory_space<vmem>>, vector<1x1x32xf32>
    %475 = vector.shape_cast %474 : vector<1x1x32xf32> to vector<1x32xf32>
    %476 = vector.broadcast %475 : vector<1x32xf32> to vector<8x32xf32>
    %477 = arith.mulf %473, %476 : vector<8x32xf32>
    %478 = arith.addf %471, %477 : vector<8x32xf32>
    %cst_487 = arith.constant dense<0.000000e+00> : vector<8xf32>
    %479 = vector.multi_reduction <add>, %478, %cst_487 [1] : vector<8x32xf32> to vector<8xf32>
    %480 = vector.shape_cast %479 : vector<8xf32> to vector<8x1xf32>
    %c0_488 = arith.constant 0 : index
    %c0_489 = arith.constant 0 : index
    %481 = vector.load %arg10[%c0_488, %c0_489] : memref<1x1xf32, #tpu.memory_space<vmem>>, vector<1x1xf32>
    %482 = vector.broadcast %481 : vector<1x1xf32> to vector<8x1xf32>
    %483 = arith.addf %480, %482 : vector<8x1xf32>
    %c0_490 = arith.constant 0 : index
    %c0_491 = arith.constant 0 : index
    %484 = vector.load %arg11[%c0_490, %c0_491] : memref<8x1xf32, #tpu.memory_space<vmem>>, vector<8x1xf32>
    tpu.vector_store %arg11[%c0_490, %c0_491], %483 {strides = array<i32>} : memref<8x1xf32, #tpu.memory_space<vmem>>, vector<8x1xf32>,
    return
  }
}

</mosaic_0001>

<llo_original>
// kernel: discriminator_forward.1
$region0: #{discriminator_forward.1}
  #allocation0 [shape = 'u32[]', space=smem, size = 0x4, offset = 0x4, fixed_abs, tag = 'smem constant byte address 0x4 - core index']
  #allocation1 [shape = 'u32[144,128]{1,0:T(1,128)}', space=vmem, size = 0x12000, scoped, tag = 'internal scratch']
  #allocation2 [shape = 'f32[2,10,10,8]{3,2,1,0:T(8,128)}', space=vmem, size = 0x28000, scoped, tag = 'scratch operand']
  #allocation3 [shape = 'f32[2,6,6,16]{3,2,1,0:T(8,128)}', space=vmem, size = 0xc000, scoped, tag = 'scratch operand']
  #allocation4 [shape = 'f32[2,4,4,32]{3,2,1,0:T(4,128)}', space=vmem, size = 0x4000, scoped, tag = 'scratch operand']
  #allocation5 [shape = 'f32[1,1]{1,0:T(1,128)S(1)}', space=vmem, size = 0x200, scoped, tag = 'scoped memory for discriminator_forward.1']
  %s0 = inlined_call_operand.vmem [shape: f32[2,18,18,4], index: 0, kind: input, shape index: {}]
  %s1 = inlined_call_operand.vmem [shape: bf16[16,4,8], index: 1, kind: input, shape index: {}]
  %s2 = inlined_call_operand.vmem [shape: f32[1,8], index: 2, kind: input, shape index: {}]
  %s3 = inlined_call_operand.vmem [shape: bf16[16,8,16], index: 3, kind: input, shape index: {}]
  %s4 = inlined_call_operand.vmem [shape: f32[1,16], index: 4, kind: input, shape index: {}]
  %s5 = inlined_call_operand.vmem [shape: f32[1,16], index: 5, kind: input, shape index: {}]
  %s6 = inlined_call_operand.vmem [shape: bf16[16,16,32], index: 6, kind: input, shape index: {}]
  %s7 = inlined_call_operand.vmem [shape: f32[1,32], index: 7, kind: input, shape index: {}]
  %s8 = inlined_call_operand.vmem [shape: f32[1,32], index: 8, kind: input, shape index: {}]
  %s9 = inlined_call_operand.vmem [shape: f32[9,1,32], index: 9, kind: input, shape index: {}]
  %s10 = inlined_call_operand.<no memory space> [shape: f32[1,1], index: 10, kind: input, shape index: {}]
  %s11 = inlined_call_operand.vmem [shape: f32[8,1], index: 11, kind: output, shape index: {}]
  %s12 = sld [smem:[#allocation0]]
  $region54: #{discriminator_forward.1} parent=0
    _
  %s14 = ssub.s32 1, %s12
  %s15 = scalar_select 0, %s14, %s12
  %v16 = vstv %s10
  %17 = vst [vmem:[#allocation5] sm:$0x1] %v16
  // Predicated region
  $region2: #{discriminator_forward.1} parent=0 // pred_check
    _
  $region3: #{discriminator_forward.1} parent=0 // pred_check_branch
    %19 = sbr.rel (0) target = $region5
  $region4: #{discriminator_forward.1} parent=0 // pred_region
    _
  $region5: #{discriminator_forward.1} parent=0 // pred_fallthru
    _
  // Predicated region
  $region6: #{discriminator_forward.1} parent=0 // pred_check
    _
  $region7: #{discriminator_forward.1} parent=0 // pred_check_branch
    %21 = sbr.rel (0) target = $region9
  $region8: #{discriminator_forward.1} parent=0 // pred_region
    _
  $region9: #{discriminator_forward.1} parent=0 // pred_fallthru
    _
  // Predicated region
  $region10: #{discriminator_forward.1} parent=0 // pred_check
    _
  $region11: #{discriminator_forward.1} parent=0 // pred_check_branch
    %23 = sbr.rel (0) target = $region13
  $region12: #{discriminator_forward.1} parent=0 // pred_region
    _
  $region13: #{discriminator_forward.1} parent=0 // pred_fallthru
    _
  // Predicated region
  $region14: #{discriminator_forward.1} parent=0 // pred_check
    _
  $region15: #{discriminator_forward.1} parent=0 // pred_check_branch
    %25 = sbr.rel (0) target = $region17
  $region16: #{discriminator_forward.1} parent=0 // pred_region
    _
  $region17: #{discriminator_forward.1} parent=0 // pred_fallthru
    _
  // Predicated region
  $region18: #{discriminator_forward.1} parent=0 // pred_check
    _
  $region19: #{discriminator_forward.1} parent=0 // pred_check_branch
    %27 = sbr.rel (0) target = $region21
  $region20: #{discriminator_forward.1} parent=0 // pred_region
    _
  $region21: #{discriminator_forward.1} parent=0 // pred_fallthru
    _
  // Predicated region
  $region22: #{discriminator_forward.1} parent=0 // pred_check
    _
  $region23: #{discriminator_forward.1} parent=0 // pred_check_branch
    %29 = sbr.rel (0) target = $region25
  $region24: #{discriminator_forward.1} parent=0 // pred_region
    _
  $region25: #{discriminator_forward.1} parent=0 // pred_fallthru
    _
  // Predicated region
  $region26: #{discriminator_forward.1} parent=0 // pred_check
    _
  $region27: #{discriminator_forward.1} parent=0 // pred_check_branch
    %31 = sbr.rel (0) target = $region29
  $region28: #{discriminator_forward.1} parent=0 // pred_region
    _
  $region29: #{discriminator_forward.1} parent=0 // pred_fallthru
    _
  // Predicated region
  $region30: #{discriminator_forward.1} parent=0 // pred_check
    _
  $region31: #{discriminator_forward.1} parent=0 // pred_check_branch
    %33 = sbr.rel (0) target = $region33
  $region32: #{discriminator_forward.1} parent=0 // pred_region
    _
  $region33: #{discriminator_forward.1} parent=0 // pred_fallthru
    _
  // Predicated region
  $region34: #{discriminator_forward.1} parent=0 // pred_check
    _
  $region35: #{discriminator_forward.1} parent=0 // pred_check_branch
    %35 = sbr.rel (0) target = $region37
  $region36: #{discriminator_forward.1} parent=0 // pred_region
    _
  $region37: #{discriminator_forward.1} parent=0 // pred_fallthru
    _
  // Predicated region
  $region38: #{discriminator_forward.1} parent=0 // pred_check
    _
  $region39: #{discriminator_forward.1} parent=0 // pred_check_branch
    %37 = sbr.rel (0) target = $region41
  $region40: #{discriminator_forward.1} parent=0 // pred_region
    _
  $region41: #{discriminator_forward.1} parent=0 // pred_fallthru
    _
  // Predicated region
  $region42: #{discriminator_forward.1} parent=0 // pred_check
    _
  $region43: #{discriminator_forward.1} parent=0 // pred_check_branch
    %39 = sbr.rel (0) target = $region45
  $region44: #{discriminator_forward.1} parent=0 // pred_region
    _
  $region45: #{discriminator_forward.1} parent=0 // pred_fallthru
    _
  %v41 = vld [vmem:[%s0] ss:$2 sm:$0xff]
  %s42 = scalar_lea.vmem %s0, 48
  %v43 = vld [vmem:[%s42] ss:$2 sm:$0xff]
  %s44 = scalar_lea.vmem %s0, 96
  %v45 = vld [vmem:[%s44] ss:$2 sm:$0xff]
  %s46 = scalar_lea.vmem %s0, 144
  %v47 = vld [vmem:[%s46] ss:$2 sm:$0xff]
  %s48 = scalar_lea.vmem %s0, 192
  %v49 = vld [vmem:[%s48] ss:$2 sm:$0xff]
  %s50 = scalar_lea.vmem %s0, 240
  %v51 = vld [vmem:[%s50] ss:$2 sm:$0xff]
  %s52 = scalar_lea.vmem %s0, 288
  %v53 = vld [vmem:[%s52] ss:$2 sm:$0xff]
  %s54 = scalar_lea.vmem %s0, 336
  %v55 = vld [vmem:[%s54] ss:$2 sm:$0xff]
  %s56 = scalar_lea.vmem %s0, 432
  %v57 = vld [vmem:[%s56] ss:$2 sm:$0xff]
  %s58 = scalar_lea.vmem %s0, 480
  %v59 = vld [vmem:[%s58] ss:$2 sm:$0xff]
  %s60 = scalar_lea.vmem %s0, 528
  %v61 = vld [vmem:[%s60] ss:$2 sm:$0xff]
  %s62 = scalar_lea.vmem %s0, 576
  %v63 = vld [vmem:[%s62] ss:$2 sm:$0xff]
  %s64 = scalar_lea.vmem %s0, 624
  %v65 = vld [vmem:[%s64] ss:$2 sm:$0xff]
  %s66 = scalar_lea.vmem %s0, 672
  %v67 = vld [vmem:[%s66] ss:$2 sm:$0xff]
  %s68 = scalar_lea.vmem %s0, 720
  %v69 = vld [vmem:[%s68] ss:$2 sm:$0xff]
  %s70 = scalar_lea.vmem %s0, 768
  %v71 = vld [vmem:[%s70] ss:$2 sm:$0xff]
  %v72 = vpack.c.bf16 %v43, %v41
  %v73 = vpack.c.bf16 %v47, %v45
  %v74 = vpack.c.bf16 %v51, %v49
  %v75 = vpack.c.bf16 %v55, %v53
  %v76 = vpack.c.bf16 %v59, %v57
  %v77 = vpack.c.bf16 %v63, %v61
  %v78 = vpack.c.bf16 %v67, %v65
  %v79 = vpack.c.bf16 %v71, %v69
  %v80 = vld [vmem:[%s1] sm:$0x3]
  %s81 = scalar_lea.vmem %s0, 1
  %v82 = vld [vmem:[%s81] ss:$2 sm:$0xff]
  %s83 = scalar_lea.vmem %s0, 49
  %v84 = vld [vmem:[%s83] ss:$2 sm:$0xff]
  %s85 = scalar_lea.vmem %s0, 97
  %v86 = vld [vmem:[%s85] ss:$2 sm:$0xff]
  %s87 = scalar_lea.vmem %s0, 145
  %v88 = vld [vmem:[%s87] ss:$2 sm:$0xff]
  %s89 = scalar_lea.vmem %s0, 193
  %v90 = vld [vmem:[%s89] ss:$2 sm:$0xff]
  %s91 = scalar_lea.vmem %s0, 241
  %v92 = vld [vmem:[%s91] ss:$2 sm:$0xff]
  %s93 = scalar_lea.vmem %s0, 289
  %v94 = vld [vmem:[%s93] ss:$2 sm:$0xff]
  %s95 = scalar_lea.vmem %s0, 337
  %v96 = vld [vmem:[%s95] ss:$2 sm:$0xff]
  %s97 = scalar_lea.vmem %s0, 433
  %v98 = vld [vmem:[%s97] ss:$2 sm:$0xff]
  %s99 = scalar_lea.vmem %s0, 481
  %v100 = vld [vmem:[%s99] ss:$2 sm:$0xff]
  %s101 = scalar_lea.vmem %s0, 529
  %v102 = vld [vmem:[%s101] ss:$2 sm:$0xff]
  %s103 = scalar_lea.vmem %s0, 577
  %v104 = vld [vmem:[%s103] ss:$2 sm:$0xff]
  %s105 = scalar_lea.vmem %s0, 625
  %v106 = vld [vmem:[%s105] ss:$2 sm:$0xff]
  %s107 = scalar_lea.vmem %s0, 673
  %v108 = vld [vmem:[%s107] ss:$2 sm:$0xff]
  %s109 = scalar_lea.vmem %s0, 721
  %v110 = vld [vmem:[%s109] ss:$2 sm:$0xff]
  %s111 = scalar_lea.vmem %s0, 769
  %v112 = vld [vmem:[%s111] ss:$2 sm:$0xff]
  %v113 = vpack.c.bf16 %v84, %v82
  %v114 = vpack.c.bf16 %v88, %v86
  %v115 = vpack.c.bf16 %v92, %v90
  %v116 = vpack.c.bf16 %v96, %v94
  %v117 = vpack.c.bf16 %v100, %v98
  %v118 = vpack.c.bf16 %v104, %v102
  %v119 = vpack.c.bf16 %v108, %v106
  %v120 = vpack.c.bf16 %v112, %v110
  %s121 = scalar_lea.vmem %s1, 2
  %v122 = vld [vmem:[%s121] sm:$0x3]
  %vm123 = vcmask 31744
  %v125 = vsel %vm123, %v113, 0
  %v128 = vsel %vm123, %v114, 0
  %v131 = vsel %vm123, %v115, 0
  %v134 = vsel %vm123, %v116, 0
  %v137 = vsel %vm123, %v117, 0
  %v140 = vsel %vm123, %v118, 0
  %v143 = vsel %vm123, %v119, 0
  %v146 = vsel %vm123, %v120, 0
  %vm148 = vcmask 1041408
  %v150 = vsel %vm148, %v122, 0
  %152 = vmatprep.subr.bf16.mxu0 0
  %153 = vmatpush1.bf16.msra.mxu0 0
  %154 = vmatprep.subr.bf16.mxu0 0
  %155 = vmatpush1.bf16.msra.mxu0 0
  %156 = vmatprep.subr.bf16.mxu0 0
  %157 = vmatpush1.bf16.msra.mxu0 0
  %158 = vmatprep.subr.bf16.mxu0 0
  %159 = vmatpush1.bf16.msra.mxu0 0
  %160 = vmatprep.subr.bf16.mxu0 0
  %161 = vmatpush1.bf16.msra.mxu0 0
  %162 = vmatprep.subr.bf16.mxu0 0
  %163 = vmatpush1.bf16.msra.mxu0 0
  %164 = vmatprep.subr.bf16.mxu0 0
  %165 = vmatpush1.bf16.msra.mxu0 0
  %166 = vmatprep.subr.bf16.mxu0 0
  %167 = vmatpush1.bf16.msra.mxu0 %v150
  %168 = vmatprep.subr.bf16.mxu0 0
  %169 = vmatpush2.bf16.msra.mxu0 0
  %170 = vmatprep.subr.bf16.mxu0 0
  %171 = vmatpush2.bf16.msra.mxu0 0
  %172 = vmatprep.subr.bf16.mxu0 0
  %173 = vmatpush2.bf16.msra.mxu0 0
  %174 = vmatprep.subr.bf16.mxu0 0
  %175 = vmatpush2.bf16.msra.mxu0 0
  %176 = vmatprep.subr.bf16.mxu0 0
  %177 = vmatpush2.bf16.msra.mxu0 0
  %178 = vmatprep.subr.bf16.mxu0 0
  %179 = vmatpush2.bf16.msra.mxu0 0
  %180 = vmatprep.subr.bf16.mxu0 0
  %181 = vmatpush2.bf16.msra.mxu0 0
  %182 = vmatprep.subr.bf16.mxu0 0
  %183 = vmatpush2.bf16.msra.mxu0 0
  %184 = vmatprep.mubr.bf16.mxu0 0
  %185 = vmatmul.mubr.bf16.gmra.mxu0 %v125
  %v186 = vpop.f32.mrf.mxu0
  %v187 = vadd.f32 0.0, %v186
  %v188 = vpop.f32.mrf.mxu0
  %v189 = vpop.f32.mrf.mxu0
  %v190 = vadd.f32 0.0, %v189
  %v191 = vpop.f32.mrf.mxu0
  %192 = vmatprep.mubr.bf16.mxu0 0
  %193 = vmatmul.mubr.bf16.gmra.mxu0 %v128
  %v194 = vpop.f32.mrf.mxu0
  %v195 = vadd.f32 0.0, %v194
  %v196 = vpop.f32.mrf.mxu0
  %v197 = vpop.f32.mrf.mxu0
  %v198 = vadd.f32 0.0, %v197
  %v199 = vpop.f32.mrf.mxu0
  %200 = vmatprep.mubr.bf16.mxu0 0
  %201 = vmatmul.mubr.bf16.gmra.mxu0 %v131
  %v202 = vpop.f32.mrf.mxu0
  %v203 = vadd.f32 0.0, %v202
  %v204 = vpop.f32.mrf.mxu0
  %v205 = vpop.f32.mrf.mxu0
  %v206 = vadd.f32 0.0, %v205
  %v207 = vpop.f32.mrf.mxu0
  %208 = vmatprep.mubr.bf16.mxu0 0
  %209 = vmatmul.mubr.bf16.gmra.mxu0 %v134
  %v210 = vpop.f32.mrf.mxu0
  %v211 = vadd.f32 0.0, %v210
  %v212 = vpop.f32.mrf.mxu0
  %v213 = vpop.f32.mrf.mxu0
  %v214 = vadd.f32 0.0, %v213
  %v215 = vpop.f32.mrf.mxu0
  %216 = vmatprep.mubr.bf16.mxu0 0
  %217 = vmatmul.mubr.bf16.gmra.mxu0 %v137
  %v218 = vpop.f32.mrf.mxu0
  %v219 = vadd.f32 0.0, %v218
  %v220 = vpop.f32.mrf.mxu0
  %v221 = vpop.f32.mrf.mxu0
  %v222 = vadd.f32 0.0, %v221
  %v223 = vpop.f32.mrf.mxu0
  %224 = vmatprep.mubr.bf16.mxu0 0
  %225 = vmatmul.mubr.bf16.gmra.mxu0 %v140
  %v226 = vpop.f32.mrf.mxu0
  %v227 = vadd.f32 0.0, %v226
  %v228 = vpop.f32.mrf.mxu0
  %v229 = vpop.f32.mrf.mxu0
  %v230 = vadd.f32 0.0, %v229
  %v231 = vpop.f32.mrf.mxu0
  %232 = vmatprep.mubr.bf16.mxu0 0
  %233 = vmatmul.mubr.bf16.gmra.mxu0 %v143
  %v234 = vpop.f32.mrf.mxu0
  %v235 = vadd.f32 0.0, %v234
  %v236 = vpop.f32.mrf.mxu0
  %v237 = vpop.f32.mrf.mxu0
  %v238 = vadd.f32 0.0, %v237
  %v239 = vpop.f32.mrf.mxu0
  %240 = vmatprep.mubr.bf16.mxu0 0
  %241 = vmatmul.mubr.bf16.gmra.mxu0 %v146
  %v242 = vpop.f32.mrf.mxu0
  %v243 = vadd.f32 0.0, %v242
  %v244 = vpop.f32.mrf.mxu0
  %v245 = vpop.f32.mrf.mxu0
  %v246 = vadd.f32 0.0, %v245
  %v247 = vpop.f32.mrf.mxu0
  %248 = vdwg.mxu0
  %v250 = vsel %vm123, %v72, 0
  %v253 = vsel %vm123, %v73, 0
  %v256 = vsel %vm123, %v74, 0
  %v259 = vsel %vm123, %v75, 0
  %v262 = vsel %vm123, %v76, 0
  %v265 = vsel %vm123, %v77, 0
  %v268 = vsel %vm123, %v78, 0
  %v271 = vsel %vm123, %v79, 0
  %v274 = vsel %vm148, %v80, 0
  %276 = vmatprep.subr.bf16.mxu0 0
  %277 = vmatpush1.bf16.msra.mxu0 0
  %278 = vmatprep.subr.bf16.mxu0 0
  %279 = vmatpush1.bf16.msra.mxu0 0
  %280 = vmatprep.subr.bf16.mxu0 0
  %281 = vmatpush1.bf16.msra.mxu0 0
  %282 = vmatprep.subr.bf16.mxu0 0
  %283 = vmatpush1.bf16.msra.mxu0 0
  %284 = vmatprep.subr.bf16.mxu0 0
  %285 = vmatpush1.bf16.msra.mxu0 0
  %286 = vmatprep.subr.bf16.mxu0 0
  %287 = vmatpush1.bf16.msra.mxu0 0
  %288 = vmatprep.subr.bf16.mxu0 0
  %289 = vmatpush1.bf16.msra.mxu0 0
  %290 = vmatprep.subr.bf16.mxu0 0
  %291 = vmatpush1.bf16.msra.mxu0 %v274
  %292 = vmatprep.subr.bf16.mxu0 0
  %293 = vmatpush2.bf16.msra.mxu0 0
  %294 = vmatprep.subr.bf16.mxu0 0
  %295 = vmatpush2.bf16.msra.mxu0 0
  %296 = vmatprep.subr.bf16.mxu0 0
  %297 = vmatpush2.bf16.msra.mxu0 0
  %298 = vmatprep.subr.bf16.mxu0 0
  %299 = vmatpush2.bf16.msra.mxu0 0
  %300 = vmatprep.subr.bf16.mxu0 0
  %301 = vmatpush2.bf16.msra.mxu0 0
  %302 = vmatprep.subr.bf16.mxu0 0
  %303 = vmatpush2.bf16.msra.mxu0 0
  %304 = vmatprep.subr.bf16.mxu0 0
  %305 = vmatpush2.bf16.msra.mxu0 0
  %306 = vmatprep.subr.bf16.mxu0 0
  %307 = vmatpush2.bf16.msra.mxu0 0
  %308 = vmatprep.mubr.bf16.mxu0 0
  %309 = vmatmul.mubr.bf16.gmra.mxu0 %v250
  %v310 = vpop.f32.mrf.mxu0
  %v311 = vadd.f32 %v187, %v310
  %v312 = vpop.f32.mrf.mxu0
  %v313 = vpop.f32.mrf.mxu0
  %v314 = vadd.f32 %v190, %v313
  %v315 = vpop.f32.mrf.mxu0
  %316 = vmatprep.mubr.bf16.mxu0 0
  %317 = vmatmul.mubr.bf16.gmra.mxu0 %v253
  %v318 = vpop.f32.mrf.mxu0
  %v319 = vadd.f32 %v195, %v318
  %v320 = vpop.f32.mrf.mxu0
  %v321 = vpop.f32.mrf.mxu0
  %v322 = vadd.f32 %v198, %v321
  %v323 = vpop.f32.mrf.mxu0
  %324 = vmatprep.mubr.bf16.mxu0 0
  %325 = vmatmul.mubr.bf16.gmra.mxu0 %v256
  %v326 = vpop.f32.mrf.mxu0
  %v327 = vadd.f32 %v203, %v326
  %v328 = vpop.f32.mrf.mxu0
  %v329 = vpop.f32.mrf.mxu0
  %v330 = vadd.f32 %v206, %v329
  %v331 = vpop.f32.mrf.mxu0
  %332 = vmatprep.mubr.bf16.mxu0 0
  %333 = vmatmul.mubr.bf16.gmra.mxu0 %v259
  %v334 = vpop.f32.mrf.mxu0
  %v335 = vadd.f32 %v211, %v334
  %v336 = vpop.f32.mrf.mxu0
  %v337 = vpop.f32.mrf.mxu0
  %v338 = vadd.f32 %v214, %v337
  %v339 = vpop.f32.mrf.mxu0
  %340 = vmatprep.mubr.bf16.mxu0 0
  %341 = vmatmul.mubr.bf16.gmra.mxu0 %v262
  %v342 = vpop.f32.mrf.mxu0
  %v343 = vadd.f32 %v219, %v342
  %v344 = vpop.f32.mrf.mxu0
  %v345 = vpop.f32.mrf.mxu0
  %v346 = vadd.f32 %v222, %v345
  %v347 = vpop.f32.mrf.mxu0
  %348 = vmatprep.mubr.bf16.mxu0 0
  %349 = vmatmul.mubr.bf16.gmra.mxu0 %v265
  %v350 = vpop.f32.mrf.mxu0
  %v351 = vadd.f32 %v227, %v350
  %v352 = vpop.f32.mrf.mxu0
  %v353 = vpop.f32.mrf.mxu0
  %v354 = vadd.f32 %v230, %v353
  %v355 = vpop.f32.mrf.mxu0
  %356 = vmatprep.mubr.bf16.mxu0 0
  %357 = vmatmul.mubr.bf16.gmra.mxu0 %v268
  %v358 = vpop.f32.mrf.mxu0
  %v359 = vadd.f32 %v235, %v358
  %v360 = vpop.f32.mrf.mxu0
  %v361 = vpop.f32.mrf.mxu0
  %v362 = vadd.f32 %v238, %v361
  %v363 = vpop.f32.mrf.mxu0
  %364 = vmatprep.mubr.bf16.mxu0 0
  %365 = vmatmul.mubr.bf16.gmra.mxu0 %v271
  %v366 = vpop.f32.mrf.mxu0
  %v367 = vadd.f32 %v243, %v366
  %v368 = vpop.f32.mrf.mxu0
  %v369 = vpop.f32.mrf.mxu0
  %v370 = vadd.f32 %v246, %v369
  %v371 = vpop.f32.mrf.mxu0
  %372 = vdwg.mxu0
  %s373 = scalar_lea.vmem %s0, 2
  %v374 = vld [vmem:[%s373] ss:$2 sm:$0xff]
  %s375 = scalar_lea.vmem %s0, 50
  %v376 = vld [vmem:[%s375] ss:$2 sm:$0xff]
  %s377 = scalar_lea.vmem %s0, 98
  %v378 = vld [vmem:[%s377] ss:$2 sm:$0xff]
  %s379 = scalar_lea.vmem %s0, 146
  %v380 = vld [vmem:[%s379] ss:$2 sm:$0xff]
  %s381 = scalar_lea.vmem %s0, 194
  %v382 = vld [vmem:[%s381] ss:$2 sm:$0xff]
  %s383 = scalar_lea.vmem %s0, 242
  %v384 = vld [vmem:[%s383] ss:$2 sm:$0xff]
  %s385 = scalar_lea.vmem %s0, 290
  %v386 = vld [vmem:[%s385] ss:$2 sm:$0xff]
  %s387 = scalar_lea.vmem %s0, 338
  %v388 = vld [vmem:[%s387] ss:$2 sm:$0xff]
  %s389 = scalar_lea.vmem %s0, 434
  %v390 = vld [vmem:[%s389] ss:$2 sm:$0xff]
  %s391 = scalar_lea.vmem %s0, 482
  %v392 = vld [vmem:[%s391] ss:$2 sm:$0xff]
  %s393 = scalar_lea.vmem %s0, 530
  %v394 = vld [vmem:[%s393] ss:$2 sm:$0xff]
  %s395 = scalar_lea.vmem %s0, 578
  %v396 = vld [vmem:[%s395] ss:$2 sm:$0xff]
  %s397 = scalar_lea.vmem %s0, 626
  %v398 = vld [vmem:[%s397] ss:$2 sm:$0xff]
  %s399 = scalar_lea.vmem %s0, 674
  %v400 = vld [vmem:[%s399] ss:$2 sm:$0xff]
  %s401 = scalar_lea.vmem %s0, 722
  %v402 = vld [vmem:[%s401] ss:$2 sm:$0xff]
  %s403 = scalar_lea.vmem %s0, 770
  %v404 = vld [vmem:[%s403] ss:$2 sm:$0xff]
  %v405 = vpack.c.bf16 %v376, %v374
  %v406 = vpack.c.bf16 %v380, %v378
  %v407 = vpack.c.bf16 %v384, %v382
  %v408 = vpack.c.bf16 %v388, %v386
  %v409 = vpack.c.bf16 %v392, %v390
  %v410 = vpack.c.bf16 %v396, %v394
  %v411 = vpack.c.bf16 %v400, %v398
  %v412 = vpack.c.bf16 %v404, %v402
  %s413 = scalar_lea.vmem %s1, 4
  %v414 = vld [vmem:[%s413] sm:$0x3]
  %v416 = vsel %vm123, %v405, 0
  %v419 = vsel %vm123, %v406, 0
  %v422 = vsel %vm123, %v407, 0
  %v425 = vsel %vm123, %v408, 0
  %v428 = vsel %vm123, %v409, 0
  %v431 = vsel %vm123, %v410, 0
  %v434 = vsel %vm123, %v411, 0
  %v437 = vsel %vm123, %v412, 0
  %v440 = vsel %vm148, %v414, 0
  %442 = vmatprep.subr.bf16.mxu0 0
  %443 = vmatpush1.bf16.msra.mxu0 0
  %444 = vmatprep.subr.bf16.mxu0 0
  %445 = vmatpush1.bf16.msra.mxu0 0
  %446 = vmatprep.subr.bf16.mxu0 0
  %447 = vmatpush1.bf16.msra.mxu0 0
  %448 = vmatprep.subr.bf16.mxu0 0
  %449 = vmatpush1.bf16.msra.mxu0 0
  %450 = vmatprep.subr.bf16.mxu0 0
  %451 = vmatpush1.bf16.msra.mxu0 0
  %452 = vmatprep.subr.bf16.mxu0 0
  %453 = vmatpush1.bf16.msra.mxu0 0
  %454 = vmatprep.subr.bf16.mxu0 0
  %455 = vmatpush1.bf16.msra.mxu0 0
  %456 = vmatprep.subr.bf16.mxu0 0
  %457 = vmatpush1.bf16.msra.mxu0 %v440
  %458 = vmatprep.subr.bf16.mxu0 0
  %459 = vmatpush2.bf16.msra.mxu0 0
  %460 = vmatprep.subr.bf16.mxu0 0
  %461 = vmatpush2.bf16.msra.mxu0 0
  %462 = vmatprep.subr.bf16.mxu0 0
  %463 = vmatpush2.bf16.msra.mxu0 0
  %464 = vmatprep.subr.bf16.mxu0 0
  %465 = vmatpush2.bf16.msra.mxu0 0
  %466 = vmatprep.subr.bf16.mxu0 0
  %467 = vmatpush2.bf16.msra.mxu0 0
  %468 = vmatprep.subr.bf16.mxu0 0
  %469 = vmatpush2.bf16.msra.mxu0 0
  %470 = vmatprep.subr.bf16.mxu0 0
  %471 = vmatpush2.bf16.msra.mxu0 0
  %472 = vmatprep.subr.bf16.mxu0 0
  %473 = vmatpush2.bf16.msra.mxu0 0
  %474 = vmatprep.mubr.bf16.mxu0 0
  %475 = vmatmul.mubr.bf16.gmra.mxu0 %v416
  %v476 = vpop.f32.mrf.mxu0
  %v477 = vadd.f32 0.0, %v476
  %v478 = vpop.f32.mrf.mxu0
  %v479 = vpop.f32.mrf.mxu0
  %v480 = vadd.f32 0.0, %v479
  %v481 = vpop.f32.mrf.mxu0
  %482 = vmatprep.mubr.bf16.mxu0 0
  %483 = vmatmul.mubr.bf16.gmra.mxu0 %v419
  %v484 = vpop.f32.mrf.mxu0
  %v485 = vadd.f32 0.0, %v484
  %v486 = vpop.f32.mrf.mxu0
  %v487 = vpop.f32.mrf.mxu0
  %v488 = vadd.f32 0.0, %v487
  %v489 = vpop.f32.mrf.mxu0
  %490 = vmatprep.mubr.bf16.mxu0 0
  %491 = vmatmul.mubr.bf16.gmra.mxu0 %v422
  %v492 = vpop.f32.mrf.mxu0
  %v493 = vadd.f32 0.0, %v492
  %v494 = vpop.f32.mrf.mxu0
  %v495 = vpop.f32.mrf.mxu0
  %v496 = vadd.f32 0.0, %v495
  %v497 = vpop.f32.mrf.mxu0
  %498 = vmatprep.mubr.bf16.mxu0 0
  %499 = vmatmul.mubr.bf16.gmra.mxu0 %v425
  %v500 = vpop.f32.mrf.mxu0
  %v501 = vadd.f32 0.0, %v500
  %v502 = vpop.f32.mrf.mxu0
  %v503 = vpop.f32.mrf.mxu0
  %v504 = vadd.f32 0.0, %v503
  %v505 = vpop.f32.mrf.mxu0
  %506 = vmatprep.mubr.bf16.mxu0 0
  %507 = vmatmul.mubr.bf16.gmra.mxu0 %v428
  %v508 = vpop.f32.mrf.mxu0
  %v509 = vadd.f32 0.0, %v508
  %v510 = vpop.f32.mrf.mxu0
  %v511 = vpop.f32.mrf.mxu0
  %v512 = vadd.f32 0.0, %v511
  %v513 = vpop.f32.mrf.mxu0
  %514 = vmatprep.mubr.bf16.mxu0 0
  %515 = vmatmul.mubr.bf16.gmra.mxu0 %v431
  %v516 = vpop.f32.mrf.mxu0
  %v517 = vadd.f32 0.0, %v516
  %v518 = vpop.f32.mrf.mxu0
  %v519 = vpop.f32.mrf.mxu0
  %v520 = vadd.f32 0.0, %v519
  %v521 = vpop.f32.mrf.mxu0
  %522 = vmatprep.mubr.bf16.mxu0 0
  %523 = vmatmul.mubr.bf16.gmra.mxu0 %v434
  %v524 = vpop.f32.mrf.mxu0
  %v525 = vadd.f32 0.0, %v524
  %v526 = vpop.f32.mrf.mxu0
  %v527 = vpop.f32.mrf.mxu0
  %v528 = vadd.f32 0.0, %v527
  %v529 = vpop.f32.mrf.mxu0
  %530 = vmatprep.mubr.bf16.mxu0 0
  %531 = vmatmul.mubr.bf16.gmra.mxu0 %v437
  %v532 = vpop.f32.mrf.mxu0
  %v533 = vadd.f32 0.0, %v532
  %v534 = vpop.f32.mrf.mxu0
  %v535 = vpop.f32.mrf.mxu0
  %v536 = vadd.f32 0.0, %v535
  %v537 = vpop.f32.mrf.mxu0
  %538 = vdwg.mxu0
  %v539 = vadd.f32 %v311, %v477
  %v540 = vadd.f32 %v314, %v480
  %v541 = vadd.f32 %v319, %v485
  %v542 = vadd.f32 %v322, %v488
  %v543 = vadd.f32 %v327, %v493
  %v544 = vadd.f32 %v330, %v496
  %v545 = vadd.f32 %v335, %v501
  %v546 = vadd.f32 %v338, %v504
  %v547 = vadd.f32 %v343, %v509
  %v548 = vadd.f32 %v346, %v512
  %v549 = vadd.f32 %v351, %v517
  %v550 = vadd.f32 %v354, %v520
  %v551 = vadd.f32 %v359, %v525
  %v552 = vadd.f32 %v362, %v528
  %v553 = vadd.f32 %v367, %v533
  %v554 = vadd.f32 %v370, %v536
  %s555 = scalar_lea.vmem %s0, 3
  %v556 = vld [vmem:[%s555] ss:$2 sm:$0xff]
  %s557 = scalar_lea.vmem %s0, 51
  %v558 = vld [vmem:[%s557] ss:$2 sm:$0xff]
  %s559 = scalar_lea.vmem %s0, 99
  %v560 = vld [vmem:[%s559] ss:$2 sm:$0xff]
  %s561 = scalar_lea.vmem %s0, 147
  %v562 = vld [vmem:[%s561] ss:$2 sm:$0xff]
  %s563 = scalar_lea.vmem %s0, 195
  %v564 = vld [vmem:[%s563] ss:$2 sm:$0xff]
  %s565 = scalar_lea.vmem %s0, 243
  %v566 = vld [vmem:[%s565] ss:$2 sm:$0xff]
  %s567 = scalar_lea.vmem %s0, 291
  %v568 = vld [vmem:[%s567] ss:$2 sm:$0xff]
  %s569 = scalar_lea.vmem %s0, 339
  %v570 = vld [vmem:[%s569] ss:$2 sm:$0xff]
  %s571 = scalar_lea.vmem %s0, 435
  %v572 = vld [vmem:[%s571] ss:$2 sm:$0xff]
  %s573 = scalar_lea.vmem %s0, 483
  %v574 = vld [vmem:[%s573] ss:$2 sm:$0xff]
  %s575 = scalar_lea.vmem %s0, 531
  %v576 = vld [vmem:[%s575] ss:$2 sm:$0xff]
  %s577 = scalar_lea.vmem %s0, 579
  %v578 = vld [vmem:[%s577] ss:$2 sm:$0xff]
  %s579 = scalar_lea.vmem %s0, 627
  %v580 = vld [vmem:[%s579] ss:$2 sm:$0xff]
  %s581 = scalar_lea.vmem %s0, 675
  %v582 = vld [vmem:[%s581] ss:$2 sm:$0xff]
  %s583 = scalar_lea.vmem %s0, 723
  %v584 = vld [vmem:[%s583] ss:$2 sm:$0xff]
  %s585 = scalar_lea.vmem %s0, 771
  %v586 = vld [vmem:[%s585] ss:$2 sm:$0xff]
  %v587 = vpack.c.bf16 %v558, %v556
  %v588 = vpack.c.bf16 %v562, %v560
  %v589 = vpack.c.bf16 %v566, %v564
  %v590 = vpack.c.bf16 %v570, %v568
  %v591 = vpack.c.bf16 %v574, %v572
  %v592 = vpack.c.bf16 %v578, %v576
  %v593 = vpack.c.bf16 %v582, %v580
  %v594 = vpack.c.bf16 %v586, %v584
  %s595 = scalar_lea.vmem %s1, 6
  %v596 = vld [vmem:[%s595] sm:$0x3]
  %v598 = vsel %vm123, %v587, 0
  %v601 = vsel %vm123, %v588, 0
  %v604 = vsel %vm123, %v589, 0
  %v607 = vsel %vm123, %v590, 0
  %v610 = vsel %vm123, %v591, 0
  %v613 = vsel %vm123, %v592, 0
  %v616 = vsel %vm123, %v593, 0
  %v619 = vsel %vm123, %v594, 0
  %v622 = vsel %vm148, %v596, 0
  %624 = vmatprep.subr.bf16.mxu0 0
  %625 = vmatpush1.bf16.msra.mxu0 0
  %626 = vmatprep.subr.bf16.mxu0 0
  %627 = vmatpush1.bf16.msra.mxu0 0
  %628 = vmatprep.subr.bf16.mxu0 0
  %629 = vmatpush1.bf16.msra.mxu0 0
  %630 = vmatprep.subr.bf16.mxu0 0
  %631 = vmatpush1.bf16.msra.mxu0 0
  %632 = vmatprep.subr.bf16.mxu0 0
  %633 = vmatpush1.bf16.msra.mxu0 0
  %634 = vmatprep.subr.bf16.mxu0 0
  %635 = vmatpush1.bf16.msra.mxu0 0
  %636 = vmatprep.subr.bf16.mxu0 0
  %637 = vmatpush1.bf16.msra.mxu0 0
  %638 = vmatprep.subr.bf16.mxu0 0
  %639 = vmatpush1.bf16.msra.mxu0 %v622
  %640 = vmatprep.subr.bf16.mxu0 0
  %641 = vmatpush2.bf16.msra.mxu0 0
  %642 = vmatprep.subr.bf16.mxu0 0
  %643 = vmatpush2.bf16.msra.mxu0 0
  %644 = vmatprep.subr.bf16.mxu0 0
  %645 = vmatpush2.bf16.msra.mxu0 0
  %646 = vmatprep.subr.bf16.mxu0 0
  %647 = vmatpush2.bf16.msra.mxu0 0
  %648 = vmatprep.subr.bf16.mxu0 0
  %649 = vmatpush2.bf16.msra.mxu0 0
  %650 = vmatprep.subr.bf16.mxu0 0
  %651 = vmatpush2.bf16.msra.mxu0 0
  %652 = vmatprep.subr.bf16.mxu0 0
  %653 = vmatpush2.bf16.msra.mxu0 0
  %654 = vmatprep.subr.bf16.mxu0 0
  %655 = vmatpush2.bf16.msra.mxu0 0
  %656 = vmatprep.mubr.bf16.mxu0 0
  %657 = vmatmul.mubr.bf16.gmra.mxu0 %v598
  %v658 = vpop.f32.mrf.mxu0
  %v659 = vadd.f32 0.0, %v658
  %v660 = vpop.f32.mrf.mxu0
  %v661 = vpop.f32.mrf.mxu0
  %v662 = vadd.f32 0.0, %v661
  %v663 = vpop.f32.mrf.mxu0
  %664 = vmatprep.mubr.bf16.mxu0 0
  %665 = vmatmul.mubr.bf16.gmra.mxu0 %v601
  %v666 = vpop.f32.mrf.mxu0
  %v667 = vadd.f32 0.0, %v666
  %v668 = vpop.f32.mrf.mxu0
  %v669 = vpop.f32.mrf.mxu0
  %v670 = vadd.f32 0.0, %v669
  %v671 = vpop.f32.mrf.mxu0
  %672 = vmatprep.mubr.bf16.mxu0 0
  %673 = vmatmul.mubr.bf16.gmra.mxu0 %v604
  %v674 = vpop.f32.mrf.mxu0
  %v675 = vadd.f32 0.0, %v674
  %v676 = vpop.f32.mrf.mxu0
  %v677 = vpop.f32.mrf.mxu0
  %v678 = vadd.f32 0.0, %v677
  %v679 = vpop.f32.mrf.mxu0
  %680 = vmatprep.mubr.bf16.mxu0 0
  %681 = vmatmul.mubr.bf16.gmra.mxu0 %v607
  %v682 = vpop.f32.mrf.mxu0
  %v683 = vadd.f32 0.0, %v682
  %v684 = vpop.f32.mrf.mxu0
  %v685 = vpop.f32.mrf.mxu0
  %v686 = vadd.f32 0.0, %v685
  %v687 = vpop.f32.mrf.mxu0
  %688 = vmatprep.mubr.bf16.mxu0 0
  %689 = vmatmul.mubr.bf16.gmra.mxu0 %v610
  %v690 = vpop.f32.mrf.mxu0
  %v691 = vadd.f32 0.0, %v690
  %v692 = vpop.f32.mrf.mxu0
  %v693 = vpop.f32.mrf.mxu0
  %v694 = vadd.f32 0.0, %v693
  %v695 = vpop.f32.mrf.mxu0
  %696 = vmatprep.mubr.bf16.mxu0 0
  %697 = vmatmul.mubr.bf16.gmra.mxu0 %v613
  %v698 = vpop.f32.mrf.mxu0
  %v699 = vadd.f32 0.0, %v698
  %v700 = vpop.f32.mrf.mxu0
  %v701 = vpop.f32.mrf.mxu0
  %v702 = vadd.f32 0.0, %v701
  %v703 = vpop.f32.mrf.mxu0
  %704 = vmatprep.mubr.bf16.mxu0 0
  %705 = vmatmul.mubr.bf16.gmra.mxu0 %v616
  %v706 = vpop.f32.mrf.mxu0
  %v707 = vadd.f32 0.0, %v706
  %v708 = vpop.f32.mrf.mxu0
  %v709 = vpop.f32.mrf.mxu0
  %v710 = vadd.f32 0.0, %v709
  %v711 = vpop.f32.mrf.mxu0
  %712 = vmatprep.mubr.bf16.mxu0 0
  %713 = vmatmul.mubr.bf16.gmra.mxu0 %v619
  %v714 = vpop.f32.mrf.mxu0
  %v715 = vadd.f32 0.0, %v714
  %v716 = vpop.f32.mrf.mxu0
  %v717 = vpop.f32.mrf.mxu0
  %v718 = vadd.f32 0.0, %v717
  %v719 = vpop.f32.mrf.mxu0
  %720 = vdwg.mxu0
  %v721 = vadd.f32 %v539, %v659
  %v722 = vadd.f32 %v540, %v662
  %v723 = vadd.f32 %v541, %v667
  %v724 = vadd.f32 %v542, %v670
  %v725 = vadd.f32 %v543, %v675
  %v726 = vadd.f32 %v544, %v678
  %v727 = vadd.f32 %v545, %v683
  %v728 = vadd.f32 %v546, %v686
  %v729 = vadd.f32 %v547, %v691
  %v730 = vadd.f32 %v548, %v694
  %v731 = vadd.f32 %v549, %v699
  %v732 = vadd.f32 %v550, %v702
  %v733 = vadd.f32 %v551, %v707
  %v734 = vadd.f32 %v552, %v710
  %v735 = vadd.f32 %v553, %v715
  %v736 = vadd.f32 %v554, %v718
  %s737 = scalar_lea.vmem %s0, 24
  %v738 = vld [vmem:[%s737] ss:$2 sm:$0xff]
  %s739 = scalar_lea.vmem %s737, 48
  %v740 = vld [vmem:[%s739] ss:$2 sm:$0xff]
  %s741 = scalar_lea.vmem %s737, 96
  %v742 = vld [vmem:[%s741] ss:$2 sm:$0xff]
  %s743 = scalar_lea.vmem %s737, 144
  %v744 = vld [vmem:[%s743] ss:$2 sm:$0xff]
  %s745 = scalar_lea.vmem %s737, 192
  %v746 = vld [vmem:[%s745] ss:$2 sm:$0xff]
  %s747 = scalar_lea.vmem %s737, 240
  %v748 = vld [vmem:[%s747] ss:$2 sm:$0xff]
  %s749 = scalar_lea.vmem %s737, 288
  %v750 = vld [vmem:[%s749] ss:$2 sm:$0xff]
  %s751 = scalar_lea.vmem %s737, 336
  %v752 = vld [vmem:[%s751] ss:$2 sm:$0xff]
  %s753 = scalar_lea.vmem %s737, 432
  %v754 = vld [vmem:[%s753] ss:$2 sm:$0xff]
  %s755 = scalar_lea.vmem %s737, 480
  %v756 = vld [vmem:[%s755] ss:$2 sm:$0xff]
  %s757 = scalar_lea.vmem %s737, 528
  %v758 = vld [vmem:[%s757] ss:$2 sm:$0xff]
  %s759 = scalar_lea.vmem %s737, 576
  %v760 = vld [vmem:[%s759] ss:$2 sm:$0xff]
  %s761 = scalar_lea.vmem %s737, 624
  %v762 = vld [vmem:[%s761] ss:$2 sm:$0xff]
  %s763 = scalar_lea.vmem %s737, 672
  %v764 = vld [vmem:[%s763] ss:$2 sm:$0xff]
  %s765 = scalar_lea.vmem %s737, 720
  %v766 = vld [vmem:[%s765] ss:$2 sm:$0xff]
  %s767 = scalar_lea.vmem %s737, 768
  %v768 = vld [vmem:[%s767] ss:$2 sm:$0xff]
  %v769 = vpack.c.bf16 %v740, %v738
  %v770 = vpack.c.bf16 %v744, %v742
  %v771 = vpack.c.bf16 %v748, %v746
  %v772 = vpack.c.bf16 %v752, %v750
  %v773 = vpack.c.bf16 %v756, %v754
  %v774 = vpack.c.bf16 %v760, %v758
  %v775 = vpack.c.bf16 %v764, %v762
  %v776 = vpack.c.bf16 %v768, %v766
  %s777 = scalar_lea.vmem %s1, 8
  %v778 = vld [vmem:[%s777] sm:$0x3]
  %v780 = vsel %vm123, %v769, 0
  %v783 = vsel %vm123, %v770, 0
  %v786 = vsel %vm123, %v771, 0
  %v789 = vsel %vm123, %v772, 0
  %v792 = vsel %vm123, %v773, 0
  %v795 = vsel %vm123, %v774, 0
  %v798 = vsel %vm123, %v775, 0
  %v801 = vsel %vm123, %v776, 0
  %v804 = vsel %vm148, %v778, 0
  %806 = vmatprep.subr.bf16.mxu0 0
  %807 = vmatpush1.bf16.msra.mxu0 0
  %808 = vmatprep.subr.bf16.mxu0 0
  %809 = vmatpush1.bf16.msra.mxu0 0
  %810 = vmatprep.subr.bf16.mxu0 0
  %811 = vmatpush1.bf16.msra.mxu0 0
  %812 = vmatprep.subr.bf16.mxu0 0
  %813 = vmatpush1.bf16.msra.mxu0 0
  %814 = vmatprep.subr.bf16.mxu0 0
  %815 = vmatpush1.bf16.msra.mxu0 0
  %816 = vmatprep.subr.bf16.mxu0 0
  %817 = vmatpush1.bf16.msra.mxu0 0
  %818 = vmatprep.subr.bf16.mxu0 0
  %819 = vmatpush1.bf16.msra.mxu0 0
  %820 = vmatprep.subr.bf16.mxu0 0
  %821 = vmatpush1.bf16.msra.mxu0 %v804
  %822 = vmatprep.subr.bf16.mxu0 0
  %823 = vmatpush2.bf16.msra.mxu0 0
  %824 = vmatprep.subr.bf16.mxu0 0
  %825 = vmatpush2.bf16.msra.mxu0 0
  %826 = vmatprep.subr.bf16.mxu0 0
  %827 = vmatpush2.bf16.msra.mxu0 0
  %828 = vmatprep.subr.bf16.mxu0 0
  %829 = vmatpush2.bf16.msra.mxu0 0
  %830 = vmatprep.subr.bf16.mxu0 0
  %831 = vmatpush2.bf16.msra.mxu0 0
  %832 = vmatprep.subr.bf16.mxu0 0
  %833 = vmatpush2.bf16.msra.mxu0 0
  %834 = vmatprep.subr.bf16.mxu0 0
  %835 = vmatpush2.bf16.msra.mxu0 0
  %836 = vmatprep.subr.bf16.mxu0 0
  %837 = vmatpush2.bf16.msra.mxu0 0
  %838 = vmatprep.mubr.bf16.mxu0 0
  %839 = vmatmul.mubr.bf16.gmra.mxu0 %v780
  %v840 = vpop.f32.mrf.mxu0
  %v841 = vadd.f32 0.0, %v840
  %v842 = vpop.f32.mrf.mxu0
  %v843 = vpop.f32.mrf.mxu0
  %v844 = vadd.f32 0.0, %v843
  %v845 = vpop.f32.mrf.mxu0
  %846 = vmatprep.mubr.bf16.mxu0 0
  %847 = vmatmul.mubr.bf16.gmra.mxu0 %v783
  %v848 = vpop.f32.mrf.mxu0
  %v849 = vadd.f32 0.0, %v848
  %v850 = vpop.f32.mrf.mxu0
  %v851 = vpop.f32.mrf.mxu0
  %v852 = vadd.f32 0.0, %v851
  %v853 = vpop.f32.mrf.mxu0
  %854 = vmatprep.mubr.bf16.mxu0 0
  %855 = vmatmul.mubr.bf16.gmra.mxu0 %v786
  %v856 = vpop.f32.mrf.mxu0
  %v857 = vadd.f32 0.0, %v856
  %v858 = vpop.f32.mrf.mxu0
  %v859 = vpop.f32.mrf.mxu0
  %v860 = vadd.f32 0.0, %v859
  %v861 = vpop.f32.mrf.mxu0
  %862 = vmatprep.mubr.bf16.mxu0 0
  %863 = vmatmul.mubr.bf16.gmra.mxu0 %v789
  %v864 = vpop.f32.mrf.mxu0
  %v865 = vadd.f32 0.0, %v864
  %v866 = vpop.f32.mrf.mxu0
  %v867 = vpop.f32.mrf.mxu0
  %v868 = vadd.f32 0.0, %v867
  %v869 = vpop.f32.mrf.mxu0
  %870 = vmatprep.mubr.bf16.mxu0 0
  %871 = vmatmul.mubr.bf16.gmra.mxu0 %v792
  %v872 = vpop.f32.mrf.mxu0
  %v873 = vadd.f32 0.0, %v872
  %v874 = vpop.f32.mrf.mxu0
  %v875 = vpop.f32.mrf.mxu0
  %v876 = vadd.f32 0.0, %v875
  %v877 = vpop.f32.mrf.mxu0
  %878 = vmatprep.mubr.bf16.mxu0 0
  %879 = vmatmul.mubr.bf16.gmra.mxu0 %v795
  %v880 = vpop.f32.mrf.mxu0
  %v881 = vadd.f32 0.0, %v880
  %v882 = vpop.f32.mrf.mxu0
  %v883 = vpop.f32.mrf.mxu0
  %v884 = vadd.f32 0.0, %v883
  %v885 = vpop.f32.mrf.mxu0
  %886 = vmatprep.mubr.bf16.mxu0 0
  %887 = vmatmul.mubr.bf16.gmra.mxu0 %v798
  %v888 = vpop.f32.mrf.mxu0
  %v889 = vadd.f32 0.0, %v888
  %v890 = vpop.f32.mrf.mxu0
  %v891 = vpop.f32.mrf.mxu0
  %v892 = vadd.f32 0.0, %v891
  %v893 = vpop.f32.mrf.mxu0
  %894 = vmatprep.mubr.bf16.mxu0 0
  %895 = vmatmul.mubr.bf16.gmra.mxu0 %v801
  %v896 = vpop.f32.mrf.mxu0
  %v897 = vadd.f32 0.0, %v896
  %v898 = vpop.f32.mrf.mxu0
  %v899 = vpop.f32.mrf.mxu0
  %v900 = vadd.f32 0.0, %v899
  %v901 = vpop.f32.mrf.mxu0
  %902 = vdwg.mxu0
  %v903 = vadd.f32 %v721, %v841
  %v904 = vadd.f32 %v722, %v844
  %v905 = vadd.f32 %v723, %v849
  %v906 = vadd.f32 %v724, %v852
  %v907 = vadd.f32 %v725, %v857
  %v908 = vadd.f32 %v726, %v860
  %v909 = vadd.f32 %v727, %v865
  %v910 = vadd.f32 %v728, %v868
  %v911 = vadd.f32 %v729, %v873
  %v912 = vadd.f32 %v730, %v876
  %v913 = vadd.f32 %v731, %v881
  %v914 = vadd.f32 %v732, %v884
  %v915 = vadd.f32 %v733, %v889
  %v916 = vadd.f32 %v734, %v892
  %v917 = vadd.f32 %v735, %v897
  %v918 = vadd.f32 %v736, %v900
  %s919 = scalar_lea.vmem %s737, 1
  %v920 = vld [vmem:[%s919] ss:$2 sm:$0xff]
  %s921 = scalar_lea.vmem %s737, 49
  %v922 = vld [vmem:[%s921] ss:$2 sm:$0xff]
  %s923 = scalar_lea.vmem %s737, 97
  %v924 = vld [vmem:[%s923] ss:$2 sm:$0xff]
  %s925 = scalar_lea.vmem %s737, 145
  %v926 = vld [vmem:[%s925] ss:$2 sm:$0xff]
  %s927 = scalar_lea.vmem %s737, 193
  %v928 = vld [vmem:[%s927] ss:$2 sm:$0xff]
  %s929 = scalar_lea.vmem %s737, 241
  %v930 = vld [vmem:[%s929] ss:$2 sm:$0xff]
  %s931 = scalar_lea.vmem %s737, 289
  %v932 = vld [vmem:[%s931] ss:$2 sm:$0xff]
  %s933 = scalar_lea.vmem %s737, 337
  %v934 = vld [vmem:[%s933] ss:$2 sm:$0xff]
  %s935 = scalar_lea.vmem %s737, 433
  %v936 = vld [vmem:[%s935] ss:$2 sm:$0xff]
  %s937 = scalar_lea.vmem %s737, 481
  %v938 = vld [vmem:[%s937] ss:$2 sm:$0xff]
  %s939 = scalar_lea.vmem %s737, 529
  %v940 = vld [vmem:[%s939] ss:$2 sm:$0xff]
  %s941 = scalar_lea.vmem %s737, 577
  %v942 = vld [vmem:[%s941] ss:$2 sm:$0xff]
  %s943 = scalar_lea.vmem %s737, 625
  %v944 = vld [vmem:[%s943] ss:$2 sm:$0xff]
  %s945 = scalar_lea.vmem %s737, 673
  %v946 = vld [vmem:[%s945] ss:$2 sm:$0xff]
  %s947 = scalar_lea.vmem %s737, 721
  %v948 = vld [vmem:[%s947] ss:$2 sm:$0xff]
  %s949 = scalar_lea.vmem %s737, 769
  %v950 = vld [vmem:[%s949] ss:$2 sm:$0xff]
  %v951 = vpack.c.bf16 %v922, %v920
  %v952 = vpack.c.bf16 %v926, %v924
  %v953 = vpack.c.bf16 %v930, %v928
  %v954 = vpack.c.bf16 %v934, %v932
  %v955 = vpack.c.bf16 %v938, %v936
  %v956 = vpack.c.bf16 %v942, %v940
  %v957 = vpack.c.bf16 %v946, %v944
  %v958 = vpack.c.bf16 %v950, %v948
  %s959 = scalar_lea.vmem %s1, 10
  %v960 = vld [vmem:[%s959] sm:$0x3]
  %v962 = vsel %vm123, %v951, 0
  %v965 = vsel %vm123, %v952, 0
  %v968 = vsel %vm123, %v953, 0
  %v971 = vsel %vm123, %v954, 0
  %v974 = vsel %vm123, %v955, 0
  %v977 = vsel %vm123, %v956, 0
  %v980 = vsel %vm123, %v957, 0
  %v983 = vsel %vm123, %v958, 0
  %v986 = vsel %vm148, %v960, 0
  %988 = vmatprep.subr.bf16.mxu0 0
  %989 = vmatpush1.bf16.msra.mxu0 0
  %990 = vmatprep.subr.bf16.mxu0 0
  %991 = vmatpush1.bf16.msra.mxu0 0
  %992 = vmatprep.subr.bf16.mxu0 0
  %993 = vmatpush1.bf16.msra.mxu0 0
  %994 = vmatprep.subr.bf16.mxu0 0
  %995 = vmatpush1.bf16.msra.mxu0 0
  %996 = vmatprep.subr.bf16.mxu0 0
  %997 = vmatpush1.bf16.msra.mxu0 0
  %998 = vmatprep.subr.bf16.mxu0 0
  %999 = vmatpush1.bf16.msra.mxu0 0
  %1000 = vmatprep.subr.bf16.mxu0 0
  %1001 = vmatpush1.bf16.msra.mxu0 0
  %1002 = vmatprep.subr.bf16.mxu0 0
  %1003 = vmatpush1.bf16.msra.mxu0 %v986
  %1004 = vmatprep.subr.bf16.mxu0 0
  %1005 = vmatpush2.bf16.msra.mxu0 0
  %1006 = vmatprep.subr.bf16.mxu0 0
  %1007 = vmatpush2.bf16.msra.mxu0 0
  %1008 = vmatprep.subr.bf16.mxu0 0
  %1009 = vmatpush2.bf16.msra.mxu0 0
  %1010 = vmatprep.subr.bf16.mxu0 0
  %1011 = vmatpush2.bf16.msra.mxu0 0
  %1012 = vmatprep.subr.bf16.mxu0 0
  %1013 = vmatpush2.bf16.msra.mxu0 0
  %1014 = vmatprep.subr.bf16.mxu0 0
  %1015 = vmatpush2.bf16.msra.mxu0 0
  %1016 = vmatprep.subr.bf16.mxu0 0
  %1017 = vmatpush2.bf16.msra.mxu0 0
  %1018 = vmatprep.subr.bf16.mxu0 0
  %1019 = vmatpush2.bf16.msra.mxu0 0
  %1020 = vmatprep.mubr.bf16.mxu0 0
  %1021 = vmatmul.mubr.bf16.gmra.mxu0 %v962
  %v1022 = vpop.f32.mrf.mxu0
  %v1023 = vadd.f32 0.0, %v1022
  %v1024 = vpop.f32.mrf.mxu0
  %v1025 = vpop.f32.mrf.mxu0
  %v1026 = vadd.f32 0.0, %v1025
  %v1027 = vpop.f32.mrf.mxu0
  %1028 = vmatprep.mubr.bf16.mxu0 0
  %1029 = vmatmul.mubr.bf16.gmra.mxu0 %v965
  %v1030 = vpop.f32.mrf.mxu0
  %v1031 = vadd.f32 0.0, %v1030
  %v1032 = vpop.f32.mrf.mxu0
  %v1033 = vpop.f32.mrf.mxu0
  %v1034 = vadd.f32 0.0, %v1033
  %v1035 = vpop.f32.mrf.mxu0
  %1036 = vmatprep.mubr.bf16.mxu0 0
  %1037 = vmatmul.mubr.bf16.gmra.mxu0 %v968
  %v1038 = vpop.f32.mrf.mxu0
  %v1039 = vadd.f32 0.0, %v1038
  %v1040 = vpop.f32.mrf.mxu0
  %v1041 = vpop.f32.mrf.mxu0
  %v1042 = vadd.f32 0.0, %v1041
  %v1043 = vpop.f32.mrf.mxu0
  %1044 = vmatprep.mubr.bf16.mxu0 0
  %1045 = vmatmul.mubr.bf16.gmra.mxu0 %v971
  %v1046 = vpop.f32.mrf.mxu0
  %v1047 = vadd.f32 0.0, %v1046
  %v1048 = vpop.f32.mrf.mxu0
  %v1049 = vpop.f32.mrf.mxu0
  %v1050 = vadd.f32 0.0, %v1049
  %v1051 = vpop.f32.mrf.mxu0
  %1052 = vmatprep.mubr.bf16.mxu0 0
  %1053 = vmatmul.mubr.bf16.gmra.mxu0 %v974
  %v1054 = vpop.f32.mrf.mxu0
  %v1055 = vadd.f32 0.0, %v1054
  %v1056 = vpop.f32.mrf.mxu0
  %v1057 = vpop.f32.mrf.mxu0
  %v1058 = vadd.f32 0.0, %v1057
  %v1059 = vpop.f32.mrf.mxu0
  %1060 = vmatprep.mubr.bf16.mxu0 0
  %1061 = vmatmul.mubr.bf16.gmra.mxu0 %v977
  %v1062 = vpop.f32.mrf.mxu0
  %v1063 = vadd.f32 0.0, %v1062
  %v1064 = vpop.f32.mrf.mxu0
  %v1065 = vpop.f32.mrf.mxu0
  %v1066 = vadd.f32 0.0, %v1065
  %v1067 = vpop.f32.mrf.mxu0
  %1068 = vmatprep.mubr.bf16.mxu0 0
  %1069 = vmatmul.mubr.bf16.gmra.mxu0 %v980
  %v1070 = vpop.f32.mrf.mxu0
  %v1071 = vadd.f32 0.0, %v1070
  %v1072 = vpop.f32.mrf.mxu0
  %v1073 = vpop.f32.mrf.mxu0
  %v1074 = vadd.f32 0.0, %v1073
  %v1075 = vpop.f32.mrf.mxu0
  %1076 = vmatprep.mubr.bf16.mxu0 0
  %1077 = vmatmul.mubr.bf16.gmra.mxu0 %v983
  %v1078 = vpop.f32.mrf.mxu0
  %v1079 = vadd.f32 0.0, %v1078
  %v1080 = vpop.f32.mrf.mxu0
  %v1081 = vpop.f32.mrf.mxu0
  %v1082 = vadd.f32 0.0, %v1081
  %v1083 = vpop.f32.mrf.mxu0
  %1084 = vdwg.mxu0
  %v1085 = vadd.f32 %v903, %v1023
  %v1086 = vadd.f32 %v904, %v1026
  %v1087 = vadd.f32 %v905, %v1031
  %v1088 = vadd.f32 %v906, %v1034
  %v1089 = vadd.f32 %v907, %v1039
  %v1090 = vadd.f32 %v908, %v1042
  %v1091 = vadd.f32 %v909, %v1047
  %v1092 = vadd.f32 %v910, %v1050
  %v1093 = vadd.f32 %v911, %v1055
  %v1094 = vadd.f32 %v912, %v1058
  %v1095 = vadd.f32 %v913, %v1063
  %v1096 = vadd.f32 %v914, %v1066
  %v1097 = vadd.f32 %v915, %v1071
  %v1098 = vadd.f32 %v916, %v1074
  %v1099 = vadd.f32 %v917, %v1079
  %v1100 = vadd.f32 %v918, %v1082
  %s1101 = scalar_lea.vmem %s737, 2
  %v1102 = vld [vmem:[%s1101] ss:$2 sm:$0xff]
  %s1103 = scalar_lea.vmem %s737, 50
  %v1104 = vld [vmem:[%s1103] ss:$2 sm:$0xff]
  %s1105 = scalar_lea.vmem %s737, 98
  %v1106 = vld [vmem:[%s1105] ss:$2 sm:$0xff]
  %s1107 = scalar_lea.vmem %s737, 146
  %v1108 = vld [vmem:[%s1107] ss:$2 sm:$0xff]
  %s1109 = scalar_lea.vmem %s737, 194
  %v1110 = vld [vmem:[%s1109] ss:$2 sm:$0xff]
  %s1111 = scalar_lea.vmem %s737, 242
  %v1112 = vld [vmem:[%s1111] ss:$2 sm:$0xff]
  %s1113 = scalar_lea.vmem %s737, 290
  %v1114 = vld [vmem:[%s1113] ss:$2 sm:$0xff]
  %s1115 = scalar_lea.vmem %s737, 338
  %v1116 = vld [vmem:[%s1115] ss:$2 sm:$0xff]
  %s1117 = scalar_lea.vmem %s737, 434
  %v1118 = vld [vmem:[%s1117] ss:$2 sm:$0xff]
  %s1119 = scalar_lea.vmem %s737, 482
  %v1120 = vld [vmem:[%s1119] ss:$2 sm:$0xff]
  %s1121 = scalar_lea.vmem %s737, 530
  %v1122 = vld [vmem:[%s1121] ss:$2 sm:$0xff]
  %s1123 = scalar_lea.vmem %s737, 578
  %v1124 = vld [vmem:[%s1123] ss:$2 sm:$0xff]
  %s1125 = scalar_lea.vmem %s737, 626
  %v1126 = vld [vmem:[%s1125] ss:$2 sm:$0xff]
  %s1127 = scalar_lea.vmem %s737, 674
  %v1128 = vld [vmem:[%s1127] ss:$2 sm:$0xff]
  %s1129 = scalar_lea.vmem %s737, 722
  %v1130 = vld [vmem:[%s1129] ss:$2 sm:$0xff]
  %s1131 = scalar_lea.vmem %s737, 770
  %v1132 = vld [vmem:[%s1131] ss:$2 sm:$0xff]
  %v1133 = vpack.c.bf16 %v1104, %v1102
  %v1134 = vpack.c.bf16 %v1108, %v1106
  %v1135 = vpack.c.bf16 %v1112, %v1110
  %v1136 = vpack.c.bf16 %v1116, %v1114
  %v1137 = vpack.c.bf16 %v1120, %v1118
  %v1138 = vpack.c.bf16 %v1124, %v1122
  %v1139 = vpack.c.bf16 %v1128, %v1126
  %v1140 = vpack.c.bf16 %v1132, %v1130
  %s1141 = scalar_lea.vmem %s1, 12
  %v1142 = vld [vmem:[%s1141] sm:$0x3]
  %v1144 = vsel %vm123, %v1133, 0
  %v1147 = vsel %vm123, %v1134, 0
  %v1150 = vsel %vm123, %v1135, 0
  %v1153 = vsel %vm123, %v1136, 0
  %v1156 = vsel %vm123, %v1137, 0
  %v1159 = vsel %vm123, %v1138, 0
  %v1162 = vsel %vm123, %v1139, 0
  %v1165 = vsel %vm123, %v1140, 0
  %v1168 = vsel %vm148, %v1142, 0
  %1170 = vmatprep.subr.bf16.mxu0 0
  %1171 = vmatpush1.bf16.msra.mxu0 0
  %1172 = vmatprep.subr.bf16.mxu0 0
  %1173 = vmatpush1.bf16.msra.mxu0 0
  %1174 = vmatprep.subr.bf16.mxu0 0
  %1175 = vmatpush1.bf16.msra.mxu0 0
  %1176 = vmatprep.subr.bf16.mxu0 0
  %1177 = vmatpush1.bf16.msra.mxu0 0
  %1178 = vmatprep.subr.bf16.mxu0 0
  %1179 = vmatpush1.bf16.msra.mxu0 0
  %1180 = vmatprep.subr.bf16.mxu0 0
  %1181 = vmatpush1.bf16.msra.mxu0 0
  %1182 = vmatprep.subr.bf16.mxu0 0
  %1183 = vmatpush1.bf16.msra.mxu0 0
  %1184 = vmatprep.subr.bf16.mxu0 0
  %1185 = vmatpush1.bf16.msra.mxu0 %v1168
  %1186 = vmatprep.subr.bf16.mxu0 0
  %1187 = vmatpush2.bf16.msra.mxu0 0
  %1188 = vmatprep.subr.bf16.mxu0 0
  %1189 = vmatpush2.bf16.msra.mxu0 0
  %1190 = vmatprep.subr.bf16.mxu0 0
  %1191 = vmatpush2.bf16.msra.mxu0 0
  %1192 = vmatprep.subr.bf16.mxu0 0
  %1193 = vmatpush2.bf16.msra.mxu0 0
  %1194 = vmatprep.subr.bf16.mxu0 0
  %1195 = vmatpush2.bf16.msra.mxu0 0
  %1196 = vmatprep.subr.bf16.mxu0 0
  %1197 = vmatpush2.bf16.msra.mxu0 0
  %1198 = vmatprep.subr.bf16.mxu0 0
  %1199 = vmatpush2.bf16.msra.mxu0 0
  %1200 = vmatprep.subr.bf16.mxu0 0
  %1201 = vmatpush2.bf16.msra.mxu0 0
  %1202 = vmatprep.mubr.bf16.mxu0 0
  %1203 = vmatmul.mubr.bf16.gmra.mxu0 %v1144
  %v1204 = vpop.f32.mrf.mxu0
  %v1205 = vadd.f32 0.0, %v1204
  %v1206 = vpop.f32.mrf.mxu0
  %v1207 = vpop.f32.mrf.mxu0
  %v1208 = vadd.f32 0.0, %v1207
  %v1209 = vpop.f32.mrf.mxu0
  %1210 = vmatprep.mubr.bf16.mxu0 0
  %1211 = vmatmul.mubr.bf16.gmra.mxu0 %v1147
  %v1212 = vpop.f32.mrf.mxu0
  %v1213 = vadd.f32 0.0, %v1212
  %v1214 = vpop.f32.mrf.mxu0
  %v1215 = vpop.f32.mrf.mxu0
  %v1216 = vadd.f32 0.0, %v1215
  %v1217 = vpop.f32.mrf.mxu0
  %1218 = vmatprep.mubr.bf16.mxu0 0
  %1219 = vmatmul.mubr.bf16.gmra.mxu0 %v1150
  %v1220 = vpop.f32.mrf.mxu0
  %v1221 = vadd.f32 0.0, %v1220
  %v1222 = vpop.f32.mrf.mxu0
  %v1223 = vpop.f32.mrf.mxu0
  %v1224 = vadd.f32 0.0, %v1223
  %v1225 = vpop.f32.mrf.mxu0
  %1226 = vmatprep.mubr.bf16.mxu0 0
  %1227 = vmatmul.mubr.bf16.gmra.mxu0 %v1153
  %v1228 = vpop.f32.mrf.mxu0
  %v1229 = vadd.f32 0.0, %v1228
  %v1230 = vpop.f32.mrf.mxu0
  %v1231 = vpop.f32.mrf.mxu0
  %v1232 = vadd.f32 0.0, %v1231
  %v1233 = vpop.f32.mrf.mxu0
  %1234 = vmatprep.mubr.bf16.mxu0 0
  %1235 = vmatmul.mubr.bf16.gmra.mxu0 %v1156
  %v1236 = vpop.f32.mrf.mxu0
  %v1237 = vadd.f32 0.0, %v1236
  %v1238 = vpop.f32.mrf.mxu0
  %v1239 = vpop.f32.mrf.mxu0
  %v1240 = vadd.f32 0.0, %v1239
  %v1241 = vpop.f32.mrf.mxu0
  %1242 = vmatprep.mubr.bf16.mxu0 0
  %1243 = vmatmul.mubr.bf16.gmra.mxu0 %v1159
  %v1244 = vpop.f32.mrf.mxu0
  %v1245 = vadd.f32 0.0, %v1244
  %v1246 = vpop.f32.mrf.mxu0
  %v1247 = vpop.f32.mrf.mxu0
  %v1248 = vadd.f32 0.0, %v1247
  %v1249 = vpop.f32.mrf.mxu0
  %1250 = vmatprep.mubr.bf16.mxu0 0
  %1251 = vmatmul.mubr.bf16.gmra.mxu0 %v1162
  %v1252 = vpop.f32.mrf.mxu0
  %v1253 = vadd.f32 0.0, %v1252
  %v1254 = vpop.f32.mrf.mxu0
  %v1255 = vpop.f32.mrf.mxu0
  %v1256 = vadd.f32 0.0, %v1255
  %v1257 = vpop.f32.mrf.mxu0
  %1258 = vmatprep.mubr.bf16.mxu0 0
  %1259 = vmatmul.mubr.bf16.gmra.mxu0 %v1165
  %v1260 = vpop.f32.mrf.mxu0
  %v1261 = vadd.f32 0.0, %v1260
  %v1262 = vpop.f32.mrf.mxu0
  %v1263 = vpop.f32.mrf.mxu0
  %v1264 = vadd.f32 0.0, %v1263
  %v1265 = vpop.f32.mrf.mxu0
  %1266 = vdwg.mxu0
  %v1267 = vadd.f32 %v1085, %v1205
  %v1268 = vadd.f32 %v1086, %v1208
  %v1269 = vadd.f32 %v1087, %v1213
  %v1270 = vadd.f32 %v1088, %v1216
  %v1271 = vadd.f32 %v1089, %v1221
  %v1272 = vadd.f32 %v1090, %v1224
  %v1273 = vadd.f32 %v1091, %v1229
  %v1274 = vadd.f32 %v1092, %v1232
  %v1275 = vadd.f32 %v1093, %v1237
  %v1276 = vadd.f32 %v1094, %v1240
  %v1277 = vadd.f32 %v1095, %v1245
  %v1278 = vadd.f32 %v1096, %v1248
  %v1279 = vadd.f32 %v1097, %v1253
  %v1280 = vadd.f32 %v1098, %v1256
  %v1281 = vadd.f32 %v1099, %v1261
  %v1282 = vadd.f32 %v1100, %v1264
  %s1283 = scalar_lea.vmem %s737, 3
  %v1284 = vld [vmem:[%s1283] ss:$2 sm:$0xff]
  %s1285 = scalar_lea.vmem %s737, 51
  %v1286 = vld [vmem:[%s1285] ss:$2 sm:$0xff]
  %s1287 = scalar_lea.vmem %s737, 99
  %v1288 = vld [vmem:[%s1287] ss:$2 sm:$0xff]
  %s1289 = scalar_lea.vmem %s737, 147
  %v1290 = vld [vmem:[%s1289] ss:$2 sm:$0xff]
  %s1291 = scalar_lea.vmem %s737, 195
  %v1292 = vld [vmem:[%s1291] ss:$2 sm:$0xff]
  %s1293 = scalar_lea.vmem %s737, 243
  %v1294 = vld [vmem:[%s1293] ss:$2 sm:$0xff]
  %s1295 = scalar_lea.vmem %s737, 291
  %v1296 = vld [vmem:[%s1295] ss:$2 sm:$0xff]
  %s1297 = scalar_lea.vmem %s737, 339
  %v1298 = vld [vmem:[%s1297] ss:$2 sm:$0xff]
  %s1299 = scalar_lea.vmem %s737, 435
  %v1300 = vld [vmem:[%s1299] ss:$2 sm:$0xff]
  %s1301 = scalar_lea.vmem %s737, 483
  %v1302 = vld [vmem:[%s1301] ss:$2 sm:$0xff]
  %s1303 = scalar_lea.vmem %s737, 531
  %v1304 = vld [vmem:[%s1303] ss:$2 sm:$0xff]
  %s1305 = scalar_lea.vmem %s737, 579
  %v1306 = vld [vmem:[%s1305] ss:$2 sm:$0xff]
  %s1307 = scalar_lea.vmem %s737, 627
  %v1308 = vld [vmem:[%s1307] ss:$2 sm:$0xff]
  %s1309 = scalar_lea.vmem %s737, 675
  %v1310 = vld [vmem:[%s1309] ss:$2 sm:$0xff]
  %s1311 = scalar_lea.vmem %s737, 723
  %v1312 = vld [vmem:[%s1311] ss:$2 sm:$0xff]
  %s1313 = scalar_lea.vmem %s737, 771
  %v1314 = vld [vmem:[%s1313] ss:$2 sm:$0xff]
  %v1315 = vpack.c.bf16 %v1286, %v1284
  %v1316 = vpack.c.bf16 %v1290, %v1288
  %v1317 = vpack.c.bf16 %v1294, %v1292
  %v1318 = vpack.c.bf16 %v1298, %v1296
  %v1319 = vpack.c.bf16 %v1302, %v1300
  %v1320 = vpack.c.bf16 %v1306, %v1304
  %v1321 = vpack.c.bf16 %v1310, %v1308
  %v1322 = vpack.c.bf16 %v1314, %v1312
  %s1323 = scalar_lea.vmem %s1, 14
  %v1324 = vld [vmem:[%s1323] sm:$0x3]
  %v1326 = vsel %vm123, %v1315, 0
  %v1329 = vsel %vm123, %v1316, 0
  %v1332 = vsel %vm123, %v1317, 0
  %v1335 = vsel %vm123, %v1318, 0
  %v1338 = vsel %vm123, %v1319, 0
  %v1341 = vsel %vm123, %v1320, 0
  %v1344 = vsel %vm123, %v1321, 0
  %v1347 = vsel %vm123, %v1322, 0
  %v1350 = vsel %vm148, %v1324, 0
  %1352 = vmatprep.subr.bf16.mxu0 0
  %1353 = vmatpush1.bf16.msra.mxu0 0
  %1354 = vmatprep.subr.bf16.mxu0 0
  %1355 = vmatpush1.bf16.msra.mxu0 0
  %1356 = vmatprep.subr.bf16.mxu0 0
  %1357 = vmatpush1.bf16.msra.mxu0 0
  %1358 = vmatprep.subr.bf16.mxu0 0
  %1359 = vmatpush1.bf16.msra.mxu0 0
  %1360 = vmatprep.subr.bf16.mxu0 0
  %1361 = vmatpush1.bf16.msra.mxu0 0
  %1362 = vmatprep.subr.bf16.mxu0 0
  %1363 = vmatpush1.bf16.msra.mxu0 0
  %1364 = vmatprep.subr.bf16.mxu0 0
  %1365 = vmatpush1.bf16.msra.mxu0 0
  %1366 = vmatprep.subr.bf16.mxu0 0
  %1367 = vmatpush1.bf16.msra.mxu0 %v1350
  %1368 = vmatprep.subr.bf16.mxu0 0
  %1369 = vmatpush2.bf16.msra.mxu0 0
  %1370 = vmatprep.subr.bf16.mxu0 0
  %1371 = vmatpush2.bf16.msra.mxu0 0
  %1372 = vmatprep.subr.bf16.mxu0 0
  %1373 = vmatpush2.bf16.msra.mxu0 0
  %1374 = vmatprep.subr.bf16.mxu0 0
  %1375 = vmatpush2.bf16.msra.mxu0 0
  %1376 = vmatprep.subr.bf16.mxu0 0
  %1377 = vmatpush2.bf16.msra.mxu0 0
  %1378 = vmatprep.subr.bf16.mxu0 0
  %1379 = vmatpush2.bf16.msra.mxu0 0
  %1380 = vmatprep.subr.bf16.mxu0 0
  %1381 = vmatpush2.bf16.msra.mxu0 0
  %1382 = vmatprep.subr.bf16.mxu0 0
  %1383 = vmatpush2.bf16.msra.mxu0 0
  %1384 = vmatprep.mubr.bf16.mxu0 0
  %1385 = vmatmul.mubr.bf16.gmra.mxu0 %v1326
  %v1386 = vpop.f32.mrf.mxu0
  %v1387 = vadd.f32 0.0, %v1386
  %v1388 = vpop.f32.mrf.mxu0
  %v1389 = vpop.f32.mrf.mxu0
  %v1390 = vadd.f32 0.0, %v1389
  %v1391 = vpop.f32.mrf.mxu0
  %1392 = vmatprep.mubr.bf16.mxu0 0
  %1393 = vmatmul.mubr.bf16.gmra.mxu0 %v1329
  %v1394 = vpop.f32.mrf.mxu0
  %v1395 = vadd.f32 0.0, %v1394
  %v1396 = vpop.f32.mrf.mxu0
  %v1397 = vpop.f32.mrf.mxu0
  %v1398 = vadd.f32 0.0, %v1397
  %v1399 = vpop.f32.mrf.mxu0
  %1400 = vmatprep.mubr.bf16.mxu0 0
  %1401 = vmatmul.mubr.bf16.gmra.mxu0 %v1332
  %v1402 = vpop.f32.mrf.mxu0
  %v1403 = vadd.f32 0.0, %v1402
  %v1404 = vpop.f32.mrf.mxu0
  %v1405 = vpop.f32.mrf.mxu0
  %v1406 = vadd.f32 0.0, %v1405
  %v1407 = vpop.f32.mrf.mxu0
  %1408 = vmatprep.mubr.bf16.mxu0 0
  %1409 = vmatmul.mubr.bf16.gmra.mxu0 %v1335
  %v1410 = vpop.f32.mrf.mxu0
  %v1411 = vadd.f32 0.0, %v1410
  %v1412 = vpop.f32.mrf.mxu0
  %v1413 = vpop.f32.mrf.mxu0
  %v1414 = vadd.f32 0.0, %v1413
  %v1415 = vpop.f32.mrf.mxu0
  %1416 = vmatprep.mubr.bf16.mxu0 0
  %1417 = vmatmul.mubr.bf16.gmra.mxu0 %v1338
  %v1418 = vpop.f32.mrf.mxu0
  %v1419 = vadd.f32 0.0, %v1418
  %v1420 = vpop.f32.mrf.mxu0
  %v1421 = vpop.f32.mrf.mxu0
  %v1422 = vadd.f32 0.0, %v1421
  %v1423 = vpop.f32.mrf.mxu0
  %1424 = vmatprep.mubr.bf16.mxu0 0
  %1425 = vmatmul.mubr.bf16.gmra.mxu0 %v1341
  %v1426 = vpop.f32.mrf.mxu0
  %v1427 = vadd.f32 0.0, %v1426
  %v1428 = vpop.f32.mrf.mxu0
  %v1429 = vpop.f32.mrf.mxu0
  %v1430 = vadd.f32 0.0, %v1429
  %v1431 = vpop.f32.mrf.mxu0
  %1432 = vmatprep.mubr.bf16.mxu0 0
  %1433 = vmatmul.mubr.bf16.gmra.mxu0 %v1344
  %v1434 = vpop.f32.mrf.mxu0
  %v1435 = vadd.f32 0.0, %v1434
  %v1436 = vpop.f32.mrf.mxu0
  %v1437 = vpop.f32.mrf.mxu0
  %v1438 = vadd.f32 0.0, %v1437
  %v1439 = vpop.f32.mrf.mxu0
  %1440 = vmatprep.mubr.bf16.mxu0 0
  %1441 = vmatmul.mubr.bf16.gmra.mxu0 %v1347
  %v1442 = vpop.f32.mrf.mxu0
  %v1443 = vadd.f32 0.0, %v1442
  %v1444 = vpop.f32.mrf.mxu0
  %v1445 = vpop.f32.mrf.mxu0
  %v1446 = vadd.f32 0.0, %v1445
  %v1447 = vpop.f32.mrf.mxu0
  %1448 = vdwg.mxu0
  %v1449 = vadd.f32 %v1267, %v1387
  %v1450 = vadd.f32 %v1268, %v1390
  %v1451 = vadd.f32 %v1269, %v1395
  %v1452 = vadd.f32 %v1270, %v1398
  %v1453 = vadd.f32 %v1271, %v1403
  %v1454 = vadd.f32 %v1272, %v1406
  %v1455 = vadd.f32 %v1273, %v1411
  %v1456 = vadd.f32 %v1274, %v1414
  %v1457 = vadd.f32 %v1275, %v1419
  %v1458 = vadd.f32 %v1276, %v1422
  %v1459 = vadd.f32 %v1277, %v1427
  %v1460 = vadd.f32 %v1278, %v1430
  %v1461 = vadd.f32 %v1279, %v1435
  %v1462 = vadd.f32 %v1280, %v1438
  %v1463 = vadd.f32 %v1281, %v1443
  %v1464 = vadd.f32 %v1282, %v1446
  %s1465 = scalar_lea.vmem %s0, 48
  %v1466 = vld [vmem:[%s1465] ss:$2 sm:$0xff]
  %s1467 = scalar_lea.vmem %s1465, 48
  %v1468 = vld [vmem:[%s1467] ss:$2 sm:$0xff]
  %s1469 = scalar_lea.vmem %s1465, 96
  %v1470 = vld [vmem:[%s1469] ss:$2 sm:$0xff]
  %s1471 = scalar_lea.vmem %s1465, 144
  %v1472 = vld [vmem:[%s1471] ss:$2 sm:$0xff]
  %s1473 = scalar_lea.vmem %s1465, 192
  %v1474 = vld [vmem:[%s1473] ss:$2 sm:$0xff]
  %s1475 = scalar_lea.vmem %s1465, 240
  %v1476 = vld [vmem:[%s1475] ss:$2 sm:$0xff]
  %s1477 = scalar_lea.vmem %s1465, 288
  %v1478 = vld [vmem:[%s1477] ss:$2 sm:$0xff]
  %s1479 = scalar_lea.vmem %s1465, 336
  %v1480 = vld [vmem:[%s1479] ss:$2 sm:$0xff]
  %s1481 = scalar_lea.vmem %s1465, 432
  %v1482 = vld [vmem:[%s1481] ss:$2 sm:$0xff]
  %s1483 = scalar_lea.vmem %s1465, 480
  %v1484 = vld [vmem:[%s1483] ss:$2 sm:$0xff]
  %s1485 = scalar_lea.vmem %s1465, 528
  %v1486 = vld [vmem:[%s1485] ss:$2 sm:$0xff]
  %s1487 = scalar_lea.vmem %s1465, 576
  %v1488 = vld [vmem:[%s1487] ss:$2 sm:$0xff]
  %s1489 = scalar_lea.vmem %s1465, 624
  %v1490 = vld [vmem:[%s1489] ss:$2 sm:$0xff]
  %s1491 = scalar_lea.vmem %s1465, 672
  %v1492 = vld [vmem:[%s1491] ss:$2 sm:$0xff]
  %s1493 = scalar_lea.vmem %s1465, 720
  %v1494 = vld [vmem:[%s1493] ss:$2 sm:$0xff]
  %s1495 = scalar_lea.vmem %s1465, 768
  %v1496 = vld [vmem:[%s1495] ss:$2 sm:$0xff]
  %v1497 = vpack.c.bf16 %v1468, %v1466
  %v1498 = vpack.c.bf16 %v1472, %v1470
  %v1499 = vpack.c.bf16 %v1476, %v1474
  %v1500 = vpack.c.bf16 %v1480, %v1478
  %v1501 = vpack.c.bf16 %v1484, %v1482
  %v1502 = vpack.c.bf16 %v1488, %v1486
  %v1503 = vpack.c.bf16 %v1492, %v1490
  %v1504 = vpack.c.bf16 %v1496, %v1494
  %s1505 = scalar_lea.vmem %s1, 16
  %v1506 = vld [vmem:[%s1505] sm:$0x3]
  %v1508 = vsel %vm123, %v1497, 0
  %v1511 = vsel %vm123, %v1498, 0
  %v1514 = vsel %vm123, %v1499, 0
  %v1517 = vsel %vm123, %v1500, 0
  %v1520 = vsel %vm123, %v1501, 0
  %v1523 = vsel %vm123, %v1502, 0
  %v1526 = vsel %vm123, %v1503, 0
  %v1529 = vsel %vm123, %v1504, 0
  %v1532 = vsel %vm148, %v1506, 0
  %1534 = vmatprep.subr.bf16.mxu0 0
  %1535 = vmatpush1.bf16.msra.mxu0 0
  %1536 = vmatprep.subr.bf16.mxu0 0
  %1537 = vmatpush1.bf16.msra.mxu0 0
  %1538 = vmatprep.subr.bf16.mxu0 0
  %1539 = vmatpush1.bf16.msra.mxu0 0
  %1540 = vmatprep.subr.bf16.mxu0 0
  %1541 = vmatpush1.bf16.msra.mxu0 0
  %1542 = vmatprep.subr.bf16.mxu0 0
  %1543 = vmatpush1.bf16.msra.mxu0 0
  %1544 = vmatprep.subr.bf16.mxu0 0
  %1545 = vmatpush1.bf16.msra.mxu0 0
  %1546 = vmatprep.subr.bf16.mxu0 0
  %1547 = vmatpush1.bf16.msra.mxu0 0
  %1548 = vmatprep.subr.bf16.mxu0 0
  %1549 = vmatpush1.bf16.msra.mxu0 %v1532
  %1550 = vmatprep.subr.bf16.mxu0 0
  %1551 = vmatpush2.bf16.msra.mxu0 0
  %1552 = vmatprep.subr.bf16.mxu0 0
  %1553 = vmatpush2.bf16.msra.mxu0 0
  %1554 = vmatprep.subr.bf16.mxu0 0
  %1555 = vmatpush2.bf16.msra.mxu0 0
  %1556 = vmatprep.subr.bf16.mxu0 0
  %1557 = vmatpush2.bf16.msra.mxu0 0
  %1558 = vmatprep.subr.bf16.mxu0 0
  %1559 = vmatpush2.bf16.msra.mxu0 0
  %1560 = vmatprep.subr.bf16.mxu0 0
  %1561 = vmatpush2.bf16.msra.mxu0 0
  %1562 = vmatprep.subr.bf16.mxu0 0
  %1563 = vmatpush2.bf16.msra.mxu0 0
  %1564 = vmatprep.subr.bf16.mxu0 0
  %1565 = vmatpush2.bf16.msra.mxu0 0
  %1566 = vmatprep.mubr.bf16.mxu0 0
  %1567 = vmatmul.mubr.bf16.gmra.mxu0 %v1508
  %v1568 = vpop.f32.mrf.mxu0
  %v1569 = vadd.f32 0.0, %v1568
  %v1570 = vpop.f32.mrf.mxu0
  %v1571 = vpop.f32.mrf.mxu0
  %v1572 = vadd.f32 0.0, %v1571
  %v1573 = vpop.f32.mrf.mxu0
  %1574 = vmatprep.mubr.bf16.mxu0 0
  %1575 = vmatmul.mubr.bf16.gmra.mxu0 %v1511
  %v1576 = vpop.f32.mrf.mxu0
  %v1577 = vadd.f32 0.0, %v1576
  %v1578 = vpop.f32.mrf.mxu0
  %v1579 = vpop.f32.mrf.mxu0
  %v1580 = vadd.f32 0.0, %v1579
  %v1581 = vpop.f32.mrf.mxu0
  %1582 = vmatprep.mubr.bf16.mxu0 0
  %1583 = vmatmul.mubr.bf16.gmra.mxu0 %v1514
  %v1584 = vpop.f32.mrf.mxu0
  %v1585 = vadd.f32 0.0, %v1584
  %v1586 = vpop.f32.mrf.mxu0
  %v1587 = vpop.f32.mrf.mxu0
  %v1588 = vadd.f32 0.0, %v1587
  %v1589 = vpop.f32.mrf.mxu0
  %1590 = vmatprep.mubr.bf16.mxu0 0
  %1591 = vmatmul.mubr.bf16.gmra.mxu0 %v1517
  %v1592 = vpop.f32.mrf.mxu0
  %v1593 = vadd.f32 0.0, %v1592
  %v1594 = vpop.f32.mrf.mxu0
  %v1595 = vpop.f32.mrf.mxu0
  %v1596 = vadd.f32 0.0, %v1595
  %v1597 = vpop.f32.mrf.mxu0
  %1598 = vmatprep.mubr.bf16.mxu0 0
  %1599 = vmatmul.mubr.bf16.gmra.mxu0 %v1520
  %v1600 = vpop.f32.mrf.mxu0
  %v1601 = vadd.f32 0.0, %v1600
  %v1602 = vpop.f32.mrf.mxu0
  %v1603 = vpop.f32.mrf.mxu0
  %v1604 = vadd.f32 0.0, %v1603
  %v1605 = vpop.f32.mrf.mxu0
  %1606 = vmatprep.mubr.bf16.mxu0 0
  %1607 = vmatmul.mubr.bf16.gmra.mxu0 %v1523
  %v1608 = vpop.f32.mrf.mxu0
  %v1609 = vadd.f32 0.0, %v1608
  %v1610 = vpop.f32.mrf.mxu0
  %v1611 = vpop.f32.mrf.mxu0
  %v1612 = vadd.f32 0.0, %v1611
  %v1613 = vpop.f32.mrf.mxu0
  %1614 = vmatprep.mubr.bf16.mxu0 0
  %1615 = vmatmul.mubr.bf16.gmra.mxu0 %v1526
  %v1616 = vpop.f32.mrf.mxu0
  %v1617 = vadd.f32 0.0, %v1616
  %v1618 = vpop.f32.mrf.mxu0
  %v1619 = vpop.f32.mrf.mxu0
  %v1620 = vadd.f32 0.0, %v1619
  %v1621 = vpop.f32.mrf.mxu0
  %1622 = vmatprep.mubr.bf16.mxu0 0
  %1623 = vmatmul.mubr.bf16.gmra.mxu0 %v1529
  %v1624 = vpop.f32.mrf.mxu0
  %v1625 = vadd.f32 0.0, %v1624
  %v1626 = vpop.f32.mrf.mxu0
  %v1627 = vpop.f32.mrf.mxu0
  %v1628 = vadd.f32 0.0, %v1627
  %v1629 = vpop.f32.mrf.mxu0
  %1630 = vdwg.mxu0
  %v1631 = vadd.f32 %v1449, %v1569
  %v1632 = vadd.f32 %v1450, %v1572
  %v1633 = vadd.f32 %v1451, %v1577
  %v1634 = vadd.f32 %v1452, %v1580
  %v1635 = vadd.f32 %v1453, %v1585
  %v1636 = vadd.f32 %v1454, %v1588
  %v1637 = vadd.f32 %v1455, %v1593
  %v1638 = vadd.f32 %v1456, %v1596
  %v1639 = vadd.f32 %v1457, %v1601
  %v1640 = vadd.f32 %v1458, %v1604
  %v1641 = vadd.f32 %v1459, %v1609
  %v1642 = vadd.f32 %v1460, %v1612
  %v1643 = vadd.f32 %v1461, %v1617
  %v1644 = vadd.f32 %v1462, %v1620
  %v1645 = vadd.f32 %v1463, %v1625
  %v1646 = vadd.f32 %v1464, %v1628
  %s1647 = scalar_lea.vmem %s1465, 1
  %v1648 = vld [vmem:[%s1647] ss:$2 sm:$0xff]
  %s1649 = scalar_lea.vmem %s1465, 49
  %v1650 = vld [vmem:[%s1649] ss:$2 sm:$0xff]
  %s1651 = scalar_lea.vmem %s1465, 97
  %v1652 = vld [vmem:[%s1651] ss:$2 sm:$0xff]
  %s1653 = scalar_lea.vmem %s1465, 145
  %v1654 = vld [vmem:[%s1653] ss:$2 sm:$0xff]
  %s1655 = scalar_lea.vmem %s1465, 193
  %v1656 = vld [vmem:[%s1655] ss:$2 sm:$0xff]
  %s1657 = scalar_lea.vmem %s1465, 241
  %v1658 = vld [vmem:[%s1657] ss:$2 sm:$0xff]
  %s1659 = scalar_lea.vmem %s1465, 289
  %v1660 = vld [vmem:[%s1659] ss:$2 sm:$0xff]
  %s1661 = scalar_lea.vmem %s1465, 337
  %v1662 = vld [vmem:[%s1661] ss:$2 sm:$0xff]
  %s1663 = scalar_lea.vmem %s1465, 433
  %v1664 = vld [vmem:[%s1663] ss:$2 sm:$0xff]
  %s1665 = scalar_lea.vmem %s1465, 481
  %v1666 = vld [vmem:[%s1665] ss:$2 sm:$0xff]
  %s1667 = scalar_lea.vmem %s1465, 529
  %v1668 = vld [vmem:[%s1667] ss:$2 sm:$0xff]
  %s1669 = scalar_lea.vmem %s1465, 577
  %v1670 = vld [vmem:[%s1669] ss:$2 sm:$0xff]
  %s1671 = scalar_lea.vmem %s1465, 625
  %v1672 = vld [vmem:[%s1671] ss:$2 sm:$0xff]
  %s1673 = scalar_lea.vmem %s1465, 673
  %v1674 = vld [vmem:[%s1673] ss:$2 sm:$0xff]
  %s1675 = scalar_lea.vmem %s1465, 721
  %v1676 = vld [vmem:[%s1675] ss:$2 sm:$0xff]
  %s1677 = scalar_lea.vmem %s1465, 769
  %v1678 = vld [vmem:[%s1677] ss:$2 sm:$0xff]
  %v1679 = vpack.c.bf16 %v1650, %v1648
  %v1680 = vpack.c.bf16 %v1654, %v1652
  %v1681 = vpack.c.bf16 %v1658, %v1656
  %v1682 = vpack.c.bf16 %v1662, %v1660
  %v1683 = vpack.c.bf16 %v1666, %v1664
  %v1684 = vpack.c.bf16 %v1670, %v1668
  %v1685 = vpack.c.bf16 %v1674, %v1672
  %v1686 = vpack.c.bf16 %v1678, %v1676
  %s1687 = scalar_lea.vmem %s1, 18
  %v1688 = vld [vmem:[%s1687] sm:$0x3]
  %v1690 = vsel %vm123, %v1679, 0
  %v1693 = vsel %vm123, %v1680, 0
  %v1696 = vsel %vm123, %v1681, 0
  %v1699 = vsel %vm123, %v1682, 0
  %v1702 = vsel %vm123, %v1683, 0
  %v1705 = vsel %vm123, %v1684, 0
  %v1708 = vsel %vm123, %v1685, 0
  %v1711 = vsel %vm123, %v1686, 0
  %v1714 = vsel %vm148, %v1688, 0
  %1716 = vmatprep.subr.bf16.mxu0 0
  %1717 = vmatpush1.bf16.msra.mxu0 0
  %1718 = vmatprep.subr.bf16.mxu0 0
  %1719 = vmatpush1.bf16.msra.mxu0 0
  %1720 = vmatprep.subr.bf16.mxu0 0
  %1721 = vmatpush1.bf16.msra.mxu0 0
  %1722 = vmatprep.subr.bf16.mxu0 0
  %1723 = vmatpush1.bf16.msra.mxu0 0
  %1724 = vmatprep.subr.bf16.mxu0 0
  %1725 = vmatpush1.bf16.msra.mxu0 0
  %1726 = vmatprep.subr.bf16.mxu0 0
  %1727 = vmatpush1.bf16.msra.mxu0 0
  %1728 = vmatprep.subr.bf16.mxu0 0
  %1729 = vmatpush1.bf16.msra.mxu0 0
  %1730 = vmatprep.subr.bf16.mxu0 0
  %1731 = vmatpush1.bf16.msra.mxu0 %v1714
  %1732 = vmatprep.subr.bf16.mxu0 0
  %1733 = vmatpush2.bf16.msra.mxu0 0
  %1734 = vmatprep.subr.bf16.mxu0 0
  %1735 = vmatpush2.bf16.msra.mxu0 0
  %1736 = vmatprep.subr.bf16.mxu0 0
  %1737 = vmatpush2.bf16.msra.mxu0 0
  %1738 = vmatprep.subr.bf16.mxu0 0
  %1739 = vmatpush2.bf16.msra.mxu0 0
  %1740 = vmatprep.subr.bf16.mxu0 0
  %1741 = vmatpush2.bf16.msra.mxu0 0
  %1742 = vmatprep.subr.bf16.mxu0 0
  %1743 = vmatpush2.bf16.msra.mxu0 0
  %1744 = vmatprep.subr.bf16.mxu0 0
  %1745 = vmatpush2.bf16.msra.mxu0 0
  %1746 = vmatprep.subr.bf16.mxu0 0
  %1747 = vmatpush2.bf16.msra.mxu0 0
  %1748 = vmatprep.mubr.bf16.mxu0 0
  %1749 = vmatmul.mubr.bf16.gmra.mxu0 %v1690
  %v1750 = vpop.f32.mrf.mxu0
  %v1751 = vadd.f32 0.0, %v1750
  %v1752 = vpop.f32.mrf.mxu0
  %v1753 = vpop.f32.mrf.mxu0
  %v1754 = vadd.f32 0.0, %v1753
  %v1755 = vpop.f32.mrf.mxu0
  %1756 = vmatprep.mubr.bf16.mxu0 0
  %1757 = vmatmul.mubr.bf16.gmra.mxu0 %v1693
  %v1758 = vpop.f32.mrf.mxu0
  %v1759 = vadd.f32 0.0, %v1758
  %v1760 = vpop.f32.mrf.mxu0
  %v1761 = vpop.f32.mrf.mxu0
  %v1762 = vadd.f32 0.0, %v1761
  %v1763 = vpop.f32.mrf.mxu0
  %1764 = vmatprep.mubr.bf16.mxu0 0
  %1765 = vmatmul.mubr.bf16.gmra.mxu0 %v1696
  %v1766 = vpop.f32.mrf.mxu0
  %v1767 = vadd.f32 0.0, %v1766
  %v1768 = vpop.f32.mrf.mxu0
  %v1769 = vpop.f32.mrf.mxu0
  %v1770 = vadd.f32 0.0, %v1769
  %v1771 = vpop.f32.mrf.mxu0
  %1772 = vmatprep.mubr.bf16.mxu0 0
  %1773 = vmatmul.mubr.bf16.gmra.mxu0 %v1699
  %v1774 = vpop.f32.mrf.mxu0
  %v1775 = vadd.f32 0.0, %v1774
  %v1776 = vpop.f32.mrf.mxu0
  %v1777 = vpop.f32.mrf.mxu0
  %v1778 = vadd.f32 0.0, %v1777
  %v1779 = vpop.f32.mrf.mxu0
  %1780 = vmatprep.mubr.bf16.mxu0 0
  %1781 = vmatmul.mubr.bf16.gmra.mxu0 %v1702
  %v1782 = vpop.f32.mrf.mxu0
  %v1783 = vadd.f32 0.0, %v1782
  %v1784 = vpop.f32.mrf.mxu0
  %v1785 = vpop.f32.mrf.mxu0
  %v1786 = vadd.f32 0.0, %v1785
  %v1787 = vpop.f32.mrf.mxu0
  %1788 = vmatprep.mubr.bf16.mxu0 0
  %1789 = vmatmul.mubr.bf16.gmra.mxu0 %v1705
  %v1790 = vpop.f32.mrf.mxu0
  %v1791 = vadd.f32 0.0, %v1790
  %v1792 = vpop.f32.mrf.mxu0
  %v1793 = vpop.f32.mrf.mxu0
  %v1794 = vadd.f32 0.0, %v1793
  %v1795 = vpop.f32.mrf.mxu0
  %1796 = vmatprep.mubr.bf16.mxu0 0
  %1797 = vmatmul.mubr.bf16.gmra.mxu0 %v1708
  %v1798 = vpop.f32.mrf.mxu0
  %v1799 = vadd.f32 0.0, %v1798
  %v1800 = vpop.f32.mrf.mxu0
  %v1801 = vpop.f32.mrf.mxu0
  %v1802 = vadd.f32 0.0, %v1801
  %v1803 = vpop.f32.mrf.mxu0
  %1804 = vmatprep.mubr.bf16.mxu0 0
  %1805 = vmatmul.mubr.bf16.gmra.mxu0 %v1711
  %v1806 = vpop.f32.mrf.mxu0
  %v1807 = vadd.f32 0.0, %v1806
  %v1808 = vpop.f32.mrf.mxu0
  %v1809 = vpop.f32.mrf.mxu0
  %v1810 = vadd.f32 0.0, %v1809
  %v1811 = vpop.f32.mrf.mxu0
  %1812 = vdwg.mxu0
  %v1813 = vadd.f32 %v1631, %v1751
  %v1814 = vadd.f32 %v1632, %v1754
  %v1815 = vadd.f32 %v1633, %v1759
  %v1816 = vadd.f32 %v1634, %v1762
  %v1817 = vadd.f32 %v1635, %v1767
  %v1818 = vadd.f32 %v1636, %v1770
  %v1819 = vadd.f32 %v1637, %v1775
  %v1820 = vadd.f32 %v1638, %v1778
  %v1821 = vadd.f32 %v1639, %v1783
  %v1822 = vadd.f32 %v1640, %v1786
  %v1823 = vadd.f32 %v1641, %v1791
  %v1824 = vadd.f32 %v1642, %v1794
  %v1825 = vadd.f32 %v1643, %v1799
  %v1826 = vadd.f32 %v1644, %v1802
  %v1827 = vadd.f32 %v1645, %v1807
  %v1828 = vadd.f32 %v1646, %v1810
  %s1829 = scalar_lea.vmem %s1465, 2
  %v1830 = vld [vmem:[%s1829] ss:$2 sm:$0xff]
  %s1831 = scalar_lea.vmem %s1465, 50
  %v1832 = vld [vmem:[%s1831] ss:$2 sm:$0xff]
  %s1833 = scalar_lea.vmem %s1465, 98
  %v1834 = vld [vmem:[%s1833] ss:$2 sm:$0xff]
  %s1835 = scalar_lea.vmem %s1465, 146
  %v1836 = vld [vmem:[%s1835] ss:$2 sm:$0xff]
  %s1837 = scalar_lea.vmem %s1465, 194
  %v1838 = vld [vmem:[%s1837] ss:$2 sm:$0xff]
  %s1839 = scalar_lea.vmem %s1465, 242
  %v1840 = vld [vmem:[%s1839] ss:$2 sm:$0xff]
  %s1841 = scalar_lea.vmem %s1465, 290
  %v1842 = vld [vmem:[%s1841] ss:$2 sm:$0xff]
  %s1843 = scalar_lea.vmem %s1465, 338
  %v1844 = vld [vmem:[%s1843] ss:$2 sm:$0xff]
  %s1845 = scalar_lea.vmem %s1465, 434
  %v1846 = vld [vmem:[%s1845] ss:$2 sm:$0xff]
  %s1847 = scalar_lea.vmem %s1465, 482
  %v1848 = vld [vmem:[%s1847] ss:$2 sm:$0xff]
  %s1849 = scalar_lea.vmem %s1465, 530
  %v1850 = vld [vmem:[%s1849] ss:$2 sm:$0xff]
  %s1851 = scalar_lea.vmem %s1465, 578
  %v1852 = vld [vmem:[%s1851] ss:$2 sm:$0xff]
  %s1853 = scalar_lea.vmem %s1465, 626
  %v1854 = vld [vmem:[%s1853] ss:$2 sm:$0xff]
  %s1855 = scalar_lea.vmem %s1465, 674
  %v1856 = vld [vmem:[%s1855] ss:$2 sm:$0xff]
  %s1857 = scalar_lea.vmem %s1465, 722
  %v1858 = vld [vmem:[%s1857] ss:$2 sm:$0xff]
  %s1859 = scalar_lea.vmem %s1465, 770
  %v1860 = vld [vmem:[%s1859] ss:$2 sm:$0xff]
  %v1861 = vpack.c.bf16 %v1832, %v1830
  %v1862 = vpack.c.bf16 %v1836, %v1834
  %v1863 = vpack.c.bf16 %v1840, %v1838
  %v1864 = vpack.c.bf16 %v1844, %v1842
  %v1865 = vpack.c.bf16 %v1848, %v1846
  %v1866 = vpack.c.bf16 %v1852, %v1850
  %v1867 = vpack.c.bf16 %v1856, %v1854
  %v1868 = vpack.c.bf16 %v1860, %v1858
  %s1869 = scalar_lea.vmem %s1, 20
  %v1870 = vld [vmem:[%s1869] sm:$0x3]
  %v1872 = vsel %vm123, %v1861, 0
  %v1875 = vsel %vm123, %v1862, 0
  %v1878 = vsel %vm123, %v1863, 0
  %v1881 = vsel %vm123, %v1864, 0
  %v1884 = vsel %vm123, %v1865, 0
  %v1887 = vsel %vm123, %v1866, 0
  %v1890 = vsel %vm123, %v1867, 0
  %v1893 = vsel %vm123, %v1868, 0
  %v1896 = vsel %vm148, %v1870, 0
  %1898 = vmatprep.subr.bf16.mxu0 0
  %1899 = vmatpush1.bf16.msra.mxu0 0
  %1900 = vmatprep.subr.bf16.mxu0 0
  %1901 = vmatpush1.bf16.msra.mxu0 0
  %1902 = vmatprep.subr.bf16.mxu0 0
  %1903 = vmatpush1.bf16.msra.mxu0 0
  %1904 = vmatprep.subr.bf16.mxu0 0
  %1905 = vmatpush1.bf16.msra.mxu0 0
  %1906 = vmatprep.subr.bf16.mxu0 0
  %1907 = vmatpush1.bf16.msra.mxu0 0
  %1908 = vmatprep.subr.bf16.mxu0 0
  %1909 = vmatpush1.bf16.msra.mxu0 0
  %1910 = vmatprep.subr.bf16.mxu0 0
  %1911 = vmatpush1.bf16.msra.mxu0 0
  %1912 = vmatprep.subr.bf16.mxu0 0
  %1913 = vmatpush1.bf16.msra.mxu0 %v1896
  %1914 = vmatprep.subr.bf16.mxu0 0
  %1915 = vmatpush2.bf16.msra.mxu0 0
  %1916 = vmatprep.subr.bf16.mxu0 0
  %1917 = vmatpush2.bf16.msra.mxu0 0
  %1918 = vmatprep.subr.bf16.mxu0 0
  %1919 = vmatpush2.bf16.msra.mxu0 0
  %1920 = vmatprep.subr.bf16.mxu0 0
  %1921 = vmatpush2.bf16.msra.mxu0 0
  %1922 = vmatprep.subr.bf16.mxu0 0
  %1923 = vmatpush2.bf16.msra.mxu0 0
  %1924 = vmatprep.subr.bf16.mxu0 0
  %1925 = vmatpush2.bf16.msra.mxu0 0
  %1926 = vmatprep.subr.bf16.mxu0 0
  %1927 = vmatpush2.bf16.msra.mxu0 0
  %1928 = vmatprep.subr.bf16.mxu0 0
  %1929 = vmatpush2.bf16.msra.mxu0 0
  %1930 = vmatprep.mubr.bf16.mxu0 0
  %1931 = vmatmul.mubr.bf16.gmra.mxu0 %v1872
  %v1932 = vpop.f32.mrf.mxu0
  %v1933 = vadd.f32 0.0, %v1932
  %v1934 = vpop.f32.mrf.mxu0
  %v1935 = vpop.f32.mrf.mxu0
  %v1936 = vadd.f32 0.0, %v1935
  %v1937 = vpop.f32.mrf.mxu0
  %1938 = vmatprep.mubr.bf16.mxu0 0
  %1939 = vmatmul.mubr.bf16.gmra.mxu0 %v1875
  %v1940 = vpop.f32.mrf.mxu0
  %v1941 = vadd.f32 0.0, %v1940
  %v1942 = vpop.f32.mrf.mxu0
  %v1943 = vpop.f32.mrf.mxu0
  %v1944 = vadd.f32 0.0, %v1943
  %v1945 = vpop.f32.mrf.mxu0
  %1946 = vmatprep.mubr.bf16.mxu0 0
  %1947 = vmatmul.mubr.bf16.gmra.mxu0 %v1878
  %v1948 = vpop.f32.mrf.mxu0
  %v1949 = vadd.f32 0.0, %v1948
  %v1950 = vpop.f32.mrf.mxu0
  %v1951 = vpop.f32.mrf.mxu0
  %v1952 = vadd.f32 0.0, %v1951
  %v1953 = vpop.f32.mrf.mxu0
  %1954 = vmatprep.mubr.bf16.mxu0 0
  %1955 = vmatmul.mubr.bf16.gmra.mxu0 %v1881
  %v1956 = vpop.f32.mrf.mxu0
  %v1957 = vadd.f32 0.0, %v1956
  %v1958 = vpop.f32.mrf.mxu0
  %v1959 = vpop.f32.mrf.mxu0
  %v1960 = vadd.f32 0.0, %v1959
  %v1961 = vpop.f32.mrf.mxu0
  %1962 = vmatprep.mubr.bf16.mxu0 0
  %1963 = vmatmul.mubr.bf16.gmra.mxu0 %v1884
  %v1964 = vpop.f32.mrf.mxu0
  %v1965 = vadd.f32 0.0, %v1964
  %v1966 = vpop.f32.mrf.mxu0
  %v1967 = vpop.f32.mrf.mxu0
  %v1968 = vadd.f32 0.0, %v1967
  %v1969 = vpop.f32.mrf.mxu0
  %1970 = vmatprep.mubr.bf16.mxu0 0
  %1971 = vmatmul.mubr.bf16.gmra.mxu0 %v1887
  %v1972 = vpop.f32.mrf.mxu0
  %v1973 = vadd.f32 0.0, %v1972
  %v1974 = vpop.f32.mrf.mxu0
  %v1975 = vpop.f32.mrf.mxu0
  %v1976 = vadd.f32 0.0, %v1975
  %v1977 = vpop.f32.mrf.mxu0
  %1978 = vmatprep.mubr.bf16.mxu0 0
  %1979 = vmatmul.mubr.bf16.gmra.mxu0 %v1890
  %v1980 = vpop.f32.mrf.mxu0
  %v1981 = vadd.f32 0.0, %v1980
  %v1982 = vpop.f32.mrf.mxu0
  %v1983 = vpop.f32.mrf.mxu0
  %v1984 = vadd.f32 0.0, %v1983
  %v1985 = vpop.f32.mrf.mxu0
  %1986 = vmatprep.mubr.bf16.mxu0 0
  %1987 = vmatmul.mubr.bf16.gmra.mxu0 %v1893
  %v1988 = vpop.f32.mrf.mxu0
  %v1989 = vadd.f32 0.0, %v1988
  %v1990 = vpop.f32.mrf.mxu0
  %v1991 = vpop.f32.mrf.mxu0
  %v1992 = vadd.f32 0.0, %v1991
  %v1993 = vpop.f32.mrf.mxu0
  %1994 = vdwg.mxu0
  %v1995 = vadd.f32 %v1813, %v1933
  %v1996 = vadd.f32 %v1814, %v1936
  %v1997 = vadd.f32 %v1815, %v1941
  %v1998 = vadd.f32 %v1816, %v1944
  %v1999 = vadd.f32 %v1817, %v1949
  %v2000 = vadd.f32 %v1818, %v1952
  %v2001 = vadd.f32 %v1819, %v1957
  %v2002 = vadd.f32 %v1820, %v1960
  %v2003 = vadd.f32 %v1821, %v1965
  %v2004 = vadd.f32 %v1822, %v1968
  %v2005 = vadd.f32 %v1823, %v1973
  %v2006 = vadd.f32 %v1824, %v1976
  %v2007 = vadd.f32 %v1825, %v1981
  %v2008 = vadd.f32 %v1826, %v1984
  %v2009 = vadd.f32 %v1827, %v1989
  %v2010 = vadd.f32 %v1828, %v1992
  %s2011 = scalar_lea.vmem %s1465, 3
  %v2012 = vld [vmem:[%s2011] ss:$2 sm:$0xff]
  %s2013 = scalar_lea.vmem %s1465, 51
  %v2014 = vld [vmem:[%s2013] ss:$2 sm:$0xff]
  %s2015 = scalar_lea.vmem %s1465, 99
  %v2016 = vld [vmem:[%s2015] ss:$2 sm:$0xff]
  %s2017 = scalar_lea.vmem %s1465, 147
  %v2018 = vld [vmem:[%s2017] ss:$2 sm:$0xff]
  %s2019 = scalar_lea.vmem %s1465, 195
  %v2020 = vld [vmem:[%s2019] ss:$2 sm:$0xff]
  %s2021 = scalar_lea.vmem %s1465, 243
  %v2022 = vld [vmem:[%s2021] ss:$2 sm:$0xff]
  %s2023 = scalar_lea.vmem %s1465, 291
  %v2024 = vld [vmem:[%s2023] ss:$2 sm:$0xff]
  %s2025 = scalar_lea.vmem %s1465, 339
  %v2026 = vld [vmem:[%s2025] ss:$2 sm:$0xff]
  %s2027 = scalar_lea.vmem %s1465, 435
  %v2028 = vld [vmem:[%s2027] ss:$2 sm:$0xff]
  %s2029 = scalar_lea.vmem %s1465, 483
  %v2030 = vld [vmem:[%s2029] ss:$2 sm:$0xff]
  %s2031 = scalar_lea.vmem %s1465, 531
  %v2032 = vld [vmem:[%s2031] ss:$2 sm:$0xff]
  %s2033 = scalar_lea.vmem %s1465, 579
  %v2034 = vld [vmem:[%s2033] ss:$2 sm:$0xff]
  %s2035 = scalar_lea.vmem %s1465, 627
  %v2036 = vld [vmem:[%s2035] ss:$2 sm:$0xff]
  %s2037 = scalar_lea.vmem %s1465, 675
  %v2038 = vld [vmem:[%s2037] ss:$2 sm:$0xff]
  %s2039 = scalar_lea.vmem %s1465, 723
  %v2040 = vld [vmem:[%s2039] ss:$2 sm:$0xff]
  %s2041 = scalar_lea.vmem %s1465, 771
  %v2042 = vld [vmem:[%s2041] ss:$2 sm:$0xff]
  %v2043 = vpack.c.bf16 %v2014, %v2012
  %v2044 = vpack.c.bf16 %v2018, %v2016
  %v2045 = vpack.c.bf16 %v2022, %v2020
  %v2046 = vpack.c.bf16 %v2026, %v2024
  %v2047 = vpack.c.bf16 %v2030, %v2028
  %v2048 = vpack.c.bf16 %v2034, %v2032
  %v2049 = vpack.c.bf16 %v2038, %v2036
  %v2050 = vpack.c.bf16 %v2042, %v2040
  %s2051 = scalar_lea.vmem %s1, 22
  %v2052 = vld [vmem:[%s2051] sm:$0x3]
  %v2054 = vsel %vm123, %v2043, 0
  %v2057 = vsel %vm123, %v2044, 0
  %v2060 = vsel %vm123, %v2045, 0
  %v2063 = vsel %vm123, %v2046, 0
  %v2066 = vsel %vm123, %v2047, 0
  %v2069 = vsel %vm123, %v2048, 0
  %v2072 = vsel %vm123, %v2049, 0
  %v2075 = vsel %vm123, %v2050, 0
  %v2078 = vsel %vm148, %v2052, 0
  %2080 = vmatprep.subr.bf16.mxu0 0
  %2081 = vmatpush1.bf16.msra.mxu0 0
  %2082 = vmatprep.subr.bf16.mxu0 0
  %2083 = vmatpush1.bf16.msra.mxu0 0
  %2084 = vmatprep.subr.bf16.mxu0 0
  %2085 = vmatpush1.bf16.msra.mxu0 0
  %2086 = vmatprep.subr.bf16.mxu0 0
  %2087 = vmatpush1.bf16.msra.mxu0 0
  %2088 = vmatprep.subr.bf16.mxu0 0
  %2089 = vmatpush1.bf16.msra.mxu0 0
  %2090 = vmatprep.subr.bf16.mxu0 0
  %2091 = vmatpush1.bf16.msra.mxu0 0
  %2092 = vmatprep.subr.bf16.mxu0 0
  %2093 = vmatpush1.bf16.msra.mxu0 0
  %2094 = vmatprep.subr.bf16.mxu0 0
  %2095 = vmatpush1.bf16.msra.mxu0 %v2078
  %2096 = vmatprep.subr.bf16.mxu0 0
  %2097 = vmatpush2.bf16.msra.mxu0 0
  %2098 = vmatprep.subr.bf16.mxu0 0
  %2099 = vmatpush2.bf16.msra.mxu0 0
  %2100 = vmatprep.subr.bf16.mxu0 0
  %2101 = vmatpush2.bf16.msra.mxu0 0
  %2102 = vmatprep.subr.bf16.mxu0 0
  %2103 = vmatpush2.bf16.msra.mxu0 0
  %2104 = vmatprep.subr.bf16.mxu0 0
  %2105 = vmatpush2.bf16.msra.mxu0 0
  %2106 = vmatprep.subr.bf16.mxu0 0
  %2107 = vmatpush2.bf16.msra.mxu0 0
  %2108 = vmatprep.subr.bf16.mxu0 0
  %2109 = vmatpush2.bf16.msra.mxu0 0
  %2110 = vmatprep.subr.bf16.mxu0 0
  %2111 = vmatpush2.bf16.msra.mxu0 0
  %2112 = vmatprep.mubr.bf16.mxu0 0
  %2113 = vmatmul.mubr.bf16.gmra.mxu0 %v2054
  %v2114 = vpop.f32.mrf.mxu0
  %v2115 = vadd.f32 0.0, %v2114
  %v2116 = vpop.f32.mrf.mxu0
  %v2117 = vpop.f32.mrf.mxu0
  %v2118 = vadd.f32 0.0, %v2117
  %v2119 = vpop.f32.mrf.mxu0
  %2120 = vmatprep.mubr.bf16.mxu0 0
  %2121 = vmatmul.mubr.bf16.gmra.mxu0 %v2057
  %v2122 = vpop.f32.mrf.mxu0
  %v2123 = vadd.f32 0.0, %v2122
  %v2124 = vpop.f32.mrf.mxu0
  %v2125 = vpop.f32.mrf.mxu0
  %v2126 = vadd.f32 0.0, %v2125
  %v2127 = vpop.f32.mrf.mxu0
  %2128 = vmatprep.mubr.bf16.mxu0 0
  %2129 = vmatmul.mubr.bf16.gmra.mxu0 %v2060
  %v2130 = vpop.f32.mrf.mxu0
  %v2131 = vadd.f32 0.0, %v2130
  %v2132 = vpop.f32.mrf.mxu0
  %v2133 = vpop.f32.mrf.mxu0
  %v2134 = vadd.f32 0.0, %v2133
  %v2135 = vpop.f32.mrf.mxu0
  %2136 = vmatprep.mubr.bf16.mxu0 0
  %2137 = vmatmul.mubr.bf16.gmra.mxu0 %v2063
  %v2138 = vpop.f32.mrf.mxu0
  %v2139 = vadd.f32 0.0, %v2138
  %v2140 = vpop.f32.mrf.mxu0
  %v2141 = vpop.f32.mrf.mxu0
  %v2142 = vadd.f32 0.0, %v2141
  %v2143 = vpop.f32.mrf.mxu0
  %2144 = vmatprep.mubr.bf16.mxu0 0
  %2145 = vmatmul.mubr.bf16.gmra.mxu0 %v2066
  %v2146 = vpop.f32.mrf.mxu0
  %v2147 = vadd.f32 0.0, %v2146
  %v2148 = vpop.f32.mrf.mxu0
  %v2149 = vpop.f32.mrf.mxu0
  %v2150 = vadd.f32 0.0, %v2149
  %v2151 = vpop.f32.mrf.mxu0
  %2152 = vmatprep.mubr.bf16.mxu0 0
  %2153 = vmatmul.mubr.bf16.gmra.mxu0 %v2069
  %v2154 = vpop.f32.mrf.mxu0
  %v2155 = vadd.f32 0.0, %v2154
  %v2156 = vpop.f32.mrf.mxu0
  %v2157 = vpop.f32.mrf.mxu0
  %v2158 = vadd.f32 0.0, %v2157
  %v2159 = vpop.f32.mrf.mxu0
  %2160 = vmatprep.mubr.bf16.mxu0 0
  %2161 = vmatmul.mubr.bf16.gmra.mxu0 %v2072
  %v2162 = vpop.f32.mrf.mxu0
  %v2163 = vadd.f32 0.0, %v2162
  %v2164 = vpop.f32.mrf.mxu0
  %v2165 = vpop.f32.mrf.mxu0
  %v2166 = vadd.f32 0.0, %v2165
  %v2167 = vpop.f32.mrf.mxu0
  %2168 = vmatprep.mubr.bf16.mxu0 0
  %2169 = vmatmul.mubr.bf16.gmra.mxu0 %v2075
  %v2170 = vpop.f32.mrf.mxu0
  %v2171 = vadd.f32 0.0, %v2170
  %v2172 = vpop.f32.mrf.mxu0
  %v2173 = vpop.f32.mrf.mxu0
  %v2174 = vadd.f32 0.0, %v2173
  %v2175 = vpop.f32.mrf.mxu0
  %2176 = vdwg.mxu0
  %v2177 = vadd.f32 %v1995, %v2115
  %v2178 = vadd.f32 %v1996, %v2118
  %v2179 = vadd.f32 %v1997, %v2123
  %v2180 = vadd.f32 %v1998, %v2126
  %v2181 = vadd.f32 %v1999, %v2131
  %v2182 = vadd.f32 %v2000, %v2134
  %v2183 = vadd.f32 %v2001, %v2139
  %v2184 = vadd.f32 %v2002, %v2142
  %v2185 = vadd.f32 %v2003, %v2147
  %v2186 = vadd.f32 %v2004, %v2150
  %v2187 = vadd.f32 %v2005, %v2155
  %v2188 = vadd.f32 %v2006, %v2158
  %v2189 = vadd.f32 %v2007, %v2163
  %v2190 = vadd.f32 %v2008, %v2166
  %v2191 = vadd.f32 %v2009, %v2171
  %v2192 = vadd.f32 %v2010, %v2174
  %s2193 = scalar_lea.vmem %s0, 72
  %v2194 = vld [vmem:[%s2193] ss:$2 sm:$0xff]
  %s2195 = scalar_lea.vmem %s2193, 48
  %v2196 = vld [vmem:[%s2195] ss:$2 sm:$0xff]
  %s2197 = scalar_lea.vmem %s2193, 96
  %v2198 = vld [vmem:[%s2197] ss:$2 sm:$0xff]
  %s2199 = scalar_lea.vmem %s2193, 144
  %v2200 = vld [vmem:[%s2199] ss:$2 sm:$0xff]
  %s2201 = scalar_lea.vmem %s2193, 192
  %v2202 = vld [vmem:[%s2201] ss:$2 sm:$0xff]
  %s2203 = scalar_lea.vmem %s2193, 240
  %v2204 = vld [vmem:[%s2203] ss:$2 sm:$0xff]
  %s2205 = scalar_lea.vmem %s2193, 288
  %v2206 = vld [vmem:[%s2205] ss:$2 sm:$0xff]
  %s2207 = scalar_lea.vmem %s2193, 336
  %v2208 = vld [vmem:[%s2207] ss:$2 sm:$0xff]
  %s2209 = scalar_lea.vmem %s2193, 432
  %v2210 = vld [vmem:[%s2209] ss:$2 sm:$0xff]
  %s2211 = scalar_lea.vmem %s2193, 480
  %v2212 = vld [vmem:[%s2211] ss:$2 sm:$0xff]
  %s2213 = scalar_lea.vmem %s2193, 528
  %v2214 = vld [vmem:[%s2213] ss:$2 sm:$0xff]
  %s2215 = scalar_lea.vmem %s2193, 576
  %v2216 = vld [vmem:[%s2215] ss:$2 sm:$0xff]
  %s2217 = scalar_lea.vmem %s2193, 624
  %v2218 = vld [vmem:[%s2217] ss:$2 sm:$0xff]
  %s2219 = scalar_lea.vmem %s2193, 672
  %v2220 = vld [vmem:[%s2219] ss:$2 sm:$0xff]
  %s2221 = scalar_lea.vmem %s2193, 720
  %v2222 = vld [vmem:[%s2221] ss:$2 sm:$0xff]
  %s2223 = scalar_lea.vmem %s2193, 768
  %v2224 = vld [vmem:[%s2223] ss:$2 sm:$0xff]
  %v2225 = vpack.c.bf16 %v2196, %v2194
  %v2226 = vpack.c.bf16 %v2200, %v2198
  %v2227 = vpack.c.bf16 %v2204, %v2202
  %v2228 = vpack.c.bf16 %v2208, %v2206
  %v2229 = vpack.c.bf16 %v2212, %v2210
  %v2230 = vpack.c.bf16 %v2216, %v2214
  %v2231 = vpack.c.bf16 %v2220, %v2218
  %v2232 = vpack.c.bf16 %v2224, %v2222
  %s2233 = scalar_lea.vmem %s1, 24
  %v2234 = vld [vmem:[%s2233] sm:$0x3]
  %v2236 = vsel %vm123, %v2225, 0
  %v2239 = vsel %vm123, %v2226, 0
  %v2242 = vsel %vm123, %v2227, 0
  %v2245 = vsel %vm123, %v2228, 0
  %v2248 = vsel %vm123, %v2229, 0
  %v2251 = vsel %vm123, %v2230, 0
  %v2254 = vsel %vm123, %v2231, 0
  %v2257 = vsel %vm123, %v2232, 0
  %v2260 = vsel %vm148, %v2234, 0
  %2262 = vmatprep.subr.bf16.mxu0 0
  %2263 = vmatpush1.bf16.msra.mxu0 0
  %2264 = vmatprep.subr.bf16.mxu0 0
  %2265 = vmatpush1.bf16.msra.mxu0 0
  %2266 = vmatprep.subr.bf16.mxu0 0
  %2267 = vmatpush1.bf16.msra.mxu0 0
  %2268 = vmatprep.subr.bf16.mxu0 0
  %2269 = vmatpush1.bf16.msra.mxu0 0
  %2270 = vmatprep.subr.bf16.mxu0 0
  %2271 = vmatpush1.bf16.msra.mxu0 0
  %2272 = vmatprep.subr.bf16.mxu0 0
  %2273 = vmatpush1.bf16.msra.mxu0 0
  %2274 = vmatprep.subr.bf16.mxu0 0
  %2275 = vmatpush1.bf16.msra.mxu0 0
  %2276 = vmatprep.subr.bf16.mxu0 0
  %2277 = vmatpush1.bf16.msra.mxu0 %v2260
  %2278 = vmatprep.subr.bf16.mxu0 0
  %2279 = vmatpush2.bf16.msra.mxu0 0
  %2280 = vmatprep.subr.bf16.mxu0 0
  %2281 = vmatpush2.bf16.msra.mxu0 0
  %2282 = vmatprep.subr.bf16.mxu0 0
  %2283 = vmatpush2.bf16.msra.mxu0 0
  %2284 = vmatprep.subr.bf16.mxu0 0
  %2285 = vmatpush2.bf16.msra.mxu0 0
  %2286 = vmatprep.subr.bf16.mxu0 0
  %2287 = vmatpush2.bf16.msra.mxu0 0
  %2288 = vmatprep.subr.bf16.mxu0 0
  %2289 = vmatpush2.bf16.msra.mxu0 0
  %2290 = vmatprep.subr.bf16.mxu0 0
  %2291 = vmatpush2.bf16.msra.mxu0 0
  %2292 = vmatprep.subr.bf16.mxu0 0
  %2293 = vmatpush2.bf16.msra.mxu0 0
  %2294 = vmatprep.mubr.bf16.mxu0 0
  %2295 = vmatmul.mubr.bf16.gmra.mxu0 %v2236
  %v2296 = vpop.f32.mrf.mxu0
  %v2297 = vadd.f32 0.0, %v2296
  %v2298 = vpop.f32.mrf.mxu0
  %v2299 = vpop.f32.mrf.mxu0
  %v2300 = vadd.f32 0.0, %v2299
  %v2301 = vpop.f32.mrf.mxu0
  %2302 = vmatprep.mubr.bf16.mxu0 0
  %2303 = vmatmul.mubr.bf16.gmra.mxu0 %v2239
  %v2304 = vpop.f32.mrf.mxu0
  %v2305 = vadd.f32 0.0, %v2304
  %v2306 = vpop.f32.mrf.mxu0
  %v2307 = vpop.f32.mrf.mxu0
  %v2308 = vadd.f32 0.0, %v2307
  %v2309 = vpop.f32.mrf.mxu0
  %2310 = vmatprep.mubr.bf16.mxu0 0
  %2311 = vmatmul.mubr.bf16.gmra.mxu0 %v2242
  %v2312 = vpop.f32.mrf.mxu0
  %v2313 = vadd.f32 0.0, %v2312
  %v2314 = vpop.f32.mrf.mxu0
  %v2315 = vpop.f32.mrf.mxu0
  %v2316 = vadd.f32 0.0, %v2315
  %v2317 = vpop.f32.mrf.mxu0
  %2318 = vmatprep.mubr.bf16.mxu0 0
  %2319 = vmatmul.mubr.bf16.gmra.mxu0 %v2245
  %v2320 = vpop.f32.mrf.mxu0
  %v2321 = vadd.f32 0.0, %v2320
  %v2322 = vpop.f32.mrf.mxu0
  %v2323 = vpop.f32.mrf.mxu0
  %v2324 = vadd.f32 0.0, %v2323
  %v2325 = vpop.f32.mrf.mxu0
  %2326 = vmatprep.mubr.bf16.mxu0 0
  %2327 = vmatmul.mubr.bf16.gmra.mxu0 %v2248
  %v2328 = vpop.f32.mrf.mxu0
  %v2329 = vadd.f32 0.0, %v2328
  %v2330 = vpop.f32.mrf.mxu0
  %v2331 = vpop.f32.mrf.mxu0
  %v2332 = vadd.f32 0.0, %v2331
  %v2333 = vpop.f32.mrf.mxu0
  %2334 = vmatprep.mubr.bf16.mxu0 0
  %2335 = vmatmul.mubr.bf16.gmra.mxu0 %v2251
  %v2336 = vpop.f32.mrf.mxu0
  %v2337 = vadd.f32 0.0, %v2336
  %v2338 = vpop.f32.mrf.mxu0
  %v2339 = vpop.f32.mrf.mxu0
  %v2340 = vadd.f32 0.0, %v2339
  %v2341 = vpop.f32.mrf.mxu0
  %2342 = vmatprep.mubr.bf16.mxu0 0
  %2343 = vmatmul.mubr.bf16.gmra.mxu0 %v2254
  %v2344 = vpop.f32.mrf.mxu0
  %v2345 = vadd.f32 0.0, %v2344
  %v2346 = vpop.f32.mrf.mxu0
  %v2347 = vpop.f32.mrf.mxu0
  %v2348 = vadd.f32 0.0, %v2347
  %v2349 = vpop.f32.mrf.mxu0
  %2350 = vmatprep.mubr.bf16.mxu0 0
  %2351 = vmatmul.mubr.bf16.gmra.mxu0 %v2257
  %v2352 = vpop.f32.mrf.mxu0
  %v2353 = vadd.f32 0.0, %v2352
  %v2354 = vpop.f32.mrf.mxu0
  %v2355 = vpop.f32.mrf.mxu0
  %v2356 = vadd.f32 0.0, %v2355
  %v2357 = vpop.f32.mrf.mxu0
  %2358 = vdwg.mxu0
  %v2359 = vadd.f32 %v2177, %v2297
  %v2360 = vadd.f32 %v2178, %v2300
  %v2361 = vadd.f32 %v2179, %v2305
  %v2362 = vadd.f32 %v2180, %v2308
  %v2363 = vadd.f32 %v2181, %v2313
  %v2364 = vadd.f32 %v2182, %v2316
  %v2365 = vadd.f32 %v2183, %v2321
  %v2366 = vadd.f32 %v2184, %v2324
  %v2367 = vadd.f32 %v2185, %v2329
  %v2368 = vadd.f32 %v2186, %v2332
  %v2369 = vadd.f32 %v2187, %v2337
  %v2370 = vadd.f32 %v2188, %v2340
  %v2371 = vadd.f32 %v2189, %v2345
  %v2372 = vadd.f32 %v2190, %v2348
  %v2373 = vadd.f32 %v2191, %v2353
  %v2374 = vadd.f32 %v2192, %v2356
  %s2375 = scalar_lea.vmem %s2193, 1
  %v2376 = vld [vmem:[%s2375] ss:$2 sm:$0xff]
  %s2377 = scalar_lea.vmem %s2193, 49
  %v2378 = vld [vmem:[%s2377] ss:$2 sm:$0xff]
  %s2379 = scalar_lea.vmem %s2193, 97
  %v2380 = vld [vmem:[%s2379] ss:$2 sm:$0xff]
  %s2381 = scalar_lea.vmem %s2193, 145
  %v2382 = vld [vmem:[%s2381] ss:$2 sm:$0xff]
  %s2383 = scalar_lea.vmem %s2193, 193
  %v2384 = vld [vmem:[%s2383] ss:$2 sm:$0xff]
  %s2385 = scalar_lea.vmem %s2193, 241
  %v2386 = vld [vmem:[%s2385] ss:$2 sm:$0xff]
  %s2387 = scalar_lea.vmem %s2193, 289
  %v2388 = vld [vmem:[%s2387] ss:$2 sm:$0xff]
  %s2389 = scalar_lea.vmem %s2193, 337
  %v2390 = vld [vmem:[%s2389] ss:$2 sm:$0xff]
  %s2391 = scalar_lea.vmem %s2193, 433
  %v2392 = vld [vmem:[%s2391] ss:$2 sm:$0xff]
  %s2393 = scalar_lea.vmem %s2193, 481
  %v2394 = vld [vmem:[%s2393] ss:$2 sm:$0xff]
  %s2395 = scalar_lea.vmem %s2193, 529
  %v2396 = vld [vmem:[%s2395] ss:$2 sm:$0xff]
  %s2397 = scalar_lea.vmem %s2193, 577
  %v2398 = vld [vmem:[%s2397] ss:$2 sm:$0xff]
  %s2399 = scalar_lea.vmem %s2193, 625
  %v2400 = vld [vmem:[%s2399] ss:$2 sm:$0xff]
  %s2401 = scalar_lea.vmem %s2193, 673
  %v2402 = vld [vmem:[%s2401] ss:$2 sm:$0xff]
  %s2403 = scalar_lea.vmem %s2193, 721
  %v2404 = vld [vmem:[%s2403] ss:$2 sm:$0xff]
  %s2405 = scalar_lea.vmem %s2193, 769
  %v2406 = vld [vmem:[%s2405] ss:$2 sm:$0xff]
  %v2407 = vpack.c.bf16 %v2378, %v2376
  %v2408 = vpack.c.bf16 %v2382, %v2380
  %v2409 = vpack.c.bf16 %v2386, %v2384
  %v2410 = vpack.c.bf16 %v2390, %v2388
  %v2411 = vpack.c.bf16 %v2394, %v2392
  %v2412 = vpack.c.bf16 %v2398, %v2396
  %v2413 = vpack.c.bf16 %v2402, %v2400
  %v2414 = vpack.c.bf16 %v2406, %v2404
  %s2415 = scalar_lea.vmem %s1, 26
  %v2416 = vld [vmem:[%s2415] sm:$0x3]
  %v2418 = vsel %vm123, %v2407, 0
  %v2421 = vsel %vm123, %v2408, 0
  %v2424 = vsel %vm123, %v2409, 0
  %v2427 = vsel %vm123, %v2410, 0
  %v2430 = vsel %vm123, %v2411, 0
  %v2433 = vsel %vm123, %v2412, 0
  %v2436 = vsel %vm123, %v2413, 0
  %v2439 = vsel %vm123, %v2414, 0
  %v2442 = vsel %vm148, %v2416, 0
  %2444 = vmatprep.subr.bf16.mxu0 0
  %2445 = vmatpush1.bf16.msra.mxu0 0
  %2446 = vmatprep.subr.bf16.mxu0 0
  %2447 = vmatpush1.bf16.msra.mxu0 0
  %2448 = vmatprep.subr.bf16.mxu0 0
  %2449 = vmatpush1.bf16.msra.mxu0 0
  %2450 = vmatprep.subr.bf16.mxu0 0
  %2451 = vmatpush1.bf16.msra.mxu0 0
  %2452 = vmatprep.subr.bf16.mxu0 0
  %2453 = vmatpush1.bf16.msra.mxu0 0
  %2454 = vmatprep.subr.bf16.mxu0 0
  %2455 = vmatpush1.bf16.msra.mxu0 0
  %2456 = vmatprep.subr.bf16.mxu0 0
  %2457 = vmatpush1.bf16.msra.mxu0 0
  %2458 = vmatprep.subr.bf16.mxu0 0
  %2459 = vmatpush1.bf16.msra.mxu0 %v2442
  %2460 = vmatprep.subr.bf16.mxu0 0
  %2461 = vmatpush2.bf16.msra.mxu0 0
  %2462 = vmatprep.subr.bf16.mxu0 0
  %2463 = vmatpush2.bf16.msra.mxu0 0
  %2464 = vmatprep.subr.bf16.mxu0 0
  %2465 = vmatpush2.bf16.msra.mxu0 0
  %2466 = vmatprep.subr.bf16.mxu0 0
  %2467 = vmatpush2.bf16.msra.mxu0 0
  %2468 = vmatprep.subr.bf16.mxu0 0
  %2469 = vmatpush2.bf16.msra.mxu0 0
  %2470 = vmatprep.subr.bf16.mxu0 0
  %2471 = vmatpush2.bf16.msra.mxu0 0
  %2472 = vmatprep.subr.bf16.mxu0 0
  %2473 = vmatpush2.bf16.msra.mxu0 0
  %2474 = vmatprep.subr.bf16.mxu0 0
  %2475 = vmatpush2.bf16.msra.mxu0 0
  %2476 = vmatprep.mubr.bf16.mxu0 0
  %2477 = vmatmul.mubr.bf16.gmra.mxu0 %v2418
  %v2478 = vpop.f32.mrf.mxu0
  %v2479 = vadd.f32 0.0, %v2478
  %v2480 = vpop.f32.mrf.mxu0
  %v2481 = vpop.f32.mrf.mxu0
  %v2482 = vadd.f32 0.0, %v2481
  %v2483 = vpop.f32.mrf.mxu0
  %2484 = vmatprep.mubr.bf16.mxu0 0
  %2485 = vmatmul.mubr.bf16.gmra.mxu0 %v2421
  %v2486 = vpop.f32.mrf.mxu0
  %v2487 = vadd.f32 0.0, %v2486
  %v2488 = vpop.f32.mrf.mxu0
  %v2489 = vpop.f32.mrf.mxu0
  %v2490 = vadd.f32 0.0, %v2489
  %v2491 = vpop.f32.mrf.mxu0
  %2492 = vmatprep.mubr.bf16.mxu0 0
  %2493 = vmatmul.mubr.bf16.gmra.mxu0 %v2424
  %v2494 = vpop.f32.mrf.mxu0
  %v2495 = vadd.f32 0.0, %v2494
  %v2496 = vpop.f32.mrf.mxu0
  %v2497 = vpop.f32.mrf.mxu0
  %v2498 = vadd.f32 0.0, %v2497
  %v2499 = vpop.f32.mrf.mxu0
  %2500 = vmatprep.mubr.bf16.mxu0 0
  %2501 = vmatmul.mubr.bf16.gmra.mxu0 %v2427
  %v2502 = vpop.f32.mrf.mxu0
  %v2503 = vadd.f32 0.0, %v2502
  %v2504 = vpop.f32.mrf.mxu0
  %v2505 = vpop.f32.mrf.mxu0
  %v2506 = vadd.f32 0.0, %v2505
  %v2507 = vpop.f32.mrf.mxu0
  %2508 = vmatprep.mubr.bf16.mxu0 0
  %2509 = vmatmul.mubr.bf16.gmra.mxu0 %v2430
  %v2510 = vpop.f32.mrf.mxu0
  %v2511 = vadd.f32 0.0, %v2510
  %v2512 = vpop.f32.mrf.mxu0
  %v2513 = vpop.f32.mrf.mxu0
  %v2514 = vadd.f32 0.0, %v2513
  %v2515 = vpop.f32.mrf.mxu0
  %2516 = vmatprep.mubr.bf16.mxu0 0
  %2517 = vmatmul.mubr.bf16.gmra.mxu0 %v2433
  %v2518 = vpop.f32.mrf.mxu0
  %v2519 = vadd.f32 0.0, %v2518
  %v2520 = vpop.f32.mrf.mxu0
  %v2521 = vpop.f32.mrf.mxu0
  %v2522 = vadd.f32 0.0, %v2521
  %v2523 = vpop.f32.mrf.mxu0
  %2524 = vmatprep.mubr.bf16.mxu0 0
  %2525 = vmatmul.mubr.bf16.gmra.mxu0 %v2436
  %v2526 = vpop.f32.mrf.mxu0
  %v2527 = vadd.f32 0.0, %v2526
  %v2528 = vpop.f32.mrf.mxu0
  %v2529 = vpop.f32.mrf.mxu0
  %v2530 = vadd.f32 0.0, %v2529
  %v2531 = vpop.f32.mrf.mxu0
  %2532 = vmatprep.mubr.bf16.mxu0 0
  %2533 = vmatmul.mubr.bf16.gmra.mxu0 %v2439
  %v2534 = vpop.f32.mrf.mxu0
  %v2535 = vadd.f32 0.0, %v2534
  %v2536 = vpop.f32.mrf.mxu0
  %v2537 = vpop.f32.mrf.mxu0
  %v2538 = vadd.f32 0.0, %v2537
  %v2539 = vpop.f32.mrf.mxu0
  %2540 = vdwg.mxu0
  %v2541 = vadd.f32 %v2359, %v2479
  %v2542 = vadd.f32 %v2360, %v2482
  %v2543 = vadd.f32 %v2361, %v2487
  %v2544 = vadd.f32 %v2362, %v2490
  %v2545 = vadd.f32 %v2363, %v2495
  %v2546 = vadd.f32 %v2364, %v2498
  %v2547 = vadd.f32 %v2365, %v2503
  %v2548 = vadd.f32 %v2366, %v2506
  %v2549 = vadd.f32 %v2367, %v2511
  %v2550 = vadd.f32 %v2368, %v2514
  %v2551 = vadd.f32 %v2369, %v2519
  %v2552 = vadd.f32 %v2370, %v2522
  %v2553 = vadd.f32 %v2371, %v2527
  %v2554 = vadd.f32 %v2372, %v2530
  %v2555 = vadd.f32 %v2373, %v2535
  %v2556 = vadd.f32 %v2374, %v2538
  %s2557 = scalar_lea.vmem %s2193, 2
  %v2558 = vld [vmem:[%s2557] ss:$2 sm:$0xff]
  %s2559 = scalar_lea.vmem %s2193, 50
  %v2560 = vld [vmem:[%s2559] ss:$2 sm:$0xff]
  %s2561 = scalar_lea.vmem %s2193, 98
  %v2562 = vld [vmem:[%s2561] ss:$2 sm:$0xff]
  %s2563 = scalar_lea.vmem %s2193, 146
  %v2564 = vld [vmem:[%s2563] ss:$2 sm:$0xff]
  %s2565 = scalar_lea.vmem %s2193, 194
  %v2566 = vld [vmem:[%s2565] ss:$2 sm:$0xff]
  %s2567 = scalar_lea.vmem %s2193, 242
  %v2568 = vld [vmem:[%s2567] ss:$2 sm:$0xff]
  %s2569 = scalar_lea.vmem %s2193, 290
  %v2570 = vld [vmem:[%s2569] ss:$2 sm:$0xff]
  %s2571 = scalar_lea.vmem %s2193, 338
  %v2572 = vld [vmem:[%s2571] ss:$2 sm:$0xff]
  %s2573 = scalar_lea.vmem %s2193, 434
  %v2574 = vld [vmem:[%s2573] ss:$2 sm:$0xff]
  %s2575 = scalar_lea.vmem %s2193, 482
  %v2576 = vld [vmem:[%s2575] ss:$2 sm:$0xff]
  %s2577 = scalar_lea.vmem %s2193, 530
  %v2578 = vld [vmem:[%s2577] ss:$2 sm:$0xff]
  %s2579 = scalar_lea.vmem %s2193, 578
  %v2580 = vld [vmem:[%s2579] ss:$2 sm:$0xff]
  %s2581 = scalar_lea.vmem %s2193, 626
  %v2582 = vld [vmem:[%s2581] ss:$2 sm:$0xff]
  %s2583 = scalar_lea.vmem %s2193, 674
  %v2584 = vld [vmem:[%s2583] ss:$2 sm:$0xff]
  %s2585 = scalar_lea.vmem %s2193, 722
  %v2586 = vld [vmem:[%s2585] ss:$2 sm:$0xff]
  %s2587 = scalar_lea.vmem %s2193, 770
  %v2588 = vld [vmem:[%s2587] ss:$2 sm:$0xff]
  %v2589 = vpack.c.bf16 %v2560, %v2558
  %v2590 = vpack.c.bf16 %v2564, %v2562
  %v2591 = vpack.c.bf16 %v2568, %v2566
  %v2592 = vpack.c.bf16 %v2572, %v2570
  %v2593 = vpack.c.bf16 %v2576, %v2574
  %v2594 = vpack.c.bf16 %v2580, %v2578
  %v2595 = vpack.c.bf16 %v2584, %v2582
  %v2596 = vpack.c.bf16 %v2588, %v2586
  %s2597 = scalar_lea.vmem %s1, 28
  %v2598 = vld [vmem:[%s2597] sm:$0x3]
  %v2600 = vsel %vm123, %v2589, 0
  %v2603 = vsel %vm123, %v2590, 0
  %v2606 = vsel %vm123, %v2591, 0
  %v2609 = vsel %vm123, %v2592, 0
  %v2612 = vsel %vm123, %v2593, 0
  %v2615 = vsel %vm123, %v2594, 0
  %v2618 = vsel %vm123, %v2595, 0
  %v2621 = vsel %vm123, %v2596, 0
  %v2624 = vsel %vm148, %v2598, 0
  %2626 = vmatprep.subr.bf16.mxu0 0
  %2627 = vmatpush1.bf16.msra.mxu0 0
  %2628 = vmatprep.subr.bf16.mxu0 0
  %2629 = vmatpush1.bf16.msra.mxu0 0
  %2630 = vmatprep.subr.bf16.mxu0 0
  %2631 = vmatpush1.bf16.msra.mxu0 0
  %2632 = vmatprep.subr.bf16.mxu0 0
  %2633 = vmatpush1.bf16.msra.mxu0 0
  %2634 = vmatprep.subr.bf16.mxu0 0
  %2635 = vmatpush1.bf16.msra.mxu0 0
  %2636 = vmatprep.subr.bf16.mxu0 0
  %2637 = vmatpush1.bf16.msra.mxu0 0
  %2638 = vmatprep.subr.bf16.mxu0 0
  %2639 = vmatpush1.bf16.msra.mxu0 0
  %2640 = vmatprep.subr.bf16.mxu0 0
  %2641 = vmatpush1.bf16.msra.mxu0 %v2624
  %2642 = vmatprep.subr.bf16.mxu0 0
  %2643 = vmatpush2.bf16.msra.mxu0 0
  %2644 = vmatprep.subr.bf16.mxu0 0
  %2645 = vmatpush2.bf16.msra.mxu0 0
  %2646 = vmatprep.subr.bf16.mxu0 0
  %2647 = vmatpush2.bf16.msra.mxu0 0
  %2648 = vmatprep.subr.bf16.mxu0 0
  %2649 = vmatpush2.bf16.msra.mxu0 0
  %2650 = vmatprep.subr.bf16.mxu0 0
  %2651 = vmatpush2.bf16.msra.mxu0 0
  %2652 = vmatprep.subr.bf16.mxu0 0
  %2653 = vmatpush2.bf16.msra.mxu0 0
  %2654 = vmatprep.subr.bf16.mxu0 0
  %2655 = vmatpush2.bf16.msra.mxu0 0
  %2656 = vmatprep.subr.bf16.mxu0 0
  %2657 = vmatpush2.bf16.msra.mxu0 0
  %2658 = vmatprep.mubr.bf16.mxu0 0
  %2659 = vmatmul.mubr.bf16.gmra.mxu0 %v2600
  %v2660 = vpop.f32.mrf.mxu0
  %v2661 = vadd.f32 0.0, %v2660
  %v2662 = vpop.f32.mrf.mxu0
  %v2663 = vpop.f32.mrf.mxu0
  %v2664 = vadd.f32 0.0, %v2663
  %v2665 = vpop.f32.mrf.mxu0
  %2666 = vmatprep.mubr.bf16.mxu0 0
  %2667 = vmatmul.mubr.bf16.gmra.mxu0 %v2603
  %v2668 = vpop.f32.mrf.mxu0
  %v2669 = vadd.f32 0.0, %v2668
  %v2670 = vpop.f32.mrf.mxu0
  %v2671 = vpop.f32.mrf.mxu0
  %v2672 = vadd.f32 0.0, %v2671
  %v2673 = vpop.f32.mrf.mxu0
  %2674 = vmatprep.mubr.bf16.mxu0 0
  %2675 = vmatmul.mubr.bf16.gmra.mxu0 %v2606
  %v2676 = vpop.f32.mrf.mxu0
  %v2677 = vadd.f32 0.0, %v2676
  %v2678 = vpop.f32.mrf.mxu0
  %v2679 = vpop.f32.mrf.mxu0
  %v2680 = vadd.f32 0.0, %v2679
  %v2681 = vpop.f32.mrf.mxu0
  %2682 = vmatprep.mubr.bf16.mxu0 0
  %2683 = vmatmul.mubr.bf16.gmra.mxu0 %v2609
  %v2684 = vpop.f32.mrf.mxu0
  %v2685 = vadd.f32 0.0, %v2684
  %v2686 = vpop.f32.mrf.mxu0
  %v2687 = vpop.f32.mrf.mxu0
  %v2688 = vadd.f32 0.0, %v2687
  %v2689 = vpop.f32.mrf.mxu0
  %2690 = vmatprep.mubr.bf16.mxu0 0
  %2691 = vmatmul.mubr.bf16.gmra.mxu0 %v2612
  %v2692 = vpop.f32.mrf.mxu0
  %v2693 = vadd.f32 0.0, %v2692
  %v2694 = vpop.f32.mrf.mxu0
  %v2695 = vpop.f32.mrf.mxu0
  %v2696 = vadd.f32 0.0, %v2695
  %v2697 = vpop.f32.mrf.mxu0
  %2698 = vmatprep.mubr.bf16.mxu0 0
  %2699 = vmatmul.mubr.bf16.gmra.mxu0 %v2615
  %v2700 = vpop.f32.mrf.mxu0
  %v2701 = vadd.f32 0.0, %v2700
  %v2702 = vpop.f32.mrf.mxu0
  %v2703 = vpop.f32.mrf.mxu0
  %v2704 = vadd.f32 0.0, %v2703
  %v2705 = vpop.f32.mrf.mxu0
  %2706 = vmatprep.mubr.bf16.mxu0 0
  %2707 = vmatmul.mubr.bf16.gmra.mxu0 %v2618
  %v2708 = vpop.f32.mrf.mxu0
  %v2709 = vadd.f32 0.0, %v2708
  %v2710 = vpop.f32.mrf.mxu0
  %v2711 = vpop.f32.mrf.mxu0
  %v2712 = vadd.f32 0.0, %v2711
  %v2713 = vpop.f32.mrf.mxu0
  %2714 = vmatprep.mubr.bf16.mxu0 0
  %2715 = vmatmul.mubr.bf16.gmra.mxu0 %v2621
  %v2716 = vpop.f32.mrf.mxu0
  %v2717 = vadd.f32 0.0, %v2716
  %v2718 = vpop.f32.mrf.mxu0
  %v2719 = vpop.f32.mrf.mxu0
  %v2720 = vadd.f32 0.0, %v2719
  %v2721 = vpop.f32.mrf.mxu0
  %2722 = vdwg.mxu0
  %v2723 = vadd.f32 %v2541, %v2661
  %v2724 = vadd.f32 %v2542, %v2664
  %v2725 = vadd.f32 %v2543, %v2669
  %v2726 = vadd.f32 %v2544, %v2672
  %v2727 = vadd.f32 %v2545, %v2677
  %v2728 = vadd.f32 %v2546, %v2680
  %v2729 = vadd.f32 %v2547, %v2685
  %v2730 = vadd.f32 %v2548, %v2688
  %v2731 = vadd.f32 %v2549, %v2693
  %v2732 = vadd.f32 %v2550, %v2696
  %v2733 = vadd.f32 %v2551, %v2701
  %v2734 = vadd.f32 %v2552, %v2704
  %v2735 = vadd.f32 %v2553, %v2709
  %v2736 = vadd.f32 %v2554, %v2712
  %v2737 = vadd.f32 %v2555, %v2717
  %v2738 = vadd.f32 %v2556, %v2720
  %s2739 = scalar_lea.vmem %s2193, 3
  %v2740 = vld [vmem:[%s2739] ss:$2 sm:$0xff]
  %s2741 = scalar_lea.vmem %s2193, 51
  %v2742 = vld [vmem:[%s2741] ss:$2 sm:$0xff]
  %s2743 = scalar_lea.vmem %s2193, 99
  %v2744 = vld [vmem:[%s2743] ss:$2 sm:$0xff]
  %s2745 = scalar_lea.vmem %s2193, 147
  %v2746 = vld [vmem:[%s2745] ss:$2 sm:$0xff]
  %s2747 = scalar_lea.vmem %s2193, 195
  %v2748 = vld [vmem:[%s2747] ss:$2 sm:$0xff]
  %s2749 = scalar_lea.vmem %s2193, 243
  %v2750 = vld [vmem:[%s2749] ss:$2 sm:$0xff]
  %s2751 = scalar_lea.vmem %s2193, 291
  %v2752 = vld [vmem:[%s2751] ss:$2 sm:$0xff]
  %s2753 = scalar_lea.vmem %s2193, 339
  %v2754 = vld [vmem:[%s2753] ss:$2 sm:$0xff]
  %s2755 = scalar_lea.vmem %s2193, 435
  %v2756 = vld [vmem:[%s2755] ss:$2 sm:$0xff]
  %s2757 = scalar_lea.vmem %s2193, 483
  %v2758 = vld [vmem:[%s2757] ss:$2 sm:$0xff]
  %s2759 = scalar_lea.vmem %s2193, 531
  %v2760 = vld [vmem:[%s2759] ss:$2 sm:$0xff]
  %s2761 = scalar_lea.vmem %s2193, 579
  %v2762 = vld [vmem:[%s2761] ss:$2 sm:$0xff]
  %s2763 = scalar_lea.vmem %s2193, 627
  %v2764 = vld [vmem:[%s2763] ss:$2 sm:$0xff]
  %s2765 = scalar_lea.vmem %s2193, 675
  %v2766 = vld [vmem:[%s2765] ss:$2 sm:$0xff]
  %s2767 = scalar_lea.vmem %s2193, 723
  %v2768 = vld [vmem:[%s2767] ss:$2 sm:$0xff]
  %s2769 = scalar_lea.vmem %s2193, 771
  %v2770 = vld [vmem:[%s2769] ss:$2 sm:$0xff]
  %v2771 = vpack.c.bf16 %v2742, %v2740
  %v2772 = vpack.c.bf16 %v2746, %v2744
  %v2773 = vpack.c.bf16 %v2750, %v2748
  %v2774 = vpack.c.bf16 %v2754, %v2752
  %v2775 = vpack.c.bf16 %v2758, %v2756
  %v2776 = vpack.c.bf16 %v2762, %v2760
  %v2777 = vpack.c.bf16 %v2766, %v2764
  %v2778 = vpack.c.bf16 %v2770, %v2768
  %s2779 = scalar_lea.vmem %s1, 30
  %v2780 = vld [vmem:[%s2779] sm:$0x3]
  %v2782 = vsel %vm123, %v2771, 0
  %v2785 = vsel %vm123, %v2772, 0
  %v2788 = vsel %vm123, %v2773, 0
  %v2791 = vsel %vm123, %v2774, 0
  %v2794 = vsel %vm123, %v2775, 0
  %v2797 = vsel %vm123, %v2776, 0
  %v2800 = vsel %vm123, %v2777, 0
  %v2803 = vsel %vm123, %v2778, 0
  %v2806 = vsel %vm148, %v2780, 0
  %2808 = vmatprep.subr.bf16.mxu0 0
  %2809 = vmatpush1.bf16.msra.mxu0 0
  %2810 = vmatprep.subr.bf16.mxu0 0
  %2811 = vmatpush1.bf16.msra.mxu0 0
  %2812 = vmatprep.subr.bf16.mxu0 0
  %2813 = vmatpush1.bf16.msra.mxu0 0
  %2814 = vmatprep.subr.bf16.mxu0 0
  %2815 = vmatpush1.bf16.msra.mxu0 0
  %2816 = vmatprep.subr.bf16.mxu0 0
  %2817 = vmatpush1.bf16.msra.mxu0 0
  %2818 = vmatprep.subr.bf16.mxu0 0
  %2819 = vmatpush1.bf16.msra.mxu0 0
  %2820 = vmatprep.subr.bf16.mxu0 0
  %2821 = vmatpush1.bf16.msra.mxu0 0
  %2822 = vmatprep.subr.bf16.mxu0 0
  %2823 = vmatpush1.bf16.msra.mxu0 %v2806
  %2824 = vmatprep.subr.bf16.mxu0 0
  %2825 = vmatpush2.bf16.msra.mxu0 0
  %2826 = vmatprep.subr.bf16.mxu0 0
  %2827 = vmatpush2.bf16.msra.mxu0 0
  %2828 = vmatprep.subr.bf16.mxu0 0
  %2829 = vmatpush2.bf16.msra.mxu0 0
  %2830 = vmatprep.subr.bf16.mxu0 0
  %2831 = vmatpush2.bf16.msra.mxu0 0
  %2832 = vmatprep.subr.bf16.mxu0 0
  %2833 = vmatpush2.bf16.msra.mxu0 0
  %2834 = vmatprep.subr.bf16.mxu0 0
  %2835 = vmatpush2.bf16.msra.mxu0 0
  %2836 = vmatprep.subr.bf16.mxu0 0
  %2837 = vmatpush2.bf16.msra.mxu0 0
  %2838 = vmatprep.subr.bf16.mxu0 0
  %2839 = vmatpush2.bf16.msra.mxu0 0
  %2840 = vmatprep.mubr.bf16.mxu0 0
  %2841 = vmatmul.mubr.bf16.gmra.mxu0 %v2782
  %v2842 = vpop.f32.mrf.mxu0
  %v2843 = vadd.f32 0.0, %v2842
  %v2844 = vpop.f32.mrf.mxu0
  %v2845 = vpop.f32.mrf.mxu0
  %v2846 = vadd.f32 0.0, %v2845
  %v2847 = vpop.f32.mrf.mxu0
  %2848 = vmatprep.mubr.bf16.mxu0 0
  %2849 = vmatmul.mubr.bf16.gmra.mxu0 %v2785
  %v2850 = vpop.f32.mrf.mxu0
  %v2851 = vadd.f32 0.0, %v2850
  %v2852 = vpop.f32.mrf.mxu0
  %v2853 = vpop.f32.mrf.mxu0
  %v2854 = vadd.f32 0.0, %v2853
  %v2855 = vpop.f32.mrf.mxu0
  %2856 = vmatprep.mubr.bf16.mxu0 0
  %2857 = vmatmul.mubr.bf16.gmra.mxu0 %v2788
  %v2858 = vpop.f32.mrf.mxu0
  %v2859 = vadd.f32 0.0, %v2858
  %v2860 = vpop.f32.mrf.mxu0
  %v2861 = vpop.f32.mrf.mxu0
  %v2862 = vadd.f32 0.0, %v2861
  %v2863 = vpop.f32.mrf.mxu0
  %2864 = vmatprep.mubr.bf16.mxu0 0
  %2865 = vmatmul.mubr.bf16.gmra.mxu0 %v2791
  %v2866 = vpop.f32.mrf.mxu0
  %v2867 = vadd.f32 0.0, %v2866
  %v2868 = vpop.f32.mrf.mxu0
  %v2869 = vpop.f32.mrf.mxu0
  %v2870 = vadd.f32 0.0, %v2869
  %v2871 = vpop.f32.mrf.mxu0
  %2872 = vmatprep.mubr.bf16.mxu0 0
  %2873 = vmatmul.mubr.bf16.gmra.mxu0 %v2794
  %v2874 = vpop.f32.mrf.mxu0
  %v2875 = vadd.f32 0.0, %v2874
  %v2876 = vpop.f32.mrf.mxu0
  %v2877 = vpop.f32.mrf.mxu0
  %v2878 = vadd.f32 0.0, %v2877
  %v2879 = vpop.f32.mrf.mxu0
  %2880 = vmatprep.mubr.bf16.mxu0 0
  %2881 = vmatmul.mubr.bf16.gmra.mxu0 %v2797
  %v2882 = vpop.f32.mrf.mxu0
  %v2883 = vadd.f32 0.0, %v2882
  %v2884 = vpop.f32.mrf.mxu0
  %v2885 = vpop.f32.mrf.mxu0
  %v2886 = vadd.f32 0.0, %v2885
  %v2887 = vpop.f32.mrf.mxu0
  %2888 = vmatprep.mubr.bf16.mxu0 0
  %2889 = vmatmul.mubr.bf16.gmra.mxu0 %v2800
  %v2890 = vpop.f32.mrf.mxu0
  %v2891 = vadd.f32 0.0, %v2890
  %v2892 = vpop.f32.mrf.mxu0
  %v2893 = vpop.f32.mrf.mxu0
  %v2894 = vadd.f32 0.0, %v2893
  %v2895 = vpop.f32.mrf.mxu0
  %2896 = vmatprep.mubr.bf16.mxu0 0
  %2897 = vmatmul.mubr.bf16.gmra.mxu0 %v2803
  %v2898 = vpop.f32.mrf.mxu0
  %v2899 = vadd.f32 0.0, %v2898
  %v2900 = vpop.f32.mrf.mxu0
  %v2901 = vpop.f32.mrf.mxu0
  %v2902 = vadd.f32 0.0, %v2901
  %v2903 = vpop.f32.mrf.mxu0
  %2904 = vdwg.mxu0
  %v2905 = vadd.f32 %v2723, %v2843
  %v2906 = vadd.f32 %v2724, %v2846
  %v2907 = vadd.f32 %v2725, %v2851
  %v2908 = vadd.f32 %v2726, %v2854
  %v2909 = vadd.f32 %v2727, %v2859
  %v2910 = vadd.f32 %v2728, %v2862
  %v2911 = vadd.f32 %v2729, %v2867
  %v2912 = vadd.f32 %v2730, %v2870
  %v2913 = vadd.f32 %v2731, %v2875
  %v2914 = vadd.f32 %v2732, %v2878
  %v2915 = vadd.f32 %v2733, %v2883
  %v2916 = vadd.f32 %v2734, %v2886
  %v2917 = vadd.f32 %v2735, %v2891
  %v2918 = vadd.f32 %v2736, %v2894
  %v2919 = vadd.f32 %v2737, %v2899
  %v2920 = vadd.f32 %v2738, %v2902
  %v2921 = vld [vmem:[%s2] sm:$0x1]
  %v2923 = vlaneseq
  %v2924 = vshrl.u32 %v2923, 7
  %v2925 = vsub.s32 0, %v2924
  %v2926 = vrot.slane %v2921, %v2925
  %v2928 = vadd.f32 %v2905, %v2926
  %v2929 = vadd.f32 %v2906, %v2926
  %v2930 = vadd.f32 %v2907, %v2926
  %v2931 = vadd.f32 %v2908, %v2926
  %v2932 = vadd.f32 %v2909, %v2926
  %v2933 = vadd.f32 %v2910, %v2926
  %v2934 = vadd.f32 %v2911, %v2926
  %v2935 = vadd.f32 %v2912, %v2926
  %v2936 = vadd.f32 %v2913, %v2926
  %v2937 = vadd.f32 %v2914, %v2926
  %v2938 = vadd.f32 %v2915, %v2926
  %v2939 = vadd.f32 %v2916, %v2926
  %v2940 = vadd.f32 %v2917, %v2926
  %v2941 = vadd.f32 %v2918, %v2926
  %v2942 = vadd.f32 %v2919, %v2926
  %v2943 = vadd.f32 %v2920, %v2926
  %vm2944 = vcmp.ge.f32.partialorder %v2928, 0.0
  %vm2945 = vcmp.ge.f32.partialorder %v2929, 0.0
  %vm2946 = vcmp.ge.f32.partialorder %v2930, 0.0
  %vm2947 = vcmp.ge.f32.partialorder %v2931, 0.0
  %vm2948 = vcmp.ge.f32.partialorder %v2932, 0.0
  %vm2949 = vcmp.ge.f32.partialorder %v2933, 0.0
  %vm2950 = vcmp.ge.f32.partialorder %v2934, 0.0
  %vm2951 = vcmp.ge.f32.partialorder %v2935, 0.0
  %vm2952 = vcmp.ge.f32.partialorder %v2936, 0.0
  %vm2953 = vcmp.ge.f32.partialorder %v2937, 0.0
  %vm2954 = vcmp.ge.f32.partialorder %v2938, 0.0
  %vm2955 = vcmp.ge.f32.partialorder %v2939, 0.0
  %vm2956 = vcmp.ge.f32.partialorder %v2940, 0.0
  %vm2957 = vcmp.ge.f32.partialorder %v2941, 0.0
  %vm2958 = vcmp.ge.f32.partialorder %v2942, 0.0
  %vm2959 = vcmp.ge.f32.partialorder %v2943, 0.0
  %v2960 = vmul.f32 %v2928, 0.2
  %v2961 = vmul.f32 %v2929, 0.2
  %v2962 = vmul.f32 %v2930, 0.2
  %v2963 = vmul.f32 %v2931, 0.2
  %v2964 = vmul.f32 %v2932, 0.2
  %v2965 = vmul.f32 %v2933, 0.2
  %v2966 = vmul.f32 %v2934, 0.2
  %v2967 = vmul.f32 %v2935, 0.2
  %v2968 = vmul.f32 %v2936, 0.2
  %v2969 = vmul.f32 %v2937, 0.2
  %v2970 = vmul.f32 %v2938, 0.2
  %v2971 = vmul.f32 %v2939, 0.2
  %v2972 = vmul.f32 %v2940, 0.2
  %v2973 = vmul.f32 %v2941, 0.2
  %v2974 = vmul.f32 %v2942, 0.2
  %v2975 = vmul.f32 %v2943, 0.2
  %v2976 = vsel %vm2944, %v2928, %v2960
  %v2977 = vsel %vm2945, %v2929, %v2961
  %v2978 = vsel %vm2946, %v2930, %v2962
  %v2979 = vsel %vm2947, %v2931, %v2963
  %v2980 = vsel %vm2948, %v2932, %v2964
  %v2981 = vsel %vm2949, %v2933, %v2965
  %v2982 = vsel %vm2950, %v2934, %v2966
  %v2983 = vsel %vm2951, %v2935, %v2967
  %v2984 = vsel %vm2952, %v2936, %v2968
  %v2985 = vsel %vm2953, %v2937, %v2969
  %v2986 = vsel %vm2954, %v2938, %v2970
  %v2987 = vsel %vm2955, %v2939, %v2971
  %v2988 = vsel %vm2956, %v2940, %v2972
  %v2989 = vsel %vm2957, %v2941, %v2973
  %v2990 = vsel %vm2958, %v2942, %v2974
  %v2991 = vsel %vm2959, %v2943, %v2975
  %vm2992 = vcmask 64512
  %2993 = vst.msk [vmem:[#allocation2] sm:$0xff] %vm2992, 0.0
  %vm2994 = vcmask 58368
  %2995 = vst.msk [vmem:[#allocation2 + $0x8] sm:$0x3] %vm2994, 0.0
  %2996 = vst.msk [vmem:[#allocation2 + $0x10] sm:$0xff] %vm2992, 0.0
  %2997 = vst.msk [vmem:[#allocation2 + $0x18] sm:$0x3] %vm2994, 0.0
  %2998 = vst.msk [vmem:[#allocation2 + $0x20] sm:$0xff] %vm2992, 0.0
  %2999 = vst.msk [vmem:[#allocation2 + $0x28] sm:$0x3] %vm2994, 0.0
  %3000 = vst.msk [vmem:[#allocation2 + $0x30] sm:$0xff] %vm2992, 0.0
  %3001 = vst.msk [vmem:[#allocation2 + $0x38] sm:$0x3] %vm2994, 0.0
  %3002 = vst.msk [vmem:[#allocation2 + $0x40] sm:$0xff] %vm2992, 0.0
  %3003 = vst.msk [vmem:[#allocation2 + $0x48] sm:$0x3] %vm2994, 0.0
  %3004 = vst.msk [vmem:[#allocation2 + $0x50] sm:$0xff] %vm2992, 0.0
  %3005 = vst.msk [vmem:[#allocation2 + $0x58] sm:$0x3] %vm2994, 0.0
  %3006 = vst.msk [vmem:[#allocation2 + $0x60] sm:$0xff] %vm2992, 0.0
  %3007 = vst.msk [vmem:[#allocation2 + $0x68] sm:$0x3] %vm2994, 0.0
  %3008 = vst.msk [vmem:[#allocation2 + $0x70] sm:$0xff] %vm2992, 0.0
  %3009 = vst.msk [vmem:[#allocation2 + $0x78] sm:$0x3] %vm2994, 0.0
  %3010 = vst.msk [vmem:[#allocation2 + $0x80] sm:$0xff] %vm2992, 0.0
  %3011 = vst.msk [vmem:[#allocation2 + $0x88] sm:$0x3] %vm2994, 0.0
  %3012 = vst.msk [vmem:[#allocation2 + $0x90] sm:$0xff] %vm2992, 0.0
  %3013 = vst.msk [vmem:[#allocation2 + $0x98] sm:$0x3] %vm2994, 0.0
  %3014 = vst.msk [vmem:[#allocation2 + $0xa0] sm:$0xff] %vm2992, 0.0
  %3015 = vst.msk [vmem:[#allocation2 + $0xa8] sm:$0x3] %vm2994, 0.0
  %3016 = vst.msk [vmem:[#allocation2 + $0xb0] sm:$0xff] %vm2992, 0.0
  %3017 = vst.msk [vmem:[#allocation2 + $0xb8] sm:$0x3] %vm2994, 0.0
  %3018 = vst.msk [vmem:[#allocation2 + $0xc0] sm:$0xff] %vm2992, 0.0
  %3019 = vst.msk [vmem:[#allocation2 + $0xc8] sm:$0x3] %vm2994, 0.0
  %3020 = vst.msk [vmem:[#allocation2 + $0xd0] sm:$0xff] %vm2992, 0.0
  %3021 = vst.msk [vmem:[#allocation2 + $0xd8] sm:$0x3] %vm2994, 0.0
  %3022 = vst.msk [vmem:[#allocation2 + $0xe0] sm:$0xff] %vm2992, 0.0
  %3023 = vst.msk [vmem:[#allocation2 + $0xe8] sm:$0x3] %vm2994, 0.0
  %3024 = vst.msk [vmem:[#allocation2 + $0xf0] sm:$0xff] %vm2992, 0.0
  %3025 = vst.msk [vmem:[#allocation2 + $0xf8] sm:$0x3] %vm2994, 0.0
  %3026 = vst.msk [vmem:[#allocation2 + $0x100] sm:$0xff] %vm2992, 0.0
  %3027 = vst.msk [vmem:[#allocation2 + $0x108] sm:$0x3] %vm2994, 0.0
  %3028 = vst.msk [vmem:[#allocation2 + $0x110] sm:$0xff] %vm2992, 0.0
  %3029 = vst.msk [vmem:[#allocation2 + $0x118] sm:$0x3] %vm2994, 0.0
  %3030 = vst.msk [vmem:[#allocation2 + $0x120] sm:$0xff] %vm2992, 0.0
  %3031 = vst.msk [vmem:[#allocation2 + $0x128] sm:$0x3] %vm2994, 0.0
  %3032 = vst.msk [vmem:[#allocation2 + $0x130] sm:$0xff] %vm2992, 0.0
  %3033 = vst.msk [vmem:[#allocation2 + $0x138] sm:$0x3] %vm2994, 0.0
  %s3034 = scalar_lea.vmem [#allocation2], 16
  %3035 = vst.msk [vmem:[%s3034 + $0x1] sm:$0xff] %vm2992, %v2976
  %3036 = vst.msk [vmem:[%s3034 + $0x11] sm:$0xff] %vm2992, %v2977
  %3037 = vst.msk [vmem:[%s3034 + $0x21] sm:$0xff] %vm2992, %v2978
  %3038 = vst.msk [vmem:[%s3034 + $0x31] sm:$0xff] %vm2992, %v2979
  %3039 = vst.msk [vmem:[%s3034 + $0x41] sm:$0xff] %vm2992, %v2980
  %3040 = vst.msk [vmem:[%s3034 + $0x51] sm:$0xff] %vm2992, %v2981
  %3041 = vst.msk [vmem:[%s3034 + $0x61] sm:$0xff] %vm2992, %v2982
  %3042 = vst.msk [vmem:[%s3034 + $0x71] sm:$0xff] %vm2992, %v2983
  %3043 = vst.msk [vmem:[%s3034 + $0xa1] sm:$0xff] %vm2992, %v2984
  %3044 = vst.msk [vmem:[%s3034 + $0xb1] sm:$0xff] %vm2992, %v2985
  %3045 = vst.msk [vmem:[%s3034 + $0xc1] sm:$0xff] %vm2992, %v2986
  %3046 = vst.msk [vmem:[%s3034 + $0xd1] sm:$0xff] %vm2992, %v2987
  %3047 = vst.msk [vmem:[%s3034 + $0xe1] sm:$0xff] %vm2992, %v2988
  %3048 = vst.msk [vmem:[%s3034 + $0xf1] sm:$0xff] %vm2992, %v2989
  %3049 = vst.msk [vmem:[%s3034 + $0x101] sm:$0xff] %vm2992, %v2990
  %3050 = vst.msk [vmem:[%s3034 + $0x111] sm:$0xff] %vm2992, %v2991
  %v3051 = vld [vmem:[#allocation2] ss:$2 sm:$0xf]
  %s3052 = scalar_lea.vmem [#allocation2], 32
  %v3053 = vld [vmem:[%s3052] ss:$2 sm:$0xf]
  %s3054 = scalar_lea.vmem [#allocation2], 64
  %v3055 = vld [vmem:[%s3054] ss:$2 sm:$0xf]
  %s3056 = scalar_lea.vmem [#allocation2], 96
  %v3057 = vld [vmem:[%s3056] ss:$2 sm:$0xf]
  %s3058 = scalar_lea.vmem [#allocation2], 160
  %v3059 = vld [vmem:[%s3058] ss:$2 sm:$0xf]
  %s3060 = scalar_lea.vmem [#allocation2], 192
  %v3061 = vld [vmem:[%s3060] ss:$2 sm:$0xf]
  %s3062 = scalar_lea.vmem [#allocation2], 224
  %v3063 = vld [vmem:[%s3062] ss:$2 sm:$0xf]
  %s3064 = scalar_lea.vmem [#allocation2], 256
  %v3065 = vld [vmem:[%s3064] ss:$2 sm:$0xf]
  %v3074 = vcombine.low %v3051, %v3053
  %v3075 = vcombine.low %v3055, %v3057
  %v3076 = vcombine.low %v3059, %v3061
  %v3077 = vcombine.low %v3063, %v3065
  %v3082 = vpack.c.bf16 %v3075, %v3074
  %v3083 = vpack.c.bf16 %v3077, %v3076
  %v3084 = vld [vmem:[%s3] sm:$0xf]
  %s3085 = scalar_lea.vmem [#allocation2], 1
  %v3086 = vld [vmem:[%s3085] ss:$2 sm:$0xf]
  %s3087 = scalar_lea.vmem [#allocation2], 33
  %v3088 = vld [vmem:[%s3087] ss:$2 sm:$0xf]
  %s3089 = scalar_lea.vmem [#allocation2], 65
  %v3090 = vld [vmem:[%s3089] ss:$2 sm:$0xf]
  %s3091 = scalar_lea.vmem [#allocation2], 97
  %v3092 = vld [vmem:[%s3091] ss:$2 sm:$0xf]
  %s3093 = scalar_lea.vmem [#allocation2], 161
  %v3094 = vld [vmem:[%s3093] ss:$2 sm:$0xf]
  %s3095 = scalar_lea.vmem [#allocation2], 193
  %v3096 = vld [vmem:[%s3095] ss:$2 sm:$0xf]
  %s3097 = scalar_lea.vmem [#allocation2], 225
  %v3098 = vld [vmem:[%s3097] ss:$2 sm:$0xf]
  %s3099 = scalar_lea.vmem [#allocation2], 257
  %v3100 = vld [vmem:[%s3099] ss:$2 sm:$0xf]
  %v3109 = vcombine.low %v3086, %v3088
  %v3110 = vcombine.low %v3090, %v3092
  %v3111 = vcombine.low %v3094, %v3096
  %v3112 = vcombine.low %v3098, %v3100
  %v3117 = vpack.c.bf16 %v3110, %v3109
  %v3118 = vpack.c.bf16 %v3112, %v3111
  %s3119 = scalar_lea.vmem %s3, 4
  %v3120 = vld [vmem:[%s3119] sm:$0xf]
  %v3122 = vsel %vm2992, %v3117, 0
  %v3125 = vsel %vm2992, %v3118, 0
  %vm3127 = vcmask 1043456
  %v3129 = vsel %vm3127, %v3120, 0
  %3131 = vmatprep.subr.bf16.mxu0 0
  %3132 = vmatpush1.bf16.msra.mxu0 0
  %3133 = vmatprep.subr.bf16.mxu0 0
  %3134 = vmatpush1.bf16.msra.mxu0 0
  %3135 = vmatprep.subr.bf16.mxu0 0
  %3136 = vmatpush1.bf16.msra.mxu0 0
  %3137 = vmatprep.subr.bf16.mxu0 0
  %3138 = vmatpush1.bf16.msra.mxu0 0
  %3139 = vmatprep.subr.bf16.mxu0 0
  %3140 = vmatpush1.bf16.msra.mxu0 0
  %3141 = vmatprep.subr.bf16.mxu0 0
  %3142 = vmatpush1.bf16.msra.mxu0 0
  %3143 = vmatprep.subr.bf16.mxu0 0
  %3144 = vmatpush1.bf16.msra.mxu0 0
  %3145 = vmatprep.subr.bf16.mxu0 0
  %3146 = vmatpush1.bf16.msra.mxu0 %v3129
  %3147 = vmatprep.subr.bf16.mxu0 0
  %3148 = vmatpush2.bf16.msra.mxu0 0
  %3149 = vmatprep.subr.bf16.mxu0 0
  %3150 = vmatpush2.bf16.msra.mxu0 0
  %3151 = vmatprep.subr.bf16.mxu0 0
  %3152 = vmatpush2.bf16.msra.mxu0 0
  %3153 = vmatprep.subr.bf16.mxu0 0
  %3154 = vmatpush2.bf16.msra.mxu0 0
  %3155 = vmatprep.subr.bf16.mxu0 0
  %3156 = vmatpush2.bf16.msra.mxu0 0
  %3157 = vmatprep.subr.bf16.mxu0 0
  %3158 = vmatpush2.bf16.msra.mxu0 0
  %3159 = vmatprep.subr.bf16.mxu0 0
  %3160 = vmatpush2.bf16.msra.mxu0 0
  %3161 = vmatprep.subr.bf16.mxu0 0
  %3162 = vmatpush2.bf16.msra.mxu0 0
  %3163 = vmatprep.mubr.bf16.mxu0 0
  %3164 = vmatmul.mubr.bf16.gmra.mxu0 %v3122
  %v3165 = vpop.f32.mrf.mxu0
  %v3166 = vadd.f32 0.0, %v3165
  %v3167 = vpop.f32.mrf.mxu0
  %v3168 = vpop.f32.mrf.mxu0
  %v3169 = vadd.f32 0.0, %v3168
  %v3170 = vpop.f32.mrf.mxu0
  %3171 = vmatprep.mubr.bf16.mxu0 0
  %3172 = vmatmul.mubr.bf16.gmra.mxu0 %v3125
  %v3173 = vpop.f32.mrf.mxu0
  %v3174 = vadd.f32 0.0, %v3173
  %v3175 = vpop.f32.mrf.mxu0
  %v3176 = vpop.f32.mrf.mxu0
  %v3177 = vadd.f32 0.0, %v3176
  %v3178 = vpop.f32.mrf.mxu0
  %3179 = vdwg.mxu0
  %v3181 = vsel %vm2992, %v3082, 0
  %v3184 = vsel %vm2992, %v3083, 0
  %v3187 = vsel %vm3127, %v3084, 0
  %3189 = vmatprep.subr.bf16.mxu0 0
  %3190 = vmatpush1.bf16.msra.mxu0 0
  %3191 = vmatprep.subr.bf16.mxu0 0
  %3192 = vmatpush1.bf16.msra.mxu0 0
  %3193 = vmatprep.subr.bf16.mxu0 0
  %3194 = vmatpush1.bf16.msra.mxu0 0
  %3195 = vmatprep.subr.bf16.mxu0 0
  %3196 = vmatpush1.bf16.msra.mxu0 0
  %3197 = vmatprep.subr.bf16.mxu0 0
  %3198 = vmatpush1.bf16.msra.mxu0 0
  %3199 = vmatprep.subr.bf16.mxu0 0
  %3200 = vmatpush1.bf16.msra.mxu0 0
  %3201 = vmatprep.subr.bf16.mxu0 0
  %3202 = vmatpush1.bf16.msra.mxu0 0
  %3203 = vmatprep.subr.bf16.mxu0 0
  %3204 = vmatpush1.bf16.msra.mxu0 %v3187
  %3205 = vmatprep.subr.bf16.mxu0 0
  %3206 = vmatpush2.bf16.msra.mxu0 0
  %3207 = vmatprep.subr.bf16.mxu0 0
  %3208 = vmatpush2.bf16.msra.mxu0 0
  %3209 = vmatprep.subr.bf16.mxu0 0
  %3210 = vmatpush2.bf16.msra.mxu0 0
  %3211 = vmatprep.subr.bf16.mxu0 0
  %3212 = vmatpush2.bf16.msra.mxu0 0
  %3213 = vmatprep.subr.bf16.mxu0 0
  %3214 = vmatpush2.bf16.msra.mxu0 0
  %3215 = vmatprep.subr.bf16.mxu0 0
  %3216 = vmatpush2.bf16.msra.mxu0 0
  %3217 = vmatprep.subr.bf16.mxu0 0
  %3218 = vmatpush2.bf16.msra.mxu0 0
  %3219 = vmatprep.subr.bf16.mxu0 0
  %3220 = vmatpush2.bf16.msra.mxu0 0
  %3221 = vmatprep.mubr.bf16.mxu0 0
  %3222 = vmatmul.mubr.bf16.gmra.mxu0 %v3181
  %v3223 = vpop.f32.mrf.mxu0
  %v3224 = vadd.f32 %v3166, %v3223
  %v3225 = vpop.f32.mrf.mxu0
  %v3226 = vpop.f32.mrf.mxu0
  %v3227 = vadd.f32 %v3169, %v3226
  %v3228 = vpop.f32.mrf.mxu0
  %3229 = vmatprep.mubr.bf16.mxu0 0
  %3230 = vmatmul.mubr.bf16.gmra.mxu0 %v3184
  %v3231 = vpop.f32.mrf.mxu0
  %v3232 = vadd.f32 %v3174, %v3231
  %v3233 = vpop.f32.mrf.mxu0
  %v3234 = vpop.f32.mrf.mxu0
  %v3235 = vadd.f32 %v3177, %v3234
  %v3236 = vpop.f32.mrf.mxu0
  %3237 = vdwg.mxu0
  %s3238 = scalar_lea.vmem [#allocation2], 2
  %v3239 = vld [vmem:[%s3238] ss:$2 sm:$0xf]
  %s3240 = scalar_lea.vmem [#allocation2], 34
  %v3241 = vld [vmem:[%s3240] ss:$2 sm:$0xf]
  %s3242 = scalar_lea.vmem [#allocation2], 66
  %v3243 = vld [vmem:[%s3242] ss:$2 sm:$0xf]
  %s3244 = scalar_lea.vmem [#allocation2], 98
  %v3245 = vld [vmem:[%s3244] ss:$2 sm:$0xf]
  %s3246 = scalar_lea.vmem [#allocation2], 162
  %v3247 = vld [vmem:[%s3246] ss:$2 sm:$0xf]
  %s3248 = scalar_lea.vmem [#allocation2], 194
  %v3249 = vld [vmem:[%s3248] ss:$2 sm:$0xf]
  %s3250 = scalar_lea.vmem [#allocation2], 226
  %v3251 = vld [vmem:[%s3250] ss:$2 sm:$0xf]
  %s3252 = scalar_lea.vmem [#allocation2], 258
  %v3253 = vld [vmem:[%s3252] ss:$2 sm:$0xf]
  %v3262 = vcombine.low %v3239, %v3241
  %v3263 = vcombine.low %v3243, %v3245
  %v3264 = vcombine.low %v3247, %v3249
  %v3265 = vcombine.low %v3251, %v3253
  %v3270 = vpack.c.bf16 %v3263, %v3262
  %v3271 = vpack.c.bf16 %v3265, %v3264
  %s3272 = scalar_lea.vmem %s3, 8
  %v3273 = vld [vmem:[%s3272] sm:$0xf]
  %v3275 = vsel %vm2992, %v3270, 0
  %v3278 = vsel %vm2992, %v3271, 0
  %v3281 = vsel %vm3127, %v3273, 0
  %3283 = vmatprep.subr.bf16.mxu0 0
  %3284 = vmatpush1.bf16.msra.mxu0 0
  %3285 = vmatprep.subr.bf16.mxu0 0
  %3286 = vmatpush1.bf16.msra.mxu0 0
  %3287 = vmatprep.subr.bf16.mxu0 0
  %3288 = vmatpush1.bf16.msra.mxu0 0
  %3289 = vmatprep.subr.bf16.mxu0 0
  %3290 = vmatpush1.bf16.msra.mxu0 0
  %3291 = vmatprep.subr.bf16.mxu0 0
  %3292 = vmatpush1.bf16.msra.mxu0 0
  %3293 = vmatprep.subr.bf16.mxu0 0
  %3294 = vmatpush1.bf16.msra.mxu0 0
  %3295 = vmatprep.subr.bf16.mxu0 0
  %3296 = vmatpush1.bf16.msra.mxu0 0
  %3297 = vmatprep.subr.bf16.mxu0 0
  %3298 = vmatpush1.bf16.msra.mxu0 %v3281
  %3299 = vmatprep.subr.bf16.mxu0 0
  %3300 = vmatpush2.bf16.msra.mxu0 0
  %3301 = vmatprep.subr.bf16.mxu0 0
  %3302 = vmatpush2.bf16.msra.mxu0 0
  %3303 = vmatprep.subr.bf16.mxu0 0
  %3304 = vmatpush2.bf16.msra.mxu0 0
  %3305 = vmatprep.subr.bf16.mxu0 0
  %3306 = vmatpush2.bf16.msra.mxu0 0
  %3307 = vmatprep.subr.bf16.mxu0 0
  %3308 = vmatpush2.bf16.msra.mxu0 0
  %3309 = vmatprep.subr.bf16.mxu0 0
  %3310 = vmatpush2.bf16.msra.mxu0 0
  %3311 = vmatprep.subr.bf16.mxu0 0
  %3312 = vmatpush2.bf16.msra.mxu0 0
  %3313 = vmatprep.subr.bf16.mxu0 0
  %3314 = vmatpush2.bf16.msra.mxu0 0
  %3315 = vmatprep.mubr.bf16.mxu0 0
  %3316 = vmatmul.mubr.bf16.gmra.mxu0 %v3275
  %v3317 = vpop.f32.mrf.mxu0
  %v3318 = vadd.f32 0.0, %v3317
  %v3319 = vpop.f32.mrf.mxu0
  %v3320 = vpop.f32.mrf.mxu0
  %v3321 = vadd.f32 0.0, %v3320
  %v3322 = vpop.f32.mrf.mxu0
  %3323 = vmatprep.mubr.bf16.mxu0 0
  %3324 = vmatmul.mubr.bf16.gmra.mxu0 %v3278
  %v3325 = vpop.f32.mrf.mxu0
  %v3326 = vadd.f32 0.0, %v3325
  %v3327 = vpop.f32.mrf.mxu0
  %v3328 = vpop.f32.mrf.mxu0
  %v3329 = vadd.f32 0.0, %v3328
  %v3330 = vpop.f32.mrf.mxu0
  %3331 = vdwg.mxu0
  %v3332 = vadd.f32 %v3224, %v3318
  %v3333 = vadd.f32 %v3227, %v3321
  %v3334 = vadd.f32 %v3232, %v3326
  %v3335 = vadd.f32 %v3235, %v3329
  %s3336 = scalar_lea.vmem [#allocation2], 3
  %v3337 = vld [vmem:[%s3336] ss:$2 sm:$0xf]
  %s3338 = scalar_lea.vmem [#allocation2], 35
  %v3339 = vld [vmem:[%s3338] ss:$2 sm:$0xf]
  %s3340 = scalar_lea.vmem [#allocation2], 67
  %v3341 = vld [vmem:[%s3340] ss:$2 sm:$0xf]
  %s3342 = scalar_lea.vmem [#allocation2], 99
  %v3343 = vld [vmem:[%s3342] ss:$2 sm:$0xf]
  %s3344 = scalar_lea.vmem [#allocation2], 163
  %v3345 = vld [vmem:[%s3344] ss:$2 sm:$0xf]
  %s3346 = scalar_lea.vmem [#allocation2], 195
  %v3347 = vld [vmem:[%s3346] ss:$2 sm:$0xf]
  %s3348 = scalar_lea.vmem [#allocation2], 227
  %v3349 = vld [vmem:[%s3348] ss:$2 sm:$0xf]
  %s3350 = scalar_lea.vmem [#allocation2], 259
  %v3351 = vld [vmem:[%s3350] ss:$2 sm:$0xf]
  %v3360 = vcombine.low %v3337, %v3339
  %v3361 = vcombine.low %v3341, %v3343
  %v3362 = vcombine.low %v3345, %v3347
  %v3363 = vcombine.low %v3349, %v3351
  %v3368 = vpack.c.bf16 %v3361, %v3360
  %v3369 = vpack.c.bf16 %v3363, %v3362
  %s3370 = scalar_lea.vmem %s3, 12
  %v3371 = vld [vmem:[%s3370] sm:$0xf]
  %v3373 = vsel %vm2992, %v3368, 0
  %v3376 = vsel %vm2992, %v3369, 0
  %v3379 = vsel %vm3127, %v3371, 0
  %3381 = vmatprep.subr.bf16.mxu0 0
  %3382 = vmatpush1.bf16.msra.mxu0 0
  %3383 = vmatprep.subr.bf16.mxu0 0
  %3384 = vmatpush1.bf16.msra.mxu0 0
  %3385 = vmatprep.subr.bf16.mxu0 0
  %3386 = vmatpush1.bf16.msra.mxu0 0
  %3387 = vmatprep.subr.bf16.mxu0 0
  %3388 = vmatpush1.bf16.msra.mxu0 0
  %3389 = vmatprep.subr.bf16.mxu0 0
  %3390 = vmatpush1.bf16.msra.mxu0 0
  %3391 = vmatprep.subr.bf16.mxu0 0
  %3392 = vmatpush1.bf16.msra.mxu0 0
  %3393 = vmatprep.subr.bf16.mxu0 0
  %3394 = vmatpush1.bf16.msra.mxu0 0
  %3395 = vmatprep.subr.bf16.mxu0 0
  %3396 = vmatpush1.bf16.msra.mxu0 %v3379
  %3397 = vmatprep.subr.bf16.mxu0 0
  %3398 = vmatpush2.bf16.msra.mxu0 0
  %3399 = vmatprep.subr.bf16.mxu0 0
  %3400 = vmatpush2.bf16.msra.mxu0 0
  %3401 = vmatprep.subr.bf16.mxu0 0
  %3402 = vmatpush2.bf16.msra.mxu0 0
  %3403 = vmatprep.subr.bf16.mxu0 0
  %3404 = vmatpush2.bf16.msra.mxu0 0
  %3405 = vmatprep.subr.bf16.mxu0 0
  %3406 = vmatpush2.bf16.msra.mxu0 0
  %3407 = vmatprep.subr.bf16.mxu0 0
  %3408 = vmatpush2.bf16.msra.mxu0 0
  %3409 = vmatprep.subr.bf16.mxu0 0
  %3410 = vmatpush2.bf16.msra.mxu0 0
  %3411 = vmatprep.subr.bf16.mxu0 0
  %3412 = vmatpush2.bf16.msra.mxu0 0
  %3413 = vmatprep.mubr.bf16.mxu0 0
  %3414 = vmatmul.mubr.bf16.gmra.mxu0 %v3373
  %v3415 = vpop.f32.mrf.mxu0
  %v3416 = vadd.f32 0.0, %v3415
  %v3417 = vpop.f32.mrf.mxu0
  %v3418 = vpop.f32.mrf.mxu0
  %v3419 = vadd.f32 0.0, %v3418
  %v3420 = vpop.f32.mrf.mxu0
  %3421 = vmatprep.mubr.bf16.mxu0 0
  %3422 = vmatmul.mubr.bf16.gmra.mxu0 %v3376
  %v3423 = vpop.f32.mrf.mxu0
  %v3424 = vadd.f32 0.0, %v3423
  %v3425 = vpop.f32.mrf.mxu0
  %v3426 = vpop.f32.mrf.mxu0
  %v3427 = vadd.f32 0.0, %v3426
  %v3428 = vpop.f32.mrf.mxu0
  %3429 = vdwg.mxu0
  %v3430 = vadd.f32 %v3332, %v3416
  %v3431 = vadd.f32 %v3333, %v3419
  %v3432 = vadd.f32 %v3334, %v3424
  %v3433 = vadd.f32 %v3335, %v3427
  %v3434 = vld [vmem:[%s3034] ss:$2 sm:$0xf]
  %s3435 = scalar_lea.vmem %s3034, 32 [#allocation2]
  %v3436 = vld [vmem:[%s3435] ss:$2 sm:$0xf]
  %s3437 = scalar_lea.vmem %s3034, 64 [#allocation2]
  %v3438 = vld [vmem:[%s3437] ss:$2 sm:$0xf]
  %s3439 = scalar_lea.vmem %s3034, 96 [#allocation2]
  %v3440 = vld [vmem:[%s3439] ss:$2 sm:$0xf]
  %s3441 = scalar_lea.vmem %s3034, 160 [#allocation2]
  %v3442 = vld [vmem:[%s3441] ss:$2 sm:$0xf]
  %s3443 = scalar_lea.vmem %s3034, 192 [#allocation2]
  %v3444 = vld [vmem:[%s3443] ss:$2 sm:$0xf]
  %s3445 = scalar_lea.vmem %s3034, 224 [#allocation2]
  %v3446 = vld [vmem:[%s3445] ss:$2 sm:$0xf]
  %s3447 = scalar_lea.vmem %s3034, 256 [#allocation2]
  %v3448 = vld [vmem:[%s3447] ss:$2 sm:$0xf]
  %v3457 = vcombine.low %v3434, %v3436
  %v3458 = vcombine.low %v3438, %v3440
  %v3459 = vcombine.low %v3442, %v3444
  %v3460 = vcombine.low %v3446, %v3448
  %v3465 = vpack.c.bf16 %v3458, %v3457
  %v3466 = vpack.c.bf16 %v3460, %v3459
  %s3467 = scalar_lea.vmem %s3, 16
  %v3468 = vld [vmem:[%s3467] sm:$0xf]
  %v3470 = vsel %vm2992, %v3465, 0
  %v3473 = vsel %vm2992, %v3466, 0
  %v3476 = vsel %vm3127, %v3468, 0
  %3478 = vmatprep.subr.bf16.mxu0 0
  %3479 = vmatpush1.bf16.msra.mxu0 0
  %3480 = vmatprep.subr.bf16.mxu0 0
  %3481 = vmatpush1.bf16.msra.mxu0 0
  %3482 = vmatprep.subr.bf16.mxu0 0
  %3483 = vmatpush1.bf16.msra.mxu0 0
  %3484 = vmatprep.subr.bf16.mxu0 0
  %3485 = vmatpush1.bf16.msra.mxu0 0
  %3486 = vmatprep.subr.bf16.mxu0 0
  %3487 = vmatpush1.bf16.msra.mxu0 0
  %3488 = vmatprep.subr.bf16.mxu0 0
  %3489 = vmatpush1.bf16.msra.mxu0 0
  %3490 = vmatprep.subr.bf16.mxu0 0
  %3491 = vmatpush1.bf16.msra.mxu0 0
  %3492 = vmatprep.subr.bf16.mxu0 0
  %3493 = vmatpush1.bf16.msra.mxu0 %v3476
  %3494 = vmatprep.subr.bf16.mxu0 0
  %3495 = vmatpush2.bf16.msra.mxu0 0
  %3496 = vmatprep.subr.bf16.mxu0 0
  %3497 = vmatpush2.bf16.msra.mxu0 0
  %3498 = vmatprep.subr.bf16.mxu0 0
  %3499 = vmatpush2.bf16.msra.mxu0 0
  %3500 = vmatprep.subr.bf16.mxu0 0
  %3501 = vmatpush2.bf16.msra.mxu0 0
  %3502 = vmatprep.subr.bf16.mxu0 0
  %3503 = vmatpush2.bf16.msra.mxu0 0
  %3504 = vmatprep.subr.bf16.mxu0 0
  %3505 = vmatpush2.bf16.msra.mxu0 0
  %3506 = vmatprep.subr.bf16.mxu0 0
  %3507 = vmatpush2.bf16.msra.mxu0 0
  %3508 = vmatprep.subr.bf16.mxu0 0
  %3509 = vmatpush2.bf16.msra.mxu0 0
  %3510 = vmatprep.mubr.bf16.mxu0 0
  %3511 = vmatmul.mubr.bf16.gmra.mxu0 %v3470
  %v3512 = vpop.f32.mrf.mxu0
  %v3513 = vadd.f32 0.0, %v3512
  %v3514 = vpop.f32.mrf.mxu0
  %v3515 = vpop.f32.mrf.mxu0
  %v3516 = vadd.f32 0.0, %v3515
  %v3517 = vpop.f32.mrf.mxu0
  %3518 = vmatprep.mubr.bf16.mxu0 0
  %3519 = vmatmul.mubr.bf16.gmra.mxu0 %v3473
  %v3520 = vpop.f32.mrf.mxu0
  %v3521 = vadd.f32 0.0, %v3520
  %v3522 = vpop.f32.mrf.mxu0
  %v3523 = vpop.f32.mrf.mxu0
  %v3524 = vadd.f32 0.0, %v3523
  %v3525 = vpop.f32.mrf.mxu0
  %3526 = vdwg.mxu0
  %v3527 = vadd.f32 %v3430, %v3513
  %v3528 = vadd.f32 %v3431, %v3516
  %v3529 = vadd.f32 %v3432, %v3521
  %v3530 = vadd.f32 %v3433, %v3524
  %s3531 = scalar_lea.vmem %s3034, 1 [#allocation2]
  %v3532 = vld [vmem:[%s3531] ss:$2 sm:$0xf]
  %s3533 = scalar_lea.vmem %s3034, 33 [#allocation2]
  %v3534 = vld [vmem:[%s3533] ss:$2 sm:$0xf]
  %s3535 = scalar_lea.vmem %s3034, 65 [#allocation2]
  %v3536 = vld [vmem:[%s3535] ss:$2 sm:$0xf]
  %s3537 = scalar_lea.vmem %s3034, 97 [#allocation2]
  %v3538 = vld [vmem:[%s3537] ss:$2 sm:$0xf]
  %s3539 = scalar_lea.vmem %s3034, 161 [#allocation2]
  %v3540 = vld [vmem:[%s3539] ss:$2 sm:$0xf]
  %s3541 = scalar_lea.vmem %s3034, 193 [#allocation2]
  %v3542 = vld [vmem:[%s3541] ss:$2 sm:$0xf]
  %s3543 = scalar_lea.vmem %s3034, 225 [#allocation2]
  %v3544 = vld [vmem:[%s3543] ss:$2 sm:$0xf]
  %s3545 = scalar_lea.vmem %s3034, 257 [#allocation2]
  %v3546 = vld [vmem:[%s3545] ss:$2 sm:$0xf]
  %v3555 = vcombine.low %v3532, %v3534
  %v3556 = vcombine.low %v3536, %v3538
  %v3557 = vcombine.low %v3540, %v3542
  %v3558 = vcombine.low %v3544, %v3546
  %v3563 = vpack.c.bf16 %v3556, %v3555
  %v3564 = vpack.c.bf16 %v3558, %v3557
  %s3565 = scalar_lea.vmem %s3, 20
  %v3566 = vld [vmem:[%s3565] sm:$0xf]
  %v3568 = vsel %vm2992, %v3563, 0
  %v3571 = vsel %vm2992, %v3564, 0
  %v3574 = vsel %vm3127, %v3566, 0
  %3576 = vmatprep.subr.bf16.mxu0 0
  %3577 = vmatpush1.bf16.msra.mxu0 0
  %3578 = vmatprep.subr.bf16.mxu0 0
  %3579 = vmatpush1.bf16.msra.mxu0 0
  %3580 = vmatprep.subr.bf16.mxu0 0
  %3581 = vmatpush1.bf16.msra.mxu0 0
  %3582 = vmatprep.subr.bf16.mxu0 0
  %3583 = vmatpush1.bf16.msra.mxu0 0
  %3584 = vmatprep.subr.bf16.mxu0 0
  %3585 = vmatpush1.bf16.msra.mxu0 0
  %3586 = vmatprep.subr.bf16.mxu0 0
  %3587 = vmatpush1.bf16.msra.mxu0 0
  %3588 = vmatprep.subr.bf16.mxu0 0
  %3589 = vmatpush1.bf16.msra.mxu0 0
  %3590 = vmatprep.subr.bf16.mxu0 0
  %3591 = vmatpush1.bf16.msra.mxu0 %v3574
  %3592 = vmatprep.subr.bf16.mxu0 0
  %3593 = vmatpush2.bf16.msra.mxu0 0
  %3594 = vmatprep.subr.bf16.mxu0 0
  %3595 = vmatpush2.bf16.msra.mxu0 0
  %3596 = vmatprep.subr.bf16.mxu0 0
  %3597 = vmatpush2.bf16.msra.mxu0 0
  %3598 = vmatprep.subr.bf16.mxu0 0
  %3599 = vmatpush2.bf16.msra.mxu0 0
  %3600 = vmatprep.subr.bf16.mxu0 0
  %3601 = vmatpush2.bf16.msra.mxu0 0
  %3602 = vmatprep.subr.bf16.mxu0 0
  %3603 = vmatpush2.bf16.msra.mxu0 0
  %3604 = vmatprep.subr.bf16.mxu0 0
  %3605 = vmatpush2.bf16.msra.mxu0 0
  %3606 = vmatprep.subr.bf16.mxu0 0
  %3607 = vmatpush2.bf16.msra.mxu0 0
  %3608 = vmatprep.mubr.bf16.mxu0 0
  %3609 = vmatmul.mubr.bf16.gmra.mxu0 %v3568
  %v3610 = vpop.f32.mrf.mxu0
  %v3611 = vadd.f32 0.0, %v3610
  %v3612 = vpop.f32.mrf.mxu0
  %v3613 = vpop.f32.mrf.mxu0
  %v3614 = vadd.f32 0.0, %v3613
  %v3615 = vpop.f32.mrf.mxu0
  %3616 = vmatprep.mubr.bf16.mxu0 0
  %3617 = vmatmul.mubr.bf16.gmra.mxu0 %v3571
  %v3618 = vpop.f32.mrf.mxu0
  %v3619 = vadd.f32 0.0, %v3618
  %v3620 = vpop.f32.mrf.mxu0
  %v3621 = vpop.f32.mrf.mxu0
  %v3622 = vadd.f32 0.0, %v3621
  %v3623 = vpop.f32.mrf.mxu0
  %3624 = vdwg.mxu0
  %v3625 = vadd.f32 %v3527, %v3611
  %v3626 = vadd.f32 %v3528, %v3614
  %v3627 = vadd.f32 %v3529, %v3619
  %v3628 = vadd.f32 %v3530, %v3622
  %s3629 = scalar_lea.vmem %s3034, 2 [#allocation2]
  %v3630 = vld [vmem:[%s3629] ss:$2 sm:$0xf]
  %s3631 = scalar_lea.vmem %s3034, 34 [#allocation2]
  %v3632 = vld [vmem:[%s3631] ss:$2 sm:$0xf]
  %s3633 = scalar_lea.vmem %s3034, 66 [#allocation2]
  %v3634 = vld [vmem:[%s3633] ss:$2 sm:$0xf]
  %s3635 = scalar_lea.vmem %s3034, 98 [#allocation2]
  %v3636 = vld [vmem:[%s3635] ss:$2 sm:$0xf]
  %s3637 = scalar_lea.vmem %s3034, 162 [#allocation2]
  %v3638 = vld [vmem:[%s3637] ss:$2 sm:$0xf]
  %s3639 = scalar_lea.vmem %s3034, 194 [#allocation2]
  %v3640 = vld [vmem:[%s3639] ss:$2 sm:$0xf]
  %s3641 = scalar_lea.vmem %s3034, 226 [#allocation2]
  %v3642 = vld [vmem:[%s3641] ss:$2 sm:$0xf]
  %s3643 = scalar_lea.vmem %s3034, 258 [#allocation2]
  %v3644 = vld [vmem:[%s3643] ss:$2 sm:$0xf]
  %v3653 = vcombine.low %v3630, %v3632
  %v3654 = vcombine.low %v3634, %v3636
  %v3655 = vcombine.low %v3638, %v3640
  %v3656 = vcombine.low %v3642, %v3644
  %v3661 = vpack.c.bf16 %v3654, %v3653
  %v3662 = vpack.c.bf16 %v3656, %v3655
  %s3663 = scalar_lea.vmem %s3, 24
  %v3664 = vld [vmem:[%s3663] sm:$0xf]
  %v3666 = vsel %vm2992, %v3661, 0
  %v3669 = vsel %vm2992, %v3662, 0
  %v3672 = vsel %vm3127, %v3664, 0
  %3674 = vmatprep.subr.bf16.mxu0 0
  %3675 = vmatpush1.bf16.msra.mxu0 0
  %3676 = vmatprep.subr.bf16.mxu0 0
  %3677 = vmatpush1.bf16.msra.mxu0 0
  %3678 = vmatprep.subr.bf16.mxu0 0
  %3679 = vmatpush1.bf16.msra.mxu0 0
  %3680 = vmatprep.subr.bf16.mxu0 0
  %3681 = vmatpush1.bf16.msra.mxu0 0
  %3682 = vmatprep.subr.bf16.mxu0 0
  %3683 = vmatpush1.bf16.msra.mxu0 0
  %3684 = vmatprep.subr.bf16.mxu0 0
  %3685 = vmatpush1.bf16.msra.mxu0 0
  %3686 = vmatprep.subr.bf16.mxu0 0
  %3687 = vmatpush1.bf16.msra.mxu0 0
  %3688 = vmatprep.subr.bf16.mxu0 0
  %3689 = vmatpush1.bf16.msra.mxu0 %v3672
  %3690 = vmatprep.subr.bf16.mxu0 0
  %3691 = vmatpush2.bf16.msra.mxu0 0
  %3692 = vmatprep.subr.bf16.mxu0 0
  %3693 = vmatpush2.bf16.msra.mxu0 0
  %3694 = vmatprep.subr.bf16.mxu0 0
  %3695 = vmatpush2.bf16.msra.mxu0 0
  %3696 = vmatprep.subr.bf16.mxu0 0
  %3697 = vmatpush2.bf16.msra.mxu0 0
  %3698 = vmatprep.subr.bf16.mxu0 0
  %3699 = vmatpush2.bf16.msra.mxu0 0
  %3700 = vmatprep.subr.bf16.mxu0 0
  %3701 = vmatpush2.bf16.msra.mxu0 0
  %3702 = vmatprep.subr.bf16.mxu0 0
  %3703 = vmatpush2.bf16.msra.mxu0 0
  %3704 = vmatprep.subr.bf16.mxu0 0
  %3705 = vmatpush2.bf16.msra.mxu0 0
  %3706 = vmatprep.mubr.bf16.mxu0 0
  %3707 = vmatmul.mubr.bf16.gmra.mxu0 %v3666
  %v3708 = vpop.f32.mrf.mxu0
  %v3709 = vadd.f32 0.0, %v3708
  %v3710 = vpop.f32.mrf.mxu0
  %v3711 = vpop.f32.mrf.mxu0
  %v3712 = vadd.f32 0.0, %v3711
  %v3713 = vpop.f32.mrf.mxu0
  %3714 = vmatprep.mubr.bf16.mxu0 0
  %3715 = vmatmul.mubr.bf16.gmra.mxu0 %v3669
  %v3716 = vpop.f32.mrf.mxu0
  %v3717 = vadd.f32 0.0, %v3716
  %v3718 = vpop.f32.mrf.mxu0
  %v3719 = vpop.f32.mrf.mxu0
  %v3720 = vadd.f32 0.0, %v3719
  %v3721 = vpop.f32.mrf.mxu0
  %3722 = vdwg.mxu0
  %v3723 = vadd.f32 %v3625, %v3709
  %v3724 = vadd.f32 %v3626, %v3712
  %v3725 = vadd.f32 %v3627, %v3717
  %v3726 = vadd.f32 %v3628, %v3720
  %s3727 = scalar_lea.vmem %s3034, 3 [#allocation2]
  %v3728 = vld [vmem:[%s3727] ss:$2 sm:$0xf]
  %s3729 = scalar_lea.vmem %s3034, 35 [#allocation2]
  %v3730 = vld [vmem:[%s3729] ss:$2 sm:$0xf]
  %s3731 = scalar_lea.vmem %s3034, 67 [#allocation2]
  %v3732 = vld [vmem:[%s3731] ss:$2 sm:$0xf]
  %s3733 = scalar_lea.vmem %s3034, 99 [#allocation2]
  %v3734 = vld [vmem:[%s3733] ss:$2 sm:$0xf]
  %s3735 = scalar_lea.vmem %s3034, 163 [#allocation2]
  %v3736 = vld [vmem:[%s3735] ss:$2 sm:$0xf]
  %s3737 = scalar_lea.vmem %s3034, 195 [#allocation2]
  %v3738 = vld [vmem:[%s3737] ss:$2 sm:$0xf]
  %s3739 = scalar_lea.vmem %s3034, 227 [#allocation2]
  %v3740 = vld [vmem:[%s3739] ss:$2 sm:$0xf]
  %s3741 = scalar_lea.vmem %s3034, 259 [#allocation2]
  %v3742 = vld [vmem:[%s3741] ss:$2 sm:$0xf]
  %v3751 = vcombine.low %v3728, %v3730
  %v3752 = vcombine.low %v3732, %v3734
  %v3753 = vcombine.low %v3736, %v3738
  %v3754 = vcombine.low %v3740, %v3742
  %v3759 = vpack.c.bf16 %v3752, %v3751
  %v3760 = vpack.c.bf16 %v3754, %v3753
  %s3761 = scalar_lea.vmem %s3, 28
  %v3762 = vld [vmem:[%s3761] sm:$0xf]
  %v3764 = vsel %vm2992, %v3759, 0
  %v3767 = vsel %vm2992, %v3760, 0
  %v3770 = vsel %vm3127, %v3762, 0
  %3772 = vmatprep.subr.bf16.mxu0 0
  %3773 = vmatpush1.bf16.msra.mxu0 0
  %3774 = vmatprep.subr.bf16.mxu0 0
  %3775 = vmatpush1.bf16.msra.mxu0 0
  %3776 = vmatprep.subr.bf16.mxu0 0
  %3777 = vmatpush1.bf16.msra.mxu0 0
  %3778 = vmatprep.subr.bf16.mxu0 0
  %3779 = vmatpush1.bf16.msra.mxu0 0
  %3780 = vmatprep.subr.bf16.mxu0 0
  %3781 = vmatpush1.bf16.msra.mxu0 0
  %3782 = vmatprep.subr.bf16.mxu0 0
  %3783 = vmatpush1.bf16.msra.mxu0 0
  %3784 = vmatprep.subr.bf16.mxu0 0
  %3785 = vmatpush1.bf16.msra.mxu0 0
  %3786 = vmatprep.subr.bf16.mxu0 0
  %3787 = vmatpush1.bf16.msra.mxu0 %v3770
  %3788 = vmatprep.subr.bf16.mxu0 0
  %3789 = vmatpush2.bf16.msra.mxu0 0
  %3790 = vmatprep.subr.bf16.mxu0 0
  %3791 = vmatpush2.bf16.msra.mxu0 0
  %3792 = vmatprep.subr.bf16.mxu0 0
  %3793 = vmatpush2.bf16.msra.mxu0 0
  %3794 = vmatprep.subr.bf16.mxu0 0
  %3795 = vmatpush2.bf16.msra.mxu0 0
  %3796 = vmatprep.subr.bf16.mxu0 0
  %3797 = vmatpush2.bf16.msra.mxu0 0
  %3798 = vmatprep.subr.bf16.mxu0 0
  %3799 = vmatpush2.bf16.msra.mxu0 0
  %3800 = vmatprep.subr.bf16.mxu0 0
  %3801 = vmatpush2.bf16.msra.mxu0 0
  %3802 = vmatprep.subr.bf16.mxu0 0
  %3803 = vmatpush2.bf16.msra.mxu0 0
  %3804 = vmatprep.mubr.bf16.mxu0 0
  %3805 = vmatmul.mubr.bf16.gmra.mxu0 %v3764
  %v3806 = vpop.f32.mrf.mxu0
  %v3807 = vadd.f32 0.0, %v3806
  %v3808 = vpop.f32.mrf.mxu0
  %v3809 = vpop.f32.mrf.mxu0
  %v3810 = vadd.f32 0.0, %v3809
  %v3811 = vpop.f32.mrf.mxu0
  %3812 = vmatprep.mubr.bf16.mxu0 0
  %3813 = vmatmul.mubr.bf16.gmra.mxu0 %v3767
  %v3814 = vpop.f32.mrf.mxu0
  %v3815 = vadd.f32 0.0, %v3814
  %v3816 = vpop.f32.mrf.mxu0
  %v3817 = vpop.f32.mrf.mxu0
  %v3818 = vadd.f32 0.0, %v3817
  %v3819 = vpop.f32.mrf.mxu0
  %3820 = vdwg.mxu0
  %v3821 = vadd.f32 %v3723, %v3807
  %v3822 = vadd.f32 %v3724, %v3810
  %v3823 = vadd.f32 %v3725, %v3815
  %v3824 = vadd.f32 %v3726, %v3818
  %s3825 = scalar_lea.vmem [#allocation2], 32
  %v3826 = vld [vmem:[%s3825] ss:$2 sm:$0xf]
  %s3827 = scalar_lea.vmem %s3825, 32 [#allocation2]
  %v3828 = vld [vmem:[%s3827] ss:$2 sm:$0xf]
  %s3829 = scalar_lea.vmem %s3825, 64 [#allocation2]
  %v3830 = vld [vmem:[%s3829] ss:$2 sm:$0xf]
  %s3831 = scalar_lea.vmem %s3825, 96 [#allocation2]
  %v3832 = vld [vmem:[%s3831] ss:$2 sm:$0xf]
  %s3833 = scalar_lea.vmem %s3825, 160 [#allocation2]
  %v3834 = vld [vmem:[%s3833] ss:$2 sm:$0xf]
  %s3835 = scalar_lea.vmem %s3825, 192 [#allocation2]
  %v3836 = vld [vmem:[%s3835] ss:$2 sm:$0xf]
  %s3837 = scalar_lea.vmem %s3825, 224 [#allocation2]
  %v3838 = vld [vmem:[%s3837] ss:$2 sm:$0xf]
  %s3839 = scalar_lea.vmem %s3825, 256 [#allocation2]
  %v3840 = vld [vmem:[%s3839] ss:$2 sm:$0xf]
  %v3849 = vcombine.low %v3826, %v3828
  %v3850 = vcombine.low %v3830, %v3832
  %v3851 = vcombine.low %v3834, %v3836
  %v3852 = vcombine.low %v3838, %v3840
  %v3857 = vpack.c.bf16 %v3850, %v3849
  %v3858 = vpack.c.bf16 %v3852, %v3851
  %s3859 = scalar_lea.vmem %s3, 32
  %v3860 = vld [vmem:[%s3859] sm:$0xf]
  %v3862 = vsel %vm2992, %v3857, 0
  %v3865 = vsel %vm2992, %v3858, 0
  %v3868 = vsel %vm3127, %v3860, 0
  %3870 = vmatprep.subr.bf16.mxu0 0
  %3871 = vmatpush1.bf16.msra.mxu0 0
  %3872 = vmatprep.subr.bf16.mxu0 0
  %3873 = vmatpush1.bf16.msra.mxu0 0
  %3874 = vmatprep.subr.bf16.mxu0 0
  %3875 = vmatpush1.bf16.msra.mxu0 0
  %3876 = vmatprep.subr.bf16.mxu0 0
  %3877 = vmatpush1.bf16.msra.mxu0 0
  %3878 = vmatprep.subr.bf16.mxu0 0
  %3879 = vmatpush1.bf16.msra.mxu0 0
  %3880 = vmatprep.subr.bf16.mxu0 0
  %3881 = vmatpush1.bf16.msra.mxu0 0
  %3882 = vmatprep.subr.bf16.mxu0 0
  %3883 = vmatpush1.bf16.msra.mxu0 0
  %3884 = vmatprep.subr.bf16.mxu0 0
  %3885 = vmatpush1.bf16.msra.mxu0 %v3868
  %3886 = vmatprep.subr.bf16.mxu0 0
  %3887 = vmatpush2.bf16.msra.mxu0 0
  %3888 = vmatprep.subr.bf16.mxu0 0
  %3889 = vmatpush2.bf16.msra.mxu0 0
  %3890 = vmatprep.subr.bf16.mxu0 0
  %3891 = vmatpush2.bf16.msra.mxu0 0
  %3892 = vmatprep.subr.bf16.mxu0 0
  %3893 = vmatpush2.bf16.msra.mxu0 0
  %3894 = vmatprep.subr.bf16.mxu0 0
  %3895 = vmatpush2.bf16.msra.mxu0 0
  %3896 = vmatprep.subr.bf16.mxu0 0
  %3897 = vmatpush2.bf16.msra.mxu0 0
  %3898 = vmatprep.subr.bf16.mxu0 0
  %3899 = vmatpush2.bf16.msra.mxu0 0
  %3900 = vmatprep.subr.bf16.mxu0 0
  %3901 = vmatpush2.bf16.msra.mxu0 0
  %3902 = vmatprep.mubr.bf16.mxu0 0
  %3903 = vmatmul.mubr.bf16.gmra.mxu0 %v3862
  %v3904 = vpop.f32.mrf.mxu0
  %v3905 = vadd.f32 0.0, %v3904
  %v3906 = vpop.f32.mrf.mxu0
  %v3907 = vpop.f32.mrf.mxu0
  %v3908 = vadd.f32 0.0, %v3907
  %v3909 = vpop.f32.mrf.mxu0
  %3910 = vmatprep.mubr.bf16.mxu0 0
  %3911 = vmatmul.mubr.bf16.gmra.mxu0 %v3865
  %v3912 = vpop.f32.mrf.mxu0
  %v3913 = vadd.f32 0.0, %v3912
  %v3914 = vpop.f32.mrf.mxu0
  %v3915 = vpop.f32.mrf.mxu0
  %v3916 = vadd.f32 0.0, %v3915
  %v3917 = vpop.f32.mrf.mxu0
  %3918 = vdwg.mxu0
  %v3919 = vadd.f32 %v3821, %v3905
  %v3920 = vadd.f32 %v3822, %v3908
  %v3921 = vadd.f32 %v3823, %v3913
  %v3922 = vadd.f32 %v3824, %v3916
  %s3923 = scalar_lea.vmem %s3825, 1 [#allocation2]
  %v3924 = vld [vmem:[%s3923] ss:$2 sm:$0xf]
  %s3925 = scalar_lea.vmem %s3825, 33 [#allocation2]
  %v3926 = vld [vmem:[%s3925] ss:$2 sm:$0xf]
  %s3927 = scalar_lea.vmem %s3825, 65 [#allocation2]
  %v3928 = vld [vmem:[%s3927] ss:$2 sm:$0xf]
  %s3929 = scalar_lea.vmem %s3825, 97 [#allocation2]
  %v3930 = vld [vmem:[%s3929] ss:$2 sm:$0xf]
  %s3931 = scalar_lea.vmem %s3825, 161 [#allocation2]
  %v3932 = vld [vmem:[%s3931] ss:$2 sm:$0xf]
  %s3933 = scalar_lea.vmem %s3825, 193 [#allocation2]
  %v3934 = vld [vmem:[%s3933] ss:$2 sm:$0xf]
  %s3935 = scalar_lea.vmem %s3825, 225 [#allocation2]
  %v3936 = vld [vmem:[%s3935] ss:$2 sm:$0xf]
  %s3937 = scalar_lea.vmem %s3825, 257 [#allocation2]
  %v3938 = vld [vmem:[%s3937] ss:$2 sm:$0xf]
  %v3947 = vcombine.low %v3924, %v3926
  %v3948 = vcombine.low %v3928, %v3930
  %v3949 = vcombine.low %v3932, %v3934
  %v3950 = vcombine.low %v3936, %v3938
  %v3955 = vpack.c.bf16 %v3948, %v3947
  %v3956 = vpack.c.bf16 %v3950, %v3949
  %s3957 = scalar_lea.vmem %s3, 36
  %v3958 = vld [vmem:[%s3957] sm:$0xf]
  %v3960 = vsel %vm2992, %v3955, 0
  %v3963 = vsel %vm2992, %v3956, 0
  %v3966 = vsel %vm3127, %v3958, 0
  %3968 = vmatprep.subr.bf16.mxu0 0
  %3969 = vmatpush1.bf16.msra.mxu0 0
  %3970 = vmatprep.subr.bf16.mxu0 0
  %3971 = vmatpush1.bf16.msra.mxu0 0
  %3972 = vmatprep.subr.bf16.mxu0 0
  %3973 = vmatpush1.bf16.msra.mxu0 0
  %3974 = vmatprep.subr.bf16.mxu0 0
  %3975 = vmatpush1.bf16.msra.mxu0 0
  %3976 = vmatprep.subr.bf16.mxu0 0
  %3977 = vmatpush1.bf16.msra.mxu0 0
  %3978 = vmatprep.subr.bf16.mxu0 0
  %3979 = vmatpush1.bf16.msra.mxu0 0
  %3980 = vmatprep.subr.bf16.mxu0 0
  %3981 = vmatpush1.bf16.msra.mxu0 0
  %3982 = vmatprep.subr.bf16.mxu0 0
  %3983 = vmatpush1.bf16.msra.mxu0 %v3966
  %3984 = vmatprep.subr.bf16.mxu0 0
  %3985 = vmatpush2.bf16.msra.mxu0 0
  %3986 = vmatprep.subr.bf16.mxu0 0
  %3987 = vmatpush2.bf16.msra.mxu0 0
  %3988 = vmatprep.subr.bf16.mxu0 0
  %3989 = vmatpush2.bf16.msra.mxu0 0
  %3990 = vmatprep.subr.bf16.mxu0 0
  %3991 = vmatpush2.bf16.msra.mxu0 0
  %3992 = vmatprep.subr.bf16.mxu0 0
  %3993 = vmatpush2.bf16.msra.mxu0 0
  %3994 = vmatprep.subr.bf16.mxu0 0
  %3995 = vmatpush2.bf16.msra.mxu0 0
  %3996 = vmatprep.subr.bf16.mxu0 0
  %3997 = vmatpush2.bf16.msra.mxu0 0
  %3998 = vmatprep.subr.bf16.mxu0 0
  %3999 = vmatpush2.bf16.msra.mxu0 0
  %4000 = vmatprep.mubr.bf16.mxu0 0
  %4001 = vmatmul.mubr.bf16.gmra.mxu0 %v3960
  %v4002 = vpop.f32.mrf.mxu0
  %v4003 = vadd.f32 0.0, %v4002
  %v4004 = vpop.f32.mrf.mxu0
  %v4005 = vpop.f32.mrf.mxu0
  %v4006 = vadd.f32 0.0, %v4005
  %v4007 = vpop.f32.mrf.mxu0
  %4008 = vmatprep.mubr.bf16.mxu0 0
  %4009 = vmatmul.mubr.bf16.gmra.mxu0 %v3963
  %v4010 = vpop.f32.mrf.mxu0
  %v4011 = vadd.f32 0.0, %v4010
  %v4012 = vpop.f32.mrf.mxu0
  %v4013 = vpop.f32.mrf.mxu0
  %v4014 = vadd.f32 0.0, %v4013
  %v4015 = vpop.f32.mrf.mxu0
  %4016 = vdwg.mxu0
  %v4017 = vadd.f32 %v3919, %v4003
  %v4018 = vadd.f32 %v3920, %v4006
  %v4019 = vadd.f32 %v3921, %v4011
  %v4020 = vadd.f32 %v3922, %v4014
  %s4021 = scalar_lea.vmem %s3825, 2 [#allocation2]
  %v4022 = vld [vmem:[%s4021] ss:$2 sm:$0xf]
  %s4023 = scalar_lea.vmem %s3825, 34 [#allocation2]
  %v4024 = vld [vmem:[%s4023] ss:$2 sm:$0xf]
  %s4025 = scalar_lea.vmem %s3825, 66 [#allocation2]
  %v4026 = vld [vmem:[%s4025] ss:$2 sm:$0xf]
  %s4027 = scalar_lea.vmem %s3825, 98 [#allocation2]
  %v4028 = vld [vmem:[%s4027] ss:$2 sm:$0xf]
  %s4029 = scalar_lea.vmem %s3825, 162 [#allocation2]
  %v4030 = vld [vmem:[%s4029] ss:$2 sm:$0xf]
  %s4031 = scalar_lea.vmem %s3825, 194 [#allocation2]
  %v4032 = vld [vmem:[%s4031] ss:$2 sm:$0xf]
  %s4033 = scalar_lea.vmem %s3825, 226 [#allocation2]
  %v4034 = vld [vmem:[%s4033] ss:$2 sm:$0xf]
  %s4035 = scalar_lea.vmem %s3825, 258 [#allocation2]
  %v4036 = vld [vmem:[%s4035] ss:$2 sm:$0xf]
  %v4045 = vcombine.low %v4022, %v4024
  %v4046 = vcombine.low %v4026, %v4028
  %v4047 = vcombine.low %v4030, %v4032
  %v4048 = vcombine.low %v4034, %v4036
  %v4053 = vpack.c.bf16 %v4046, %v4045
  %v4054 = vpack.c.bf16 %v4048, %v4047
  %s4055 = scalar_lea.vmem %s3, 40
  %v4056 = vld [vmem:[%s4055] sm:$0xf]
  %v4058 = vsel %vm2992, %v4053, 0
  %v4061 = vsel %vm2992, %v4054, 0
  %v4064 = vsel %vm3127, %v4056, 0
  %4066 = vmatprep.subr.bf16.mxu0 0
  %4067 = vmatpush1.bf16.msra.mxu0 0
  %4068 = vmatprep.subr.bf16.mxu0 0
  %4069 = vmatpush1.bf16.msra.mxu0 0
  %4070 = vmatprep.subr.bf16.mxu0 0
  %4071 = vmatpush1.bf16.msra.mxu0 0
  %4072 = vmatprep.subr.bf16.mxu0 0
  %4073 = vmatpush1.bf16.msra.mxu0 0
  %4074 = vmatprep.subr.bf16.mxu0 0
  %4075 = vmatpush1.bf16.msra.mxu0 0
  %4076 = vmatprep.subr.bf16.mxu0 0
  %4077 = vmatpush1.bf16.msra.mxu0 0
  %4078 = vmatprep.subr.bf16.mxu0 0
  %4079 = vmatpush1.bf16.msra.mxu0 0
  %4080 = vmatprep.subr.bf16.mxu0 0
  %4081 = vmatpush1.bf16.msra.mxu0 %v4064
  %4082 = vmatprep.subr.bf16.mxu0 0
  %4083 = vmatpush2.bf16.msra.mxu0 0
  %4084 = vmatprep.subr.bf16.mxu0 0
  %4085 = vmatpush2.bf16.msra.mxu0 0
  %4086 = vmatprep.subr.bf16.mxu0 0
  %4087 = vmatpush2.bf16.msra.mxu0 0
  %4088 = vmatprep.subr.bf16.mxu0 0
  %4089 = vmatpush2.bf16.msra.mxu0 0
  %4090 = vmatprep.subr.bf16.mxu0 0
  %4091 = vmatpush2.bf16.msra.mxu0 0
  %4092 = vmatprep.subr.bf16.mxu0 0
  %4093 = vmatpush2.bf16.msra.mxu0 0
  %4094 = vmatprep.subr.bf16.mxu0 0
  %4095 = vmatpush2.bf16.msra.mxu0 0
  %4096 = vmatprep.subr.bf16.mxu0 0
  %4097 = vmatpush2.bf16.msra.mxu0 0
  %4098 = vmatprep.mubr.bf16.mxu0 0
  %4099 = vmatmul.mubr.bf16.gmra.mxu0 %v4058
  %v4100 = vpop.f32.mrf.mxu0
  %v4101 = vadd.f32 0.0, %v4100
  %v4102 = vpop.f32.mrf.mxu0
  %v4103 = vpop.f32.mrf.mxu0
  %v4104 = vadd.f32 0.0, %v4103
  %v4105 = vpop.f32.mrf.mxu0
  %4106 = vmatprep.mubr.bf16.mxu0 0
  %4107 = vmatmul.mubr.bf16.gmra.mxu0 %v4061
  %v4108 = vpop.f32.mrf.mxu0
  %v4109 = vadd.f32 0.0, %v4108
  %v4110 = vpop.f32.mrf.mxu0
  %v4111 = vpop.f32.mrf.mxu0
  %v4112 = vadd.f32 0.0, %v4111
  %v4113 = vpop.f32.mrf.mxu0
  %4114 = vdwg.mxu0
  %v4115 = vadd.f32 %v4017, %v4101
  %v4116 = vadd.f32 %v4018, %v4104
  %v4117 = vadd.f32 %v4019, %v4109
  %v4118 = vadd.f32 %v4020, %v4112
  %s4119 = scalar_lea.vmem %s3825, 3 [#allocation2]
  %v4120 = vld [vmem:[%s4119] ss:$2 sm:$0xf]
  %s4121 = scalar_lea.vmem %s3825, 35 [#allocation2]
  %v4122 = vld [vmem:[%s4121] ss:$2 sm:$0xf]
  %s4123 = scalar_lea.vmem %s3825, 67 [#allocation2]
  %v4124 = vld [vmem:[%s4123] ss:$2 sm:$0xf]
  %s4125 = scalar_lea.vmem %s3825, 99 [#allocation2]
  %v4126 = vld [vmem:[%s4125] ss:$2 sm:$0xf]
  %s4127 = scalar_lea.vmem %s3825, 163 [#allocation2]
  %v4128 = vld [vmem:[%s4127] ss:$2 sm:$0xf]
  %s4129 = scalar_lea.vmem %s3825, 195 [#allocation2]
  %v4130 = vld [vmem:[%s4129] ss:$2 sm:$0xf]
  %s4131 = scalar_lea.vmem %s3825, 227 [#allocation2]
  %v4132 = vld [vmem:[%s4131] ss:$2 sm:$0xf]
  %s4133 = scalar_lea.vmem %s3825, 259 [#allocation2]
  %v4134 = vld [vmem:[%s4133] ss:$2 sm:$0xf]
  %v4143 = vcombine.low %v4120, %v4122
  %v4144 = vcombine.low %v4124, %v4126
  %v4145 = vcombine.low %v4128, %v4130
  %v4146 = vcombine.low %v4132, %v4134
  %v4151 = vpack.c.bf16 %v4144, %v4143
  %v4152 = vpack.c.bf16 %v4146, %v4145
  %s4153 = scalar_lea.vmem %s3, 44
  %v4154 = vld [vmem:[%s4153] sm:$0xf]
  %v4156 = vsel %vm2992, %v4151, 0
  %v4159 = vsel %vm2992, %v4152, 0
  %v4162 = vsel %vm3127, %v4154, 0
  %4164 = vmatprep.subr.bf16.mxu0 0
  %4165 = vmatpush1.bf16.msra.mxu0 0
  %4166 = vmatprep.subr.bf16.mxu0 0
  %4167 = vmatpush1.bf16.msra.mxu0 0
  %4168 = vmatprep.subr.bf16.mxu0 0
  %4169 = vmatpush1.bf16.msra.mxu0 0
  %4170 = vmatprep.subr.bf16.mxu0 0
  %4171 = vmatpush1.bf16.msra.mxu0 0
  %4172 = vmatprep.subr.bf16.mxu0 0
  %4173 = vmatpush1.bf16.msra.mxu0 0
  %4174 = vmatprep.subr.bf16.mxu0 0
  %4175 = vmatpush1.bf16.msra.mxu0 0
  %4176 = vmatprep.subr.bf16.mxu0 0
  %4177 = vmatpush1.bf16.msra.mxu0 0
  %4178 = vmatprep.subr.bf16.mxu0 0
  %4179 = vmatpush1.bf16.msra.mxu0 %v4162
  %4180 = vmatprep.subr.bf16.mxu0 0
  %4181 = vmatpush2.bf16.msra.mxu0 0
  %4182 = vmatprep.subr.bf16.mxu0 0
  %4183 = vmatpush2.bf16.msra.mxu0 0
  %4184 = vmatprep.subr.bf16.mxu0 0
  %4185 = vmatpush2.bf16.msra.mxu0 0
  %4186 = vmatprep.subr.bf16.mxu0 0
  %4187 = vmatpush2.bf16.msra.mxu0 0
  %4188 = vmatprep.subr.bf16.mxu0 0
  %4189 = vmatpush2.bf16.msra.mxu0 0
  %4190 = vmatprep.subr.bf16.mxu0 0
  %4191 = vmatpush2.bf16.msra.mxu0 0
  %4192 = vmatprep.subr.bf16.mxu0 0
  %4193 = vmatpush2.bf16.msra.mxu0 0
  %4194 = vmatprep.subr.bf16.mxu0 0
  %4195 = vmatpush2.bf16.msra.mxu0 0
  %4196 = vmatprep.mubr.bf16.mxu0 0
  %4197 = vmatmul.mubr.bf16.gmra.mxu0 %v4156
  %v4198 = vpop.f32.mrf.mxu0
  %v4199 = vadd.f32 0.0, %v4198
  %v4200 = vpop.f32.mrf.mxu0
  %v4201 = vpop.f32.mrf.mxu0
  %v4202 = vadd.f32 0.0, %v4201
  %v4203 = vpop.f32.mrf.mxu0
  %4204 = vmatprep.mubr.bf16.mxu0 0
  %4205 = vmatmul.mubr.bf16.gmra.mxu0 %v4159
  %v4206 = vpop.f32.mrf.mxu0
  %v4207 = vadd.f32 0.0, %v4206
  %v4208 = vpop.f32.mrf.mxu0
  %v4209 = vpop.f32.mrf.mxu0
  %v4210 = vadd.f32 0.0, %v4209
  %v4211 = vpop.f32.mrf.mxu0
  %4212 = vdwg.mxu0
  %v4213 = vadd.f32 %v4115, %v4199
  %v4214 = vadd.f32 %v4116, %v4202
  %v4215 = vadd.f32 %v4117, %v4207
  %v4216 = vadd.f32 %v4118, %v4210
  %s4217 = scalar_lea.vmem [#allocation2], 48
  %v4218 = vld [vmem:[%s4217] ss:$2 sm:$0xf]
  %s4219 = scalar_lea.vmem %s4217, 32 [#allocation2]
  %v4220 = vld [vmem:[%s4219] ss:$2 sm:$0xf]
  %s4221 = scalar_lea.vmem %s4217, 64 [#allocation2]
  %v4222 = vld [vmem:[%s4221] ss:$2 sm:$0xf]
  %s4223 = scalar_lea.vmem %s4217, 96 [#allocation2]
  %v4224 = vld [vmem:[%s4223] ss:$2 sm:$0xf]
  %s4225 = scalar_lea.vmem %s4217, 160 [#allocation2]
  %v4226 = vld [vmem:[%s4225] ss:$2 sm:$0xf]
  %s4227 = scalar_lea.vmem %s4217, 192 [#allocation2]
  %v4228 = vld [vmem:[%s4227] ss:$2 sm:$0xf]
  %s4229 = scalar_lea.vmem %s4217, 224 [#allocation2]
  %v4230 = vld [vmem:[%s4229] ss:$2 sm:$0xf]
  %s4231 = scalar_lea.vmem %s4217, 256 [#allocation2]
  %v4232 = vld [vmem:[%s4231] ss:$2 sm:$0xf]
  %v4241 = vcombine.low %v4218, %v4220
  %v4242 = vcombine.low %v4222, %v4224
  %v4243 = vcombine.low %v4226, %v4228
  %v4244 = vcombine.low %v4230, %v4232
  %v4249 = vpack.c.bf16 %v4242, %v4241
  %v4250 = vpack.c.bf16 %v4244, %v4243
  %s4251 = scalar_lea.vmem %s3, 48
  %v4252 = vld [vmem:[%s4251] sm:$0xf]
  %v4254 = vsel %vm2992, %v4249, 0
  %v4257 = vsel %vm2992, %v4250, 0
  %v4260 = vsel %vm3127, %v4252, 0
  %4262 = vmatprep.subr.bf16.mxu0 0
  %4263 = vmatpush1.bf16.msra.mxu0 0
  %4264 = vmatprep.subr.bf16.mxu0 0
  %4265 = vmatpush1.bf16.msra.mxu0 0
  %4266 = vmatprep.subr.bf16.mxu0 0
  %4267 = vmatpush1.bf16.msra.mxu0 0
  %4268 = vmatprep.subr.bf16.mxu0 0
  %4269 = vmatpush1.bf16.msra.mxu0 0
  %4270 = vmatprep.subr.bf16.mxu0 0
  %4271 = vmatpush1.bf16.msra.mxu0 0
  %4272 = vmatprep.subr.bf16.mxu0 0
  %4273 = vmatpush1.bf16.msra.mxu0 0
  %4274 = vmatprep.subr.bf16.mxu0 0
  %4275 = vmatpush1.bf16.msra.mxu0 0
  %4276 = vmatprep.subr.bf16.mxu0 0
  %4277 = vmatpush1.bf16.msra.mxu0 %v4260
  %4278 = vmatprep.subr.bf16.mxu0 0
  %4279 = vmatpush2.bf16.msra.mxu0 0
  %4280 = vmatprep.subr.bf16.mxu0 0
  %4281 = vmatpush2.bf16.msra.mxu0 0
  %4282 = vmatprep.subr.bf16.mxu0 0
  %4283 = vmatpush2.bf16.msra.mxu0 0
  %4284 = vmatprep.subr.bf16.mxu0 0
  %4285 = vmatpush2.bf16.msra.mxu0 0
  %4286 = vmatprep.subr.bf16.mxu0 0
  %4287 = vmatpush2.bf16.msra.mxu0 0
  %4288 = vmatprep.subr.bf16.mxu0 0
  %4289 = vmatpush2.bf16.msra.mxu0 0
  %4290 = vmatprep.subr.bf16.mxu0 0
  %4291 = vmatpush2.bf16.msra.mxu0 0
  %4292 = vmatprep.subr.bf16.mxu0 0
  %4293 = vmatpush2.bf16.msra.mxu0 0
  %4294 = vmatprep.mubr.bf16.mxu0 0
  %4295 = vmatmul.mubr.bf16.gmra.mxu0 %v4254
  %v4296 = vpop.f32.mrf.mxu0
  %v4297 = vadd.f32 0.0, %v4296
  %v4298 = vpop.f32.mrf.mxu0
  %v4299 = vpop.f32.mrf.mxu0
  %v4300 = vadd.f32 0.0, %v4299
  %v4301 = vpop.f32.mrf.mxu0
  %4302 = vmatprep.mubr.bf16.mxu0 0
  %4303 = vmatmul.mubr.bf16.gmra.mxu0 %v4257
  %v4304 = vpop.f32.mrf.mxu0
  %v4305 = vadd.f32 0.0, %v4304
  %v4306 = vpop.f32.mrf.mxu0
  %v4307 = vpop.f32.mrf.mxu0
  %v4308 = vadd.f32 0.0, %v4307
  %v4309 = vpop.f32.mrf.mxu0
  %4310 = vdwg.mxu0
  %v4311 = vadd.f32 %v4213, %v4297
  %v4312 = vadd.f32 %v4214, %v4300
  %v4313 = vadd.f32 %v4215, %v4305
  %v4314 = vadd.f32 %v4216, %v4308
  %s4315 = scalar_lea.vmem %s4217, 1 [#allocation2]
  %v4316 = vld [vmem:[%s4315] ss:$2 sm:$0xf]
  %s4317 = scalar_lea.vmem %s4217, 33 [#allocation2]
  %v4318 = vld [vmem:[%s4317] ss:$2 sm:$0xf]
  %s4319 = scalar_lea.vmem %s4217, 65 [#allocation2]
  %v4320 = vld [vmem:[%s4319] ss:$2 sm:$0xf]
  %s4321 = scalar_lea.vmem %s4217, 97 [#allocation2]
  %v4322 = vld [vmem:[%s4321] ss:$2 sm:$0xf]
  %s4323 = scalar_lea.vmem %s4217, 161 [#allocation2]
  %v4324 = vld [vmem:[%s4323] ss:$2 sm:$0xf]
  %s4325 = scalar_lea.vmem %s4217, 193 [#allocation2]
  %v4326 = vld [vmem:[%s4325] ss:$2 sm:$0xf]
  %s4327 = scalar_lea.vmem %s4217, 225 [#allocation2]
  %v4328 = vld [vmem:[%s4327] ss:$2 sm:$0xf]
  %s4329 = scalar_lea.vmem %s4217, 257 [#allocation2]
  %v4330 = vld [vmem:[%s4329] ss:$2 sm:$0xf]
  %v4339 = vcombine.low %v4316, %v4318
  %v4340 = vcombine.low %v4320, %v4322
  %v4341 = vcombine.low %v4324, %v4326
  %v4342 = vcombine.low %v4328, %v4330
  %v4347 = vpack.c.bf16 %v4340, %v4339
  %v4348 = vpack.c.bf16 %v4342, %v4341
  %s4349 = scalar_lea.vmem %s3, 52
  %v4350 = vld [vmem:[%s4349] sm:$0xf]
  %v4352 = vsel %vm2992, %v4347, 0
  %v4355 = vsel %vm2992, %v4348, 0
  %v4358 = vsel %vm3127, %v4350, 0
  %4360 = vmatprep.subr.bf16.mxu0 0
  %4361 = vmatpush1.bf16.msra.mxu0 0
  %4362 = vmatprep.subr.bf16.mxu0 0
  %4363 = vmatpush1.bf16.msra.mxu0 0
  %4364 = vmatprep.subr.bf16.mxu0 0
  %4365 = vmatpush1.bf16.msra.mxu0 0
  %4366 = vmatprep.subr.bf16.mxu0 0
  %4367 = vmatpush1.bf16.msra.mxu0 0
  %4368 = vmatprep.subr.bf16.mxu0 0
  %4369 = vmatpush1.bf16.msra.mxu0 0
  %4370 = vmatprep.subr.bf16.mxu0 0
  %4371 = vmatpush1.bf16.msra.mxu0 0
  %4372 = vmatprep.subr.bf16.mxu0 0
  %4373 = vmatpush1.bf16.msra.mxu0 0
  %4374 = vmatprep.subr.bf16.mxu0 0
  %4375 = vmatpush1.bf16.msra.mxu0 %v4358
  %4376 = vmatprep.subr.bf16.mxu0 0
  %4377 = vmatpush2.bf16.msra.mxu0 0
  %4378 = vmatprep.subr.bf16.mxu0 0
  %4379 = vmatpush2.bf16.msra.mxu0 0
  %4380 = vmatprep.subr.bf16.mxu0 0
  %4381 = vmatpush2.bf16.msra.mxu0 0
  %4382 = vmatprep.subr.bf16.mxu0 0
  %4383 = vmatpush2.bf16.msra.mxu0 0
  %4384 = vmatprep.subr.bf16.mxu0 0
  %4385 = vmatpush2.bf16.msra.mxu0 0
  %4386 = vmatprep.subr.bf16.mxu0 0
  %4387 = vmatpush2.bf16.msra.mxu0 0
  %4388 = vmatprep.subr.bf16.mxu0 0
  %4389 = vmatpush2.bf16.msra.mxu0 0
  %4390 = vmatprep.subr.bf16.mxu0 0
  %4391 = vmatpush2.bf16.msra.mxu0 0
  %4392 = vmatprep.mubr.bf16.mxu0 0
  %4393 = vmatmul.mubr.bf16.gmra.mxu0 %v4352
  %v4394 = vpop.f32.mrf.mxu0
  %v4395 = vadd.f32 0.0, %v4394
  %v4396 = vpop.f32.mrf.mxu0
  %v4397 = vpop.f32.mrf.mxu0
  %v4398 = vadd.f32 0.0, %v4397
  %v4399 = vpop.f32.mrf.mxu0
  %4400 = vmatprep.mubr.bf16.mxu0 0
  %4401 = vmatmul.mubr.bf16.gmra.mxu0 %v4355
  %v4402 = vpop.f32.mrf.mxu0
  %v4403 = vadd.f32 0.0, %v4402
  %v4404 = vpop.f32.mrf.mxu0
  %v4405 = vpop.f32.mrf.mxu0
  %v4406 = vadd.f32 0.0, %v4405
  %v4407 = vpop.f32.mrf.mxu0
  %4408 = vdwg.mxu0
  %v4409 = vadd.f32 %v4311, %v4395
  %v4410 = vadd.f32 %v4312, %v4398
  %v4411 = vadd.f32 %v4313, %v4403
  %v4412 = vadd.f32 %v4314, %v4406
  %s4413 = scalar_lea.vmem %s4217, 2 [#allocation2]
  %v4414 = vld [vmem:[%s4413] ss:$2 sm:$0xf]
  %s4415 = scalar_lea.vmem %s4217, 34 [#allocation2]
  %v4416 = vld [vmem:[%s4415] ss:$2 sm:$0xf]
  %s4417 = scalar_lea.vmem %s4217, 66 [#allocation2]
  %v4418 = vld [vmem:[%s4417] ss:$2 sm:$0xf]
  %s4419 = scalar_lea.vmem %s4217, 98 [#allocation2]
  %v4420 = vld [vmem:[%s4419] ss:$2 sm:$0xf]
  %s4421 = scalar_lea.vmem %s4217, 162 [#allocation2]
  %v4422 = vld [vmem:[%s4421] ss:$2 sm:$0xf]
  %s4423 = scalar_lea.vmem %s4217, 194 [#allocation2]
  %v4424 = vld [vmem:[%s4423] ss:$2 sm:$0xf]
  %s4425 = scalar_lea.vmem %s4217, 226 [#allocation2]
  %v4426 = vld [vmem:[%s4425] ss:$2 sm:$0xf]
  %s4427 = scalar_lea.vmem %s4217, 258 [#allocation2]
  %v4428 = vld [vmem:[%s4427] ss:$2 sm:$0xf]
  %v4437 = vcombine.low %v4414, %v4416
  %v4438 = vcombine.low %v4418, %v4420
  %v4439 = vcombine.low %v4422, %v4424
  %v4440 = vcombine.low %v4426, %v4428
  %v4445 = vpack.c.bf16 %v4438, %v4437
  %v4446 = vpack.c.bf16 %v4440, %v4439
  %s4447 = scalar_lea.vmem %s3, 56
  %v4448 = vld [vmem:[%s4447] sm:$0xf]
  %v4450 = vsel %vm2992, %v4445, 0
  %v4453 = vsel %vm2992, %v4446, 0
  %v4456 = vsel %vm3127, %v4448, 0
  %4458 = vmatprep.subr.bf16.mxu0 0
  %4459 = vmatpush1.bf16.msra.mxu0 0
  %4460 = vmatprep.subr.bf16.mxu0 0
  %4461 = vmatpush1.bf16.msra.mxu0 0
  %4462 = vmatprep.subr.bf16.mxu0 0
  %4463 = vmatpush1.bf16.msra.mxu0 0
  %4464 = vmatprep.subr.bf16.mxu0 0
  %4465 = vmatpush1.bf16.msra.mxu0 0
  %4466 = vmatprep.subr.bf16.mxu0 0
  %4467 = vmatpush1.bf16.msra.mxu0 0
  %4468 = vmatprep.subr.bf16.mxu0 0
  %4469 = vmatpush1.bf16.msra.mxu0 0
  %4470 = vmatprep.subr.bf16.mxu0 0
  %4471 = vmatpush1.bf16.msra.mxu0 0
  %4472 = vmatprep.subr.bf16.mxu0 0
  %4473 = vmatpush1.bf16.msra.mxu0 %v4456
  %4474 = vmatprep.subr.bf16.mxu0 0
  %4475 = vmatpush2.bf16.msra.mxu0 0
  %4476 = vmatprep.subr.bf16.mxu0 0
  %4477 = vmatpush2.bf16.msra.mxu0 0
  %4478 = vmatprep.subr.bf16.mxu0 0
  %4479 = vmatpush2.bf16.msra.mxu0 0
  %4480 = vmatprep.subr.bf16.mxu0 0
  %4481 = vmatpush2.bf16.msra.mxu0 0
  %4482 = vmatprep.subr.bf16.mxu0 0
  %4483 = vmatpush2.bf16.msra.mxu0 0
  %4484 = vmatprep.subr.bf16.mxu0 0
  %4485 = vmatpush2.bf16.msra.mxu0 0
  %4486 = vmatprep.subr.bf16.mxu0 0
  %4487 = vmatpush2.bf16.msra.mxu0 0
  %4488 = vmatprep.subr.bf16.mxu0 0
  %4489 = vmatpush2.bf16.msra.mxu0 0
  %4490 = vmatprep.mubr.bf16.mxu0 0
  %4491 = vmatmul.mubr.bf16.gmra.mxu0 %v4450
  %v4492 = vpop.f32.mrf.mxu0
  %v4493 = vadd.f32 0.0, %v4492
  %v4494 = vpop.f32.mrf.mxu0
  %v4495 = vpop.f32.mrf.mxu0
  %v4496 = vadd.f32 0.0, %v4495
  %v4497 = vpop.f32.mrf.mxu0
  %4498 = vmatprep.mubr.bf16.mxu0 0
  %4499 = vmatmul.mubr.bf16.gmra.mxu0 %v4453
  %v4500 = vpop.f32.mrf.mxu0
  %v4501 = vadd.f32 0.0, %v4500
  %v4502 = vpop.f32.mrf.mxu0
  %v4503 = vpop.f32.mrf.mxu0
  %v4504 = vadd.f32 0.0, %v4503
  %v4505 = vpop.f32.mrf.mxu0
  %4506 = vdwg.mxu0
  %v4507 = vadd.f32 %v4409, %v4493
  %v4508 = vadd.f32 %v4410, %v4496
  %v4509 = vadd.f32 %v4411, %v4501
  %v4510 = vadd.f32 %v4412, %v4504
  %s4511 = scalar_lea.vmem %s4217, 3 [#allocation2]
  %v4512 = vld [vmem:[%s4511] ss:$2 sm:$0xf]
  %s4513 = scalar_lea.vmem %s4217, 35 [#allocation2]
  %v4514 = vld [vmem:[%s4513] ss:$2 sm:$0xf]
  %s4515 = scalar_lea.vmem %s4217, 67 [#allocation2]
  %v4516 = vld [vmem:[%s4515] ss:$2 sm:$0xf]
  %s4517 = scalar_lea.vmem %s4217, 99 [#allocation2]
  %v4518 = vld [vmem:[%s4517] ss:$2 sm:$0xf]
  %s4519 = scalar_lea.vmem %s4217, 163 [#allocation2]
  %v4520 = vld [vmem:[%s4519] ss:$2 sm:$0xf]
  %s4521 = scalar_lea.vmem %s4217, 195 [#allocation2]
  %v4522 = vld [vmem:[%s4521] ss:$2 sm:$0xf]
  %s4523 = scalar_lea.vmem %s4217, 227 [#allocation2]
  %v4524 = vld [vmem:[%s4523] ss:$2 sm:$0xf]
  %s4525 = scalar_lea.vmem %s4217, 259 [#allocation2]
  %v4526 = vld [vmem:[%s4525] ss:$2 sm:$0xf]
  %v4535 = vcombine.low %v4512, %v4514
  %v4536 = vcombine.low %v4516, %v4518
  %v4537 = vcombine.low %v4520, %v4522
  %v4538 = vcombine.low %v4524, %v4526
  %v4543 = vpack.c.bf16 %v4536, %v4535
  %v4544 = vpack.c.bf16 %v4538, %v4537
  %s4545 = scalar_lea.vmem %s3, 60
  %v4546 = vld [vmem:[%s4545] sm:$0xf]
  %v4548 = vsel %vm2992, %v4543, 0
  %v4551 = vsel %vm2992, %v4544, 0
  %v4554 = vsel %vm3127, %v4546, 0
  %4556 = vmatprep.subr.bf16.mxu0 0
  %4557 = vmatpush1.bf16.msra.mxu0 0
  %4558 = vmatprep.subr.bf16.mxu0 0
  %4559 = vmatpush1.bf16.msra.mxu0 0
  %4560 = vmatprep.subr.bf16.mxu0 0
  %4561 = vmatpush1.bf16.msra.mxu0 0
  %4562 = vmatprep.subr.bf16.mxu0 0
  %4563 = vmatpush1.bf16.msra.mxu0 0
  %4564 = vmatprep.subr.bf16.mxu0 0
  %4565 = vmatpush1.bf16.msra.mxu0 0
  %4566 = vmatprep.subr.bf16.mxu0 0
  %4567 = vmatpush1.bf16.msra.mxu0 0
  %4568 = vmatprep.subr.bf16.mxu0 0
  %4569 = vmatpush1.bf16.msra.mxu0 0
  %4570 = vmatprep.subr.bf16.mxu0 0
  %4571 = vmatpush1.bf16.msra.mxu0 %v4554
  %4572 = vmatprep.subr.bf16.mxu0 0
  %4573 = vmatpush2.bf16.msra.mxu0 0
  %4574 = vmatprep.subr.bf16.mxu0 0
  %4575 = vmatpush2.bf16.msra.mxu0 0
  %4576 = vmatprep.subr.bf16.mxu0 0
  %4577 = vmatpush2.bf16.msra.mxu0 0
  %4578 = vmatprep.subr.bf16.mxu0 0
  %4579 = vmatpush2.bf16.msra.mxu0 0
  %4580 = vmatprep.subr.bf16.mxu0 0
  %4581 = vmatpush2.bf16.msra.mxu0 0
  %4582 = vmatprep.subr.bf16.mxu0 0
  %4583 = vmatpush2.bf16.msra.mxu0 0
  %4584 = vmatprep.subr.bf16.mxu0 0
  %4585 = vmatpush2.bf16.msra.mxu0 0
  %4586 = vmatprep.subr.bf16.mxu0 0
  %4587 = vmatpush2.bf16.msra.mxu0 0
  %4588 = vmatprep.mubr.bf16.mxu0 0
  %4589 = vmatmul.mubr.bf16.gmra.mxu0 %v4548
  %v4590 = vpop.f32.mrf.mxu0
  %v4591 = vadd.f32 0.0, %v4590
  %v4592 = vpop.f32.mrf.mxu0
  %v4593 = vpop.f32.mrf.mxu0
  %v4594 = vadd.f32 0.0, %v4593
  %v4595 = vpop.f32.mrf.mxu0
  %4596 = vmatprep.mubr.bf16.mxu0 0
  %4597 = vmatmul.mubr.bf16.gmra.mxu0 %v4551
  %v4598 = vpop.f32.mrf.mxu0
  %v4599 = vadd.f32 0.0, %v4598
  %v4600 = vpop.f32.mrf.mxu0
  %v4601 = vpop.f32.mrf.mxu0
  %v4602 = vadd.f32 0.0, %v4601
  %v4603 = vpop.f32.mrf.mxu0
  %4604 = vdwg.mxu0
  %v4605 = vadd.f32 %v4507, %v4591
  %v4606 = vadd.f32 %v4508, %v4594
  %v4607 = vadd.f32 %v4509, %v4599
  %v4608 = vadd.f32 %v4510, %v4602
  %vm4609 = vcmask 130048
  %v4610 = vsel %vm4609, %v4605, 0.0
  %v4611 = vsel %vm4609, %v4606, 0.0
  %v4612 = vadd.f32 %v4610, %v4611
  %v4613 = vsel %vm4609, %v4607, 0.0
  %v4614 = vadd.f32 %v4612, %v4613
  %v4615 = vsel %vm4609, %v4608, 0.0
  %v4616 = vadd.f32 %v4614, %v4615
  %v4617 = vrot.slane %v4616, 4
  %v4618 = vadd.f32 %v4616, %v4617
  %v4619 = vrot.slane %v4618, 2
  %v4620 = vadd.f32 %v4618, %v4619
  %v4621 = vrot.slane %v4620, 1
  %v4622 = vadd.f32 %v4620, %v4621
  %v4623 = vrcp.pop 32.0
  %v4624 = vmul.f32 %v4622, %v4623
  %v4625 = vmul.f32 %v4605, %v4605
  %v4626 = vmul.f32 %v4606, %v4606
  %v4627 = vmul.f32 %v4607, %v4607
  %v4628 = vmul.f32 %v4608, %v4608
  %v4629 = vsel %vm4609, %v4625, 0.0
  %v4630 = vsel %vm4609, %v4626, 0.0
  %v4631 = vadd.f32 %v4629, %v4630
  %v4632 = vsel %vm4609, %v4627, 0.0
  %v4633 = vadd.f32 %v4631, %v4632
  %v4634 = vsel %vm4609, %v4628, 0.0
  %v4635 = vadd.f32 %v4633, %v4634
  %v4636 = vrot.slane %v4635, 4
  %v4637 = vadd.f32 %v4635, %v4636
  %v4638 = vrot.slane %v4637, 2
  %v4639 = vadd.f32 %v4637, %v4638
  %v4640 = vrot.slane %v4639, 1
  %v4641 = vadd.f32 %v4639, %v4640
  %v4642 = vmul.f32 %v4641, %v4623
  %v4643 = vmul.f32 %v4624, %v4624
  %v4644 = vsub.f32 %v4642, %v4643
  %v4645 = vld [vmem:[%s4] sm:$0x1]
  %v4646 = vadd.f32 %v4644, 1e-05
  %v4647 = vrsqrt.pop %v4646
  %v4648 = vmul.f32 %v4645, %v4647
  %v4650 = vlaneseq
  %v4651 = vshrl.u32 %v4650, 7
  %v4652 = vsub.s32 0, %v4651
  %v4653 = vrot.slane %v4648, %v4652
  %v4655 = vmul.f32 %v4605, %v4653
  %v4656 = vmul.f32 %v4606, %v4653
  %v4657 = vmul.f32 %v4607, %v4653
  %v4658 = vmul.f32 %v4608, %v4653
  %v4659 = vld [vmem:[%s5] sm:$0x1]
  %v4660 = vmul.f32 %v4624, %v4648
  %v4661 = vsub.f32 %v4659, %v4660
  %v4663 = vlaneseq
  %v4664 = vshrl.u32 %v4663, 7
  %v4665 = vsub.s32 0, %v4664
  %v4666 = vrot.slane %v4661, %v4665
  %v4668 = vadd.f32 %v4655, %v4666
  %v4669 = vadd.f32 %v4656, %v4666
  %v4670 = vadd.f32 %v4657, %v4666
  %v4671 = vadd.f32 %v4658, %v4666
  %vm4672 = vcmp.ge.f32.partialorder %v4668, 0.0
  %vm4673 = vcmp.ge.f32.partialorder %v4669, 0.0
  %vm4674 = vcmp.ge.f32.partialorder %v4670, 0.0
  %vm4675 = vcmp.ge.f32.partialorder %v4671, 0.0
  %v4676 = vmul.f32 %v4668, 0.2
  %v4677 = vmul.f32 %v4669, 0.2
  %v4678 = vmul.f32 %v4670, 0.2
  %v4679 = vmul.f32 %v4671, 0.2
  %v4680 = vsel %vm4672, %v4668, %v4676
  %v4681 = vsel %vm4673, %v4669, %v4677
  %v4682 = vsel %vm4674, %v4670, %v4678
  %v4683 = vsel %vm4675, %v4671, %v4679
  %vm4684 = vcmask 128000
  %4685 = vst.msk [vmem:[#allocation3] sm:$0x3f] %vm4684, 0.0
  %4686 = vst.msk [vmem:[#allocation3 + $0x8] sm:$0x3f] %vm4684, 0.0
  %4687 = vst.msk [vmem:[#allocation3 + $0x10] sm:$0x3f] %vm4684, 0.0
  %4688 = vst.msk [vmem:[#allocation3 + $0x18] sm:$0x3f] %vm4684, 0.0
  %4689 = vst.msk [vmem:[#allocation3 + $0x20] sm:$0x3f] %vm4684, 0.0
  %4690 = vst.msk [vmem:[#allocation3 + $0x28] sm:$0x3f] %vm4684, 0.0
  %4691 = vst.msk [vmem:[#allocation3 + $0x30] sm:$0x3f] %vm4684, 0.0
  %4692 = vst.msk [vmem:[#allocation3 + $0x38] sm:$0x3f] %vm4684, 0.0
  %4693 = vst.msk [vmem:[#allocation3 + $0x40] sm:$0x3f] %vm4684, 0.0
  %4694 = vst.msk [vmem:[#allocation3 + $0x48] sm:$0x3f] %vm4684, 0.0
  %4695 = vst.msk [vmem:[#allocation3 + $0x50] sm:$0x3f] %vm4684, 0.0
  %4696 = vst.msk [vmem:[#allocation3 + $0x58] sm:$0x3f] %vm4684, 0.0
  %v4701 = vcombine.high %v4680, %v4680
  %v4702 = vcombine.high %v4681, %v4681
  %v4703 = vcombine.high %v4682, %v4682
  %v4704 = vcombine.high %v4683, %v4683
  %s4709 = scalar_lea.vmem [#allocation3], 8
  %vm4710 = vcmask 125952
  %4711 = vst.msk [vmem:[%s4709 + $0x1] sm:$0xf] %vm4710, %v4680
  %4712 = vst.msk [vmem:[%s4709 + $0x9] sm:$0xf] %vm4710, %v4701
  %4713 = vst.msk [vmem:[%s4709 + $0x11] sm:$0xf] %vm4710, %v4681
  %4714 = vst.msk [vmem:[%s4709 + $0x19] sm:$0xf] %vm4710, %v4702
  %4715 = vst.msk [vmem:[%s4709 + $0x31] sm:$0xf] %vm4710, %v4682
  %4716 = vst.msk [vmem:[%s4709 + $0x39] sm:$0xf] %vm4710, %v4703
  %4717 = vst.msk [vmem:[%s4709 + $0x41] sm:$0xf] %vm4710, %v4683
  %4718 = vst.msk [vmem:[%s4709 + $0x49] sm:$0xf] %vm4710, %v4704
  %v4719 = vld [vmem:[#allocation3] ss:$2 sm:$0x3]
  %s4720 = scalar_lea.vmem [#allocation3], 16
  %v4721 = vld [vmem:[%s4720] ss:$2 sm:$0x3]
  %s4722 = scalar_lea.vmem [#allocation3], 48
  %v4723 = vld [vmem:[%s4722] ss:$2 sm:$0x3]
  %s4724 = scalar_lea.vmem [#allocation3], 64
  %v4725 = vld [vmem:[%s4724] ss:$2 sm:$0x3]
  %v4730 = vcombine.low %v4719, %v4721
  %v4731 = vcombine.low %v4723, %v4725
  %v4733 = vunpack.c.l.s4 1983009808
  %v4734 = vunpack.c.0.s8 %v4733
  %v4735 = vlaneseq
  %v4736 = vshrl.u32 %v4735, 7
  %v4737 = vsub.s32 %v4734, %v4736
  %v4738 = vrot.slane %v4730, %v4737
  %v4740 = vunpack.c.l.s4 1983009808
  %v4741 = vunpack.c.0.s8 %v4740
  %v4742 = vlaneseq
  %v4743 = vshrl.u32 %v4742, 7
  %v4744 = vsub.s32 %v4741, %v4743
  %v4745 = vrot.slane %v4731, %v4744
  %v4746 = vcombine.low %v4738, %v4745
  %v4748 = vpack.c.bf16 %v4746, %v4746
  %v4749 = vld [vmem:[%s6] sm:$0xf]
  %v4750 = vld [vmem:[%s6 + $0x4] sm:$0xf]
  %s4751 = scalar_lea.vmem [#allocation3], 1
  %v4752 = vld [vmem:[%s4751] ss:$2 sm:$0x3]
  %s4753 = scalar_lea.vmem [#allocation3], 17
  %v4754 = vld [vmem:[%s4753] ss:$2 sm:$0x3]
  %s4755 = scalar_lea.vmem [#allocation3], 49
  %v4756 = vld [vmem:[%s4755] ss:$2 sm:$0x3]
  %s4757 = scalar_lea.vmem [#allocation3], 65
  %v4758 = vld [vmem:[%s4757] ss:$2 sm:$0x3]
  %v4763 = vcombine.low %v4752, %v4754
  %v4764 = vcombine.low %v4756, %v4758
  %v4766 = vunpack.c.l.s4 1983009808
  %v4767 = vunpack.c.0.s8 %v4766
  %v4768 = vlaneseq
  %v4769 = vshrl.u32 %v4768, 7
  %v4770 = vsub.s32 %v4767, %v4769
  %v4771 = vrot.slane %v4763, %v4770
  %v4773 = vunpack.c.l.s4 1983009808
  %v4774 = vunpack.c.0.s8 %v4773
  %v4775 = vlaneseq
  %v4776 = vshrl.u32 %v4775, 7
  %v4777 = vsub.s32 %v4774, %v4776
  %v4778 = vrot.slane %v4764, %v4777
  %v4779 = vcombine.low %v4771, %v4778
  %v4781 = vpack.c.bf16 %v4779, %v4779
  %s4782 = scalar_lea.vmem %s6, 8
  %v4783 = vld [vmem:[%s4782] sm:$0xf]
  %v4784 = vld [vmem:[%s4782 + $0x4] sm:$0xf]
  %v4787 = vunpack.c.l.b16 %v4783
  %v4788 = vunpack.c.l.b16 %v4784
  %v4789 = vpack.c.b16 %v4788, %v4787
  %v4792 = vsel %vm4609, %v4781, 0
  %4794 = vmatprep.subr.bf16.mxu0 0
  %4795 = vmatpush1.bf16.msra.mxu0 0
  %4796 = vmatprep.subr.bf16.mxu0 0
  %4797 = vmatpush1.bf16.msra.mxu0 0
  %4798 = vmatprep.subr.bf16.mxu0 0
  %4799 = vmatpush1.bf16.msra.mxu0 0
  %4800 = vmatprep.subr.bf16.mxu0 0
  %4801 = vmatpush1.bf16.msra.mxu0 0
  %4802 = vmatprep.subr.bf16.mxu0 0
  %4803 = vmatpush1.bf16.msra.mxu0 0
  %4804 = vmatprep.subr.bf16.mxu0 0
  %4805 = vmatpush1.bf16.msra.mxu0 0
  %4806 = vmatprep.subr.bf16.mxu0 0
  %4807 = vmatpush1.bf16.msra.mxu0 0
  %4808 = vmatprep.subr.bf16.mxu0 0
  %4809 = vmatpush1.bf16.msra.mxu0 %v4789
  %4810 = vmatprep.subr.bf16.mxu0 0
  %4811 = vmatpush2.bf16.msra.mxu0 0
  %4812 = vmatprep.subr.bf16.mxu0 0
  %4813 = vmatpush2.bf16.msra.mxu0 0
  %4814 = vmatprep.subr.bf16.mxu0 0
  %4815 = vmatpush2.bf16.msra.mxu0 0
  %4816 = vmatprep.subr.bf16.mxu0 0
  %4817 = vmatpush2.bf16.msra.mxu0 0
  %4818 = vmatprep.subr.bf16.mxu0 0
  %4819 = vmatpush2.bf16.msra.mxu0 0
  %4820 = vmatprep.subr.bf16.mxu0 0
  %4821 = vmatpush2.bf16.msra.mxu0 0
  %4822 = vmatprep.subr.bf16.mxu0 0
  %4823 = vmatpush2.bf16.msra.mxu0 0
  %4824 = vmatprep.subr.bf16.mxu0 0
  %4825 = vmatpush2.bf16.msra.mxu0 0
  %4826 = vmatprep.mubr.bf16.mxu0 0
  %4827 = vmatmul.mubr.bf16.gmra.mxu0 %v4792
  %v4828 = vpop.f32.mrf.mxu0
  %v4829 = vadd.f32 0.0, %v4828
  %v4830 = vpop.f32.mrf.mxu0
  %v4831 = vpop.f32.mrf.mxu0
  %v4832 = vpop.f32.mrf.mxu0
  %4833 = vdwg.mxu0
  %v4836 = vunpack.c.l.b16 %v4749
  %v4837 = vunpack.c.l.b16 %v4750
  %v4838 = vpack.c.b16 %v4837, %v4836
  %v4841 = vsel %vm4609, %v4748, 0
  %4843 = vmatprep.subr.bf16.mxu0 0
  %4844 = vmatpush1.bf16.msra.mxu0 0
  %4845 = vmatprep.subr.bf16.mxu0 0
  %4846 = vmatpush1.bf16.msra.mxu0 0
  %4847 = vmatprep.subr.bf16.mxu0 0
  %4848 = vmatpush1.bf16.msra.mxu0 0
  %4849 = vmatprep.subr.bf16.mxu0 0
  %4850 = vmatpush1.bf16.msra.mxu0 0
  %4851 = vmatprep.subr.bf16.mxu0 0
  %4852 = vmatpush1.bf16.msra.mxu0 0
  %4853 = vmatprep.subr.bf16.mxu0 0
  %4854 = vmatpush1.bf16.msra.mxu0 0
  %4855 = vmatprep.subr.bf16.mxu0 0
  %4856 = vmatpush1.bf16.msra.mxu0 0
  %4857 = vmatprep.subr.bf16.mxu0 0
  %4858 = vmatpush1.bf16.msra.mxu0 %v4838
  %4859 = vmatprep.subr.bf16.mxu0 0
  %4860 = vmatpush2.bf16.msra.mxu0 0
  %4861 = vmatprep.subr.bf16.mxu0 0
  %4862 = vmatpush2.bf16.msra.mxu0 0
  %4863 = vmatprep.subr.bf16.mxu0 0
  %4864 = vmatpush2.bf16.msra.mxu0 0
  %4865 = vmatprep.subr.bf16.mxu0 0
  %4866 = vmatpush2.bf16.msra.mxu0 0
  %4867 = vmatprep.subr.bf16.mxu0 0
  %4868 = vmatpush2.bf16.msra.mxu0 0
  %4869 = vmatprep.subr.bf16.mxu0 0
  %4870 = vmatpush2.bf16.msra.mxu0 0
  %4871 = vmatprep.subr.bf16.mxu0 0
  %4872 = vmatpush2.bf16.msra.mxu0 0
  %4873 = vmatprep.subr.bf16.mxu0 0
  %4874 = vmatpush2.bf16.msra.mxu0 0
  %4875 = vmatprep.mubr.bf16.mxu0 0
  %4876 = vmatmul.mubr.bf16.gmra.mxu0 %v4841
  %v4877 = vpop.f32.mrf.mxu0
  %v4878 = vadd.f32 %v4829, %v4877
  %v4879 = vpop.f32.mrf.mxu0
  %v4880 = vpop.f32.mrf.mxu0
  %v4881 = vpop.f32.mrf.mxu0
  %4882 = vdwg.mxu0
  %s4883 = scalar_lea.vmem [#allocation3], 2
  %v4884 = vld [vmem:[%s4883] ss:$2 sm:$0x3]
  %s4885 = scalar_lea.vmem [#allocation3], 18
  %v4886 = vld [vmem:[%s4885] ss:$2 sm:$0x3]
  %s4887 = scalar_lea.vmem [#allocation3], 50
  %v4888 = vld [vmem:[%s4887] ss:$2 sm:$0x3]
  %s4889 = scalar_lea.vmem [#allocation3], 66
  %v4890 = vld [vmem:[%s4889] ss:$2 sm:$0x3]
  %v4895 = vcombine.low %v4884, %v4886
  %v4896 = vcombine.low %v4888, %v4890
  %v4898 = vunpack.c.l.s4 1983009808
  %v4899 = vunpack.c.0.s8 %v4898
  %v4900 = vlaneseq
  %v4901 = vshrl.u32 %v4900, 7
  %v4902 = vsub.s32 %v4899, %v4901
  %v4903 = vrot.slane %v4895, %v4902
  %v4905 = vunpack.c.l.s4 1983009808
  %v4906 = vunpack.c.0.s8 %v4905
  %v4907 = vlaneseq
  %v4908 = vshrl.u32 %v4907, 7
  %v4909 = vsub.s32 %v4906, %v4908
  %v4910 = vrot.slane %v4896, %v4909
  %v4911 = vcombine.low %v4903, %v4910
  %v4913 = vpack.c.bf16 %v4911, %v4911
  %s4914 = scalar_lea.vmem %s6, 16
  %v4915 = vld [vmem:[%s4914] sm:$0xf]
  %v4916 = vld [vmem:[%s4914 + $0x4] sm:$0xf]
  %v4919 = vunpack.c.l.b16 %v4915
  %v4920 = vunpack.c.l.b16 %v4916
  %v4921 = vpack.c.b16 %v4920, %v4919
  %v4924 = vsel %vm4609, %v4913, 0
  %4926 = vmatprep.subr.bf16.mxu0 0
  %4927 = vmatpush1.bf16.msra.mxu0 0
  %4928 = vmatprep.subr.bf16.mxu0 0
  %4929 = vmatpush1.bf16.msra.mxu0 0
  %4930 = vmatprep.subr.bf16.mxu0 0
  %4931 = vmatpush1.bf16.msra.mxu0 0
  %4932 = vmatprep.subr.bf16.mxu0 0
  %4933 = vmatpush1.bf16.msra.mxu0 0
  %4934 = vmatprep.subr.bf16.mxu0 0
  %4935 = vmatpush1.bf16.msra.mxu0 0
  %4936 = vmatprep.subr.bf16.mxu0 0
  %4937 = vmatpush1.bf16.msra.mxu0 0
  %4938 = vmatprep.subr.bf16.mxu0 0
  %4939 = vmatpush1.bf16.msra.mxu0 0
  %4940 = vmatprep.subr.bf16.mxu0 0
  %4941 = vmatpush1.bf16.msra.mxu0 %v4921
  %4942 = vmatprep.subr.bf16.mxu0 0
  %4943 = vmatpush2.bf16.msra.mxu0 0
  %4944 = vmatprep.subr.bf16.mxu0 0
  %4945 = vmatpush2.bf16.msra.mxu0 0
  %4946 = vmatprep.subr.bf16.mxu0 0
  %4947 = vmatpush2.bf16.msra.mxu0 0
  %4948 = vmatprep.subr.bf16.mxu0 0
  %4949 = vmatpush2.bf16.msra.mxu0 0
  %4950 = vmatprep.subr.bf16.mxu0 0
  %4951 = vmatpush2.bf16.msra.mxu0 0
  %4952 = vmatprep.subr.bf16.mxu0 0
  %4953 = vmatpush2.bf16.msra.mxu0 0
  %4954 = vmatprep.subr.bf16.mxu0 0
  %4955 = vmatpush2.bf16.msra.mxu0 0
  %4956 = vmatprep.subr.bf16.mxu0 0
  %4957 = vmatpush2.bf16.msra.mxu0 0
  %4958 = vmatprep.mubr.bf16.mxu0 0
  %4959 = vmatmul.mubr.bf16.gmra.mxu0 %v4924
  %v4960 = vpop.f32.mrf.mxu0
  %v4961 = vadd.f32 0.0, %v4960
  %v4962 = vpop.f32.mrf.mxu0
  %v4963 = vpop.f32.mrf.mxu0
  %v4964 = vpop.f32.mrf.mxu0
  %4965 = vdwg.mxu0
  %v4966 = vadd.f32 %v4878, %v4961
  %s4967 = scalar_lea.vmem [#allocation3], 3
  %v4968 = vld [vmem:[%s4967] ss:$2 sm:$0x3]
  %s4969 = scalar_lea.vmem [#allocation3], 19
  %v4970 = vld [vmem:[%s4969] ss:$2 sm:$0x3]
  %s4971 = scalar_lea.vmem [#allocation3], 51
  %v4972 = vld [vmem:[%s4971] ss:$2 sm:$0x3]
  %s4973 = scalar_lea.vmem [#allocation3], 67
  %v4974 = vld [vmem:[%s4973] ss:$2 sm:$0x3]
  %v4979 = vcombine.low %v4968, %v4970
  %v4980 = vcombine.low %v4972, %v4974
  %v4982 = vunpack.c.l.s4 1983009808
  %v4983 = vunpack.c.0.s8 %v4982
  %v4984 = vlaneseq
  %v4985 = vshrl.u32 %v4984, 7
  %v4986 = vsub.s32 %v4983, %v4985
  %v4987 = vrot.slane %v4979, %v4986
  %v4989 = vunpack.c.l.s4 1983009808
  %v4990 = vunpack.c.0.s8 %v4989
  %v4991 = vlaneseq
  %v4992 = vshrl.u32 %v4991, 7
  %v4993 = vsub.s32 %v4990, %v4992
  %v4994 = vrot.slane %v4980, %v4993
  %v4995 = vcombine.low %v4987, %v4994
  %v4997 = vpack.c.bf16 %v4995, %v4995
  %s4998 = scalar_lea.vmem %s6, 24
  %v4999 = vld [vmem:[%s4998] sm:$0xf]
  %v5000 = vld [vmem:[%s4998 + $0x4] sm:$0xf]
  %v5003 = vunpack.c.l.b16 %v4999
  %v5004 = vunpack.c.l.b16 %v5000
  %v5005 = vpack.c.b16 %v5004, %v5003
  %v5008 = vsel %vm4609, %v4997, 0
  %5010 = vmatprep.subr.bf16.mxu0 0
  %5011 = vmatpush1.bf16.msra.mxu0 0
  %5012 = vmatprep.subr.bf16.mxu0 0
  %5013 = vmatpush1.bf16.msra.mxu0 0
  %5014 = vmatprep.subr.bf16.mxu0 0
  %5015 = vmatpush1.bf16.msra.mxu0 0
  %5016 = vmatprep.subr.bf16.mxu0 0
  %5017 = vmatpush1.bf16.msra.mxu0 0
  %5018 = vmatprep.subr.bf16.mxu0 0
  %5019 = vmatpush1.bf16.msra.mxu0 0
  %5020 = vmatprep.subr.bf16.mxu0 0
  %5021 = vmatpush1.bf16.msra.mxu0 0
  %5022 = vmatprep.subr.bf16.mxu0 0
  %5023 = vmatpush1.bf16.msra.mxu0 0
  %5024 = vmatprep.subr.bf16.mxu0 0
  %5025 = vmatpush1.bf16.msra.mxu0 %v5005
  %5026 = vmatprep.subr.bf16.mxu0 0
  %5027 = vmatpush2.bf16.msra.mxu0 0
  %5028 = vmatprep.subr.bf16.mxu0 0
  %5029 = vmatpush2.bf16.msra.mxu0 0
  %5030 = vmatprep.subr.bf16.mxu0 0
  %5031 = vmatpush2.bf16.msra.mxu0 0
  %5032 = vmatprep.subr.bf16.mxu0 0
  %5033 = vmatpush2.bf16.msra.mxu0 0
  %5034 = vmatprep.subr.bf16.mxu0 0
  %5035 = vmatpush2.bf16.msra.mxu0 0
  %5036 = vmatprep.subr.bf16.mxu0 0
  %5037 = vmatpush2.bf16.msra.mxu0 0
  %5038 = vmatprep.subr.bf16.mxu0 0
  %5039 = vmatpush2.bf16.msra.mxu0 0
  %5040 = vmatprep.subr.bf16.mxu0 0
  %5041 = vmatpush2.bf16.msra.mxu0 0
  %5042 = vmatprep.mubr.bf16.mxu0 0
  %5043 = vmatmul.mubr.bf16.gmra.mxu0 %v5008
  %v5044 = vpop.f32.mrf.mxu0
  %v5045 = vadd.f32 0.0, %v5044
  %v5046 = vpop.f32.mrf.mxu0
  %v5047 = vpop.f32.mrf.mxu0
  %v5048 = vpop.f32.mrf.mxu0
  %5049 = vdwg.mxu0
  %v5050 = vadd.f32 %v4966, %v5045
  %v5051 = vld [vmem:[%s4709] ss:$2 sm:$0x3]
  %s5052 = scalar_lea.vmem %s4709, 16 [#allocation3]
  %v5053 = vld [vmem:[%s5052] ss:$2 sm:$0x3]
  %s5054 = scalar_lea.vmem %s4709, 48 [#allocation3]
  %v5055 = vld [vmem:[%s5054] ss:$2 sm:$0x3]
  %s5056 = scalar_lea.vmem %s4709, 64 [#allocation3]
  %v5057 = vld [vmem:[%s5056] ss:$2 sm:$0x3]
  %v5062 = vcombine.low %v5051, %v5053
  %v5063 = vcombine.low %v5055, %v5057
  %v5065 = vunpack.c.l.s4 1983009808
  %v5066 = vunpack.c.0.s8 %v5065
  %v5067 = vlaneseq
  %v5068 = vshrl.u32 %v5067, 7
  %v5069 = vsub.s32 %v5066, %v5068
  %v5070 = vrot.slane %v5062, %v5069
  %v5072 = vunpack.c.l.s4 1983009808
  %v5073 = vunpack.c.0.s8 %v5072
  %v5074 = vlaneseq
  %v5075 = vshrl.u32 %v5074, 7
  %v5076 = vsub.s32 %v5073, %v5075
  %v5077 = vrot.slane %v5063, %v5076
  %v5078 = vcombine.low %v5070, %v5077
  %v5080 = vpack.c.bf16 %v5078, %v5078
  %s5081 = scalar_lea.vmem %s6, 32
  %v5082 = vld [vmem:[%s5081] sm:$0xf]
  %v5083 = vld [vmem:[%s5081 + $0x4] sm:$0xf]
  %v5086 = vunpack.c.l.b16 %v5082
  %v5087 = vunpack.c.l.b16 %v5083
  %v5088 = vpack.c.b16 %v5087, %v5086
  %v5091 = vsel %vm4609, %v5080, 0
  %5093 = vmatprep.subr.bf16.mxu0 0
  %5094 = vmatpush1.bf16.msra.mxu0 0
  %5095 = vmatprep.subr.bf16.mxu0 0
  %5096 = vmatpush1.bf16.msra.mxu0 0
  %5097 = vmatprep.subr.bf16.mxu0 0
  %5098 = vmatpush1.bf16.msra.mxu0 0
  %5099 = vmatprep.subr.bf16.mxu0 0
  %5100 = vmatpush1.bf16.msra.mxu0 0
  %5101 = vmatprep.subr.bf16.mxu0 0
  %5102 = vmatpush1.bf16.msra.mxu0 0
  %5103 = vmatprep.subr.bf16.mxu0 0
  %5104 = vmatpush1.bf16.msra.mxu0 0
  %5105 = vmatprep.subr.bf16.mxu0 0
  %5106 = vmatpush1.bf16.msra.mxu0 0
  %5107 = vmatprep.subr.bf16.mxu0 0
  %5108 = vmatpush1.bf16.msra.mxu0 %v5088
  %5109 = vmatprep.subr.bf16.mxu0 0
  %5110 = vmatpush2.bf16.msra.mxu0 0
  %5111 = vmatprep.subr.bf16.mxu0 0
  %5112 = vmatpush2.bf16.msra.mxu0 0
  %5113 = vmatprep.subr.bf16.mxu0 0
  %5114 = vmatpush2.bf16.msra.mxu0 0
  %5115 = vmatprep.subr.bf16.mxu0 0
  %5116 = vmatpush2.bf16.msra.mxu0 0
  %5117 = vmatprep.subr.bf16.mxu0 0
  %5118 = vmatpush2.bf16.msra.mxu0 0
  %5119 = vmatprep.subr.bf16.mxu0 0
  %5120 = vmatpush2.bf16.msra.mxu0 0
  %5121 = vmatprep.subr.bf16.mxu0 0
  %5122 = vmatpush2.bf16.msra.mxu0 0
  %5123 = vmatprep.subr.bf16.mxu0 0
  %5124 = vmatpush2.bf16.msra.mxu0 0
  %5125 = vmatprep.mubr.bf16.mxu0 0
  %5126 = vmatmul.mubr.bf16.gmra.mxu0 %v5091
  %v5127 = vpop.f32.mrf.mxu0
  %v5128 = vadd.f32 0.0, %v5127
  %v5129 = vpop.f32.mrf.mxu0
  %v5130 = vpop.f32.mrf.mxu0
  %v5131 = vpop.f32.mrf.mxu0
  %5132 = vdwg.mxu0
  %v5133 = vadd.f32 %v5050, %v5128
  %s5134 = scalar_lea.vmem %s4709, 1 [#allocation3]
  %v5135 = vld [vmem:[%s5134] ss:$2 sm:$0x3]
  %s5136 = scalar_lea.vmem %s4709, 17 [#allocation3]
  %v5137 = vld [vmem:[%s5136] ss:$2 sm:$0x3]
  %s5138 = scalar_lea.vmem %s4709, 49 [#allocation3]
  %v5139 = vld [vmem:[%s5138] ss:$2 sm:$0x3]
  %s5140 = scalar_lea.vmem %s4709, 65 [#allocation3]
  %v5141 = vld [vmem:[%s5140] ss:$2 sm:$0x3]
  %v5146 = vcombine.low %v5135, %v5137
  %v5147 = vcombine.low %v5139, %v5141
  %v5149 = vunpack.c.l.s4 1983009808
  %v5150 = vunpack.c.0.s8 %v5149
  %v5151 = vlaneseq
  %v5152 = vshrl.u32 %v5151, 7
  %v5153 = vsub.s32 %v5150, %v5152
  %v5154 = vrot.slane %v5146, %v5153
  %v5156 = vunpack.c.l.s4 1983009808
  %v5157 = vunpack.c.0.s8 %v5156
  %v5158 = vlaneseq
  %v5159 = vshrl.u32 %v5158, 7
  %v5160 = vsub.s32 %v5157, %v5159
  %v5161 = vrot.slane %v5147, %v5160
  %v5162 = vcombine.low %v5154, %v5161
  %v5164 = vpack.c.bf16 %v5162, %v5162
  %s5165 = scalar_lea.vmem %s6, 40
  %v5166 = vld [vmem:[%s5165] sm:$0xf]
  %v5167 = vld [vmem:[%s5165 + $0x4] sm:$0xf]
  %v5170 = vunpack.c.l.b16 %v5166
  %v5171 = vunpack.c.l.b16 %v5167
  %v5172 = vpack.c.b16 %v5171, %v5170
  %v5175 = vsel %vm4609, %v5164, 0
  %5177 = vmatprep.subr.bf16.mxu0 0
  %5178 = vmatpush1.bf16.msra.mxu0 0
  %5179 = vmatprep.subr.bf16.mxu0 0
  %5180 = vmatpush1.bf16.msra.mxu0 0
  %5181 = vmatprep.subr.bf16.mxu0 0
  %5182 = vmatpush1.bf16.msra.mxu0 0
  %5183 = vmatprep.subr.bf16.mxu0 0
  %5184 = vmatpush1.bf16.msra.mxu0 0
  %5185 = vmatprep.subr.bf16.mxu0 0
  %5186 = vmatpush1.bf16.msra.mxu0 0
  %5187 = vmatprep.subr.bf16.mxu0 0
  %5188 = vmatpush1.bf16.msra.mxu0 0
  %5189 = vmatprep.subr.bf16.mxu0 0
  %5190 = vmatpush1.bf16.msra.mxu0 0
  %5191 = vmatprep.subr.bf16.mxu0 0
  %5192 = vmatpush1.bf16.msra.mxu0 %v5172
  %5193 = vmatprep.subr.bf16.mxu0 0
  %5194 = vmatpush2.bf16.msra.mxu0 0
  %5195 = vmatprep.subr.bf16.mxu0 0
  %5196 = vmatpush2.bf16.msra.mxu0 0
  %5197 = vmatprep.subr.bf16.mxu0 0
  %5198 = vmatpush2.bf16.msra.mxu0 0
  %5199 = vmatprep.subr.bf16.mxu0 0
  %5200 = vmatpush2.bf16.msra.mxu0 0
  %5201 = vmatprep.subr.bf16.mxu0 0
  %5202 = vmatpush2.bf16.msra.mxu0 0
  %5203 = vmatprep.subr.bf16.mxu0 0
  %5204 = vmatpush2.bf16.msra.mxu0 0
  %5205 = vmatprep.subr.bf16.mxu0 0
  %5206 = vmatpush2.bf16.msra.mxu0 0
  %5207 = vmatprep.subr.bf16.mxu0 0
  %5208 = vmatpush2.bf16.msra.mxu0 0
  %5209 = vmatprep.mubr.bf16.mxu0 0
  %5210 = vmatmul.mubr.bf16.gmra.mxu0 %v5175
  %v5211 = vpop.f32.mrf.mxu0
  %v5212 = vadd.f32 0.0, %v5211
  %v5213 = vpop.f32.mrf.mxu0
  %v5214 = vpop.f32.mrf.mxu0
  %v5215 = vpop.f32.mrf.mxu0
  %5216 = vdwg.mxu0
  %v5217 = vadd.f32 %v5133, %v5212
  %s5218 = scalar_lea.vmem %s4709, 2 [#allocation3]
  %v5219 = vld [vmem:[%s5218] ss:$2 sm:$0x3]
  %s5220 = scalar_lea.vmem %s4709, 18 [#allocation3]
  %v5221 = vld [vmem:[%s5220] ss:$2 sm:$0x3]
  %s5222 = scalar_lea.vmem %s4709, 50 [#allocation3]
  %v5223 = vld [vmem:[%s5222] ss:$2 sm:$0x3]
  %s5224 = scalar_lea.vmem %s4709, 66 [#allocation3]
  %v5225 = vld [vmem:[%s5224] ss:$2 sm:$0x3]
  %v5230 = vcombine.low %v5219, %v5221
  %v5231 = vcombine.low %v5223, %v5225
  %v5233 = vunpack.c.l.s4 1983009808
  %v5234 = vunpack.c.0.s8 %v5233
  %v5235 = vlaneseq
  %v5236 = vshrl.u32 %v5235, 7
  %v5237 = vsub.s32 %v5234, %v5236
  %v5238 = vrot.slane %v5230, %v5237
  %v5240 = vunpack.c.l.s4 1983009808
  %v5241 = vunpack.c.0.s8 %v5240
  %v5242 = vlaneseq
  %v5243 = vshrl.u32 %v5242, 7
  %v5244 = vsub.s32 %v5241, %v5243
  %v5245 = vrot.slane %v5231, %v5244
  %v5246 = vcombine.low %v5238, %v5245
  %v5248 = vpack.c.bf16 %v5246, %v5246
  %s5249 = scalar_lea.vmem %s6, 48
  %v5250 = vld [vmem:[%s5249] sm:$0xf]
  %v5251 = vld [vmem:[%s5249 + $0x4] sm:$0xf]
  %v5254 = vunpack.c.l.b16 %v5250
  %v5255 = vunpack.c.l.b16 %v5251
  %v5256 = vpack.c.b16 %v5255, %v5254
  %v5259 = vsel %vm4609, %v5248, 0
  %5261 = vmatprep.subr.bf16.mxu0 0
  %5262 = vmatpush1.bf16.msra.mxu0 0
  %5263 = vmatprep.subr.bf16.mxu0 0
  %5264 = vmatpush1.bf16.msra.mxu0 0
  %5265 = vmatprep.subr.bf16.mxu0 0
  %5266 = vmatpush1.bf16.msra.mxu0 0
  %5267 = vmatprep.subr.bf16.mxu0 0
  %5268 = vmatpush1.bf16.msra.mxu0 0
  %5269 = vmatprep.subr.bf16.mxu0 0
  %5270 = vmatpush1.bf16.msra.mxu0 0
  %5271 = vmatprep.subr.bf16.mxu0 0
  %5272 = vmatpush1.bf16.msra.mxu0 0
  %5273 = vmatprep.subr.bf16.mxu0 0
  %5274 = vmatpush1.bf16.msra.mxu0 0
  %5275 = vmatprep.subr.bf16.mxu0 0
  %5276 = vmatpush1.bf16.msra.mxu0 %v5256
  %5277 = vmatprep.subr.bf16.mxu0 0
  %5278 = vmatpush2.bf16.msra.mxu0 0
  %5279 = vmatprep.subr.bf16.mxu0 0
  %5280 = vmatpush2.bf16.msra.mxu0 0
  %5281 = vmatprep.subr.bf16.mxu0 0
  %5282 = vmatpush2.bf16.msra.mxu0 0
  %5283 = vmatprep.subr.bf16.mxu0 0
  %5284 = vmatpush2.bf16.msra.mxu0 0
  %5285 = vmatprep.subr.bf16.mxu0 0
  %5286 = vmatpush2.bf16.msra.mxu0 0
  %5287 = vmatprep.subr.bf16.mxu0 0
  %5288 = vmatpush2.bf16.msra.mxu0 0
  %5289 = vmatprep.subr.bf16.mxu0 0
  %5290 = vmatpush2.bf16.msra.mxu0 0
  %5291 = vmatprep.subr.bf16.mxu0 0
  %5292 = vmatpush2.bf16.msra.mxu0 0
  %5293 = vmatprep.mubr.bf16.mxu0 0
  %5294 = vmatmul.mubr.bf16.gmra.mxu0 %v5259
  %v5295 = vpop.f32.mrf.mxu0
  %v5296 = vadd.f32 0.0, %v5295
  %v5297 = vpop.f32.mrf.mxu0
  %v5298 = vpop.f32.mrf.mxu0
  %v5299 = vpop.f32.mrf.mxu0
  %5300 = vdwg.mxu0
  %v5301 = vadd.f32 %v5217, %v5296
  %s5302 = scalar_lea.vmem %s4709, 3 [#allocation3]
  %v5303 = vld [vmem:[%s5302] ss:$2 sm:$0x3]
  %s5304 = scalar_lea.vmem %s4709, 19 [#allocation3]
  %v5305 = vld [vmem:[%s5304] ss:$2 sm:$0x3]
  %s5306 = scalar_lea.vmem %s4709, 51 [#allocation3]
  %v5307 = vld [vmem:[%s5306] ss:$2 sm:$0x3]
  %s5308 = scalar_lea.vmem %s4709, 67 [#allocation3]
  %v5309 = vld [vmem:[%s5308] ss:$2 sm:$0x3]
  %v5314 = vcombine.low %v5303, %v5305
  %v5315 = vcombine.low %v5307, %v5309
  %v5317 = vunpack.c.l.s4 1983009808
  %v5318 = vunpack.c.0.s8 %v5317
  %v5319 = vlaneseq
  %v5320 = vshrl.u32 %v5319, 7
  %v5321 = vsub.s32 %v5318, %v5320
  %v5322 = vrot.slane %v5314, %v5321
  %v5324 = vunpack.c.l.s4 1983009808
  %v5325 = vunpack.c.0.s8 %v5324
  %v5326 = vlaneseq
  %v5327 = vshrl.u32 %v5326, 7
  %v5328 = vsub.s32 %v5325, %v5327
  %v5329 = vrot.slane %v5315, %v5328
  %v5330 = vcombine.low %v5322, %v5329
  %v5332 = vpack.c.bf16 %v5330, %v5330
  %s5333 = scalar_lea.vmem %s6, 56
  %v5334 = vld [vmem:[%s5333] sm:$0xf]
  %v5335 = vld [vmem:[%s5333 + $0x4] sm:$0xf]
  %v5338 = vunpack.c.l.b16 %v5334
  %v5339 = vunpack.c.l.b16 %v5335
  %v5340 = vpack.c.b16 %v5339, %v5338
  %v5343 = vsel %vm4609, %v5332, 0
  %5345 = vmatprep.subr.bf16.mxu0 0
  %5346 = vmatpush1.bf16.msra.mxu0 0
  %5347 = vmatprep.subr.bf16.mxu0 0
  %5348 = vmatpush1.bf16.msra.mxu0 0
  %5349 = vmatprep.subr.bf16.mxu0 0
  %5350 = vmatpush1.bf16.msra.mxu0 0
  %5351 = vmatprep.subr.bf16.mxu0 0
  %5352 = vmatpush1.bf16.msra.mxu0 0
  %5353 = vmatprep.subr.bf16.mxu0 0
  %5354 = vmatpush1.bf16.msra.mxu0 0
  %5355 = vmatprep.subr.bf16.mxu0 0
  %5356 = vmatpush1.bf16.msra.mxu0 0
  %5357 = vmatprep.subr.bf16.mxu0 0
  %5358 = vmatpush1.bf16.msra.mxu0 0
  %5359 = vmatprep.subr.bf16.mxu0 0
  %5360 = vmatpush1.bf16.msra.mxu0 %v5340
  %5361 = vmatprep.subr.bf16.mxu0 0
  %5362 = vmatpush2.bf16.msra.mxu0 0
  %5363 = vmatprep.subr.bf16.mxu0 0
  %5364 = vmatpush2.bf16.msra.mxu0 0
  %5365 = vmatprep.subr.bf16.mxu0 0
  %5366 = vmatpush2.bf16.msra.mxu0 0
  %5367 = vmatprep.subr.bf16.mxu0 0
  %5368 = vmatpush2.bf16.msra.mxu0 0
  %5369 = vmatprep.subr.bf16.mxu0 0
  %5370 = vmatpush2.bf16.msra.mxu0 0
  %5371 = vmatprep.subr.bf16.mxu0 0
  %5372 = vmatpush2.bf16.msra.mxu0 0
  %5373 = vmatprep.subr.bf16.mxu0 0
  %5374 = vmatpush2.bf16.msra.mxu0 0
  %5375 = vmatprep.subr.bf16.mxu0 0
  %5376 = vmatpush2.bf16.msra.mxu0 0
  %5377 = vmatprep.mubr.bf16.mxu0 0
  %5378 = vmatmul.mubr.bf16.gmra.mxu0 %v5343
  %v5379 = vpop.f32.mrf.mxu0
  %v5380 = vadd.f32 0.0, %v5379
  %v5381 = vpop.f32.mrf.mxu0
  %v5382 = vpop.f32.mrf.mxu0
  %v5383 = vpop.f32.mrf.mxu0
  %5384 = vdwg.mxu0
  %v5385 = vadd.f32 %v5301, %v5380
  %s5386 = scalar_lea.vmem [#allocation3], 16
  %v5387 = vld [vmem:[%s5386] ss:$2 sm:$0x3]
  %s5388 = scalar_lea.vmem %s5386, 16 [#allocation3]
  %v5389 = vld [vmem:[%s5388] ss:$2 sm:$0x3]
  %s5390 = scalar_lea.vmem %s5386, 48 [#allocation3]
  %v5391 = vld [vmem:[%s5390] ss:$2 sm:$0x3]
  %s5392 = scalar_lea.vmem %s5386, 64 [#allocation3]
  %v5393 = vld [vmem:[%s5392] ss:$2 sm:$0x3]
  %v5398 = vcombine.low %v5387, %v5389
  %v5399 = vcombine.low %v5391, %v5393
  %v5401 = vunpack.c.l.s4 1983009808
  %v5402 = vunpack.c.0.s8 %v5401
  %v5403 = vlaneseq
  %v5404 = vshrl.u32 %v5403, 7
  %v5405 = vsub.s32 %v5402, %v5404
  %v5406 = vrot.slane %v5398, %v5405
  %v5408 = vunpack.c.l.s4 1983009808
  %v5409 = vunpack.c.0.s8 %v5408
  %v5410 = vlaneseq
  %v5411 = vshrl.u32 %v5410, 7
  %v5412 = vsub.s32 %v5409, %v5411
  %v5413 = vrot.slane %v5399, %v5412
  %v5414 = vcombine.low %v5406, %v5413
  %v5416 = vpack.c.bf16 %v5414, %v5414
  %s5417 = scalar_lea.vmem %s6, 64
  %v5418 = vld [vmem:[%s5417] sm:$0xf]
  %v5419 = vld [vmem:[%s5417 + $0x4] sm:$0xf]
  %v5422 = vunpack.c.l.b16 %v5418
  %v5423 = vunpack.c.l.b16 %v5419
  %v5424 = vpack.c.b16 %v5423, %v5422
  %v5427 = vsel %vm4609, %v5416, 0
  %5429 = vmatprep.subr.bf16.mxu0 0
  %5430 = vmatpush1.bf16.msra.mxu0 0
  %5431 = vmatprep.subr.bf16.mxu0 0
  %5432 = vmatpush1.bf16.msra.mxu0 0
  %5433 = vmatprep.subr.bf16.mxu0 0
  %5434 = vmatpush1.bf16.msra.mxu0 0
  %5435 = vmatprep.subr.bf16.mxu0 0
  %5436 = vmatpush1.bf16.msra.mxu0 0
  %5437 = vmatprep.subr.bf16.mxu0 0
  %5438 = vmatpush1.bf16.msra.mxu0 0
  %5439 = vmatprep.subr.bf16.mxu0 0
  %5440 = vmatpush1.bf16.msra.mxu0 0
  %5441 = vmatprep.subr.bf16.mxu0 0
  %5442 = vmatpush1.bf16.msra.mxu0 0
  %5443 = vmatprep.subr.bf16.mxu0 0
  %5444 = vmatpush1.bf16.msra.mxu0 %v5424
  %5445 = vmatprep.subr.bf16.mxu0 0
  %5446 = vmatpush2.bf16.msra.mxu0 0
  %5447 = vmatprep.subr.bf16.mxu0 0
  %5448 = vmatpush2.bf16.msra.mxu0 0
  %5449 = vmatprep.subr.bf16.mxu0 0
  %5450 = vmatpush2.bf16.msra.mxu0 0
  %5451 = vmatprep.subr.bf16.mxu0 0
  %5452 = vmatpush2.bf16.msra.mxu0 0
  %5453 = vmatprep.subr.bf16.mxu0 0
  %5454 = vmatpush2.bf16.msra.mxu0 0
  %5455 = vmatprep.subr.bf16.mxu0 0
  %5456 = vmatpush2.bf16.msra.mxu0 0
  %5457 = vmatprep.subr.bf16.mxu0 0
  %5458 = vmatpush2.bf16.msra.mxu0 0
  %5459 = vmatprep.subr.bf16.mxu0 0
  %5460 = vmatpush2.bf16.msra.mxu0 0
  %5461 = vmatprep.mubr.bf16.mxu0 0
  %5462 = vmatmul.mubr.bf16.gmra.mxu0 %v5427
  %v5463 = vpop.f32.mrf.mxu0
  %v5464 = vadd.f32 0.0, %v5463
  %v5465 = vpop.f32.mrf.mxu0
  %v5466 = vpop.f32.mrf.mxu0
  %v5467 = vpop.f32.mrf.mxu0
  %5468 = vdwg.mxu0
  %v5469 = vadd.f32 %v5385, %v5464
  %s5470 = scalar_lea.vmem %s5386, 1 [#allocation3]
  %v5471 = vld [vmem:[%s5470] ss:$2 sm:$0x3]
  %s5472 = scalar_lea.vmem %s5386, 17 [#allocation3]
  %v5473 = vld [vmem:[%s5472] ss:$2 sm:$0x3]
  %s5474 = scalar_lea.vmem %s5386, 49 [#allocation3]
  %v5475 = vld [vmem:[%s5474] ss:$2 sm:$0x3]
  %s5476 = scalar_lea.vmem %s5386, 65 [#allocation3]
  %v5477 = vld [vmem:[%s5476] ss:$2 sm:$0x3]
  %v5482 = vcombine.low %v5471, %v5473
  %v5483 = vcombine.low %v5475, %v5477
  %v5485 = vunpack.c.l.s4 1983009808
  %v5486 = vunpack.c.0.s8 %v5485
  %v5487 = vlaneseq
  %v5488 = vshrl.u32 %v5487, 7
  %v5489 = vsub.s32 %v5486, %v5488
  %v5490 = vrot.slane %v5482, %v5489
  %v5492 = vunpack.c.l.s4 1983009808
  %v5493 = vunpack.c.0.s8 %v5492
  %v5494 = vlaneseq
  %v5495 = vshrl.u32 %v5494, 7
  %v5496 = vsub.s32 %v5493, %v5495
  %v5497 = vrot.slane %v5483, %v5496
  %v5498 = vcombine.low %v5490, %v5497
  %v5500 = vpack.c.bf16 %v5498, %v5498
  %s5501 = scalar_lea.vmem %s6, 72
  %v5502 = vld [vmem:[%s5501] sm:$0xf]
  %v5503 = vld [vmem:[%s5501 + $0x4] sm:$0xf]
  %v5506 = vunpack.c.l.b16 %v5502
  %v5507 = vunpack.c.l.b16 %v5503
  %v5508 = vpack.c.b16 %v5507, %v5506
  %v5511 = vsel %vm4609, %v5500, 0
  %5513 = vmatprep.subr.bf16.mxu0 0
  %5514 = vmatpush1.bf16.msra.mxu0 0
  %5515 = vmatprep.subr.bf16.mxu0 0
  %5516 = vmatpush1.bf16.msra.mxu0 0
  %5517 = vmatprep.subr.bf16.mxu0 0
  %5518 = vmatpush1.bf16.msra.mxu0 0
  %5519 = vmatprep.subr.bf16.mxu0 0
  %5520 = vmatpush1.bf16.msra.mxu0 0
  %5521 = vmatprep.subr.bf16.mxu0 0
  %5522 = vmatpush1.bf16.msra.mxu0 0
  %5523 = vmatprep.subr.bf16.mxu0 0
  %5524 = vmatpush1.bf16.msra.mxu0 0
  %5525 = vmatprep.subr.bf16.mxu0 0
  %5526 = vmatpush1.bf16.msra.mxu0 0
  %5527 = vmatprep.subr.bf16.mxu0 0
  %5528 = vmatpush1.bf16.msra.mxu0 %v5508
  %5529 = vmatprep.subr.bf16.mxu0 0
  %5530 = vmatpush2.bf16.msra.mxu0 0
  %5531 = vmatprep.subr.bf16.mxu0 0
  %5532 = vmatpush2.bf16.msra.mxu0 0
  %5533 = vmatprep.subr.bf16.mxu0 0
  %5534 = vmatpush2.bf16.msra.mxu0 0
  %5535 = vmatprep.subr.bf16.mxu0 0
  %5536 = vmatpush2.bf16.msra.mxu0 0
  %5537 = vmatprep.subr.bf16.mxu0 0
  %5538 = vmatpush2.bf16.msra.mxu0 0
  %5539 = vmatprep.subr.bf16.mxu0 0
  %5540 = vmatpush2.bf16.msra.mxu0 0
  %5541 = vmatprep.subr.bf16.mxu0 0
  %5542 = vmatpush2.bf16.msra.mxu0 0
  %5543 = vmatprep.subr.bf16.mxu0 0
  %5544 = vmatpush2.bf16.msra.mxu0 0
  %5545 = vmatprep.mubr.bf16.mxu0 0
  %5546 = vmatmul.mubr.bf16.gmra.mxu0 %v5511
  %v5547 = vpop.f32.mrf.mxu0
  %v5548 = vadd.f32 0.0, %v5547
  %v5549 = vpop.f32.mrf.mxu0
  %v5550 = vpop.f32.mrf.mxu0
  %v5551 = vpop.f32.mrf.mxu0
  %5552 = vdwg.mxu0
  %v5553 = vadd.f32 %v5469, %v5548
  %s5554 = scalar_lea.vmem %s5386, 2 [#allocation3]
  %v5555 = vld [vmem:[%s5554] ss:$2 sm:$0x3]
  %s5556 = scalar_lea.vmem %s5386, 18 [#allocation3]
  %v5557 = vld [vmem:[%s5556] ss:$2 sm:$0x3]
  %s5558 = scalar_lea.vmem %s5386, 50 [#allocation3]
  %v5559 = vld [vmem:[%s5558] ss:$2 sm:$0x3]
  %s5560 = scalar_lea.vmem %s5386, 66 [#allocation3]
  %v5561 = vld [vmem:[%s5560] ss:$2 sm:$0x3]
  %v5566 = vcombine.low %v5555, %v5557
  %v5567 = vcombine.low %v5559, %v5561
  %v5569 = vunpack.c.l.s4 1983009808
  %v5570 = vunpack.c.0.s8 %v5569
  %v5571 = vlaneseq
  %v5572 = vshrl.u32 %v5571, 7
  %v5573 = vsub.s32 %v5570, %v5572
  %v5574 = vrot.slane %v5566, %v5573
  %v5576 = vunpack.c.l.s4 1983009808
  %v5577 = vunpack.c.0.s8 %v5576
  %v5578 = vlaneseq
  %v5579 = vshrl.u32 %v5578, 7
  %v5580 = vsub.s32 %v5577, %v5579
  %v5581 = vrot.slane %v5567, %v5580
  %v5582 = vcombine.low %v5574, %v5581
  %v5584 = vpack.c.bf16 %v5582, %v5582
  %s5585 = scalar_lea.vmem %s6, 80
  %v5586 = vld [vmem:[%s5585] sm:$0xf]
  %v5587 = vld [vmem:[%s5585 + $0x4] sm:$0xf]
  %v5590 = vunpack.c.l.b16 %v5586
  %v5591 = vunpack.c.l.b16 %v5587
  %v5592 = vpack.c.b16 %v5591, %v5590
  %v5595 = vsel %vm4609, %v5584, 0
  %5597 = vmatprep.subr.bf16.mxu0 0
  %5598 = vmatpush1.bf16.msra.mxu0 0
  %5599 = vmatprep.subr.bf16.mxu0 0
  %5600 = vmatpush1.bf16.msra.mxu0 0
  %5601 = vmatprep.subr.bf16.mxu0 0
  %5602 = vmatpush1.bf16.msra.mxu0 0
  %5603 = vmatprep.subr.bf16.mxu0 0
  %5604 = vmatpush1.bf16.msra.mxu0 0
  %5605 = vmatprep.subr.bf16.mxu0 0
  %5606 = vmatpush1.bf16.msra.mxu0 0
  %5607 = vmatprep.subr.bf16.mxu0 0
  %5608 = vmatpush1.bf16.msra.mxu0 0
  %5609 = vmatprep.subr.bf16.mxu0 0
  %5610 = vmatpush1.bf16.msra.mxu0 0
  %5611 = vmatprep.subr.bf16.mxu0 0
  %5612 = vmatpush1.bf16.msra.mxu0 %v5592
  %5613 = vmatprep.subr.bf16.mxu0 0
  %5614 = vmatpush2.bf16.msra.mxu0 0
  %5615 = vmatprep.subr.bf16.mxu0 0
  %5616 = vmatpush2.bf16.msra.mxu0 0
  %5617 = vmatprep.subr.bf16.mxu0 0
  %5618 = vmatpush2.bf16.msra.mxu0 0
  %5619 = vmatprep.subr.bf16.mxu0 0
  %5620 = vmatpush2.bf16.msra.mxu0 0
  %5621 = vmatprep.subr.bf16.mxu0 0
  %5622 = vmatpush2.bf16.msra.mxu0 0
  %5623 = vmatprep.subr.bf16.mxu0 0
  %5624 = vmatpush2.bf16.msra.mxu0 0
  %5625 = vmatprep.subr.bf16.mxu0 0
  %5626 = vmatpush2.bf16.msra.mxu0 0
  %5627 = vmatprep.subr.bf16.mxu0 0
  %5628 = vmatpush2.bf16.msra.mxu0 0
  %5629 = vmatprep.mubr.bf16.mxu0 0
  %5630 = vmatmul.mubr.bf16.gmra.mxu0 %v5595
  %v5631 = vpop.f32.mrf.mxu0
  %v5632 = vadd.f32 0.0, %v5631
  %v5633 = vpop.f32.mrf.mxu0
  %v5634 = vpop.f32.mrf.mxu0
  %v5635 = vpop.f32.mrf.mxu0
  %5636 = vdwg.mxu0
  %v5637 = vadd.f32 %v5553, %v5632
  %s5638 = scalar_lea.vmem %s5386, 3 [#allocation3]
  %v5639 = vld [vmem:[%s5638] ss:$2 sm:$0x3]
  %s5640 = scalar_lea.vmem %s5386, 19 [#allocation3]
  %v5641 = vld [vmem:[%s5640] ss:$2 sm:$0x3]
  %s5642 = scalar_lea.vmem %s5386, 51 [#allocation3]
  %v5643 = vld [vmem:[%s5642] ss:$2 sm:$0x3]
  %s5644 = scalar_lea.vmem %s5386, 67 [#allocation3]
  %v5645 = vld [vmem:[%s5644] ss:$2 sm:$0x3]
  %v5650 = vcombine.low %v5639, %v5641
  %v5651 = vcombine.low %v5643, %v5645
  %v5653 = vunpack.c.l.s4 1983009808
  %v5654 = vunpack.c.0.s8 %v5653
  %v5655 = vlaneseq
  %v5656 = vshrl.u32 %v5655, 7
  %v5657 = vsub.s32 %v5654, %v5656
  %v5658 = vrot.slane %v5650, %v5657
  %v5660 = vunpack.c.l.s4 1983009808
  %v5661 = vunpack.c.0.s8 %v5660
  %v5662 = vlaneseq
  %v5663 = vshrl.u32 %v5662, 7
  %v5664 = vsub.s32 %v5661, %v5663
  %v5665 = vrot.slane %v5651, %v5664
  %v5666 = vcombine.low %v5658, %v5665
  %v5668 = vpack.c.bf16 %v5666, %v5666
  %s5669 = scalar_lea.vmem %s6, 88
  %v5670 = vld [vmem:[%s5669] sm:$0xf]
  %v5671 = vld [vmem:[%s5669 + $0x4] sm:$0xf]
  %v5674 = vunpack.c.l.b16 %v5670
  %v5675 = vunpack.c.l.b16 %v5671
  %v5676 = vpack.c.b16 %v5675, %v5674
  %v5679 = vsel %vm4609, %v5668, 0
  %5681 = vmatprep.subr.bf16.mxu0 0
  %5682 = vmatpush1.bf16.msra.mxu0 0
  %5683 = vmatprep.subr.bf16.mxu0 0
  %5684 = vmatpush1.bf16.msra.mxu0 0
  %5685 = vmatprep.subr.bf16.mxu0 0
  %5686 = vmatpush1.bf16.msra.mxu0 0
  %5687 = vmatprep.subr.bf16.mxu0 0
  %5688 = vmatpush1.bf16.msra.mxu0 0
  %5689 = vmatprep.subr.bf16.mxu0 0
  %5690 = vmatpush1.bf16.msra.mxu0 0
  %5691 = vmatprep.subr.bf16.mxu0 0
  %5692 = vmatpush1.bf16.msra.mxu0 0
  %5693 = vmatprep.subr.bf16.mxu0 0
  %5694 = vmatpush1.bf16.msra.mxu0 0
  %5695 = vmatprep.subr.bf16.mxu0 0
  %5696 = vmatpush1.bf16.msra.mxu0 %v5676
  %5697 = vmatprep.subr.bf16.mxu0 0
  %5698 = vmatpush2.bf16.msra.mxu0 0
  %5699 = vmatprep.subr.bf16.mxu0 0
  %5700 = vmatpush2.bf16.msra.mxu0 0
  %5701 = vmatprep.subr.bf16.mxu0 0
  %5702 = vmatpush2.bf16.msra.mxu0 0
  %5703 = vmatprep.subr.bf16.mxu0 0
  %5704 = vmatpush2.bf16.msra.mxu0 0
  %5705 = vmatprep.subr.bf16.mxu0 0
  %5706 = vmatpush2.bf16.msra.mxu0 0
  %5707 = vmatprep.subr.bf16.mxu0 0
  %5708 = vmatpush2.bf16.msra.mxu0 0
  %5709 = vmatprep.subr.bf16.mxu0 0
  %5710 = vmatpush2.bf16.msra.mxu0 0
  %5711 = vmatprep.subr.bf16.mxu0 0
  %5712 = vmatpush2.bf16.msra.mxu0 0
  %5713 = vmatprep.mubr.bf16.mxu0 0
  %5714 = vmatmul.mubr.bf16.gmra.mxu0 %v5679
  %v5715 = vpop.f32.mrf.mxu0
  %v5716 = vadd.f32 0.0, %v5715
  %v5717 = vpop.f32.mrf.mxu0
  %v5718 = vpop.f32.mrf.mxu0
  %v5719 = vpop.f32.mrf.mxu0
  %5720 = vdwg.mxu0
  %v5721 = vadd.f32 %v5637, %v5716
  %s5722 = scalar_lea.vmem [#allocation3], 24
  %v5723 = vld [vmem:[%s5722] ss:$2 sm:$0x3]
  %s5724 = scalar_lea.vmem %s5722, 16 [#allocation3]
  %v5725 = vld [vmem:[%s5724] ss:$2 sm:$0x3]
  %s5726 = scalar_lea.vmem %s5722, 48 [#allocation3]
  %v5727 = vld [vmem:[%s5726] ss:$2 sm:$0x3]
  %s5728 = scalar_lea.vmem %s5722, 64 [#allocation3]
  %v5729 = vld [vmem:[%s5728] ss:$2 sm:$0x3]
  %v5734 = vcombine.low %v5723, %v5725
  %v5735 = vcombine.low %v5727, %v5729
  %v5737 = vunpack.c.l.s4 1983009808
  %v5738 = vunpack.c.0.s8 %v5737
  %v5739 = vlaneseq
  %v5740 = vshrl.u32 %v5739, 7
  %v5741 = vsub.s32 %v5738, %v5740
  %v5742 = vrot.slane %v5734, %v5741
  %v5744 = vunpack.c.l.s4 1983009808
  %v5745 = vunpack.c.0.s8 %v5744
  %v5746 = vlaneseq
  %v5747 = vshrl.u32 %v5746, 7
  %v5748 = vsub.s32 %v5745, %v5747
  %v5749 = vrot.slane %v5735, %v5748
  %v5750 = vcombine.low %v5742, %v5749
  %v5752 = vpack.c.bf16 %v5750, %v5750
  %s5753 = scalar_lea.vmem %s6, 96
  %v5754 = vld [vmem:[%s5753] sm:$0xf]
  %v5755 = vld [vmem:[%s5753 + $0x4] sm:$0xf]
  %v5758 = vunpack.c.l.b16 %v5754
  %v5759 = vunpack.c.l.b16 %v5755
  %v5760 = vpack.c.b16 %v5759, %v5758
  %v5763 = vsel %vm4609, %v5752, 0
  %5765 = vmatprep.subr.bf16.mxu0 0
  %5766 = vmatpush1.bf16.msra.mxu0 0
  %5767 = vmatprep.subr.bf16.mxu0 0
  %5768 = vmatpush1.bf16.msra.mxu0 0
  %5769 = vmatprep.subr.bf16.mxu0 0
  %5770 = vmatpush1.bf16.msra.mxu0 0
  %5771 = vmatprep.subr.bf16.mxu0 0
  %5772 = vmatpush1.bf16.msra.mxu0 0
  %5773 = vmatprep.subr.bf16.mxu0 0
  %5774 = vmatpush1.bf16.msra.mxu0 0
  %5775 = vmatprep.subr.bf16.mxu0 0
  %5776 = vmatpush1.bf16.msra.mxu0 0
  %5777 = vmatprep.subr.bf16.mxu0 0
  %5778 = vmatpush1.bf16.msra.mxu0 0
  %5779 = vmatprep.subr.bf16.mxu0 0
  %5780 = vmatpush1.bf16.msra.mxu0 %v5760
  %5781 = vmatprep.subr.bf16.mxu0 0
  %5782 = vmatpush2.bf16.msra.mxu0 0
  %5783 = vmatprep.subr.bf16.mxu0 0
  %5784 = vmatpush2.bf16.msra.mxu0 0
  %5785 = vmatprep.subr.bf16.mxu0 0
  %5786 = vmatpush2.bf16.msra.mxu0 0
  %5787 = vmatprep.subr.bf16.mxu0 0
  %5788 = vmatpush2.bf16.msra.mxu0 0
  %5789 = vmatprep.subr.bf16.mxu0 0
  %5790 = vmatpush2.bf16.msra.mxu0 0
  %5791 = vmatprep.subr.bf16.mxu0 0
  %5792 = vmatpush2.bf16.msra.mxu0 0
  %5793 = vmatprep.subr.bf16.mxu0 0
  %5794 = vmatpush2.bf16.msra.mxu0 0
  %5795 = vmatprep.subr.bf16.mxu0 0
  %5796 = vmatpush2.bf16.msra.mxu0 0
  %5797 = vmatprep.mubr.bf16.mxu0 0
  %5798 = vmatmul.mubr.bf16.gmra.mxu0 %v5763
  %v5799 = vpop.f32.mrf.mxu0
  %v5800 = vadd.f32 0.0, %v5799
  %v5801 = vpop.f32.mrf.mxu0
  %v5802 = vpop.f32.mrf.mxu0
  %v5803 = vpop.f32.mrf.mxu0
  %5804 = vdwg.mxu0
  %v5805 = vadd.f32 %v5721, %v5800
  %s5806 = scalar_lea.vmem %s5722, 1 [#allocation3]
  %v5807 = vld [vmem:[%s5806] ss:$2 sm:$0x3]
  %s5808 = scalar_lea.vmem %s5722, 17 [#allocation3]
  %v5809 = vld [vmem:[%s5808] ss:$2 sm:$0x3]
  %s5810 = scalar_lea.vmem %s5722, 49 [#allocation3]
  %v5811 = vld [vmem:[%s5810] ss:$2 sm:$0x3]
  %s5812 = scalar_lea.vmem %s5722, 65 [#allocation3]
  %v5813 = vld [vmem:[%s5812] ss:$2 sm:$0x3]
  %v5818 = vcombine.low %v5807, %v5809
  %v5819 = vcombine.low %v5811, %v5813
  %v5821 = vunpack.c.l.s4 1983009808
  %v5822 = vunpack.c.0.s8 %v5821
  %v5823 = vlaneseq
  %v5824 = vshrl.u32 %v5823, 7
  %v5825 = vsub.s32 %v5822, %v5824
  %v5826 = vrot.slane %v5818, %v5825
  %v5828 = vunpack.c.l.s4 1983009808
  %v5829 = vunpack.c.0.s8 %v5828
  %v5830 = vlaneseq
  %v5831 = vshrl.u32 %v5830, 7
  %v5832 = vsub.s32 %v5829, %v5831
  %v5833 = vrot.slane %v5819, %v5832
  %v5834 = vcombine.low %v5826, %v5833
  %v5836 = vpack.c.bf16 %v5834, %v5834
  %s5837 = scalar_lea.vmem %s6, 104
  %v5838 = vld [vmem:[%s5837] sm:$0xf]
  %v5839 = vld [vmem:[%s5837 + $0x4] sm:$0xf]
  %v5842 = vunpack.c.l.b16 %v5838
  %v5843 = vunpack.c.l.b16 %v5839
  %v5844 = vpack.c.b16 %v5843, %v5842
  %v5847 = vsel %vm4609, %v5836, 0
  %5849 = vmatprep.subr.bf16.mxu0 0
  %5850 = vmatpush1.bf16.msra.mxu0 0
  %5851 = vmatprep.subr.bf16.mxu0 0
  %5852 = vmatpush1.bf16.msra.mxu0 0
  %5853 = vmatprep.subr.bf16.mxu0 0
  %5854 = vmatpush1.bf16.msra.mxu0 0
  %5855 = vmatprep.subr.bf16.mxu0 0
  %5856 = vmatpush1.bf16.msra.mxu0 0
  %5857 = vmatprep.subr.bf16.mxu0 0
  %5858 = vmatpush1.bf16.msra.mxu0 0
  %5859 = vmatprep.subr.bf16.mxu0 0
  %5860 = vmatpush1.bf16.msra.mxu0 0
  %5861 = vmatprep.subr.bf16.mxu0 0
  %5862 = vmatpush1.bf16.msra.mxu0 0
  %5863 = vmatprep.subr.bf16.mxu0 0
  %5864 = vmatpush1.bf16.msra.mxu0 %v5844
  %5865 = vmatprep.subr.bf16.mxu0 0
  %5866 = vmatpush2.bf16.msra.mxu0 0
  %5867 = vmatprep.subr.bf16.mxu0 0
  %5868 = vmatpush2.bf16.msra.mxu0 0
  %5869 = vmatprep.subr.bf16.mxu0 0
  %5870 = vmatpush2.bf16.msra.mxu0 0
  %5871 = vmatprep.subr.bf16.mxu0 0
  %5872 = vmatpush2.bf16.msra.mxu0 0
  %5873 = vmatprep.subr.bf16.mxu0 0
  %5874 = vmatpush2.bf16.msra.mxu0 0
  %5875 = vmatprep.subr.bf16.mxu0 0
  %5876 = vmatpush2.bf16.msra.mxu0 0
  %5877 = vmatprep.subr.bf16.mxu0 0
  %5878 = vmatpush2.bf16.msra.mxu0 0
  %5879 = vmatprep.subr.bf16.mxu0 0
  %5880 = vmatpush2.bf16.msra.mxu0 0
  %5881 = vmatprep.mubr.bf16.mxu0 0
  %5882 = vmatmul.mubr.bf16.gmra.mxu0 %v5847
  %v5883 = vpop.f32.mrf.mxu0
  %v5884 = vadd.f32 0.0, %v5883
  %v5885 = vpop.f32.mrf.mxu0
  %v5886 = vpop.f32.mrf.mxu0
  %v5887 = vpop.f32.mrf.mxu0
  %5888 = vdwg.mxu0
  %v5889 = vadd.f32 %v5805, %v5884
  %s5890 = scalar_lea.vmem %s5722, 2 [#allocation3]
  %v5891 = vld [vmem:[%s5890] ss:$2 sm:$0x3]
  %s5892 = scalar_lea.vmem %s5722, 18 [#allocation3]
  %v5893 = vld [vmem:[%s5892] ss:$2 sm:$0x3]
  %s5894 = scalar_lea.vmem %s5722, 50 [#allocation3]
  %v5895 = vld [vmem:[%s5894] ss:$2 sm:$0x3]
  %s5896 = scalar_lea.vmem %s5722, 66 [#allocation3]
  %v5897 = vld [vmem:[%s5896] ss:$2 sm:$0x3]
  %v5902 = vcombine.low %v5891, %v5893
  %v5903 = vcombine.low %v5895, %v5897
  %v5905 = vunpack.c.l.s4 1983009808
  %v5906 = vunpack.c.0.s8 %v5905
  %v5907 = vlaneseq
  %v5908 = vshrl.u32 %v5907, 7
  %v5909 = vsub.s32 %v5906, %v5908
  %v5910 = vrot.slane %v5902, %v5909
  %v5912 = vunpack.c.l.s4 1983009808
  %v5913 = vunpack.c.0.s8 %v5912
  %v5914 = vlaneseq
  %v5915 = vshrl.u32 %v5914, 7
  %v5916 = vsub.s32 %v5913, %v5915
  %v5917 = vrot.slane %v5903, %v5916
  %v5918 = vcombine.low %v5910, %v5917
  %v5920 = vpack.c.bf16 %v5918, %v5918
  %s5921 = scalar_lea.vmem %s6, 112
  %v5922 = vld [vmem:[%s5921] sm:$0xf]
  %v5923 = vld [vmem:[%s5921 + $0x4] sm:$0xf]
  %v5926 = vunpack.c.l.b16 %v5922
  %v5927 = vunpack.c.l.b16 %v5923
  %v5928 = vpack.c.b16 %v5927, %v5926
  %v5931 = vsel %vm4609, %v5920, 0
  %5933 = vmatprep.subr.bf16.mxu0 0
  %5934 = vmatpush1.bf16.msra.mxu0 0
  %5935 = vmatprep.subr.bf16.mxu0 0
  %5936 = vmatpush1.bf16.msra.mxu0 0
  %5937 = vmatprep.subr.bf16.mxu0 0
  %5938 = vmatpush1.bf16.msra.mxu0 0
  %5939 = vmatprep.subr.bf16.mxu0 0
  %5940 = vmatpush1.bf16.msra.mxu0 0
  %5941 = vmatprep.subr.bf16.mxu0 0
  %5942 = vmatpush1.bf16.msra.mxu0 0
  %5943 = vmatprep.subr.bf16.mxu0 0
  %5944 = vmatpush1.bf16.msra.mxu0 0
  %5945 = vmatprep.subr.bf16.mxu0 0
  %5946 = vmatpush1.bf16.msra.mxu0 0
  %5947 = vmatprep.subr.bf16.mxu0 0
  %5948 = vmatpush1.bf16.msra.mxu0 %v5928
  %5949 = vmatprep.subr.bf16.mxu0 0
  %5950 = vmatpush2.bf16.msra.mxu0 0
  %5951 = vmatprep.subr.bf16.mxu0 0
  %5952 = vmatpush2.bf16.msra.mxu0 0
  %5953 = vmatprep.subr.bf16.mxu0 0
  %5954 = vmatpush2.bf16.msra.mxu0 0
  %5955 = vmatprep.subr.bf16.mxu0 0
  %5956 = vmatpush2.bf16.msra.mxu0 0
  %5957 = vmatprep.subr.bf16.mxu0 0
  %5958 = vmatpush2.bf16.msra.mxu0 0
  %5959 = vmatprep.subr.bf16.mxu0 0
  %5960 = vmatpush2.bf16.msra.mxu0 0
  %5961 = vmatprep.subr.bf16.mxu0 0
  %5962 = vmatpush2.bf16.msra.mxu0 0
  %5963 = vmatprep.subr.bf16.mxu0 0
  %5964 = vmatpush2.bf16.msra.mxu0 0
  %5965 = vmatprep.mubr.bf16.mxu0 0
  %5966 = vmatmul.mubr.bf16.gmra.mxu0 %v5931
  %v5967 = vpop.f32.mrf.mxu0
  %v5968 = vadd.f32 0.0, %v5967
  %v5969 = vpop.f32.mrf.mxu0
  %v5970 = vpop.f32.mrf.mxu0
  %v5971 = vpop.f32.mrf.mxu0
  %5972 = vdwg.mxu0
  %v5973 = vadd.f32 %v5889, %v5968
  %s5974 = scalar_lea.vmem %s5722, 3 [#allocation3]
  %v5975 = vld [vmem:[%s5974] ss:$2 sm:$0x3]
  %s5976 = scalar_lea.vmem %s5722, 19 [#allocation3]
  %v5977 = vld [vmem:[%s5976] ss:$2 sm:$0x3]
  %s5978 = scalar_lea.vmem %s5722, 51 [#allocation3]
  %v5979 = vld [vmem:[%s5978] ss:$2 sm:$0x3]
  %s5980 = scalar_lea.vmem %s5722, 67 [#allocation3]
  %v5981 = vld [vmem:[%s5980] ss:$2 sm:$0x3]
  %v5986 = vcombine.low %v5975, %v5977
  %v5987 = vcombine.low %v5979, %v5981
  %v5989 = vunpack.c.l.s4 1983009808
  %v5990 = vunpack.c.0.s8 %v5989
  %v5991 = vlaneseq
  %v5992 = vshrl.u32 %v5991, 7
  %v5993 = vsub.s32 %v5990, %v5992
  %v5994 = vrot.slane %v5986, %v5993
  %v5996 = vunpack.c.l.s4 1983009808
  %v5997 = vunpack.c.0.s8 %v5996
  %v5998 = vlaneseq
  %v5999 = vshrl.u32 %v5998, 7
  %v6000 = vsub.s32 %v5997, %v5999
  %v6001 = vrot.slane %v5987, %v6000
  %v6002 = vcombine.low %v5994, %v6001
  %v6004 = vpack.c.bf16 %v6002, %v6002
  %s6005 = scalar_lea.vmem %s6, 120
  %v6006 = vld [vmem:[%s6005] sm:$0xf]
  %v6007 = vld [vmem:[%s6005 + $0x4] sm:$0xf]
  %v6010 = vunpack.c.l.b16 %v6006
  %v6011 = vunpack.c.l.b16 %v6007
  %v6012 = vpack.c.b16 %v6011, %v6010
  %v6015 = vsel %vm4609, %v6004, 0
  %6017 = vmatprep.subr.bf16.mxu0 0
  %6018 = vmatpush1.bf16.msra.mxu0 0
  %6019 = vmatprep.subr.bf16.mxu0 0
  %6020 = vmatpush1.bf16.msra.mxu0 0
  %6021 = vmatprep.subr.bf16.mxu0 0
  %6022 = vmatpush1.bf16.msra.mxu0 0
  %6023 = vmatprep.subr.bf16.mxu0 0
  %6024 = vmatpush1.bf16.msra.mxu0 0
  %6025 = vmatprep.subr.bf16.mxu0 0
  %6026 = vmatpush1.bf16.msra.mxu0 0
  %6027 = vmatprep.subr.bf16.mxu0 0
  %6028 = vmatpush1.bf16.msra.mxu0 0
  %6029 = vmatprep.subr.bf16.mxu0 0
  %6030 = vmatpush1.bf16.msra.mxu0 0
  %6031 = vmatprep.subr.bf16.mxu0 0
  %6032 = vmatpush1.bf16.msra.mxu0 %v6012
  %6033 = vmatprep.subr.bf16.mxu0 0
  %6034 = vmatpush2.bf16.msra.mxu0 0
  %6035 = vmatprep.subr.bf16.mxu0 0
  %6036 = vmatpush2.bf16.msra.mxu0 0
  %6037 = vmatprep.subr.bf16.mxu0 0
  %6038 = vmatpush2.bf16.msra.mxu0 0
  %6039 = vmatprep.subr.bf16.mxu0 0
  %6040 = vmatpush2.bf16.msra.mxu0 0
  %6041 = vmatprep.subr.bf16.mxu0 0
  %6042 = vmatpush2.bf16.msra.mxu0 0
  %6043 = vmatprep.subr.bf16.mxu0 0
  %6044 = vmatpush2.bf16.msra.mxu0 0
  %6045 = vmatprep.subr.bf16.mxu0 0
  %6046 = vmatpush2.bf16.msra.mxu0 0
  %6047 = vmatprep.subr.bf16.mxu0 0
  %6048 = vmatpush2.bf16.msra.mxu0 0
  %6049 = vmatprep.mubr.bf16.mxu0 0
  %6050 = vmatmul.mubr.bf16.gmra.mxu0 %v6015
  %v6051 = vpop.f32.mrf.mxu0
  %v6052 = vadd.f32 0.0, %v6051
  %v6053 = vpop.f32.mrf.mxu0
  %v6054 = vpop.f32.mrf.mxu0
  %v6055 = vpop.f32.mrf.mxu0
  %6056 = vdwg.mxu0
  %v6057 = vadd.f32 %v5973, %v6052
  %vm6058 = vcmask 261120
  %v6059 = vsel %vm6058, %v6057, 0.0
  %v6060 = vrot.slane %v6059, 4
  %v6061 = vadd.f32 %v6059, %v6060
  %v6062 = vrot.slane %v6061, 2
  %v6063 = vadd.f32 %v6061, %v6062
  %v6064 = vrot.slane %v6063, 1
  %v6065 = vadd.f32 %v6063, %v6064
  %v6066 = vrcp.pop 8.0
  %v6067 = vmul.f32 %v6065, %v6066
  %v6068 = vmul.f32 %v6057, %v6057
  %v6069 = vsel %vm6058, %v6068, 0.0
  %v6070 = vrot.slane %v6069, 4
  %v6071 = vadd.f32 %v6069, %v6070
  %v6072 = vrot.slane %v6071, 2
  %v6073 = vadd.f32 %v6071, %v6072
  %v6074 = vrot.slane %v6073, 1
  %v6075 = vadd.f32 %v6073, %v6074
  %v6076 = vmul.f32 %v6075, %v6066
  %v6077 = vmul.f32 %v6067, %v6067
  %v6078 = vsub.f32 %v6076, %v6077
  %v6079 = vld [vmem:[%s7] sm:$0x1]
  %v6080 = vadd.f32 %v6078, 1e-05
  %v6081 = vrsqrt.pop %v6080
  %v6082 = vmul.f32 %v6079, %v6081
  %v6084 = vlaneseq
  %v6085 = vshrl.u32 %v6084, 7
  %v6086 = vsub.s32 0, %v6085
  %v6087 = vrot.slane %v6082, %v6086
  %v6089 = vmul.f32 %v6057, %v6087
  %v6090 = vld [vmem:[%s8] sm:$0x1]
  %v6091 = vmul.f32 %v6067, %v6082
  %v6092 = vsub.f32 %v6090, %v6091
  %v6094 = vlaneseq
  %v6095 = vshrl.u32 %v6094, 7
  %v6096 = vsub.s32 0, %v6095
  %v6097 = vrot.slane %v6092, %v6096
  %v6099 = vadd.f32 %v6089, %v6097
  %vm6100 = vcmp.ge.f32.partialorder %v6099, 0.0
  %v6101 = vmul.f32 %v6099, 0.2
  %v6102 = vsel %vm6100, %v6099, %v6101
  %vm6103 = vcmask 257024
  %6104 = vst.msk [vmem:[#allocation4] sm:$0xf] %vm6103, 0.0
  %6105 = vst.msk [vmem:[#allocation4 + $0x4] sm:$0xf] %vm6103, 0.0
  %6106 = vst.msk [vmem:[#allocation4 + $0x8] sm:$0xf] %vm6103, 0.0
  %6107 = vst.msk [vmem:[#allocation4 + $0xc] sm:$0xf] %vm6103, 0.0
  %6108 = vst.msk [vmem:[#allocation4 + $0x10] sm:$0xf] %vm6103, 0.0
  %6109 = vst.msk [vmem:[#allocation4 + $0x14] sm:$0xf] %vm6103, 0.0
  %6110 = vst.msk [vmem:[#allocation4 + $0x18] sm:$0xf] %vm6103, 0.0
  %6111 = vst.msk [vmem:[#allocation4 + $0x1c] sm:$0xf] %vm6103, 0.0
  %v6113 = vcombine.high %v6102, %v6102
  %v6115 = vunpack.c.l.s4 1983009808
  %v6116 = vunpack.c.0.s8 %v6115
  %v6117 = vlaneseq
  %v6118 = vshrl.u32 %v6117, 7
  %v6119 = vsub.s32 %v6116, %v6118
  %v6120 = vrot.slane %v6102, %v6119
  %v6122 = vunpack.c.l.s4 1983009808
  %v6123 = vunpack.c.0.s8 %v6122
  %v6124 = vlaneseq
  %v6125 = vshrl.u32 %v6124, 7
  %v6126 = vsub.s32 %v6123, %v6125
  %v6127 = vrot.slane %v6113, %v6126
  %v6128 = vcombine.high %v6120, %v6120
  %v6129 = vcombine.high %v6127, %v6127
  %s6134 = scalar_lea.vmem [#allocation4], 4
  %vm6135 = vcmask 254976
  %6136 = vst.msk [vmem:[%s6134 + $0x1] sm:$0x3] %vm6135, %v6120
  %6137 = vst.msk [vmem:[%s6134 + $0x5] sm:$0x3] %vm6135, %v6128
  %6138 = vst.msk [vmem:[%s6134 + $0x11] sm:$0x3] %vm6135, %v6127
  %6139 = vst.msk [vmem:[%s6134 + $0x15] sm:$0x3] %vm6135, %v6129
  %v6140 = vld [vmem:[#allocation4] sm:$0x3]
  %v6141 = vld [vmem:[#allocation4 + $0x4] sm:$0x3]
  %v6142 = vld [vmem:[#allocation4 + $0x10] sm:$0x3]
  %v6143 = vld [vmem:[#allocation4 + $0x14] sm:$0x3]
  %v6144 = vld [vmem:[%s9] sm:$0x1]
  %v6146 = vlaneseq
  %v6147 = vshrl.u32 %v6146, 7
  %v6148 = vsub.s32 0, %v6147
  %v6149 = vrot.slane %v6144, %v6148
  %v6150 = vcombine.high %v6149, %v6149
  %v6152 = vunpack.c.l.s4 1983009808
  %v6153 = vunpack.c.0.s8 %v6152
  %v6154 = vlaneseq
  %v6155 = vshrl.u32 %v6154, 7
  %v6156 = vsub.s32 %v6153, %v6155
  %v6157 = vrot.slane %v6149, %v6156
  %v6159 = vunpack.c.l.s4 1983009808
  %v6160 = vunpack.c.0.s8 %v6159
  %v6161 = vlaneseq
  %v6162 = vshrl.u32 %v6161, 7
  %v6163 = vsub.s32 %v6160, %v6162
  %v6164 = vrot.slane %v6150, %v6163
  %v6165 = vcombine.high %v6157, %v6157
  %v6166 = vcombine.high %v6164, %v6164
  %v6171 = vmul.f32 %v6140, %v6157
  %v6172 = vmul.f32 %v6141, %v6165
  %v6173 = vmul.f32 %v6142, %v6164
  %v6174 = vmul.f32 %v6143, %v6166
  %v6175 = vadd.f32 %v6171, 0.0
  %v6176 = vadd.f32 %v6172, 0.0
  %v6177 = vadd.f32 %v6173, 0.0
  %v6178 = vadd.f32 %v6174, 0.0
  %v6179 = vld [vmem:[#allocation4 + $0x1] sm:$0x3]
  %v6180 = vld [vmem:[#allocation4 + $0x5] sm:$0x3]
  %v6181 = vld [vmem:[#allocation4 + $0x11] sm:$0x3]
  %v6182 = vld [vmem:[#allocation4 + $0x15] sm:$0x3]
  %s6183 = scalar_lea.vmem %s9, 1
  %v6184 = vld [vmem:[%s6183] sm:$0x1]
  %v6186 = vlaneseq
  %v6187 = vshrl.u32 %v6186, 7
  %v6188 = vsub.s32 0, %v6187
  %v6189 = vrot.slane %v6184, %v6188
  %v6190 = vcombine.high %v6189, %v6189
  %v6192 = vunpack.c.l.s4 1983009808
  %v6193 = vunpack.c.0.s8 %v6192
  %v6194 = vlaneseq
  %v6195 = vshrl.u32 %v6194, 7
  %v6196 = vsub.s32 %v6193, %v6195
  %v6197 = vrot.slane %v6189, %v6196
  %v6199 = vunpack.c.l.s4 1983009808
  %v6200 = vunpack.c.0.s8 %v6199
  %v6201 = vlaneseq
  %v6202 = vshrl.u32 %v6201, 7
  %v6203 = vsub.s32 %v6200, %v6202
  %v6204 = vrot.slane %v6190, %v6203
  %v6205 = vcombine.high %v6197, %v6197
  %v6206 = vcombine.high %v6204, %v6204
  %v6211 = vmul.f32 %v6179, %v6197
  %v6212 = vmul.f32 %v6180, %v6205
  %v6213 = vmul.f32 %v6181, %v6204
  %v6214 = vmul.f32 %v6182, %v6206
  %v6215 = vadd.f32 %v6175, %v6211
  %v6216 = vadd.f32 %v6176, %v6212
  %v6217 = vadd.f32 %v6177, %v6213
  %v6218 = vadd.f32 %v6178, %v6214
  %v6219 = vld [vmem:[#allocation4 + $0x2] sm:$0x3]
  %v6220 = vld [vmem:[#allocation4 + $0x6] sm:$0x3]
  %v6221 = vld [vmem:[#allocation4 + $0x12] sm:$0x3]
  %v6222 = vld [vmem:[#allocation4 + $0x16] sm:$0x3]
  %s6223 = scalar_lea.vmem %s9, 2
  %v6224 = vld [vmem:[%s6223] sm:$0x1]
  %v6226 = vlaneseq
  %v6227 = vshrl.u32 %v6226, 7
  %v6228 = vsub.s32 0, %v6227
  %v6229 = vrot.slane %v6224, %v6228
  %v6230 = vcombine.high %v6229, %v6229
  %v6232 = vunpack.c.l.s4 1983009808
  %v6233 = vunpack.c.0.s8 %v6232
  %v6234 = vlaneseq
  %v6235 = vshrl.u32 %v6234, 7
  %v6236 = vsub.s32 %v6233, %v6235
  %v6237 = vrot.slane %v6229, %v6236
  %v6239 = vunpack.c.l.s4 1983009808
  %v6240 = vunpack.c.0.s8 %v6239
  %v6241 = vlaneseq
  %v6242 = vshrl.u32 %v6241, 7
  %v6243 = vsub.s32 %v6240, %v6242
  %v6244 = vrot.slane %v6230, %v6243
  %v6245 = vcombine.high %v6237, %v6237
  %v6246 = vcombine.high %v6244, %v6244
  %v6251 = vmul.f32 %v6219, %v6237
  %v6252 = vmul.f32 %v6220, %v6245
  %v6253 = vmul.f32 %v6221, %v6244
  %v6254 = vmul.f32 %v6222, %v6246
  %v6255 = vadd.f32 %v6215, %v6251
  %v6256 = vadd.f32 %v6216, %v6252
  %v6257 = vadd.f32 %v6217, %v6253
  %v6258 = vadd.f32 %v6218, %v6254
  %v6259 = vld [vmem:[%s6134] sm:$0x3]
  %v6260 = vld [vmem:[%s6134 + $0x4] sm:$0x3]
  %v6261 = vld [vmem:[%s6134 + $0x10] sm:$0x3]
  %v6262 = vld [vmem:[%s6134 + $0x14] sm:$0x3]
  %s6263 = scalar_lea.vmem %s9, 3
  %v6264 = vld [vmem:[%s6263] sm:$0x1]
  %v6266 = vlaneseq
  %v6267 = vshrl.u32 %v6266, 7
  %v6268 = vsub.s32 0, %v6267
  %v6269 = vrot.slane %v6264, %v6268
  %v6270 = vcombine.high %v6269, %v6269
  %v6272 = vunpack.c.l.s4 1983009808
  %v6273 = vunpack.c.0.s8 %v6272
  %v6274 = vlaneseq
  %v6275 = vshrl.u32 %v6274, 7
  %v6276 = vsub.s32 %v6273, %v6275
  %v6277 = vrot.slane %v6269, %v6276
  %v6279 = vunpack.c.l.s4 1983009808
  %v6280 = vunpack.c.0.s8 %v6279
  %v6281 = vlaneseq
  %v6282 = vshrl.u32 %v6281, 7
  %v6283 = vsub.s32 %v6280, %v6282
  %v6284 = vrot.slane %v6270, %v6283
  %v6285 = vcombine.high %v6277, %v6277
  %v6286 = vcombine.high %v6284, %v6284
  %v6291 = vmul.f32 %v6259, %v6277
  %v6292 = vmul.f32 %v6260, %v6285
  %v6293 = vmul.f32 %v6261, %v6284
  %v6294 = vmul.f32 %v6262, %v6286
  %v6295 = vadd.f32 %v6255, %v6291
  %v6296 = vadd.f32 %v6256, %v6292
  %v6297 = vadd.f32 %v6257, %v6293
  %v6298 = vadd.f32 %v6258, %v6294
  %v6299 = vld [vmem:[%s6134 + $0x1] sm:$0x3]
  %v6300 = vld [vmem:[%s6134 + $0x5] sm:$0x3]
  %v6301 = vld [vmem:[%s6134 + $0x11] sm:$0x3]
  %v6302 = vld [vmem:[%s6134 + $0x15] sm:$0x3]
  %s6303 = scalar_lea.vmem %s9, 4
  %v6304 = vld [vmem:[%s6303] sm:$0x1]
  %v6306 = vlaneseq
  %v6307 = vshrl.u32 %v6306, 7
  %v6308 = vsub.s32 0, %v6307
  %v6309 = vrot.slane %v6304, %v6308
  %v6310 = vcombine.high %v6309, %v6309
  %v6312 = vunpack.c.l.s4 1983009808
  %v6313 = vunpack.c.0.s8 %v6312
  %v6314 = vlaneseq
  %v6315 = vshrl.u32 %v6314, 7
  %v6316 = vsub.s32 %v6313, %v6315
  %v6317 = vrot.slane %v6309, %v6316
  %v6319 = vunpack.c.l.s4 1983009808
  %v6320 = vunpack.c.0.s8 %v6319
  %v6321 = vlaneseq
  %v6322 = vshrl.u32 %v6321, 7
  %v6323 = vsub.s32 %v6320, %v6322
  %v6324 = vrot.slane %v6310, %v6323
  %v6325 = vcombine.high %v6317, %v6317
  %v6326 = vcombine.high %v6324, %v6324
  %v6331 = vmul.f32 %v6299, %v6317
  %v6332 = vmul.f32 %v6300, %v6325
  %v6333 = vmul.f32 %v6301, %v6324
  %v6334 = vmul.f32 %v6302, %v6326
  %v6335 = vadd.f32 %v6295, %v6331
  %v6336 = vadd.f32 %v6296, %v6332
  %v6337 = vadd.f32 %v6297, %v6333
  %v6338 = vadd.f32 %v6298, %v6334
  %v6339 = vld [vmem:[%s6134 + $0x2] sm:$0x3]
  %v6340 = vld [vmem:[%s6134 + $0x6] sm:$0x3]
  %v6341 = vld [vmem:[%s6134 + $0x12] sm:$0x3]
  %v6342 = vld [vmem:[%s6134 + $0x16] sm:$0x3]
  %s6343 = scalar_lea.vmem %s9, 5
  %v6344 = vld [vmem:[%s6343] sm:$0x1]
  %v6346 = vlaneseq
  %v6347 = vshrl.u32 %v6346, 7
  %v6348 = vsub.s32 0, %v6347
  %v6349 = vrot.slane %v6344, %v6348
  %v6350 = vcombine.high %v6349, %v6349
  %v6352 = vunpack.c.l.s4 1983009808
  %v6353 = vunpack.c.0.s8 %v6352
  %v6354 = vlaneseq
  %v6355 = vshrl.u32 %v6354, 7
  %v6356 = vsub.s32 %v6353, %v6355
  %v6357 = vrot.slane %v6349, %v6356
  %v6359 = vunpack.c.l.s4 1983009808
  %v6360 = vunpack.c.0.s8 %v6359
  %v6361 = vlaneseq
  %v6362 = vshrl.u32 %v6361, 7
  %v6363 = vsub.s32 %v6360, %v6362
  %v6364 = vrot.slane %v6350, %v6363
  %v6365 = vcombine.high %v6357, %v6357
  %v6366 = vcombine.high %v6364, %v6364
  %v6371 = vmul.f32 %v6339, %v6357
  %v6372 = vmul.f32 %v6340, %v6365
  %v6373 = vmul.f32 %v6341, %v6364
  %v6374 = vmul.f32 %v6342, %v6366
  %v6375 = vadd.f32 %v6335, %v6371
  %v6376 = vadd.f32 %v6336, %v6372
  %v6377 = vadd.f32 %v6337, %v6373
  %v6378 = vadd.f32 %v6338, %v6374
  %s6379 = scalar_lea.vmem [#allocation4], 8
  %v6380 = vld [vmem:[%s6379] sm:$0x3]
  %v6381 = vld [vmem:[%s6379 + $0x4] sm:$0x3]
  %v6382 = vld [vmem:[%s6379 + $0x10] sm:$0x3]
  %v6383 = vld [vmem:[%s6379 + $0x14] sm:$0x3]
  %s6384 = scalar_lea.vmem %s9, 6
  %v6385 = vld [vmem:[%s6384] sm:$0x1]
  %v6387 = vlaneseq
  %v6388 = vshrl.u32 %v6387, 7
  %v6389 = vsub.s32 0, %v6388
  %v6390 = vrot.slane %v6385, %v6389
  %v6391 = vcombine.high %v6390, %v6390
  %v6393 = vunpack.c.l.s4 1983009808
  %v6394 = vunpack.c.0.s8 %v6393
  %v6395 = vlaneseq
  %v6396 = vshrl.u32 %v6395, 7
  %v6397 = vsub.s32 %v6394, %v6396
  %v6398 = vrot.slane %v6390, %v6397
  %v6400 = vunpack.c.l.s4 1983009808
  %v6401 = vunpack.c.0.s8 %v6400
  %v6402 = vlaneseq
  %v6403 = vshrl.u32 %v6402, 7
  %v6404 = vsub.s32 %v6401, %v6403
  %v6405 = vrot.slane %v6391, %v6404
  %v6406 = vcombine.high %v6398, %v6398
  %v6407 = vcombine.high %v6405, %v6405
  %v6412 = vmul.f32 %v6380, %v6398
  %v6413 = vmul.f32 %v6381, %v6406
  %v6414 = vmul.f32 %v6382, %v6405
  %v6415 = vmul.f32 %v6383, %v6407
  %v6416 = vadd.f32 %v6375, %v6412
  %v6417 = vadd.f32 %v6376, %v6413
  %v6418 = vadd.f32 %v6377, %v6414
  %v6419 = vadd.f32 %v6378, %v6415
  %v6420 = vld [vmem:[%s6379 + $0x1] sm:$0x3]
  %v6421 = vld [vmem:[%s6379 + $0x5] sm:$0x3]
  %v6422 = vld [vmem:[%s6379 + $0x11] sm:$0x3]
  %v6423 = vld [vmem:[%s6379 + $0x15] sm:$0x3]
  %s6424 = scalar_lea.vmem %s9, 7
  %v6425 = vld [vmem:[%s6424] sm:$0x1]
  %v6427 = vlaneseq
  %v6428 = vshrl.u32 %v6427, 7
  %v6429 = vsub.s32 0, %v6428
  %v6430 = vrot.slane %v6425, %v6429
  %v6431 = vcombine.high %v6430, %v6430
  %v6433 = vunpack.c.l.s4 1983009808
  %v6434 = vunpack.c.0.s8 %v6433
  %v6435 = vlaneseq
  %v6436 = vshrl.u32 %v6435, 7
  %v6437 = vsub.s32 %v6434, %v6436
  %v6438 = vrot.slane %v6430, %v6437
  %v6440 = vunpack.c.l.s4 1983009808
  %v6441 = vunpack.c.0.s8 %v6440
  %v6442 = vlaneseq
  %v6443 = vshrl.u32 %v6442, 7
  %v6444 = vsub.s32 %v6441, %v6443
  %v6445 = vrot.slane %v6431, %v6444
  %v6446 = vcombine.high %v6438, %v6438
  %v6447 = vcombine.high %v6445, %v6445
  %v6452 = vmul.f32 %v6420, %v6438
  %v6453 = vmul.f32 %v6421, %v6446
  %v6454 = vmul.f32 %v6422, %v6445
  %v6455 = vmul.f32 %v6423, %v6447
  %v6456 = vadd.f32 %v6416, %v6452
  %v6457 = vadd.f32 %v6417, %v6453
  %v6458 = vadd.f32 %v6418, %v6454
  %v6459 = vadd.f32 %v6419, %v6455
  %v6460 = vld [vmem:[%s6379 + $0x2] sm:$0x3]
  %v6461 = vld [vmem:[%s6379 + $0x6] sm:$0x3]
  %v6462 = vld [vmem:[%s6379 + $0x12] sm:$0x3]
  %v6463 = vld [vmem:[%s6379 + $0x16] sm:$0x3]
  %s6464 = scalar_lea.vmem %s9, 8
  %v6465 = vld [vmem:[%s6464] sm:$0x1]
  %v6467 = vlaneseq
  %v6468 = vshrl.u32 %v6467, 7
  %v6469 = vsub.s32 0, %v6468
  %v6470 = vrot.slane %v6465, %v6469
  %v6471 = vcombine.high %v6470, %v6470
  %v6473 = vunpack.c.l.s4 1983009808
  %v6474 = vunpack.c.0.s8 %v6473
  %v6475 = vlaneseq
  %v6476 = vshrl.u32 %v6475, 7
  %v6477 = vsub.s32 %v6474, %v6476
  %v6478 = vrot.slane %v6470, %v6477
  %v6480 = vunpack.c.l.s4 1983009808
  %v6481 = vunpack.c.0.s8 %v6480
  %v6482 = vlaneseq
  %v6483 = vshrl.u32 %v6482, 7
  %v6484 = vsub.s32 %v6481, %v6483
  %v6485 = vrot.slane %v6471, %v6484
  %v6486 = vcombine.high %v6478, %v6478
  %v6487 = vcombine.high %v6485, %v6485
  %v6492 = vmul.f32 %v6460, %v6478
  %v6493 = vmul.f32 %v6461, %v6486
  %v6494 = vmul.f32 %v6462, %v6485
  %v6495 = vmul.f32 %v6463, %v6487
  %v6496 = vadd.f32 %v6456, %v6492
  %v6497 = vadd.f32 %v6457, %v6493
  %v6498 = vadd.f32 %v6458, %v6494
  %v6499 = vadd.f32 %v6459, %v6495
  %v6504 = vcombine.low %v6496, %v6497
  %v6505 = vcombine.low %v6498, %v6499
  %v6507 = vunpack.c.l.s4 1983009808
  %v6508 = vunpack.c.0.s8 %v6507
  %v6509 = vlaneseq
  %v6510 = vshrl.u32 %v6509, 7
  %v6511 = vsub.s32 %v6508, %v6510
  %v6512 = vrot.slane %v6504, %v6511
  %v6514 = vunpack.c.l.s4 1983009808
  %v6515 = vunpack.c.0.s8 %v6514
  %v6516 = vlaneseq
  %v6517 = vshrl.u32 %v6516, 7
  %v6518 = vsub.s32 %v6515, %v6517
  %v6519 = vrot.slane %v6505, %v6518
  %v6520 = vcombine.low %v6512, %v6519
  %v6522 = vsel %vm6058, %v6520, 0.0
  %6523 = vadd.xlane.f32.xlu0 %v6522
  %v6524 = vpop.xlane.xlu0 %6523
  %v6525 = vld [vmem:[#allocation5] sm:$0x1]
  %v6527 = vlaneseq
  %v6528 = vshrl.u32 %v6527, 7
  %v6529 = vsub.s32 0, %v6528
  %v6530 = vrot.slane %v6525, %v6529
  %v6532 = vadd.f32 %v6524, %v6530
  %vm6533 = vcmask 7168
  %6534 = vst.msk [vmem:[%s11] sm:$0xff] %vm6533, %v6532
  // Predicated region
  $region46: #{discriminator_forward.1} parent=0 // pred_check
    _
  $region47: #{discriminator_forward.1} parent=0 // pred_check_branch
    %6536 = sbr.rel (0) target = $region49
  $region48: #{discriminator_forward.1} parent=0 // pred_region
    _
  $region49: #{discriminator_forward.1} parent=0 // pred_fallthru
    _
  // Predicated region
  $region50: #{discriminator_forward.1} parent=0 // pred_check
    _
  $region51: #{discriminator_forward.1} parent=0 // pred_check_branch
    %6538 = sbr.rel (0) target = $region53
  $region52: #{discriminator_forward.1} parent=0 // pred_region
    _
  $region53: #{discriminator_forward.1} parent=0 // pred_fallthru
    _

</llo_original>
